<compile_context>
chip_gen: v6e
topology: v6e:2x2x1
jax: 0.10.0
libtpu: 0.0.40
codegen_flags: <defaults>
</compile_context>

<pallas_src>
import functools
import math

import jax
import jax.numpy as jnp
from jax.experimental import pallas as pl
from jax.experimental.pallas import tpu as pltpu


# ---------------------------------------------------------------------------
# Helpers
# ---------------------------------------------------------------------------

def _pick_tm(M):
    """Largest tile in {512,256,128} dividing M that still yields >=2 grid steps
    (so the grid can shard across both TensorCores on v7x)."""
    divs = [t for t in (512, 256, 128) if M % t == 0]
    for t in divs:
        if M // t >= 2:
            return t
    if divs:
        return divs[0]
    return M          # full-extent block (exempt from (8,128) divisibility)


# ---------------------------------------------------------------------------
# Generic fused matmul kernel: o = act(x @ w + b)   (Conv1x1 + BN [+ SiLU])
# ---------------------------------------------------------------------------

def _mm_bias_act_kernel(x_ref, w_ref, b_ref, o_ref, *, act):
    y = jnp.dot(x_ref[...], w_ref[...], preferred_element_type=jnp.float32)
    y = y + b_ref[...]
    if act:
        y = y * jax.nn.sigmoid(y)          # SiLU
    o_ref[...] = y.astype(o_ref.dtype)


def matmul_bias_act(x, w, b, *, act=False, out_dtype=jnp.float32):
    M, K = x.shape
    N = w.shape[1]
    tm = _pick_tm(M)
    return pl.pallas_call(
        functools.partial(_mm_bias_act_kernel, act=act),
        out_shape=jax.ShapeDtypeStruct((M, N), out_dtype),
        grid_spec=pltpu.PrefetchScalarGridSpec(
            num_scalar_prefetch=0,
            grid=(M // tm,),
            in_specs=[pl.BlockSpec((tm, K), lambda i: (i, 0)),
                      pl.BlockSpec((K, N), lambda i: (0, 0)),
                      pl.BlockSpec((1, N), lambda i: (0, 0))],
            out_specs=pl.BlockSpec((tm, N), lambda i: (i, 0)),
        ),
        compiler_params=pltpu.CompilerParams(dimension_semantics=("parallel",)),
    )(x, w, b.reshape(1, N))


# ---------------------------------------------------------------------------
# Depthwise 3x3 conv (positional encoding) — VPU 9-tap shifted MAC, no MXU
# ---------------------------------------------------------------------------

def _pe_dwconv_kernel(vpad_ref, w_ref, b_ref, o_ref, *, H, W):
    C = vpad_ref.shape[-1]
    acc = jnp.zeros((H, W, C), jnp.float32)
    for dy in range(3):
        for dx in range(3):
            tap = vpad_ref[0, dy:dy + H, dx:dx + W, :].astype(jnp.float32)
            wt = w_ref[3 * dy + dx:3 * dy + dx + 1, :].reshape(1, 1, C)
            acc = acc + tap * wt
    o_ref[0] = (acc + b_ref[...].reshape(1, 1, C)).astype(o_ref.dtype)


def pe_dwconv(v_pad, w9, b, *, out_dtype=jnp.bfloat16):
    B, Hp, Wp, C = v_pad.shape
    H, W = Hp - 2, Wp - 2
    return pl.pallas_call(
        functools.partial(_pe_dwconv_kernel, H=H, W=W),
        out_shape=jax.ShapeDtypeStruct((B, H, W, C), out_dtype),
        grid_spec=pltpu.PrefetchScalarGridSpec(
            num_scalar_prefetch=0,
            grid=(B,),
            in_specs=[pl.BlockSpec((1, Hp, Wp, C), lambda b: (b, 0, 0, 0)),
                      pl.BlockSpec((9, C), lambda b: (0, 0)),
                      pl.BlockSpec((1, C), lambda b: (0, 0))],
            out_specs=pl.BlockSpec((1, H, W, C), lambda b: (b, 0, 0, 0)),
        ),
        compiler_params=pltpu.CompilerParams(dimension_semantics=("parallel",)),
    )(v_pad, w9, b.reshape(1, C))


# ---------------------------------------------------------------------------
# Fused: multi-head attention + proj conv + pe-proj + residual  (per batch)
#   x1 = x + (att @ Wp) + (pe @ Wp) + bp
# ---------------------------------------------------------------------------

def _attn_proj_res_kernel(qkv_ref, pe_ref, x_ref, wp_ref, b_ref, o_ref, *,
                          num_heads, key_dim, head_dim, scale, shortcut):
    N = qkv_ref.shape[1]
    per = 2 * key_dim + head_dim

    # pe branch projected + bias (and residual).
    acc = jnp.dot(pe_ref[0], wp_ref[...],
                  preferred_element_type=jnp.float32) + b_ref[...]
    if shortcut:
        acc = acc + x_ref[0]

    # per-head softmax attention with the proj matmul folded per head:
    #   concat_h(o_h) @ Wp == sum_h o_h @ Wp_h
    # which keeps every store lane-dense (N, C) instead of (N, head_dim).
    for hh in range(num_heads):
        base = hh * per
        q = qkv_ref[0, :, base:base + key_dim]                   # (N, kd) bf16
        k = qkv_ref[0, :, base + key_dim:base + 2 * key_dim]     # (N, kd) bf16
        v = qkv_ref[0, :, base + 2 * key_dim:base + per]         # (N, hd) bf16
        # scores[i, j] = sum_d q[i, d] * k[j, d]   (== q^T k in the PyTorch layout)
        s = jax.lax.dot_general(q, k, (((1,), (1,)), ((), ())),
                                preferred_element_type=jnp.float32) * scale
        s = s - jnp.max(s, axis=-1, keepdims=True)
        p = jnp.exp(s)
        inv = pl.reciprocal(jnp.sum(p, axis=-1, keepdims=True), approx=True)
        p = p * inv
        o_h = jnp.dot(p.astype(jnp.bfloat16), v,
                      preferred_element_type=jnp.float32)
        acc = acc + jnp.dot(o_h.astype(jnp.bfloat16),
                            wp_ref[hh * head_dim:(hh + 1) * head_dim, :],
                            preferred_element_type=jnp.float32)

    o_ref[0] = acc.astype(o_ref.dtype)


def attn_proj_residual(qkv3, pe3, x3, wp, bp, *, num_heads, key_dim, head_dim,
                       shortcut=True):
    B, N, h = qkv3.shape
    C = num_heads * head_dim
    return pl.pallas_call(
        functools.partial(_attn_proj_res_kernel, num_heads=num_heads,
                          key_dim=key_dim, head_dim=head_dim,
                          scale=float(key_dim) ** -0.5, shortcut=shortcut),
        out_shape=jax.ShapeDtypeStruct((B, N, C), jnp.float32),
        grid_spec=pltpu.PrefetchScalarGridSpec(
            num_scalar_prefetch=0,
            grid=(B,),
            in_specs=[pl.BlockSpec((1, N, h), lambda b: (b, 0, 0)),
                      pl.BlockSpec((1, N, C), lambda b: (b, 0, 0)),
                      pl.BlockSpec((1, N, C), lambda b: (b, 0, 0)),
                      pl.BlockSpec((C, C), lambda b: (0, 0)),
                      pl.BlockSpec((1, C), lambda b: (0, 0))],
            out_specs=pl.BlockSpec((1, N, C), lambda b: (b, 0, 0)),
        ),
        compiler_params=pltpu.CompilerParams(dimension_semantics=("parallel",)),
    )(qkv3, pe3, x3, wp, bp.reshape(1, C))


# ---------------------------------------------------------------------------
# FFN: x + Conv1x1(2c->c)( SiLU( Conv1x1(c->2c)(x) ) )   — both convs fused
# ---------------------------------------------------------------------------

def _ffn_kernel(x_ref, w1_ref, b1_ref, w2_ref, b2_ref, o_ref, *, shortcut):
    x = x_ref[...]
    h = jnp.dot(x.astype(jnp.bfloat16), w1_ref[...],
                preferred_element_type=jnp.float32) + b1_ref[...]
    h = h * jax.nn.sigmoid(h)                      # SiLU
    y = jnp.dot(h.astype(jnp.bfloat16), w2_ref[...],
                preferred_element_type=jnp.float32) + b2_ref[...]
    if shortcut:
        y = y + x
    o_ref[...] = y.astype(o_ref.dtype)


def ffn_block(x, w1, b1, w2, b2, *, shortcut=True):
    M, C = x.shape
    Ch = w1.shape[1]
    tm = _pick_tm(M)
    return pl.pallas_call(
        functools.partial(_ffn_kernel, shortcut=shortcut),
        out_shape=jax.ShapeDtypeStruct((M, C), jnp.float32),
        grid_spec=pltpu.PrefetchScalarGridSpec(
            num_scalar_prefetch=0,
            grid=(M // tm,),
            in_specs=[pl.BlockSpec((tm, C), lambda i: (i, 0)),
                      pl.BlockSpec((C, Ch), lambda i: (0, 0)),
                      pl.BlockSpec((1, Ch), lambda i: (0, 0)),
                      pl.BlockSpec((Ch, C), lambda i: (0, 0)),
                      pl.BlockSpec((1, C), lambda i: (0, 0))],
            out_specs=pl.BlockSpec((tm, C), lambda i: (i, 0)),
        ),
        compiler_params=pltpu.CompilerParams(dimension_semantics=("parallel",)),
    )(x, w1, b1.reshape(1, Ch), w2, b2.reshape(1, C))


# ---------------------------------------------------------------------------
# Parameter init (PyTorch-like Conv2d uniform init, BatchNorm eval defaults folded)
# ---------------------------------------------------------------------------

class KeyGen:
    def __init__(self, seed=0):
        self._key = jax.random.PRNGKey(seed)

    def __call__(self):
        self._key, sub = jax.random.split(self._key)
        return sub


_BN_EPS = 1e-5


def _bn_fold(cout):
    gamma = jnp.ones((cout,), jnp.float32)
    beta = jnp.zeros((cout,), jnp.float32)
    mean = jnp.zeros((cout,), jnp.float32)
    var = jnp.ones((cout,), jnp.float32)
    scale = gamma / jnp.sqrt(var + _BN_EPS)
    bias = beta - mean * scale
    return scale, bias


def conv1x1_bn_params(kg, cin, cout):
    bound = 1.0 / math.sqrt(cin)
    w = jax.random.uniform(kg(), (cout, cin), jnp.float32, -bound, bound)
    scale, bias = _bn_fold(cout)
    wm = (w.T * scale[None, :]).astype(jnp.bfloat16)        # (cin, cout), BN folded
    return wm, bias


def dwconv3x3_bn_params(kg, c):
    bound = 1.0 / math.sqrt(9.0)
    w = jax.random.uniform(kg(), (c, 1, 3, 3), jnp.float32, -bound, bound)
    scale, bias = _bn_fold(c)
    w9 = jnp.transpose(w[:, 0], (1, 2, 0)).reshape(9, c) * scale[None, :]   # [tap, ch]
    return w9.astype(jnp.float32), bias


def init_psablock(kg, c, num_heads, attn_ratio=0.5):
    head_dim = c // num_heads
    key_dim = int(head_dim * attn_ratio)
    h = c + 2 * key_dim * num_heads
    qkv_w, qkv_b = conv1x1_bn_params(kg, c, h)
    proj_w, proj_b = conv1x1_bn_params(kg, c, c)
    pe_w, pe_b = dwconv3x3_bn_params(kg, c)
    ffn1_w, ffn1_b = conv1x1_bn_params(kg, c, 2 * c)
    ffn2_w, ffn2_b = conv1x1_bn_params(kg, 2 * c, c)
    return dict(qkv_w=qkv_w, qkv_b=qkv_b, proj_w=proj_w, proj_b=proj_b,
                pe_w=pe_w, pe_b=pe_b, ffn1_w=ffn1_w, ffn1_b=ffn1_b,
                ffn2_w=ffn2_w, ffn2_b=ffn2_b)


# ---------------------------------------------------------------------------
# PSABlock forward (eval mode, shortcut=True as in the module default)
# ---------------------------------------------------------------------------

def psablock_forward(params, x_nchw, *, num_heads, attn_ratio=0.5, shortcut=True):
    B, C, H, W = x_nchw.shape
    N = H * W
    M = B * N
    head_dim = C // num_heads
    key_dim = int(head_dim * attn_ratio)
    per = 2 * key_dim + head_dim

    x_flat = jnp.transpose(x_nchw, (0, 2, 3, 1)).reshape(M, C)      # NHWC rows, f32
    x_bf = x_flat.astype(jnp.bfloat16)

    # ---- Attention branch ----
    # 1) qkv = Conv1x1+BN (fused matmul), lane-dense (M, h) bf16
    qkv = matmul_bias_act(x_bf, params['qkv_w'], params['qkv_b'],
                          act=False, out_dtype=jnp.bfloat16)
    qkv3 = qkv.reshape(B, N, -1)

    # v channels (concat of per-head value slices) as an NHWC image with 1-px halo
    v = jnp.concatenate(
        [qkv3[..., i * per + 2 * key_dim:(i + 1) * per] for i in range(num_heads)],
        axis=-1)                                                    # (B, N, C) bf16
    v_pad = jnp.pad(v.reshape(B, H, W, C), ((0, 0), (1, 1), (1, 1), (0, 0)))

    # 2) pe = DWConv3x3 + BN (VPU only), bf16
    pe = pe_dwconv(v_pad, params['pe_w'], params['pe_b'])           # (B, H, W, C)

    # 3) x1 = x + proj(att + pe) == x + att@Wp + pe@Wp + bp, fused per batch
    x1 = attn_proj_residual(qkv3, pe.reshape(B, N, C), x_flat.reshape(B, N, C),
                            params['proj_w'], params['proj_b'],
                            num_heads=num_heads, key_dim=key_dim,
                            head_dim=head_dim, shortcut=shortcut)   # (B, N, C) f32

    # ---- FFN branch (both 1x1 convs + SiLU + residual fused) ----
    out_flat = ffn_block(x1.reshape(M, C), params['ffn1_w'], params['ffn1_b'],
                         params['ffn2_w'], params['ffn2_b'], shortcut=shortcut)

    return out_flat.reshape(B, H, W, C).transpose(0, 3, 1, 2)       # back to NCHW


# ---------------------------------------------------------------------------
# Driver
# ---------------------------------------------------------------------------

if __name__ == "__main__":
    # PSABlock(c=128, attn_ratio=0.5, num_heads=4, shortcut=True), small spatial size.
    B, C, H, W = 2, 128, 16, 16
    num_heads = 4

    kg = KeyGen(0)
    params = init_psablock(kg, C, num_heads)

    x = jax.random.normal(jax.random.PRNGKey(0), (B, C, H, W), jnp.float32)

    fwd = jax.jit(functools.partial(psablock_forward, num_heads=num_heads))
    y = fwd(params, x)
    jax.block_until_ready(y)

    assert y.shape == (B, C, H, W)
    assert bool(jnp.all(jnp.isfinite(y)))
    print("KERNEL_OK")
</pallas_src>

<mosaic_0001>
module attributes {stable_mosaic.version = 11 : i64} {
  func.func @_mm_bias_act_kernel(%arg0: i32, %arg1: memref<256x128xbf16, #tpu.memory_space<vmem>>, %arg2: memref<128x256xbf16, #tpu.memory_space<vmem>>, %arg3: memref<1x256xf32, #tpu.memory_space<vmem>>, %arg4: memref<256x256xbf16, #tpu.memory_space<vmem>>) attributes {dimension_semantics = [#tpu.dimension_semantics<parallel>], iteration_bounds = array<i64: 2>, scalar_prefetch = 0 : i64, scratch_operands = 0 : i64, tpu.core_type = #tpu.core_type<tc>, window_params = [{transform_indices = @transform_0, window_bounds = array<i64: 256, 128>}, {pipeline_mode = #tpu.pipeline_mode<synchronous>, transform_indices = @transform_1, window_bounds = array<i64: 128, 256>}, {pipeline_mode = #tpu.pipeline_mode<synchronous>, transform_indices = @transform_2, window_bounds = array<i64: 1, 256>}, {transform_indices = @transform_3, window_bounds = array<i64: 256, 256>}]} {
    %c0 = arith.constant 0 : index
    %c0_0 = arith.constant 0 : index
    %0 = vector.load %arg1[%c0, %c0_0] : memref<256x128xbf16, #tpu.memory_space<vmem>>, vector<256x128xbf16>
    %c0_1 = arith.constant 0 : index
    %c0_2 = arith.constant 0 : index
    %1 = vector.load %arg2[%c0_1, %c0_2] : memref<128x256xbf16, #tpu.memory_space<vmem>>, vector<128x256xbf16>
    %cst = arith.constant dense<0.000000e+00> : vector<256x256xf32>
    %2 = tpu.matmul %0, %1, %cst {dimension_numbers = #tpu.dot_dimension_numbers<[1], [0], [0], [1], [0, 0, 1, 1], [], []>} : vector<256x128xbf16>, vector<128x256xbf16>, vector<256x256xf32> -> vector<256x256xf32>
    %c0_3 = arith.constant 0 : index
    %c0_4 = arith.constant 0 : index
    %3 = vector.load %arg3[%c0_3, %c0_4] : memref<1x256xf32, #tpu.memory_space<vmem>>, vector<1x256xf32>
    %4 = vector.broadcast %3 : vector<1x256xf32> to vector<256x256xf32>
    %5 = arith.addf %2, %4 : vector<256x256xf32>
    %6 = arith.truncf %5 : vector<256x256xf32> to vector<256x256xbf16>
    %c0_5 = arith.constant 0 : index
    %c0_6 = arith.constant 0 : index
    %7 = vector.load %arg4[%c0_5, %c0_6] : memref<256x256xbf16, #tpu.memory_space<vmem>>, vector<256x256xbf16>
    tpu.vector_store %arg4[%c0_5, %c0_6], %6 {strides = array<i32>} : memref<256x256xbf16, #tpu.memory_space<vmem>>, vector<256x256xbf16>,
    return
  }
  func.func @transform_0(%arg0: i32) -> (i32, i32) {
    %c0_i32 = arith.constant 0 : i32
    %c0_i32_0 = arith.constant 0 : i32
    return %arg0, %c0_i32 : i32, i32
  }
  func.func @transform_1(%arg0: i32) -> (i32, i32) {
    %c0_i32 = arith.constant 0 : i32
    %c0_i32_0 = arith.constant 0 : i32
    %c0_i32_1 = arith.constant 0 : i32
    return %c0_i32, %c0_i32_0 : i32, i32
  }
  func.func @transform_2(%arg0: i32) -> (i32, i32) {
    %c0_i32 = arith.constant 0 : i32
    %c0_i32_0 = arith.constant 0 : i32
    %c0_i32_1 = arith.constant 0 : i32
    return %c0_i32, %c0_i32_0 : i32, i32
  }
  func.func @transform_3(%arg0: i32) -> (i32, i32) {
    %c0_i32 = arith.constant 0 : i32
    %c0_i32_0 = arith.constant 0 : i32
    return %arg0, %c0_i32 : i32, i32
  }
}

module attributes {stable_mosaic.version = 11 : i64} {
  func.func @_pe_dwconv_kernel(%arg0: i32, %arg1: memref<1x18x18x128xbf16, #tpu.memory_space<vmem>>, %arg2: memref<9x128xf32, #tpu.memory_space<vmem>>, %arg3: memref<1x128xf32, #tpu.memory_space<vmem>>, %arg4: memref<1x16x16x128xbf16, #tpu.memory_space<vmem>>) attributes {dimension_semantics = [#tpu.dimension_semantics<parallel>], iteration_bounds = array<i64: 2>, scalar_prefetch = 0 : i64, scratch_operands = 0 : i64, tpu.core_type = #tpu.core_type<tc>, window_params = [{transform_indices = @transform_0, window_bounds = array<i64: 1, 18, 18, 128>}, {pipeline_mode = #tpu.pipeline_mode<synchronous>, transform_indices = @transform_1, window_bounds = array<i64: 9, 128>}, {pipeline_mode = #tpu.pipeline_mode<synchronous>, transform_indices = @transform_2, window_bounds = array<i64: 1, 128>}, {transform_indices = @transform_3, window_bounds = array<i64: 1, 16, 16, 128>}]} {
    %cst = arith.constant 0.000000e+00 : f32
    %0 = vector.broadcast %cst : f32 to vector<16x16x128xf32>
    %c0 = arith.constant 0 : index
    %c0_0 = arith.constant 0 : index
    %c0_1 = arith.constant 0 : index
    %c0_2 = arith.constant 0 : index
    %1 = vector.load %arg1[%c0, %c0_0, %c0_1, %c0_2] : memref<1x18x18x128xbf16, #tpu.memory_space<vmem>>, vector<1x16x16x128xbf16>
    %2 = vector.shape_cast %1 : vector<1x16x16x128xbf16> to vector<16x16x128xbf16>
    %3 = arith.extf %2 : vector<16x16x128xbf16> to vector<16x16x128xf32>
    %c0_3 = arith.constant 0 : index
    %c0_4 = arith.constant 0 : index
    %4 = vector.load %arg2[%c0_3, %c0_4] : memref<9x128xf32, #tpu.memory_space<vmem>>, vector<1x128xf32>
    %5 = vector.shape_cast %4 : vector<1x128xf32> to vector<1x1x128xf32>
    %6 = vector.broadcast %5 : vector<1x1x128xf32> to vector<16x16x128xf32>
    %7 = arith.mulf %3, %6 : vector<16x16x128xf32>
    %8 = arith.addf %0, %7 : vector<16x16x128xf32>
    %c0_5 = arith.constant 0 : index
    %c0_6 = arith.constant 0 : index
    %c1 = arith.constant 1 : index
    %c0_7 = arith.constant 0 : index
    %9 = vector.load %arg1[%c0_5, %c0_6, %c1, %c0_7] : memref<1x18x18x128xbf16, #tpu.memory_space<vmem>>, vector<1x16x16x128xbf16>
    %10 = vector.shape_cast %9 : vector<1x16x16x128xbf16> to vector<16x16x128xbf16>
    %11 = arith.extf %10 : vector<16x16x128xbf16> to vector<16x16x128xf32>
    %c1_8 = arith.constant 1 : index
    %c0_9 = arith.constant 0 : index
    %12 = vector.load %arg2[%c1_8, %c0_9] : memref<9x128xf32, #tpu.memory_space<vmem>>, vector<1x128xf32>
    %13 = vector.shape_cast %12 : vector<1x128xf32> to vector<1x1x128xf32>
    %14 = vector.broadcast %13 : vector<1x1x128xf32> to vector<16x16x128xf32>
    %15 = arith.mulf %11, %14 : vector<16x16x128xf32>
    %16 = arith.addf %8, %15 : vector<16x16x128xf32>
    %c0_10 = arith.constant 0 : index
    %c0_11 = arith.constant 0 : index
    %c2 = arith.constant 2 : index
    %c0_12 = arith.constant 0 : index
    %17 = vector.load %arg1[%c0_10, %c0_11, %c2, %c0_12] : memref<1x18x18x128xbf16, #tpu.memory_space<vmem>>, vector<1x16x16x128xbf16>
    %18 = vector.shape_cast %17 : vector<1x16x16x128xbf16> to vector<16x16x128xbf16>
    %19 = arith.extf %18 : vector<16x16x128xbf16> to vector<16x16x128xf32>
    %c2_13 = arith.constant 2 : index
    %c0_14 = arith.constant 0 : index
    %20 = vector.load %arg2[%c2_13, %c0_14] : memref<9x128xf32, #tpu.memory_space<vmem>>, vector<1x128xf32>
    %21 = vector.shape_cast %20 : vector<1x128xf32> to vector<1x1x128xf32>
    %22 = vector.broadcast %21 : vector<1x1x128xf32> to vector<16x16x128xf32>
    %23 = arith.mulf %19, %22 : vector<16x16x128xf32>
    %24 = arith.addf %16, %23 : vector<16x16x128xf32>
    %c0_15 = arith.constant 0 : index
    %c1_16 = arith.constant 1 : index
    %c0_17 = arith.constant 0 : index
    %c0_18 = arith.constant 0 : index
    %25 = vector.load %arg1[%c0_15, %c1_16, %c0_17, %c0_18] : memref<1x18x18x128xbf16, #tpu.memory_space<vmem>>, vector<1x16x16x128xbf16>
    %26 = vector.shape_cast %25 : vector<1x16x16x128xbf16> to vector<16x16x128xbf16>
    %27 = arith.extf %26 : vector<16x16x128xbf16> to vector<16x16x128xf32>
    %c3 = arith.constant 3 : index
    %c0_19 = arith.constant 0 : index
    %28 = vector.load %arg2[%c3, %c0_19] : memref<9x128xf32, #tpu.memory_space<vmem>>, vector<1x128xf32>
    %29 = vector.shape_cast %28 : vector<1x128xf32> to vector<1x1x128xf32>
    %30 = vector.broadcast %29 : vector<1x1x128xf32> to vector<16x16x128xf32>
    %31 = arith.mulf %27, %30 : vector<16x16x128xf32>
    %32 = arith.addf %24, %31 : vector<16x16x128xf32>
    %c0_20 = arith.constant 0 : index
    %c1_21 = arith.constant 1 : index
    %c1_22 = arith.constant 1 : index
    %c0_23 = arith.constant 0 : index
    %33 = vector.load %arg1[%c0_20, %c1_21, %c1_22, %c0_23] : memref<1x18x18x128xbf16, #tpu.memory_space<vmem>>, vector<1x16x16x128xbf16>
    %34 = vector.shape_cast %33 : vector<1x16x16x128xbf16> to vector<16x16x128xbf16>
    %35 = arith.extf %34 : vector<16x16x128xbf16> to vector<16x16x128xf32>
    %c4 = arith.constant 4 : index
    %c0_24 = arith.constant 0 : index
    %36 = vector.load %arg2[%c4, %c0_24] : memref<9x128xf32, #tpu.memory_space<vmem>>, vector<1x128xf32>
    %37 = vector.shape_cast %36 : vector<1x128xf32> to vector<1x1x128xf32>
    %38 = vector.broadcast %37 : vector<1x1x128xf32> to vector<16x16x128xf32>
    %39 = arith.mulf %35, %38 : vector<16x16x128xf32>
    %40 = arith.addf %32, %39 : vector<16x16x128xf32>
    %c0_25 = arith.constant 0 : index
    %c1_26 = arith.constant 1 : index
    %c2_27 = arith.constant 2 : index
    %c0_28 = arith.constant 0 : index
    %41 = vector.load %arg1[%c0_25, %c1_26, %c2_27, %c0_28] : memref<1x18x18x128xbf16, #tpu.memory_space<vmem>>, vector<1x16x16x128xbf16>
    %42 = vector.shape_cast %41 : vector<1x16x16x128xbf16> to vector<16x16x128xbf16>
    %43 = arith.extf %42 : vector<16x16x128xbf16> to vector<16x16x128xf32>
    %c5 = arith.constant 5 : index
    %c0_29 = arith.constant 0 : index
    %44 = vector.load %arg2[%c5, %c0_29] : memref<9x128xf32, #tpu.memory_space<vmem>>, vector<1x128xf32>
    %45 = vector.shape_cast %44 : vector<1x128xf32> to vector<1x1x128xf32>
    %46 = vector.broadcast %45 : vector<1x1x128xf32> to vector<16x16x128xf32>
    %47 = arith.mulf %43, %46 : vector<16x16x128xf32>
    %48 = arith.addf %40, %47 : vector<16x16x128xf32>
    %c0_30 = arith.constant 0 : index
    %c2_31 = arith.constant 2 : index
    %c0_32 = arith.constant 0 : index
    %c0_33 = arith.constant 0 : index
    %49 = vector.load %arg1[%c0_30, %c2_31, %c0_32, %c0_33] : memref<1x18x18x128xbf16, #tpu.memory_space<vmem>>, vector<1x16x16x128xbf16>
    %50 = vector.shape_cast %49 : vector<1x16x16x128xbf16> to vector<16x16x128xbf16>
    %51 = arith.extf %50 : vector<16x16x128xbf16> to vector<16x16x128xf32>
    %c6 = arith.constant 6 : index
    %c0_34 = arith.constant 0 : index
    %52 = vector.load %arg2[%c6, %c0_34] : memref<9x128xf32, #tpu.memory_space<vmem>>, vector<1x128xf32>
    %53 = vector.shape_cast %52 : vector<1x128xf32> to vector<1x1x128xf32>
    %54 = vector.broadcast %53 : vector<1x1x128xf32> to vector<16x16x128xf32>
    %55 = arith.mulf %51, %54 : vector<16x16x128xf32>
    %56 = arith.addf %48, %55 : vector<16x16x128xf32>
    %c0_35 = arith.constant 0 : index
    %c2_36 = arith.constant 2 : index
    %c1_37 = arith.constant 1 : index
    %c0_38 = arith.constant 0 : index
    %57 = vector.load %arg1[%c0_35, %c2_36, %c1_37, %c0_38] : memref<1x18x18x128xbf16, #tpu.memory_space<vmem>>, vector<1x16x16x128xbf16>
    %58 = vector.shape_cast %57 : vector<1x16x16x128xbf16> to vector<16x16x128xbf16>
    %59 = arith.extf %58 : vector<16x16x128xbf16> to vector<16x16x128xf32>
    %c7 = arith.constant 7 : index
    %c0_39 = arith.constant 0 : index
    %60 = vector.load %arg2[%c7, %c0_39] : memref<9x128xf32, #tpu.memory_space<vmem>>, vector<1x128xf32>
    %61 = vector.shape_cast %60 : vector<1x128xf32> to vector<1x1x128xf32>
    %62 = vector.broadcast %61 : vector<1x1x128xf32> to vector<16x16x128xf32>
    %63 = arith.mulf %59, %62 : vector<16x16x128xf32>
    %64 = arith.addf %56, %63 : vector<16x16x128xf32>
    %c0_40 = arith.constant 0 : index
    %c2_41 = arith.constant 2 : index
    %c2_42 = arith.constant 2 : index
    %c0_43 = arith.constant 0 : index
    %65 = vector.load %arg1[%c0_40, %c2_41, %c2_42, %c0_43] : memref<1x18x18x128xbf16, #tpu.memory_space<vmem>>, vector<1x16x16x128xbf16>
    %66 = vector.shape_cast %65 : vector<1x16x16x128xbf16> to vector<16x16x128xbf16>
    %67 = arith.extf %66 : vector<16x16x128xbf16> to vector<16x16x128xf32>
    %c8 = arith.constant 8 : index
    %c0_44 = arith.constant 0 : index
    %68 = vector.load %arg2[%c8, %c0_44] : memref<9x128xf32, #tpu.memory_space<vmem>>, vector<1x128xf32>
    %69 = vector.shape_cast %68 : vector<1x128xf32> to vector<1x1x128xf32>
    %70 = vector.broadcast %69 : vector<1x1x128xf32> to vector<16x16x128xf32>
    %71 = arith.mulf %67, %70 : vector<16x16x128xf32>
    %72 = arith.addf %64, %71 : vector<16x16x128xf32>
    %c0_45 = arith.constant 0 : index
    %c0_46 = arith.constant 0 : index
    %73 = vector.load %arg3[%c0_45, %c0_46] : memref<1x128xf32, #tpu.memory_space<vmem>>, vector<1x128xf32>
    %74 = vector.shape_cast %73 : vector<1x128xf32> to vector<1x1x128xf32>
    %75 = vector.broadcast %74 : vector<1x1x128xf32> to vector<16x16x128xf32>
    %76 = arith.addf %72, %75 : vector<16x16x128xf32>
    %77 = arith.truncf %76 : vector<16x16x128xf32> to vector<16x16x128xbf16>
    %c0_47 = arith.constant 0 : index
    %c0_48 = arith.constant 0 : index
    %c0_49 = arith.constant 0 : index
    %c0_50 = arith.constant 0 : index
    %78 = vector.load %arg4[%c0_47, %c0_48, %c0_49, %c0_50] : memref<1x16x16x128xbf16, #tpu.memory_space<vmem>>, vector<1x16x16x128xbf16>
    %79 = vector.shape_cast %78 : vector<1x16x16x128xbf16> to vector<16x16x128xbf16>
    %80 = vector.shape_cast %77 : vector<16x16x128xbf16> to vector<1x16x16x128xbf16>
    tpu.vector_store %arg4[%c0_47, %c0_48, %c0_49, %c0_50], %80 {strides = array<i32>} : memref<1x16x16x128xbf16, #tpu.memory_space<vmem>>, vector<1x16x16x128xbf16>,
    return
  }
  func.func @transform_0(%arg0: i32) -> (i32, i32, i32, i32) {
    %c0_i32 = arith.constant 0 : i32
    %c0_i32_0 = arith.constant 0 : i32
    %c0_i32_1 = arith.constant 0 : i32
    %c0_i32_2 = arith.constant 0 : i32
    return %arg0, %c0_i32, %c0_i32_0, %c0_i32_1 : i32, i32, i32, i32
  }
  func.func @transform_1(%arg0: i32) -> (i32, i32) {
    %c0_i32 = arith.constant 0 : i32
    %c0_i32_0 = arith.constant 0 : i32
    %c0_i32_1 = arith.constant 0 : i32
    return %c0_i32, %c0_i32_0 : i32, i32
  }
  func.func @transform_2(%arg0: i32) -> (i32, i32) {
    %c0_i32 = arith.constant 0 : i32
    %c0_i32_0 = arith.constant 0 : i32
    %c0_i32_1 = arith.constant 0 : i32
    return %c0_i32, %c0_i32_0 : i32, i32
  }
  func.func @transform_3(%arg0: i32) -> (i32, i32, i32, i32) {
    %c0_i32 = arith.constant 0 : i32
    %c0_i32_0 = arith.constant 0 : i32
    %c0_i32_1 = arith.constant 0 : i32
    %c0_i32_2 = arith.constant 0 : i32
    return %arg0, %c0_i32, %c0_i32_0, %c0_i32_1 : i32, i32, i32, i32
  }
}

module attributes {stable_mosaic.version = 11 : i64} {
  func.func @_ffn_kernel(%arg0: i32, %arg1: memref<256x128xf32, #tpu.memory_space<vmem>>, %arg2: memref<128x256xbf16, #tpu.memory_space<vmem>>, %arg3: memref<1x256xf32, #tpu.memory_space<vmem>>, %arg4: memref<256x128xbf16, #tpu.memory_space<vmem>>, %arg5: memref<1x128xf32, #tpu.memory_space<vmem>>, %arg6: memref<256x128xf32, #tpu.memory_space<vmem>>) attributes {dimension_semantics = [#tpu.dimension_semantics<parallel>], iteration_bounds = array<i64: 2>, scalar_prefetch = 0 : i64, scratch_operands = 0 : i64, tpu.core_type = #tpu.core_type<tc>, window_params = [{transform_indices = @transform_0, window_bounds = array<i64: 256, 128>}, {pipeline_mode = #tpu.pipeline_mode<synchronous>, transform_indices = @transform_1, window_bounds = array<i64: 128, 256>}, {pipeline_mode = #tpu.pipeline_mode<synchronous>, transform_indices = @transform_2, window_bounds = array<i64: 1, 256>}, {pipeline_mode = #tpu.pipeline_mode<synchronous>, transform_indices = @transform_3, window_bounds = array<i64: 256, 128>}, {pipeline_mode = #tpu.pipeline_mode<synchronous>, transform_indices = @transform_4, window_bounds = array<i64: 1, 128>}, {transform_indices = @transform_5, window_bounds = array<i64: 256, 128>}]} {
    %c0 = arith.constant 0 : index
    %c0_0 = arith.constant 0 : index
    %0 = vector.load %arg1[%c0, %c0_0] : memref<256x128xf32, #tpu.memory_space<vmem>>, vector<256x128xf32>
    %1 = arith.truncf %0 : vector<256x128xf32> to vector<256x128xbf16>
    %c0_1 = arith.constant 0 : index
    %c0_2 = arith.constant 0 : index
    %2 = vector.load %arg2[%c0_1, %c0_2] : memref<128x256xbf16, #tpu.memory_space<vmem>>, vector<128x256xbf16>
    %cst = arith.constant dense<0.000000e+00> : vector<256x256xf32>
    %3 = tpu.matmul %1, %2, %cst {dimension_numbers = #tpu.dot_dimension_numbers<[1], [0], [0], [1], [0, 0, 1, 1], [], []>} : vector<256x128xbf16>, vector<128x256xbf16>, vector<256x256xf32> -> vector<256x256xf32>
    %c0_3 = arith.constant 0 : index
    %c0_4 = arith.constant 0 : index
    %4 = vector.load %arg3[%c0_3, %c0_4] : memref<1x256xf32, #tpu.memory_space<vmem>>, vector<1x256xf32>
    %5 = vector.broadcast %4 : vector<1x256xf32> to vector<256x256xf32>
    %6 = arith.addf %3, %5 : vector<256x256xf32>
    %7 = arith.negf %6 : vector<256x256xf32>
    %8 = math.exp %7 : vector<256x256xf32>
    %cst_5 = arith.constant 1.000000e+00 : f32
    %9 = vector.broadcast %cst_5 : f32 to vector<256x256xf32>
    %10 = arith.addf %9, %8 : vector<256x256xf32>
    %11 = arith.divf %9, %10 : vector<256x256xf32>
    %12 = arith.mulf %6, %11 : vector<256x256xf32>
    %13 = arith.truncf %12 : vector<256x256xf32> to vector<256x256xbf16>
    %c0_6 = arith.constant 0 : index
    %c0_7 = arith.constant 0 : index
    %14 = vector.load %arg4[%c0_6, %c0_7] : memref<256x128xbf16, #tpu.memory_space<vmem>>, vector<256x128xbf16>
    %cst_8 = arith.constant dense<0.000000e+00> : vector<256x128xf32>
    %15 = tpu.matmul %13, %14, %cst_8 {dimension_numbers = #tpu.dot_dimension_numbers<[1], [0], [0], [1], [0, 0, 1, 1], [], []>} : vector<256x256xbf16>, vector<256x128xbf16>, vector<256x128xf32> -> vector<256x128xf32>
    %c0_9 = arith.constant 0 : index
    %c0_10 = arith.constant 0 : index
    %16 = vector.load %arg5[%c0_9, %c0_10] : memref<1x128xf32, #tpu.memory_space<vmem>>, vector<1x128xf32>
    %17 = vector.broadcast %16 : vector<1x128xf32> to vector<256x128xf32>
    %18 = arith.addf %15, %17 : vector<256x128xf32>
    %19 = arith.addf %18, %0 : vector<256x128xf32>
    %c0_11 = arith.constant 0 : index
    %c0_12 = arith.constant 0 : index
    %20 = vector.load %arg6[%c0_11, %c0_12] : memref<256x128xf32, #tpu.memory_space<vmem>>, vector<256x128xf32>
    tpu.vector_store %arg6[%c0_11, %c0_12], %19 {strides = array<i32>} : memref<256x128xf32, #tpu.memory_space<vmem>>, vector<256x128xf32>,
    return
  }
  func.func @transform_0(%arg0: i32) -> (i32, i32) {
    %c0_i32 = arith.constant 0 : i32
    %c0_i32_0 = arith.constant 0 : i32
    return %arg0, %c0_i32 : i32, i32
  }
  func.func @transform_1(%arg0: i32) -> (i32, i32) {
    %c0_i32 = arith.constant 0 : i32
    %c0_i32_0 = arith.constant 0 : i32
    %c0_i32_1 = arith.constant 0 : i32
    return %c0_i32, %c0_i32_0 : i32, i32
  }
  func.func @transform_2(%arg0: i32) -> (i32, i32) {
    %c0_i32 = arith.constant 0 : i32
    %c0_i32_0 = arith.constant 0 : i32
    %c0_i32_1 = arith.constant 0 : i32
    return %c0_i32, %c0_i32_0 : i32, i32
  }
  func.func @transform_3(%arg0: i32) -> (i32, i32) {
    %c0_i32 = arith.constant 0 : i32
    %c0_i32_0 = arith.constant 0 : i32
    %c0_i32_1 = arith.constant 0 : i32
    return %c0_i32, %c0_i32_0 : i32, i32
  }
  func.func @transform_4(%arg0: i32) -> (i32, i32) {
    %c0_i32 = arith.constant 0 : i32
    %c0_i32_0 = arith.constant 0 : i32
    %c0_i32_1 = arith.constant 0 : i32
    return %c0_i32, %c0_i32_0 : i32, i32
  }
  func.func @transform_5(%arg0: i32) -> (i32, i32) {
    %c0_i32 = arith.constant 0 : i32
    %c0_i32_0 = arith.constant 0 : i32
    return %arg0, %c0_i32 : i32, i32
  }
}

module attributes {stable_mosaic.version = 11 : i64} {
  func.func @_attn_proj_res_kernel(%arg0: i32, %arg1: memref<1x256x256xbf16, #tpu.memory_space<vmem>>, %arg2: memref<1x256x128xbf16, #tpu.memory_space<vmem>>, %arg3: memref<1x256x128xf32, #tpu.memory_space<vmem>>, %arg4: memref<128x128xbf16, #tpu.memory_space<vmem>>, %arg5: memref<1x128xf32, #tpu.memory_space<vmem>>, %arg6: memref<1x256x128xf32, #tpu.memory_space<vmem>>) attributes {dimension_semantics = [#tpu.dimension_semantics<parallel>], iteration_bounds = array<i64: 2>, scalar_prefetch = 0 : i64, scratch_operands = 0 : i64, tpu.core_type = #tpu.core_type<tc>, window_params = [{transform_indices = @transform_0, window_bounds = array<i64: 1, 256, 256>}, {transform_indices = @transform_1, window_bounds = array<i64: 1, 256, 128>}, {transform_indices = @transform_2, window_bounds = array<i64: 1, 256, 128>}, {pipeline_mode = #tpu.pipeline_mode<synchronous>, transform_indices = @transform_3, window_bounds = array<i64: 128, 128>}, {pipeline_mode = #tpu.pipeline_mode<synchronous>, transform_indices = @transform_4, window_bounds = array<i64: 1, 128>}, {transform_indices = @transform_5, window_bounds = array<i64: 1, 256, 128>}]} {
    %c0 = arith.constant 0 : index
    %c0_0 = arith.constant 0 : index
    %c0_1 = arith.constant 0 : index
    %0 = vector.load %arg2[%c0, %c0_0, %c0_1] : memref<1x256x128xbf16, #tpu.memory_space<vmem>>, vector<1x256x128xbf16>
    %1 = vector.shape_cast %0 : vector<1x256x128xbf16> to vector<256x128xbf16>
    %c0_2 = arith.constant 0 : index
    %c0_3 = arith.constant 0 : index
    %2 = vector.load %arg4[%c0_2, %c0_3] : memref<128x128xbf16, #tpu.memory_space<vmem>>, vector<128x128xbf16>
    %cst = arith.constant dense<0.000000e+00> : vector<256x128xf32>
    %3 = tpu.matmul %1, %2, %cst {dimension_numbers = #tpu.dot_dimension_numbers<[1], [0], [0], [1], [0, 0, 1, 1], [], []>} : vector<256x128xbf16>, vector<128x128xbf16>, vector<256x128xf32> -> vector<256x128xf32>
    %c0_4 = arith.constant 0 : index
    %c0_5 = arith.constant 0 : index
    %4 = vector.load %arg5[%c0_4, %c0_5] : memref<1x128xf32, #tpu.memory_space<vmem>>, vector<1x128xf32>
    %5 = vector.broadcast %4 : vector<1x128xf32> to vector<256x128xf32>
    %6 = arith.addf %3, %5 : vector<256x128xf32>
    %c0_6 = arith.constant 0 : index
    %c0_7 = arith.constant 0 : index
    %c0_8 = arith.constant 0 : index
    %7 = vector.load %arg3[%c0_6, %c0_7, %c0_8] : memref<1x256x128xf32, #tpu.memory_space<vmem>>, vector<1x256x128xf32>
    %8 = vector.shape_cast %7 : vector<1x256x128xf32> to vector<256x128xf32>
    %9 = arith.addf %6, %8 : vector<256x128xf32>
    %c0_9 = arith.constant 0 : index
    %c0_10 = arith.constant 0 : index
    %c0_11 = arith.constant 0 : index
    %10 = vector.load %arg1[%c0_9, %c0_10, %c0_11] : memref<1x256x256xbf16, #tpu.memory_space<vmem>>, vector<1x256x16xbf16>
    %11 = vector.shape_cast %10 : vector<1x256x16xbf16> to vector<256x16xbf16>
    %c0_12 = arith.constant 0 : index
    %c0_13 = arith.constant 0 : index
    %c16 = arith.constant 16 : index
    %12 = vector.load %arg1[%c0_12, %c0_13, %c16] : memref<1x256x256xbf16, #tpu.memory_space<vmem>>, vector<1x256x16xbf16>
    %13 = vector.shape_cast %12 : vector<1x256x16xbf16> to vector<256x16xbf16>
    %c0_14 = arith.constant 0 : index
    %c0_15 = arith.constant 0 : index
    %c32 = arith.constant 32 : index
    %14 = vector.load %arg1[%c0_14, %c0_15, %c32] : memref<1x256x256xbf16, #tpu.memory_space<vmem>>, vector<1x256x32xbf16>
    %15 = vector.shape_cast %14 : vector<1x256x32xbf16> to vector<256x32xbf16>
    %cst_16 = arith.constant dense<0.000000e+00> : vector<256x256xf32>
    %16 = tpu.matmul %11, %13, %cst_16 {dimension_numbers = #tpu.dot_dimension_numbers<[1], [1], [0], [0], [0, 0, 1, 0], [], []>} : vector<256x16xbf16>, vector<256x16xbf16>, vector<256x256xf32> -> vector<256x256xf32>
    %cst_17 = arith.constant 2.500000e-01 : f32
    %17 = vector.broadcast %cst_17 : f32 to vector<256x256xf32>
    %18 = arith.mulf %16, %17 : vector<256x256xf32>
    %cst_18 = arith.constant dense<0xFF800000> : vector<256xf32>
    %19 = vector.multi_reduction <maximumf>, %18, %cst_18 [1] : vector<256x256xf32> to vector<256xf32>
    %20 = vector.shape_cast %19 : vector<256xf32> to vector<256x1xf32>
    %21 = vector.broadcast %20 : vector<256x1xf32> to vector<256x256xf32>
    %22 = arith.subf %18, %21 : vector<256x256xf32>
    %23 = math.exp %22 : vector<256x256xf32>
    %cst_19 = arith.constant dense<0.000000e+00> : vector<256xf32>
    %24 = vector.multi_reduction <add>, %23, %cst_19 [1] : vector<256x256xf32> to vector<256xf32>
    %25 = vector.shape_cast %24 : vector<256xf32> to vector<256x1xf32>
    %26 = tpu.reciprocal %25 {approx = true} : vector<256x1xf32> -> vector<256x1xf32>
    %27 = vector.broadcast %26 : vector<256x1xf32> to vector<256x256xf32>
    %28 = arith.mulf %23, %27 : vector<256x256xf32>
    %29 = arith.truncf %28 : vector<256x256xf32> to vector<256x256xbf16>
    %cst_20 = arith.constant dense<0.000000e+00> : vector<256x32xf32>
    %30 = tpu.matmul %29, %15, %cst_20 {dimension_numbers = #tpu.dot_dimension_numbers<[1], [0], [0], [1], [0, 0, 1, 1], [], []>} : vector<256x256xbf16>, vector<256x32xbf16>, vector<256x32xf32> -> vector<256x32xf32>
    %31 = arith.truncf %30 : vector<256x32xf32> to vector<256x32xbf16>
    %c0_21 = arith.constant 0 : index
    %c0_22 = arith.constant 0 : index
    %32 = vector.load %arg4[%c0_21, %c0_22] : memref<128x128xbf16, #tpu.memory_space<vmem>>, vector<32x128xbf16>
    %cst_23 = arith.constant dense<0.000000e+00> : vector<256x128xf32>
    %33 = tpu.matmul %31, %32, %cst_23 {dimension_numbers = #tpu.dot_dimension_numbers<[1], [0], [0], [1], [0, 0, 1, 1], [], []>} : vector<256x32xbf16>, vector<32x128xbf16>, vector<256x128xf32> -> vector<256x128xf32>
    %34 = arith.addf %9, %33 : vector<256x128xf32>
    %c0_24 = arith.constant 0 : index
    %c0_25 = arith.constant 0 : index
    %c64 = arith.constant 64 : index
    %35 = vector.load %arg1[%c0_24, %c0_25, %c64] : memref<1x256x256xbf16, #tpu.memory_space<vmem>>, vector<1x256x16xbf16>
    %36 = vector.shape_cast %35 : vector<1x256x16xbf16> to vector<256x16xbf16>
    %c0_26 = arith.constant 0 : index
    %c0_27 = arith.constant 0 : index
    %c80 = arith.constant 80 : index
    %37 = vector.load %arg1[%c0_26, %c0_27, %c80] : memref<1x256x256xbf16, #tpu.memory_space<vmem>>, vector<1x256x16xbf16>
    %38 = vector.shape_cast %37 : vector<1x256x16xbf16> to vector<256x16xbf16>
    %c0_28 = arith.constant 0 : index
    %c0_29 = arith.constant 0 : index
    %c96 = arith.constant 96 : index
    %39 = vector.load %arg1[%c0_28, %c0_29, %c96] : memref<1x256x256xbf16, #tpu.memory_space<vmem>>, vector<1x256x32xbf16>
    %40 = vector.shape_cast %39 : vector<1x256x32xbf16> to vector<256x32xbf16>
    %cst_30 = arith.constant dense<0.000000e+00> : vector<256x256xf32>
    %41 = tpu.matmul %36, %38, %cst_30 {dimension_numbers = #tpu.dot_dimension_numbers<[1], [1], [0], [0], [0, 0, 1, 0], [], []>} : vector<256x16xbf16>, vector<256x16xbf16>, vector<256x256xf32> -> vector<256x256xf32>
    %cst_31 = arith.constant 2.500000e-01 : f32
    %42 = vector.broadcast %cst_31 : f32 to vector<256x256xf32>
    %43 = arith.mulf %41, %42 : vector<256x256xf32>
    %cst_32 = arith.constant dense<0xFF800000> : vector<256xf32>
    %44 = vector.multi_reduction <maximumf>, %43, %cst_32 [1] : vector<256x256xf32> to vector<256xf32>
    %45 = vector.shape_cast %44 : vector<256xf32> to vector<256x1xf32>
    %46 = vector.broadcast %45 : vector<256x1xf32> to vector<256x256xf32>
    %47 = arith.subf %43, %46 : vector<256x256xf32>
    %48 = math.exp %47 : vector<256x256xf32>
    %cst_33 = arith.constant dense<0.000000e+00> : vector<256xf32>
    %49 = vector.multi_reduction <add>, %48, %cst_33 [1] : vector<256x256xf32> to vector<256xf32>
    %50 = vector.shape_cast %49 : vector<256xf32> to vector<256x1xf32>
    %51 = tpu.reciprocal %50 {approx = true} : vector<256x1xf32> -> vector<256x1xf32>
    %52 = vector.broadcast %51 : vector<256x1xf32> to vector<256x256xf32>
    %53 = arith.mulf %48, %52 : vector<256x256xf32>
    %54 = arith.truncf %53 : vector<256x256xf32> to vector<256x256xbf16>
    %cst_34 = arith.constant dense<0.000000e+00> : vector<256x32xf32>
    %55 = tpu.matmul %54, %40, %cst_34 {dimension_numbers = #tpu.dot_dimension_numbers<[1], [0], [0], [1], [0, 0, 1, 1], [], []>} : vector<256x256xbf16>, vector<256x32xbf16>, vector<256x32xf32> -> vector<256x32xf32>
    %56 = arith.truncf %55 : vector<256x32xf32> to vector<256x32xbf16>
    %c32_35 = arith.constant 32 : index
    %c0_36 = arith.constant 0 : index
    %57 = vector.load %arg4[%c32_35, %c0_36] : memref<128x128xbf16, #tpu.memory_space<vmem>>, vector<32x128xbf16>
    %cst_37 = arith.constant dense<0.000000e+00> : vector<256x128xf32>
    %58 = tpu.matmul %56, %57, %cst_37 {dimension_numbers = #tpu.dot_dimension_numbers<[1], [0], [0], [1], [0, 0, 1, 1], [], []>} : vector<256x32xbf16>, vector<32x128xbf16>, vector<256x128xf32> -> vector<256x128xf32>
    %59 = arith.addf %34, %58 : vector<256x128xf32>
    %c0_38 = arith.constant 0 : index
    %c0_39 = arith.constant 0 : index
    %c128 = arith.constant 128 : index
    %60 = vector.load %arg1[%c0_38, %c0_39, %c128] : memref<1x256x256xbf16, #tpu.memory_space<vmem>>, vector<1x256x16xbf16>
    %61 = vector.shape_cast %60 : vector<1x256x16xbf16> to vector<256x16xbf16>
    %c0_40 = arith.constant 0 : index
    %c0_41 = arith.constant 0 : index
    %c144 = arith.constant 144 : index
    %62 = vector.load %arg1[%c0_40, %c0_41, %c144] : memref<1x256x256xbf16, #tpu.memory_space<vmem>>, vector<1x256x16xbf16>
    %63 = vector.shape_cast %62 : vector<1x256x16xbf16> to vector<256x16xbf16>
    %c0_42 = arith.constant 0 : index
    %c0_43 = arith.constant 0 : index
    %c160 = arith.constant 160 : index
    %64 = vector.load %arg1[%c0_42, %c0_43, %c160] : memref<1x256x256xbf16, #tpu.memory_space<vmem>>, vector<1x256x32xbf16>
    %65 = vector.shape_cast %64 : vector<1x256x32xbf16> to vector<256x32xbf16>
    %cst_44 = arith.constant dense<0.000000e+00> : vector<256x256xf32>
    %66 = tpu.matmul %61, %63, %cst_44 {dimension_numbers = #tpu.dot_dimension_numbers<[1], [1], [0], [0], [0, 0, 1, 0], [], []>} : vector<256x16xbf16>, vector<256x16xbf16>, vector<256x256xf32> -> vector<256x256xf32>
    %cst_45 = arith.constant 2.500000e-01 : f32
    %67 = vector.broadcast %cst_45 : f32 to vector<256x256xf32>
    %68 = arith.mulf %66, %67 : vector<256x256xf32>
    %cst_46 = arith.constant dense<0xFF800000> : vector<256xf32>
    %69 = vector.multi_reduction <maximumf>, %68, %cst_46 [1] : vector<256x256xf32> to vector<256xf32>
    %70 = vector.shape_cast %69 : vector<256xf32> to vector<256x1xf32>
    %71 = vector.broadcast %70 : vector<256x1xf32> to vector<256x256xf32>
    %72 = arith.subf %68, %71 : vector<256x256xf32>
    %73 = math.exp %72 : vector<256x256xf32>
    %cst_47 = arith.constant dense<0.000000e+00> : vector<256xf32>
    %74 = vector.multi_reduction <add>, %73, %cst_47 [1] : vector<256x256xf32> to vector<256xf32>
    %75 = vector.shape_cast %74 : vector<256xf32> to vector<256x1xf32>
    %76 = tpu.reciprocal %75 {approx = true} : vector<256x1xf32> -> vector<256x1xf32>
    %77 = vector.broadcast %76 : vector<256x1xf32> to vector<256x256xf32>
    %78 = arith.mulf %73, %77 : vector<256x256xf32>
    %79 = arith.truncf %78 : vector<256x256xf32> to vector<256x256xbf16>
    %cst_48 = arith.constant dense<0.000000e+00> : vector<256x32xf32>
    %80 = tpu.matmul %79, %65, %cst_48 {dimension_numbers = #tpu.dot_dimension_numbers<[1], [0], [0], [1], [0, 0, 1, 1], [], []>} : vector<256x256xbf16>, vector<256x32xbf16>, vector<256x32xf32> -> vector<256x32xf32>
    %81 = arith.truncf %80 : vector<256x32xf32> to vector<256x32xbf16>
    %c64_49 = arith.constant 64 : index
    %c0_50 = arith.constant 0 : index
    %82 = vector.load %arg4[%c64_49, %c0_50] : memref<128x128xbf16, #tpu.memory_space<vmem>>, vector<32x128xbf16>
    %cst_51 = arith.constant dense<0.000000e+00> : vector<256x128xf32>
    %83 = tpu.matmul %81, %82, %cst_51 {dimension_numbers = #tpu.dot_dimension_numbers<[1], [0], [0], [1], [0, 0, 1, 1], [], []>} : vector<256x32xbf16>, vector<32x128xbf16>, vector<256x128xf32> -> vector<256x128xf32>
    %84 = arith.addf %59, %83 : vector<256x128xf32>
    %c0_52 = arith.constant 0 : index
    %c0_53 = arith.constant 0 : index
    %c192 = arith.constant 192 : index
    %85 = vector.load %arg1[%c0_52, %c0_53, %c192] : memref<1x256x256xbf16, #tpu.memory_space<vmem>>, vector<1x256x16xbf16>
    %86 = vector.shape_cast %85 : vector<1x256x16xbf16> to vector<256x16xbf16>
    %c0_54 = arith.constant 0 : index
    %c0_55 = arith.constant 0 : index
    %c208 = arith.constant 208 : index
    %87 = vector.load %arg1[%c0_54, %c0_55, %c208] : memref<1x256x256xbf16, #tpu.memory_space<vmem>>, vector<1x256x16xbf16>
    %88 = vector.shape_cast %87 : vector<1x256x16xbf16> to vector<256x16xbf16>
    %c0_56 = arith.constant 0 : index
    %c0_57 = arith.constant 0 : index
    %c224 = arith.constant 224 : index
    %89 = vector.load %arg1[%c0_56, %c0_57, %c224] : memref<1x256x256xbf16, #tpu.memory_space<vmem>>, vector<1x256x32xbf16>
    %90 = vector.shape_cast %89 : vector<1x256x32xbf16> to vector<256x32xbf16>
    %cst_58 = arith.constant dense<0.000000e+00> : vector<256x256xf32>
    %91 = tpu.matmul %86, %88, %cst_58 {dimension_numbers = #tpu.dot_dimension_numbers<[1], [1], [0], [0], [0, 0, 1, 0], [], []>} : vector<256x16xbf16>, vector<256x16xbf16>, vector<256x256xf32> -> vector<256x256xf32>
    %cst_59 = arith.constant 2.500000e-01 : f32
    %92 = vector.broadcast %cst_59 : f32 to vector<256x256xf32>
    %93 = arith.mulf %91, %92 : vector<256x256xf32>
    %cst_60 = arith.constant dense<0xFF800000> : vector<256xf32>
    %94 = vector.multi_reduction <maximumf>, %93, %cst_60 [1] : vector<256x256xf32> to vector<256xf32>
    %95 = vector.shape_cast %94 : vector<256xf32> to vector<256x1xf32>
    %96 = vector.broadcast %95 : vector<256x1xf32> to vector<256x256xf32>
    %97 = arith.subf %93, %96 : vector<256x256xf32>
    %98 = math.exp %97 : vector<256x256xf32>
    %cst_61 = arith.constant dense<0.000000e+00> : vector<256xf32>
    %99 = vector.multi_reduction <add>, %98, %cst_61 [1] : vector<256x256xf32> to vector<256xf32>
    %100 = vector.shape_cast %99 : vector<256xf32> to vector<256x1xf32>
    %101 = tpu.reciprocal %100 {approx = true} : vector<256x1xf32> -> vector<256x1xf32>
    %102 = vector.broadcast %101 : vector<256x1xf32> to vector<256x256xf32>
    %103 = arith.mulf %98, %102 : vector<256x256xf32>
    %104 = arith.truncf %103 : vector<256x256xf32> to vector<256x256xbf16>
    %cst_62 = arith.constant dense<0.000000e+00> : vector<256x32xf32>
    %105 = tpu.matmul %104, %90, %cst_62 {dimension_numbers = #tpu.dot_dimension_numbers<[1], [0], [0], [1], [0, 0, 1, 1], [], []>} : vector<256x256xbf16>, vector<256x32xbf16>, vector<256x32xf32> -> vector<256x32xf32>
    %106 = arith.truncf %105 : vector<256x32xf32> to vector<256x32xbf16>
    %c96_63 = arith.constant 96 : index
    %c0_64 = arith.constant 0 : index
    %107 = vector.load %arg4[%c96_63, %c0_64] : memref<128x128xbf16, #tpu.memory_space<vmem>>, vector<32x128xbf16>
    %cst_65 = arith.constant dense<0.000000e+00> : vector<256x128xf32>
    %108 = tpu.matmul %106, %107, %cst_65 {dimension_numbers = #tpu.dot_dimension_numbers<[1], [0], [0], [1], [0, 0, 1, 1], [], []>} : vector<256x32xbf16>, vector<32x128xbf16>, vector<256x128xf32> -> vector<256x128xf32>
    %109 = arith.addf %84, %108 : vector<256x128xf32>
    %c0_66 = arith.constant 0 : index
    %c0_67 = arith.constant 0 : index
    %c0_68 = arith.constant 0 : index
    %110 = vector.load %arg6[%c0_66, %c0_67, %c0_68] : memref<1x256x128xf32, #tpu.memory_space<vmem>>, vector<1x256x128xf32>
    %111 = vector.shape_cast %110 : vector<1x256x128xf32> to vector<256x128xf32>
    %112 = vector.shape_cast %109 : vector<256x128xf32> to vector<1x256x128xf32>
    tpu.vector_store %arg6[%c0_66, %c0_67, %c0_68], %112 {strides = array<i32>} : memref<1x256x128xf32, #tpu.memory_space<vmem>>, vector<1x256x128xf32>,
    return
  }
  func.func @transform_0(%arg0: i32) -> (i32, i32, i32) {
    %c0_i32 = arith.constant 0 : i32
    %c0_i32_0 = arith.constant 0 : i32
    %c0_i32_1 = arith.constant 0 : i32
    return %arg0, %c0_i32, %c0_i32_0 : i32, i32, i32
  }
  func.func @transform_1(%arg0: i32) -> (i32, i32, i32) {
    %c0_i32 = arith.constant 0 : i32
    %c0_i32_0 = arith.constant 0 : i32
    %c0_i32_1 = arith.constant 0 : i32
    return %arg0, %c0_i32, %c0_i32_0 : i32, i32, i32
  }
  func.func @transform_2(%arg0: i32) -> (i32, i32, i32) {
    %c0_i32 = arith.constant 0 : i32
    %c0_i32_0 = arith.constant 0 : i32
    %c0_i32_1 = arith.constant 0 : i32
    return %arg0, %c0_i32, %c0_i32_0 : i32, i32, i32
  }
  func.func @transform_3(%arg0: i32) -> (i32, i32) {
    %c0_i32 = arith.constant 0 : i32
    %c0_i32_0 = arith.constant 0 : i32
    %c0_i32_1 = arith.constant 0 : i32
    return %c0_i32, %c0_i32_0 : i32, i32
  }
  func.func @transform_4(%arg0: i32) -> (i32, i32) {
    %c0_i32 = arith.constant 0 : i32
    %c0_i32_0 = arith.constant 0 : i32
    %c0_i32_1 = arith.constant 0 : i32
    return %c0_i32, %c0_i32_0 : i32, i32
  }
  func.func @transform_5(%arg0: i32) -> (i32, i32, i32) {
    %c0_i32 = arith.constant 0 : i32
    %c0_i32_0 = arith.constant 0 : i32
    %c0_i32_1 = arith.constant 0 : i32
    return %arg0, %c0_i32, %c0_i32_0 : i32, i32, i32
  }
}

</mosaic_0001>

<llo_original>
// kernel: psablock_forward.4
$region0: #{psablock_forward.4}
  #allocation0 [shape = 'u32[]', space=smem, size = 0x4, offset = 0x4, fixed_abs, tag = 'smem constant byte address 0x4 - core index']
  #allocation1 [shape = 'u32[144,128]{1,0:T(1,128)}', space=vmem, size = 0x12000, scoped, tag = 'internal scratch']
  %s0 = inlined_call_operand.vmem [shape: bf16[512,128], index: 0, kind: input, shape index: {}]
  %s1 = inlined_call_operand.vmem [shape: bf16[128,256], index: 1, kind: input, shape index: {}]
  %s2 = inlined_call_operand.vmem [shape: f32[1,256], index: 2, kind: input, shape index: {}]
  %s3 = inlined_call_operand.vmem [shape: bf16[512,256], index: 3, kind: output, shape index: {}]
  %s4 = sld [smem:[#allocation0]]
  $region45: #{psablock_forward.4} parent=0
    _
  %s6 = ssub.s32 1, %s4
  %s7 = scalar_select 0, %s6, %s4
  loop: start=0, step=1, limit=4
  $region2: #{psablock_forward.4} parent=0 // loop_pre_header
    _
  $region3: #{psablock_forward.4} parent=0 // loop_header
    %s9 = sphi 0, %s13
    %p10 = scmp.ge.s32.totalorder %s9, 4
    %s19 = sphi 0, %s21
    %s22 = sphi 0, %s19
    %s23 = sphi 0, %s22
    %s39 = sphi 0, %s23
    %s43 = sphi 0, %s43
    %s45 = sphi 0, %s43
    %s46 = sphi 0, %s45
    %s60 = sphi 0, %s46
    %s64 = sphi 0, %s64
    %s66 = sphi 0, %s64
    %s67 = sphi 0, %s66
    %s81 = sphi 0, %s67
    %s87 = sphi 0, %s89
    %s90 = sphi 0, %s87
    %s91 = sphi 0, %s90
    %s107 = sphi 0, %s91
  $region4: #{psablock_forward.4} parent=0 // loop_header_branch
    %12 = sbr.rel (%p10) target = $region8
  $region5: #{psablock_forward.4} parent=0 // loop_body
    %s14 = ssub.s32 %s9, 1
    %s15 = ssub.s32 %s9, 2
    %s16 = sadd.s32 %s9, 1
    %s17 = ssub.s32 %s9, %s16
    %p18 = scmp.eq.s32.totalorder %s17, 0
    %s20 = sadd.s32 %s19, 1
    %s21 = scalar_select %p18, %s19, %s20
    %p24 = pneg %p18
    %p25 = scmp.eq.s32.totalorder %s9, 1
    %p26 = por %p24, %p25
    %p27 = scmp.ne.s32.totalorder %s19, %s22
    %p28 = scmp.eq.s32.totalorder %s9, 0
    %p29 = por %p27, %p28
    %p30 = scmp.ne.s32.totalorder %s19, %s22
    %p31 = scmp.eq.s32.totalorder %s14, 1
    %p32 = por %p30, %p31
    %p33 = scmp.ne.s32.totalorder %s22, %s23
    %p34 = scmp.eq.s32.totalorder %s14, 0
    %p35 = por %p33, %p34
    %p36 = scmp.ne.s32.totalorder %s22, %s23
    %p37 = scmp.eq.s32.totalorder %s15, 1
    %p38 = por %p36, %p37
    %p40 = scmp.ne.s32.totalorder %s23, %s39
    %p41 = scmp.eq.s32.totalorder %s15, 0
    %p42 = por %p40, %p41
    %s44 = sadd.s32 %s43, 1
    %p47 = scmp.eq.s32.totalorder %s9, 1
    %p48 = scmp.ne.s32.totalorder %s43, %s45
    %p49 = scmp.eq.s32.totalorder %s9, 0
    %p50 = por %p48, %p49
    %p51 = scmp.ne.s32.totalorder %s43, %s45
    %p52 = scmp.eq.s32.totalorder %s14, 1
    %p53 = por %p51, %p52
    %p54 = scmp.ne.s32.totalorder %s45, %s46
    %p55 = scmp.eq.s32.totalorder %s14, 0
    %p56 = por %p54, %p55
    %p57 = scmp.ne.s32.totalorder %s45, %s46
    %p58 = scmp.eq.s32.totalorder %s15, 1
    %p59 = por %p57, %p58
    %p61 = scmp.ne.s32.totalorder %s46, %s60
    %p62 = scmp.eq.s32.totalorder %s15, 0
    %p63 = por %p61, %p62
    %s65 = sadd.s32 %s64, 1
    %p68 = scmp.eq.s32.totalorder %s9, 1
    %p69 = scmp.ne.s32.totalorder %s64, %s66
    %p70 = scmp.eq.s32.totalorder %s9, 0
    %p71 = por %p69, %p70
    %p72 = scmp.ne.s32.totalorder %s64, %s66
    %p73 = scmp.eq.s32.totalorder %s14, 1
    %p74 = por %p72, %p73
    %p75 = scmp.ne.s32.totalorder %s66, %s67
    %p76 = scmp.eq.s32.totalorder %s14, 0
    %p77 = por %p75, %p76
    %p78 = scmp.ne.s32.totalorder %s66, %s67
    %p79 = scmp.eq.s32.totalorder %s15, 1
    %p80 = por %p78, %p79
    %p82 = scmp.ne.s32.totalorder %s67, %s81
    %p83 = scmp.eq.s32.totalorder %s15, 0
    %p84 = por %p82, %p83
    %s85 = ssub.s32 %s9, %s16
    %p86 = scmp.eq.s32.totalorder %s85, 0
    %s88 = sadd.s32 %s87, 1
    %s89 = scalar_select %p86, %s87, %s88
    %p92 = pneg %p86
    %p93 = scmp.eq.s32.totalorder %s9, 1
    %p94 = por %p92, %p93
    %p95 = scmp.ne.s32.totalorder %s87, %s90
    %p96 = scmp.eq.s32.totalorder %s9, 0
    %p97 = por %p95, %p96
    %p98 = scmp.ne.s32.totalorder %s87, %s90
    %p99 = scmp.eq.s32.totalorder %s14, 1
    %p100 = por %p98, %p99
    %p101 = scmp.ne.s32.totalorder %s90, %s91
    %p102 = scmp.eq.s32.totalorder %s14, 0
    %p103 = por %p101, %p102
    %p104 = scmp.ne.s32.totalorder %s90, %s91
    %p105 = scmp.eq.s32.totalorder %s15, 1
    %p106 = por %p104, %p105
    %p108 = scmp.ne.s32.totalorder %s91, %s107
    %p109 = scmp.eq.s32.totalorder %s15, 0
    %p110 = por %p108, %p109
    %p111 = scmp.le.s32.totalorder 1, %s9
    %p112 = scmp.lt.s32.totalorder %s9, 3
    %p113 = pnand %p111, %p112
    %p114 = pneg %p113
    // Predicated region
    $region9: #{psablock_forward.4} parent=5 // pred_check
      _
    $region10: #{psablock_forward.4} parent=5 // pred_check_branch
      %116 = sbr.rel (%p113) target = $region12
    $region11: #{psablock_forward.4} parent=5 // pred_region
      %s117 = ssub.s32 %s9, 1
      // Predicated region
      $region13: #{psablock_forward.4} parent=11 // pred_check
        %p118 = pneg %p56
      $region14: #{psablock_forward.4} parent=11 // pred_check_branch
        %120 = sbr.rel (%p118) target = $region16
      $region15: #{psablock_forward.4} parent=11 // pred_region
        _
      $region16: #{psablock_forward.4} parent=11 // pred_fallthru
        _
      // Predicated region
      $region17: #{psablock_forward.4} parent=11 // pred_check
        %p121 = pneg %p77
      $region18: #{psablock_forward.4} parent=11 // pred_check_branch
        %123 = sbr.rel (%p121) target = $region20
      $region19: #{psablock_forward.4} parent=11 // pred_region
        _
      $region20: #{psablock_forward.4} parent=11 // pred_fallthru
        _
    $region12: #{psablock_forward.4} parent=5 // pred_fallthru
      _
    %p124 = scmp.lt.s32.totalorder %s9, 2
    // Predicated region
    $region21: #{psablock_forward.4} parent=5 // pred_check
      %p125 = pneg %p124
    $region22: #{psablock_forward.4} parent=5 // pred_check_branch
      %127 = sbr.rel (%p125) target = $region24
    $region23: #{psablock_forward.4} parent=5 // pred_region
      // Predicated region
      $region25: #{psablock_forward.4} parent=23 // pred_check
        %p128 = pneg %p29
      $region26: #{psablock_forward.4} parent=23 // pred_check_branch
        %130 = sbr.rel (%p128) target = $region28
      $region27: #{psablock_forward.4} parent=23 // pred_region
        %s131 = smul.u32 32, %s9
        %p132 = scmp.lt.s32.totalorder %s131, 63
        %s133 = scalar_select %p132, %s131, 63
        %s134 = smul.addr %s133, 4
        %s135 = scalar_lea.vmem %s0, %s134
        %s136 = smul.u32 32, %s9
      $region28: #{psablock_forward.4} parent=23 // pred_fallthru
        _
    $region24: #{psablock_forward.4} parent=5 // pred_fallthru
      _
    %p137 = scmp.le.s32.totalorder 1, %s9
    %p138 = scmp.lt.s32.totalorder %s9, 3
    %p139 = pnand %p137, %p138
    %p140 = pneg %p139
    // Predicated region
    $region29: #{psablock_forward.4} parent=5 // pred_check
      _
    $region30: #{psablock_forward.4} parent=5 // pred_check_branch
      %142 = sbr.rel (%p139) target = $region32
    $region31: #{psablock_forward.4} parent=5 // pred_region
      %s143 = ssub.s32 %s9, 1
      %s144 = smul.u32 32, %s14
      %p145 = scmp.lt.s32.totalorder %s144, 63
      %s146 = scalar_select %p145, %s144, 63
      %s147 = smul.addr %s146, 4
      %s148 = scalar_lea.vmem %s0, %s147
      %p149 = pneg %p35
      %p150 = pneg %p32
      %p151 = pneg %p56
      %p152 = pneg %p53
      %p153 = pneg %p77
      %p154 = pneg %p74
      %p155 = pneg %p103
      %p156 = pneg %p100
      %s157 = smul.u32 32, %s14
      %p158 = scmp.lt.s32.totalorder %s157, 63
      %s159 = scalar_select %p158, %s157, 63
      %s160 = smul.addr %s159, 2
      %s161 = smul.addr %s160, 4
      %s162 = scalar_lea.vmem %s3, %s161
      %s163 = smul.u32 32, %s14
      %p164 = scmp.lt.s32.totalorder %s163, 63
      %s165 = scalar_select %p164, %s163, 63
      %s166 = smul.addr %s165, 4
      %s167 = scalar_lea.vmem %s0, %s166
      %s168 = smul.u32 32, %s14
      %s169 = smul.u32 32, %s14
      %p170 = scmp.lt.s32.totalorder %s169, 63
      %s171 = scalar_select %p170, %s169, 63
      %s172 = smul.addr %s171, 2
      %s173 = smul.addr %s172, 4
      %s174 = scalar_lea.vmem %s3, %s173
      %s175 = smul.u32 32, %s14
      %v177 = vld [vmem:[%s167] sm:$0xf]
      %v178 = vld [vmem:[%s167 + $0x4] sm:$0xf]
      %v179 = vld [vmem:[%s167 + $0x8] sm:$0xf]
      %v180 = vld [vmem:[%s167 + $0xc] sm:$0xf]
      %v181 = vld [vmem:[%s167 + $0x10] sm:$0xf]
      %v182 = vld [vmem:[%s167 + $0x14] sm:$0xf]
      %v183 = vld [vmem:[%s167 + $0x18] sm:$0xf]
      %v184 = vld [vmem:[%s167 + $0x1c] sm:$0xf]
      %v185 = vld [vmem:[%s167 + $0x20] sm:$0xf]
      %v186 = vld [vmem:[%s167 + $0x24] sm:$0xf]
      %v187 = vld [vmem:[%s167 + $0x28] sm:$0xf]
      %v188 = vld [vmem:[%s167 + $0x2c] sm:$0xf]
      %v189 = vld [vmem:[%s167 + $0x30] sm:$0xf]
      %v190 = vld [vmem:[%s167 + $0x34] sm:$0xf]
      %v191 = vld [vmem:[%s167 + $0x38] sm:$0xf]
      %v192 = vld [vmem:[%s167 + $0x3c] sm:$0xf]
      %v193 = vld [vmem:[%s167 + $0x40] sm:$0xf]
      %v194 = vld [vmem:[%s167 + $0x44] sm:$0xf]
      %v195 = vld [vmem:[%s167 + $0x48] sm:$0xf]
      %v196 = vld [vmem:[%s167 + $0x4c] sm:$0xf]
      %v197 = vld [vmem:[%s167 + $0x50] sm:$0xf]
      %v198 = vld [vmem:[%s167 + $0x54] sm:$0xf]
      %v199 = vld [vmem:[%s167 + $0x58] sm:$0xf]
      %v200 = vld [vmem:[%s167 + $0x5c] sm:$0xf]
      %v201 = vld [vmem:[%s167 + $0x60] sm:$0xf]
      %v202 = vld [vmem:[%s167 + $0x64] sm:$0xf]
      %v203 = vld [vmem:[%s167 + $0x68] sm:$0xf]
      %v204 = vld [vmem:[%s167 + $0x6c] sm:$0xf]
      %v205 = vld [vmem:[%s167 + $0x70] sm:$0xf]
      %v206 = vld [vmem:[%s167 + $0x74] sm:$0xf]
      %v207 = vld [vmem:[%s167 + $0x78] sm:$0xf]
      %v208 = vld [vmem:[%s167 + $0x7c] sm:$0xf]
      %v209 = vld [vmem:[%s1] sm:$0xff]
      %v210 = vld [vmem:[%s1 + $0x8] sm:$0xff]
      %v211 = vld [vmem:[%s1 + $0x10] sm:$0xff]
      %v212 = vld [vmem:[%s1 + $0x18] sm:$0xff]
      %v213 = vld [vmem:[%s1 + $0x20] sm:$0xff]
      %v214 = vld [vmem:[%s1 + $0x28] sm:$0xff]
      %v215 = vld [vmem:[%s1 + $0x30] sm:$0xff]
      %v216 = vld [vmem:[%s1 + $0x38] sm:$0xff]
      %v217 = vld [vmem:[%s1 + $0x40] sm:$0xff]
      %v218 = vld [vmem:[%s1 + $0x48] sm:$0xff]
      %v219 = vld [vmem:[%s1 + $0x50] sm:$0xff]
      %v220 = vld [vmem:[%s1 + $0x58] sm:$0xff]
      %v221 = vld [vmem:[%s1 + $0x60] sm:$0xff]
      %v222 = vld [vmem:[%s1 + $0x68] sm:$0xff]
      %v223 = vld [vmem:[%s1 + $0x70] sm:$0xff]
      %v224 = vld [vmem:[%s1 + $0x78] sm:$0xff]
      %v225 = vld [vmem:[%s2] sm:$0x3]
      %v227 = vlaneseq
      %v228 = vshrl.u32 %v227, 7
      %v229 = vsub.s32 0, %v228
      %v230 = vrot.slane %v225, %v229
      %v231 = vlaneseq
      %v232 = vshrl.u32 %v231, 7
      %v233 = vsub.s32 1, %v232
      %v234 = vrot.slane %v225, %v233
      %v269 = vunpack.c.l.b16 %v177
      %v270 = vunpack.c.l.b16 %v178
      %v271 = vunpack.c.l.b16 %v179
      %v272 = vunpack.c.l.b16 %v180
      %v273 = vunpack.c.l.b16 %v181
      %v274 = vunpack.c.l.b16 %v182
      %v275 = vunpack.c.l.b16 %v183
      %v276 = vunpack.c.l.b16 %v184
      %v277 = vunpack.c.l.b16 %v185
      %v278 = vunpack.c.l.b16 %v186
      %v279 = vunpack.c.l.b16 %v187
      %v280 = vunpack.c.l.b16 %v188
      %v281 = vunpack.c.l.b16 %v189
      %v282 = vunpack.c.l.b16 %v190
      %v283 = vunpack.c.l.b16 %v191
      %v284 = vunpack.c.l.b16 %v192
      %v285 = vunpack.c.l.b16 %v193
      %v286 = vunpack.c.l.b16 %v194
      %v287 = vunpack.c.l.b16 %v195
      %v288 = vunpack.c.l.b16 %v196
      %v289 = vunpack.c.l.b16 %v197
      %v290 = vunpack.c.l.b16 %v198
      %v291 = vunpack.c.l.b16 %v199
      %v292 = vunpack.c.l.b16 %v200
      %v293 = vunpack.c.l.b16 %v201
      %v294 = vunpack.c.l.b16 %v202
      %v295 = vunpack.c.l.b16 %v203
      %v296 = vunpack.c.l.b16 %v204
      %v297 = vunpack.c.l.b16 %v205
      %v298 = vunpack.c.l.b16 %v206
      %v299 = vunpack.c.l.b16 %v207
      %v300 = vunpack.c.l.b16 %v208
      %v301 = vpack.c.b16 %v270, %v269
      %v302 = vpack.c.b16 %v272, %v271
      %v303 = vpack.c.b16 %v274, %v273
      %v304 = vpack.c.b16 %v276, %v275
      %v305 = vpack.c.b16 %v278, %v277
      %v306 = vpack.c.b16 %v280, %v279
      %v307 = vpack.c.b16 %v282, %v281
      %v308 = vpack.c.b16 %v284, %v283
      %v309 = vpack.c.b16 %v286, %v285
      %v310 = vpack.c.b16 %v288, %v287
      %v311 = vpack.c.b16 %v290, %v289
      %v312 = vpack.c.b16 %v292, %v291
      %v313 = vpack.c.b16 %v294, %v293
      %v314 = vpack.c.b16 %v296, %v295
      %v315 = vpack.c.b16 %v298, %v297
      %v316 = vpack.c.b16 %v300, %v299
      %v349 = vunpack.c.l.b16 %v209
      %v350 = vunpack.c.h.b16 %v209
      %v351 = vunpack.c.l.b16 %v210
      %v352 = vunpack.c.h.b16 %v210
      %v353 = vunpack.c.l.b16 %v211
      %v354 = vunpack.c.h.b16 %v211
      %v355 = vunpack.c.l.b16 %v212
      %v356 = vunpack.c.h.b16 %v212
      %v357 = vunpack.c.l.b16 %v213
      %v358 = vunpack.c.h.b16 %v213
      %v359 = vunpack.c.l.b16 %v214
      %v360 = vunpack.c.h.b16 %v214
      %v361 = vunpack.c.l.b16 %v215
      %v362 = vunpack.c.h.b16 %v215
      %v363 = vunpack.c.l.b16 %v216
      %v364 = vunpack.c.h.b16 %v216
      %v365 = vunpack.c.l.b16 %v217
      %v366 = vunpack.c.h.b16 %v217
      %v367 = vunpack.c.l.b16 %v218
      %v368 = vunpack.c.h.b16 %v218
      %v369 = vunpack.c.l.b16 %v219
      %v370 = vunpack.c.h.b16 %v219
      %v371 = vunpack.c.l.b16 %v220
      %v372 = vunpack.c.h.b16 %v220
      %v373 = vunpack.c.l.b16 %v221
      %v374 = vunpack.c.h.b16 %v221
      %v375 = vunpack.c.l.b16 %v222
      %v376 = vunpack.c.h.b16 %v222
      %v377 = vunpack.c.l.b16 %v223
      %v378 = vunpack.c.h.b16 %v223
      %v379 = vunpack.c.l.b16 %v224
      %v380 = vunpack.c.h.b16 %v224
      %v381 = vpack.c.b16 %v351, %v349
      %v382 = vpack.c.b16 %v352, %v350
      %v383 = vpack.c.b16 %v355, %v353
      %v384 = vpack.c.b16 %v356, %v354
      %v385 = vpack.c.b16 %v359, %v357
      %v386 = vpack.c.b16 %v360, %v358
      %v387 = vpack.c.b16 %v363, %v361
      %v388 = vpack.c.b16 %v364, %v362
      %v389 = vpack.c.b16 %v367, %v365
      %v390 = vpack.c.b16 %v368, %v366
      %v391 = vpack.c.b16 %v371, %v369
      %v392 = vpack.c.b16 %v372, %v370
      %v393 = vpack.c.b16 %v375, %v373
      %v394 = vpack.c.b16 %v376, %v374
      %v395 = vpack.c.b16 %v379, %v377
      %v396 = vpack.c.b16 %v380, %v378
      %413 = vmatprep.subr.bf16.mxu0 %v396
      %414 = vmatpush1.bf16.msra.mxu0 %v395
      %415 = vmatprep.subr.bf16.mxu0 %v394
      %416 = vmatpush1.bf16.msra.mxu0 %v393
      %417 = vmatprep.subr.bf16.mxu0 %v392
      %418 = vmatpush1.bf16.msra.mxu0 %v391
      %419 = vmatprep.subr.bf16.mxu0 %v390
      %420 = vmatpush1.bf16.msra.mxu0 %v389
      %421 = vmatprep.subr.bf16.mxu0 %v388
      %422 = vmatpush1.bf16.msra.mxu0 %v387
      %423 = vmatprep.subr.bf16.mxu0 %v386
      %424 = vmatpush1.bf16.msra.mxu0 %v385
      %425 = vmatprep.subr.bf16.mxu0 %v384
      %426 = vmatpush1.bf16.msra.mxu0 %v383
      %427 = vmatprep.subr.bf16.mxu0 %v382
      %428 = vmatpush1.bf16.msra.mxu0 %v381
      %429 = vmatprep.subr.bf16.mxu0 0
      %430 = vmatpush2.bf16.msra.mxu0 0
      %431 = vmatprep.subr.bf16.mxu0 0
      %432 = vmatpush2.bf16.msra.mxu0 0
      %433 = vmatprep.subr.bf16.mxu0 0
      %434 = vmatpush2.bf16.msra.mxu0 0
      %435 = vmatprep.subr.bf16.mxu0 0
      %436 = vmatpush2.bf16.msra.mxu0 0
      %437 = vmatprep.subr.bf16.mxu0 0
      %438 = vmatpush2.bf16.msra.mxu0 0
      %439 = vmatprep.subr.bf16.mxu0 0
      %440 = vmatpush2.bf16.msra.mxu0 0
      %441 = vmatprep.subr.bf16.mxu0 0
      %442 = vmatpush2.bf16.msra.mxu0 0
      %443 = vmatprep.subr.bf16.mxu0 0
      %444 = vmatpush2.bf16.msra.mxu0 0
      %445 = vmatprep.mubr.bf16.mxu0 0
      %446 = vmatmul.mubr.bf16.gmra.mxu0 %v301
      %v447 = vpop.f32.mrf.mxu0
      %v448 = vadd.f32 %v230, %v447
      %v449 = vpop.f32.mrf.mxu0
      %v450 = vadd.f32 %v234, %v449
      %v451 = vpop.f32.mrf.mxu0
      %v452 = vadd.f32 %v230, %v451
      %v453 = vpop.f32.mrf.mxu0
      %v454 = vadd.f32 %v234, %v453
      %455 = vmatprep.mubr.bf16.mxu0 0
      %456 = vmatmul.mubr.bf16.gmra.mxu0 %v302
      %v457 = vpop.f32.mrf.mxu0
      %v458 = vadd.f32 %v230, %v457
      %v459 = vpop.f32.mrf.mxu0
      %v460 = vadd.f32 %v234, %v459
      %v461 = vpop.f32.mrf.mxu0
      %v462 = vadd.f32 %v230, %v461
      %v463 = vpop.f32.mrf.mxu0
      %v464 = vadd.f32 %v234, %v463
      %465 = vmatprep.mubr.bf16.mxu0 0
      %466 = vmatmul.mubr.bf16.gmra.mxu0 %v303
      %v467 = vpop.f32.mrf.mxu0
      %v468 = vadd.f32 %v230, %v467
      %v469 = vpop.f32.mrf.mxu0
      %v470 = vadd.f32 %v234, %v469
      %v471 = vpop.f32.mrf.mxu0
      %v472 = vadd.f32 %v230, %v471
      %v473 = vpop.f32.mrf.mxu0
      %v474 = vadd.f32 %v234, %v473
      %475 = vmatprep.mubr.bf16.mxu0 0
      %476 = vmatmul.mubr.bf16.gmra.mxu0 %v304
      %v477 = vpop.f32.mrf.mxu0
      %v478 = vadd.f32 %v230, %v477
      %v479 = vpop.f32.mrf.mxu0
      %v480 = vadd.f32 %v234, %v479
      %v481 = vpop.f32.mrf.mxu0
      %v482 = vadd.f32 %v230, %v481
      %v483 = vpop.f32.mrf.mxu0
      %v484 = vadd.f32 %v234, %v483
      %485 = vmatprep.mubr.bf16.mxu0 0
      %486 = vmatmul.mubr.bf16.gmra.mxu0 %v305
      %v487 = vpop.f32.mrf.mxu0
      %v488 = vadd.f32 %v230, %v487
      %v489 = vpop.f32.mrf.mxu0
      %v490 = vadd.f32 %v234, %v489
      %v491 = vpop.f32.mrf.mxu0
      %v492 = vadd.f32 %v230, %v491
      %v493 = vpop.f32.mrf.mxu0
      %v494 = vadd.f32 %v234, %v493
      %495 = vmatprep.mubr.bf16.mxu0 0
      %496 = vmatmul.mubr.bf16.gmra.mxu0 %v306
      %v497 = vpop.f32.mrf.mxu0
      %v498 = vadd.f32 %v230, %v497
      %v499 = vpop.f32.mrf.mxu0
      %v500 = vadd.f32 %v234, %v499
      %v501 = vpop.f32.mrf.mxu0
      %v502 = vadd.f32 %v230, %v501
      %v503 = vpop.f32.mrf.mxu0
      %v504 = vadd.f32 %v234, %v503
      %505 = vmatprep.mubr.bf16.mxu0 0
      %506 = vmatmul.mubr.bf16.gmra.mxu0 %v307
      %v507 = vpop.f32.mrf.mxu0
      %v508 = vadd.f32 %v230, %v507
      %v509 = vpop.f32.mrf.mxu0
      %v510 = vadd.f32 %v234, %v509
      %v511 = vpop.f32.mrf.mxu0
      %v512 = vadd.f32 %v230, %v511
      %v513 = vpop.f32.mrf.mxu0
      %v514 = vadd.f32 %v234, %v513
      %515 = vmatprep.mubr.bf16.mxu0 0
      %516 = vmatmul.mubr.bf16.gmra.mxu0 %v308
      %v517 = vpop.f32.mrf.mxu0
      %v518 = vadd.f32 %v230, %v517
      %v519 = vpop.f32.mrf.mxu0
      %v520 = vadd.f32 %v234, %v519
      %v521 = vpop.f32.mrf.mxu0
      %v522 = vadd.f32 %v230, %v521
      %v523 = vpop.f32.mrf.mxu0
      %v524 = vadd.f32 %v234, %v523
      %525 = vmatprep.mubr.bf16.mxu0 0
      %526 = vmatmul.mubr.bf16.gmra.mxu0 %v309
      %v527 = vpop.f32.mrf.mxu0
      %v528 = vadd.f32 %v230, %v527
      %v529 = vpop.f32.mrf.mxu0
      %v530 = vadd.f32 %v234, %v529
      %v531 = vpop.f32.mrf.mxu0
      %v532 = vadd.f32 %v230, %v531
      %v533 = vpop.f32.mrf.mxu0
      %v534 = vadd.f32 %v234, %v533
      %535 = vmatprep.mubr.bf16.mxu0 0
      %536 = vmatmul.mubr.bf16.gmra.mxu0 %v310
      %v537 = vpop.f32.mrf.mxu0
      %v538 = vadd.f32 %v230, %v537
      %v539 = vpop.f32.mrf.mxu0
      %v540 = vadd.f32 %v234, %v539
      %v541 = vpop.f32.mrf.mxu0
      %v542 = vadd.f32 %v230, %v541
      %v543 = vpop.f32.mrf.mxu0
      %v544 = vadd.f32 %v234, %v543
      %545 = vmatprep.mubr.bf16.mxu0 0
      %546 = vmatmul.mubr.bf16.gmra.mxu0 %v311
      %v547 = vpop.f32.mrf.mxu0
      %v548 = vadd.f32 %v230, %v547
      %v549 = vpop.f32.mrf.mxu0
      %v550 = vadd.f32 %v234, %v549
      %v551 = vpop.f32.mrf.mxu0
      %v552 = vadd.f32 %v230, %v551
      %v553 = vpop.f32.mrf.mxu0
      %v554 = vadd.f32 %v234, %v553
      %555 = vmatprep.mubr.bf16.mxu0 0
      %556 = vmatmul.mubr.bf16.gmra.mxu0 %v312
      %v557 = vpop.f32.mrf.mxu0
      %v558 = vadd.f32 %v230, %v557
      %v559 = vpop.f32.mrf.mxu0
      %v560 = vadd.f32 %v234, %v559
      %v561 = vpop.f32.mrf.mxu0
      %v562 = vadd.f32 %v230, %v561
      %v563 = vpop.f32.mrf.mxu0
      %v564 = vadd.f32 %v234, %v563
      %565 = vmatprep.mubr.bf16.mxu0 0
      %566 = vmatmul.mubr.bf16.gmra.mxu0 %v313
      %v567 = vpop.f32.mrf.mxu0
      %v568 = vadd.f32 %v230, %v567
      %v569 = vpop.f32.mrf.mxu0
      %v570 = vadd.f32 %v234, %v569
      %v571 = vpop.f32.mrf.mxu0
      %v572 = vadd.f32 %v230, %v571
      %v573 = vpop.f32.mrf.mxu0
      %v574 = vadd.f32 %v234, %v573
      %575 = vmatprep.mubr.bf16.mxu0 0
      %576 = vmatmul.mubr.bf16.gmra.mxu0 %v314
      %v577 = vpop.f32.mrf.mxu0
      %v578 = vadd.f32 %v230, %v577
      %v579 = vpop.f32.mrf.mxu0
      %v580 = vadd.f32 %v234, %v579
      %v581 = vpop.f32.mrf.mxu0
      %v582 = vadd.f32 %v230, %v581
      %v583 = vpop.f32.mrf.mxu0
      %v584 = vadd.f32 %v234, %v583
      %585 = vmatprep.mubr.bf16.mxu0 0
      %586 = vmatmul.mubr.bf16.gmra.mxu0 %v315
      %v587 = vpop.f32.mrf.mxu0
      %v588 = vadd.f32 %v230, %v587
      %v589 = vpop.f32.mrf.mxu0
      %v590 = vadd.f32 %v234, %v589
      %v591 = vpop.f32.mrf.mxu0
      %v592 = vadd.f32 %v230, %v591
      %v593 = vpop.f32.mrf.mxu0
      %v594 = vadd.f32 %v234, %v593
      %595 = vmatprep.mubr.bf16.mxu0 0
      %596 = vmatmul.mubr.bf16.gmra.mxu0 %v316
      %v597 = vpop.f32.mrf.mxu0
      %v598 = vadd.f32 %v230, %v597
      %v599 = vpop.f32.mrf.mxu0
      %v600 = vadd.f32 %v234, %v599
      %v601 = vpop.f32.mrf.mxu0
      %v602 = vadd.f32 %v230, %v601
      %v603 = vpop.f32.mrf.mxu0
      %v604 = vadd.f32 %v234, %v603
      %605 = vdwg.mxu0
      %v606 = vpack.c.bf16 %v452, %v448
      %v607 = vpack.c.bf16 %v454, %v450
      %v608 = vpack.c.bf16 %v462, %v458
      %v609 = vpack.c.bf16 %v464, %v460
      %v610 = vpack.c.bf16 %v472, %v468
      %v611 = vpack.c.bf16 %v474, %v470
      %v612 = vpack.c.bf16 %v482, %v478
      %v613 = vpack.c.bf16 %v484, %v480
      %v614 = vpack.c.bf16 %v492, %v488
      %v615 = vpack.c.bf16 %v494, %v490
      %v616 = vpack.c.bf16 %v502, %v498
      %v617 = vpack.c.bf16 %v504, %v500
      %v618 = vpack.c.bf16 %v512, %v508
      %v619 = vpack.c.bf16 %v514, %v510
      %v620 = vpack.c.bf16 %v522, %v518
      %v621 = vpack.c.bf16 %v524, %v520
      %v622 = vpack.c.bf16 %v532, %v528
      %v623 = vpack.c.bf16 %v534, %v530
      %v624 = vpack.c.bf16 %v542, %v538
      %v625 = vpack.c.bf16 %v544, %v540
      %v626 = vpack.c.bf16 %v552, %v548
      %v627 = vpack.c.bf16 %v554, %v550
      %v628 = vpack.c.bf16 %v562, %v558
      %v629 = vpack.c.bf16 %v564, %v560
      %v630 = vpack.c.bf16 %v572, %v568
      %v631 = vpack.c.bf16 %v574, %v570
      %v632 = vpack.c.bf16 %v582, %v578
      %v633 = vpack.c.bf16 %v584, %v580
      %v634 = vpack.c.bf16 %v592, %v588
      %v635 = vpack.c.bf16 %v594, %v590
      %v636 = vpack.c.bf16 %v602, %v598
      %v637 = vpack.c.bf16 %v604, %v600
      %v670 = vunpack.c.l.b16 %v606
      %v671 = vunpack.c.l.b16 %v607
      %v672 = vunpack.c.h.b16 %v606
      %v673 = vunpack.c.h.b16 %v607
      %v674 = vunpack.c.l.b16 %v608
      %v675 = vunpack.c.l.b16 %v609
      %v676 = vunpack.c.h.b16 %v608
      %v677 = vunpack.c.h.b16 %v609
      %v678 = vunpack.c.l.b16 %v610
      %v679 = vunpack.c.l.b16 %v611
      %v680 = vunpack.c.h.b16 %v610
      %v681 = vunpack.c.h.b16 %v611
      %v682 = vunpack.c.l.b16 %v612
      %v683 = vunpack.c.l.b16 %v613
      %v684 = vunpack.c.h.b16 %v612
      %v685 = vunpack.c.h.b16 %v613
      %v686 = vunpack.c.l.b16 %v614
      %v687 = vunpack.c.l.b16 %v615
      %v688 = vunpack.c.h.b16 %v614
      %v689 = vunpack.c.h.b16 %v615
      %v690 = vunpack.c.l.b16 %v616
      %v691 = vunpack.c.l.b16 %v617
      %v692 = vunpack.c.h.b16 %v616
      %v693 = vunpack.c.h.b16 %v617
      %v694 = vunpack.c.l.b16 %v618
      %v695 = vunpack.c.l.b16 %v619
      %v696 = vunpack.c.h.b16 %v618
      %v697 = vunpack.c.h.b16 %v619
      %v698 = vunpack.c.l.b16 %v620
      %v699 = vunpack.c.l.b16 %v621
      %v700 = vunpack.c.h.b16 %v620
      %v701 = vunpack.c.h.b16 %v621
      %v702 = vunpack.c.l.b16 %v622
      %v703 = vunpack.c.l.b16 %v623
      %v704 = vunpack.c.h.b16 %v622
      %v705 = vunpack.c.h.b16 %v623
      %v706 = vunpack.c.l.b16 %v624
      %v707 = vunpack.c.l.b16 %v625
      %v708 = vunpack.c.h.b16 %v624
      %v709 = vunpack.c.h.b16 %v625
      %v710 = vunpack.c.l.b16 %v626
      %v711 = vunpack.c.l.b16 %v627
      %v712 = vunpack.c.h.b16 %v626
      %v713 = vunpack.c.h.b16 %v627
      %v714 = vunpack.c.l.b16 %v628
      %v715 = vunpack.c.l.b16 %v629
      %v716 = vunpack.c.h.b16 %v628
      %v717 = vunpack.c.h.b16 %v629
      %v718 = vunpack.c.l.b16 %v630
      %v719 = vunpack.c.l.b16 %v631
      %v720 = vunpack.c.h.b16 %v630
      %v721 = vunpack.c.h.b16 %v631
      %v722 = vunpack.c.l.b16 %v632
      %v723 = vunpack.c.l.b16 %v633
      %v724 = vunpack.c.h.b16 %v632
      %v725 = vunpack.c.h.b16 %v633
      %v726 = vunpack.c.l.b16 %v634
      %v727 = vunpack.c.l.b16 %v635
      %v728 = vunpack.c.h.b16 %v634
      %v729 = vunpack.c.h.b16 %v635
      %v730 = vunpack.c.l.b16 %v636
      %v731 = vunpack.c.l.b16 %v637
      %v732 = vunpack.c.h.b16 %v636
      %v733 = vunpack.c.h.b16 %v637
      %v734 = vpack.c.b16 %v671, %v670
      %v735 = vpack.c.b16 %v673, %v672
      %v736 = vpack.c.b16 %v675, %v674
      %v737 = vpack.c.b16 %v677, %v676
      %v738 = vpack.c.b16 %v679, %v678
      %v739 = vpack.c.b16 %v681, %v680
      %v740 = vpack.c.b16 %v683, %v682
      %v741 = vpack.c.b16 %v685, %v684
      %v742 = vpack.c.b16 %v687, %v686
      %v743 = vpack.c.b16 %v689, %v688
      %v744 = vpack.c.b16 %v691, %v690
      %v745 = vpack.c.b16 %v693, %v692
      %v746 = vpack.c.b16 %v695, %v694
      %v747 = vpack.c.b16 %v697, %v696
      %v748 = vpack.c.b16 %v699, %v698
      %v749 = vpack.c.b16 %v701, %v700
      %v750 = vpack.c.b16 %v703, %v702
      %v751 = vpack.c.b16 %v705, %v704
      %v752 = vpack.c.b16 %v707, %v706
      %v753 = vpack.c.b16 %v709, %v708
      %v754 = vpack.c.b16 %v711, %v710
      %v755 = vpack.c.b16 %v713, %v712
      %v756 = vpack.c.b16 %v715, %v714
      %v757 = vpack.c.b16 %v717, %v716
      %v758 = vpack.c.b16 %v719, %v718
      %v759 = vpack.c.b16 %v721, %v720
      %v760 = vpack.c.b16 %v723, %v722
      %v761 = vpack.c.b16 %v725, %v724
      %v762 = vpack.c.b16 %v727, %v726
      %v763 = vpack.c.b16 %v729, %v728
      %v764 = vpack.c.b16 %v731, %v730
      %v765 = vpack.c.b16 %v733, %v732
      %798 = vst [vmem:[%s174] sm:$0xff] %v734
      %799 = vst [vmem:[%s174 + $0x8] sm:$0xff] %v735
      %800 = vst [vmem:[%s174 + $0x10] sm:$0xff] %v736
      %801 = vst [vmem:[%s174 + $0x18] sm:$0xff] %v737
      %802 = vst [vmem:[%s174 + $0x20] sm:$0xff] %v738
      %803 = vst [vmem:[%s174 + $0x28] sm:$0xff] %v739
      %804 = vst [vmem:[%s174 + $0x30] sm:$0xff] %v740
      %805 = vst [vmem:[%s174 + $0x38] sm:$0xff] %v741
      %806 = vst [vmem:[%s174 + $0x40] sm:$0xff] %v742
      %807 = vst [vmem:[%s174 + $0x48] sm:$0xff] %v743
      %808 = vst [vmem:[%s174 + $0x50] sm:$0xff] %v744
      %809 = vst [vmem:[%s174 + $0x58] sm:$0xff] %v745
      %810 = vst [vmem:[%s174 + $0x60] sm:$0xff] %v746
      %811 = vst [vmem:[%s174 + $0x68] sm:$0xff] %v747
      %812 = vst [vmem:[%s174 + $0x70] sm:$0xff] %v748
      %813 = vst [vmem:[%s174 + $0x78] sm:$0xff] %v749
      %814 = vst [vmem:[%s174 + $0x80] sm:$0xff] %v750
      %815 = vst [vmem:[%s174 + $0x88] sm:$0xff] %v751
      %816 = vst [vmem:[%s174 + $0x90] sm:$0xff] %v752
      %817 = vst [vmem:[%s174 + $0x98] sm:$0xff] %v753
      %818 = vst [vmem:[%s174 + $0xa0] sm:$0xff] %v754
      %819 = vst [vmem:[%s174 + $0xa8] sm:$0xff] %v755
      %820 = vst [vmem:[%s174 + $0xb0] sm:$0xff] %v756
      %821 = vst [vmem:[%s174 + $0xb8] sm:$0xff] %v757
      %822 = vst [vmem:[%s174 + $0xc0] sm:$0xff] %v758
      %823 = vst [vmem:[%s174 + $0xc8] sm:$0xff] %v759
      %824 = vst [vmem:[%s174 + $0xd0] sm:$0xff] %v760
      %825 = vst [vmem:[%s174 + $0xd8] sm:$0xff] %v761
      %826 = vst [vmem:[%s174 + $0xe0] sm:$0xff] %v762
      %827 = vst [vmem:[%s174 + $0xe8] sm:$0xff] %v763
      %828 = vst [vmem:[%s174 + $0xf0] sm:$0xff] %v764
      %829 = vst [vmem:[%s174 + $0xf8] sm:$0xff] %v765
      %s830 = smul.u32 32, %s14
      %p831 = scmp.lt.s32.totalorder %s830, 63
      %s832 = scalar_select %p831, %s830, 63
      %s833 = smul.addr %s832, 2
      %s834 = smul.addr %s833, 4
      %s835 = scalar_lea.vmem %s3, %s834
      // Predicated region
      $region33: #{psablock_forward.4} parent=31 // pred_check
        %p836 = pneg %p100
      $region34: #{psablock_forward.4} parent=31 // pred_check_branch
        %838 = sbr.rel (%p836) target = $region36
      $region35: #{psablock_forward.4} parent=31 // pred_region
        %s839 = smul.u32 32, %s14
      $region36: #{psablock_forward.4} parent=31 // pred_fallthru
        _
    $region32: #{psablock_forward.4} parent=5 // pred_fallthru
      _
    %p840 = scmp.le.s32.totalorder 2, %s9
    // Predicated region
    $region37: #{psablock_forward.4} parent=5 // pred_check
      %p841 = pneg %p840
    $region38: #{psablock_forward.4} parent=5 // pred_check_branch
      %843 = sbr.rel (%p841) target = $region40
    $region39: #{psablock_forward.4} parent=5 // pred_region
      %s844 = ssub.s32 %s9, 2
      // Predicated region
      $region41: #{psablock_forward.4} parent=39 // pred_check
        %p845 = pneg %p106
      $region42: #{psablock_forward.4} parent=39 // pred_check_branch
        %847 = sbr.rel (%p845) target = $region44
      $region43: #{psablock_forward.4} parent=39 // pred_region
        %s848 = smul.u32 32, %s15
        %p849 = scmp.lt.s32.totalorder %s848, 63
        %s850 = scalar_select %p849, %s848, 63
        %s851 = smul.addr %s850, 2
        %s852 = smul.addr %s851, 4
        %s853 = scalar_lea.vmem %s3, %s852
      $region44: #{psablock_forward.4} parent=39 // pred_fallthru
        _
    $region40: #{psablock_forward.4} parent=5 // pred_fallthru
      _
  $region6: #{psablock_forward.4} parent=0 // loop_footer
    %s13 = sadd.s32 1, %s9
  $region7: #{psablock_forward.4} parent=0 // loop_footer_branch
    %8 = sbr.rel target = $region3
  $region8: #{psablock_forward.4} parent=0 // loop_exit
    _

// kernel: psablock_forward.7
$region0: #{psablock_forward.7}
  #allocation0 [shape = 'u32[]', space=smem, size = 0x4, offset = 0x4, fixed_abs, tag = 'smem constant byte address 0x4 - core index']
  #allocation1 [shape = 'u32[144,128]{1,0:T(1,128)}', space=vmem, size = 0x12000, scoped, tag = 'internal scratch']
  %s0 = inlined_call_operand.vmem [shape: f32[512,128], index: 0, kind: input, shape index: {}]
  %s1 = inlined_call_operand.vmem [shape: bf16[128,256], index: 1, kind: input, shape index: {}]
  %s2 = inlined_call_operand.vmem [shape: f32[1,256], index: 2, kind: input, shape index: {}]
  %s3 = inlined_call_operand.vmem [shape: bf16[256,128], index: 3, kind: input, shape index: {}]
  %s4 = inlined_call_operand.vmem [shape: f32[1,128], index: 4, kind: input, shape index: {}]
  %s5 = inlined_call_operand.hbm [shape: f32[512,128], index: 5, kind: output, shape index: {}]
  %s6 = sld [smem:[#allocation0]]
  $region53: #{psablock_forward.7} parent=0
    _
  %s8 = ssub.s32 1, %s6
  %s9 = scalar_select 0, %s8, %s6
  $region1: #{psablock_forward.7} parent=0
    #allocation2 [shape = 'u8[262144]{0}', space=vmem, size = 0x40000, scoped, tag = 'output window, operand 0']
    #allocation3 [shape = 's32[2]{0}', space=sflag, size = 0x8, scoped, tag = 'scoped memory for psablock_forward.7']
    %10 = vsyncpa [#allocation3], 0
    %s11 = scalar_lea.sflag [#allocation3], 1
    %12 = vsyncpa %s11, 0
    loop: start=0, step=1, limit=4
    $region2: #{psablock_forward.7} parent=1 // loop_pre_header
      _
    $region3: #{psablock_forward.7} parent=1 // loop_header
      %s14 = sphi 0, %s18
      %p15 = scmp.ge.s32.totalorder %s14, 4
      %s24 = sphi 0, %s26
      %s27 = sphi 0, %s24
      %s28 = sphi 0, %s27
      %s44 = sphi 0, %s28
      %s48 = sphi 0, %s48
      %s50 = sphi 0, %s48
      %s51 = sphi 0, %s50
      %s65 = sphi 0, %s51
      %s69 = sphi 0, %s69
      %s71 = sphi 0, %s69
      %s72 = sphi 0, %s71
      %s86 = sphi 0, %s72
      %s90 = sphi 0, %s90
      %s92 = sphi 0, %s90
      %s93 = sphi 0, %s92
      %s107 = sphi 0, %s93
      %s111 = sphi 0, %s111
      %s113 = sphi 0, %s111
      %s114 = sphi 0, %s113
      %s128 = sphi 0, %s114
      %s134 = sphi 0, %s136
      %s137 = sphi 0, %s134
      %s138 = sphi 0, %s137
      %s154 = sphi 0, %s138
    $region4: #{psablock_forward.7} parent=1 // loop_header_branch
      %17 = sbr.rel (%p15) target = $region8
    $region5: #{psablock_forward.7} parent=1 // loop_body
      %s19 = ssub.s32 %s14, 1
      %s20 = ssub.s32 %s14, 2
      %s21 = sadd.s32 %s14, 1
      %s22 = ssub.s32 %s14, %s21
      %p23 = scmp.eq.s32.totalorder %s22, 0
      %s25 = sadd.s32 %s24, 1
      %s26 = scalar_select %p23, %s24, %s25
      %p29 = pneg %p23
      %p30 = scmp.eq.s32.totalorder %s14, 1
      %p31 = por %p29, %p30
      %p32 = scmp.ne.s32.totalorder %s24, %s27
      %p33 = scmp.eq.s32.totalorder %s14, 0
      %p34 = por %p32, %p33
      %p35 = scmp.ne.s32.totalorder %s24, %s27
      %p36 = scmp.eq.s32.totalorder %s19, 1
      %p37 = por %p35, %p36
      %p38 = scmp.ne.s32.totalorder %s27, %s28
      %p39 = scmp.eq.s32.totalorder %s19, 0
      %p40 = por %p38, %p39
      %p41 = scmp.ne.s32.totalorder %s27, %s28
      %p42 = scmp.eq.s32.totalorder %s20, 1
      %p43 = por %p41, %p42
      %p45 = scmp.ne.s32.totalorder %s28, %s44
      %p46 = scmp.eq.s32.totalorder %s20, 0
      %p47 = por %p45, %p46
      %s49 = sadd.s32 %s48, 1
      %p52 = scmp.eq.s32.totalorder %s14, 1
      %p53 = scmp.ne.s32.totalorder %s48, %s50
      %p54 = scmp.eq.s32.totalorder %s14, 0
      %p55 = por %p53, %p54
      %p56 = scmp.ne.s32.totalorder %s48, %s50
      %p57 = scmp.eq.s32.totalorder %s19, 1
      %p58 = por %p56, %p57
      %p59 = scmp.ne.s32.totalorder %s50, %s51
      %p60 = scmp.eq.s32.totalorder %s19, 0
      %p61 = por %p59, %p60
      %p62 = scmp.ne.s32.totalorder %s50, %s51
      %p63 = scmp.eq.s32.totalorder %s20, 1
      %p64 = por %p62, %p63
      %p66 = scmp.ne.s32.totalorder %s51, %s65
      %p67 = scmp.eq.s32.totalorder %s20, 0
      %p68 = por %p66, %p67
      %s70 = sadd.s32 %s69, 1
      %p73 = scmp.eq.s32.totalorder %s14, 1
      %p74 = scmp.ne.s32.totalorder %s69, %s71
      %p75 = scmp.eq.s32.totalorder %s14, 0
      %p76 = por %p74, %p75
      %p77 = scmp.ne.s32.totalorder %s69, %s71
      %p78 = scmp.eq.s32.totalorder %s19, 1
      %p79 = por %p77, %p78
      %p80 = scmp.ne.s32.totalorder %s71, %s72
      %p81 = scmp.eq.s32.totalorder %s19, 0
      %p82 = por %p80, %p81
      %p83 = scmp.ne.s32.totalorder %s71, %s72
      %p84 = scmp.eq.s32.totalorder %s20, 1
      %p85 = por %p83, %p84
      %p87 = scmp.ne.s32.totalorder %s72, %s86
      %p88 = scmp.eq.s32.totalorder %s20, 0
      %p89 = por %p87, %p88
      %s91 = sadd.s32 %s90, 1
      %p94 = scmp.eq.s32.totalorder %s14, 1
      %p95 = scmp.ne.s32.totalorder %s90, %s92
      %p96 = scmp.eq.s32.totalorder %s14, 0
      %p97 = por %p95, %p96
      %p98 = scmp.ne.s32.totalorder %s90, %s92
      %p99 = scmp.eq.s32.totalorder %s19, 1
      %p100 = por %p98, %p99
      %p101 = scmp.ne.s32.totalorder %s92, %s93
      %p102 = scmp.eq.s32.totalorder %s19, 0
      %p103 = por %p101, %p102
      %p104 = scmp.ne.s32.totalorder %s92, %s93
      %p105 = scmp.eq.s32.totalorder %s20, 1
      %p106 = por %p104, %p105
      %p108 = scmp.ne.s32.totalorder %s93, %s107
      %p109 = scmp.eq.s32.totalorder %s20, 0
      %p110 = por %p108, %p109
      %s112 = sadd.s32 %s111, 1
      %p115 = scmp.eq.s32.totalorder %s14, 1
      %p116 = scmp.ne.s32.totalorder %s111, %s113
      %p117 = scmp.eq.s32.totalorder %s14, 0
      %p118 = por %p116, %p117
      %p119 = scmp.ne.s32.totalorder %s111, %s113
      %p120 = scmp.eq.s32.totalorder %s19, 1
      %p121 = por %p119, %p120
      %p122 = scmp.ne.s32.totalorder %s113, %s114
      %p123 = scmp.eq.s32.totalorder %s19, 0
      %p124 = por %p122, %p123
      %p125 = scmp.ne.s32.totalorder %s113, %s114
      %p126 = scmp.eq.s32.totalorder %s20, 1
      %p127 = por %p125, %p126
      %p129 = scmp.ne.s32.totalorder %s114, %s128
      %p130 = scmp.eq.s32.totalorder %s20, 0
      %p131 = por %p129, %p130
      %s132 = ssub.s32 %s14, %s21
      %p133 = scmp.eq.s32.totalorder %s132, 0
      %s135 = sadd.s32 %s134, 1
      %s136 = scalar_select %p133, %s134, %s135
      %p139 = pneg %p133
      %p140 = scmp.eq.s32.totalorder %s14, 1
      %p141 = por %p139, %p140
      %p142 = scmp.ne.s32.totalorder %s134, %s137
      %p143 = scmp.eq.s32.totalorder %s14, 0
      %p144 = por %p142, %p143
      %p145 = scmp.ne.s32.totalorder %s134, %s137
      %p146 = scmp.eq.s32.totalorder %s19, 1
      %p147 = por %p145, %p146
      %p148 = scmp.ne.s32.totalorder %s137, %s138
      %p149 = scmp.eq.s32.totalorder %s19, 0
      %p150 = por %p148, %p149
      %p151 = scmp.ne.s32.totalorder %s137, %s138
      %p152 = scmp.eq.s32.totalorder %s20, 1
      %p153 = por %p151, %p152
      %p155 = scmp.ne.s32.totalorder %s138, %s154
      %p156 = scmp.eq.s32.totalorder %s20, 0
      %p157 = por %p155, %p156
      %p158 = scmp.le.s32.totalorder 1, %s14
      %p159 = scmp.lt.s32.totalorder %s14, 3
      %p160 = pnand %p158, %p159
      %p161 = pneg %p160
      // Predicated region
      $region9: #{psablock_forward.7} parent=5 // pred_check
        _
      $region10: #{psablock_forward.7} parent=5 // pred_check_branch
        %163 = sbr.rel (%p160) target = $region12
      $region11: #{psablock_forward.7} parent=5 // pred_region
        %s164 = ssub.s32 %s14, 1
        // Predicated region
        $region13: #{psablock_forward.7} parent=11 // pred_check
          %p165 = pneg %p61
        $region14: #{psablock_forward.7} parent=11 // pred_check_branch
          %167 = sbr.rel (%p165) target = $region16
        $region15: #{psablock_forward.7} parent=11 // pred_region
          _
        $region16: #{psablock_forward.7} parent=11 // pred_fallthru
          _
        // Predicated region
        $region17: #{psablock_forward.7} parent=11 // pred_check
          %p168 = pneg %p82
        $region18: #{psablock_forward.7} parent=11 // pred_check_branch
          %170 = sbr.rel (%p168) target = $region20
        $region19: #{psablock_forward.7} parent=11 // pred_region
          _
        $region20: #{psablock_forward.7} parent=11 // pred_fallthru
          _
        // Predicated region
        $region21: #{psablock_forward.7} parent=11 // pred_check
          %p171 = pneg %p103
        $region22: #{psablock_forward.7} parent=11 // pred_check_branch
          %173 = sbr.rel (%p171) target = $region24
        $region23: #{psablock_forward.7} parent=11 // pred_region
          _
        $region24: #{psablock_forward.7} parent=11 // pred_fallthru
          _
        // Predicated region
        $region25: #{psablock_forward.7} parent=11 // pred_check
          %p174 = pneg %p124
        $region26: #{psablock_forward.7} parent=11 // pred_check_branch
          %176 = sbr.rel (%p174) target = $region28
        $region27: #{psablock_forward.7} parent=11 // pred_region
          _
        $region28: #{psablock_forward.7} parent=11 // pred_fallthru
          _
      $region12: #{psablock_forward.7} parent=5 // pred_fallthru
        _
      %p177 = scmp.lt.s32.totalorder %s14, 2
      // Predicated region
      $region29: #{psablock_forward.7} parent=5 // pred_check
        %p178 = pneg %p177
      $region30: #{psablock_forward.7} parent=5 // pred_check_branch
        %180 = sbr.rel (%p178) target = $region32
      $region31: #{psablock_forward.7} parent=5 // pred_region
        // Predicated region
        $region33: #{psablock_forward.7} parent=31 // pred_check
          %p181 = pneg %p34
        $region34: #{psablock_forward.7} parent=31 // pred_check_branch
          %183 = sbr.rel (%p181) target = $region36
        $region35: #{psablock_forward.7} parent=31 // pred_region
          %s184 = smul.u32 32, %s14
          %p185 = scmp.lt.s32.totalorder %s184, 63
          %s186 = scalar_select %p185, %s184, 63
          %s187 = smul.addr %s186, 8
          %s188 = scalar_lea.vmem %s0, %s187
          %s189 = smul.u32 32, %s14
        $region36: #{psablock_forward.7} parent=31 // pred_fallthru
          _
      $region32: #{psablock_forward.7} parent=5 // pred_fallthru
        _
      %p190 = scmp.le.s32.totalorder 1, %s14
      %p191 = scmp.lt.s32.totalorder %s14, 3
      %p192 = pnand %p190, %p191
      %p193 = pneg %p192
      // Predicated region
      $region37: #{psablock_forward.7} parent=5 // pred_check
        _
      $region38: #{psablock_forward.7} parent=5 // pred_check_branch
        %195 = sbr.rel (%p192) target = $region40
      $region39: #{psablock_forward.7} parent=5 // pred_region
        %s196 = ssub.s32 %s14, 1
        %s197 = smul.u32 32, %s19
        %p198 = scmp.lt.s32.totalorder %s197, 63
        %s199 = scalar_select %p198, %s197, 63
        %s200 = smul.addr %s199, 8
        %s201 = scalar_lea.vmem %s0, %s200
        %p202 = pneg %p40
        %p203 = pneg %p37
        %p204 = pneg %p61
        %p205 = pneg %p58
        %p206 = pneg %p82
        %p207 = pneg %p79
        %p208 = pneg %p103
        %p209 = pneg %p100
        %p210 = pneg %p124
        %p211 = pneg %p121
        %p212 = pneg %p150
        %p213 = pneg %p147
        %s214 = sand.u32 %s137, 1
        %s215 = scalar_lea.sflag [#allocation3], %s214
        %s216 = sand.u32 %s137, 1
        %s217 = smul.addr %s216, 256
        %s218 = scalar_lea.vmem [#allocation2], %s217
        %s219 = smul.u32 32, %s19
        %p220 = scmp.lt.s32.totalorder %s219, 63
        %s221 = scalar_select %p220, %s219, 63
        %s222 = smul.addr %s221, 8
        %s223 = scalar_lea.vmem %s0, %s222
        %s224 = smul.u32 32, %s19
        %s225 = smul.u32 32, %s19
        %v227 = vld [vmem:[%s223] sm:$0xff]
        %v228 = vld [vmem:[%s223 + $0x8] sm:$0xff]
        %v229 = vld [vmem:[%s223 + $0x10] sm:$0xff]
        %v230 = vld [vmem:[%s223 + $0x18] sm:$0xff]
        %v231 = vld [vmem:[%s223 + $0x20] sm:$0xff]
        %v232 = vld [vmem:[%s223 + $0x28] sm:$0xff]
        %v233 = vld [vmem:[%s223 + $0x30] sm:$0xff]
        %v234 = vld [vmem:[%s223 + $0x38] sm:$0xff]
        %v235 = vld [vmem:[%s223 + $0x40] sm:$0xff]
        %v236 = vld [vmem:[%s223 + $0x48] sm:$0xff]
        %v237 = vld [vmem:[%s223 + $0x50] sm:$0xff]
        %v238 = vld [vmem:[%s223 + $0x58] sm:$0xff]
        %v239 = vld [vmem:[%s223 + $0x60] sm:$0xff]
        %v240 = vld [vmem:[%s223 + $0x68] sm:$0xff]
        %v241 = vld [vmem:[%s223 + $0x70] sm:$0xff]
        %v242 = vld [vmem:[%s223 + $0x78] sm:$0xff]
        %v243 = vld [vmem:[%s223 + $0x80] sm:$0xff]
        %v244 = vld [vmem:[%s223 + $0x88] sm:$0xff]
        %v245 = vld [vmem:[%s223 + $0x90] sm:$0xff]
        %v246 = vld [vmem:[%s223 + $0x98] sm:$0xff]
        %v247 = vld [vmem:[%s223 + $0xa0] sm:$0xff]
        %v248 = vld [vmem:[%s223 + $0xa8] sm:$0xff]
        %v249 = vld [vmem:[%s223 + $0xb0] sm:$0xff]
        %v250 = vld [vmem:[%s223 + $0xb8] sm:$0xff]
        %v251 = vld [vmem:[%s223 + $0xc0] sm:$0xff]
        %v252 = vld [vmem:[%s223 + $0xc8] sm:$0xff]
        %v253 = vld [vmem:[%s223 + $0xd0] sm:$0xff]
        %v254 = vld [vmem:[%s223 + $0xd8] sm:$0xff]
        %v255 = vld [vmem:[%s223 + $0xe0] sm:$0xff]
        %v256 = vld [vmem:[%s223 + $0xe8] sm:$0xff]
        %v257 = vld [vmem:[%s223 + $0xf0] sm:$0xff]
        %v258 = vld [vmem:[%s223 + $0xf8] sm:$0xff]
        %v259 = vpack.c.bf16 %v228, %v227
        %v260 = vpack.c.bf16 %v230, %v229
        %v261 = vpack.c.bf16 %v232, %v231
        %v262 = vpack.c.bf16 %v234, %v233
        %v263 = vpack.c.bf16 %v236, %v235
        %v264 = vpack.c.bf16 %v238, %v237
        %v265 = vpack.c.bf16 %v240, %v239
        %v266 = vpack.c.bf16 %v242, %v241
        %v267 = vpack.c.bf16 %v244, %v243
        %v268 = vpack.c.bf16 %v246, %v245
        %v269 = vpack.c.bf16 %v248, %v247
        %v270 = vpack.c.bf16 %v250, %v249
        %v271 = vpack.c.bf16 %v252, %v251
        %v272 = vpack.c.bf16 %v254, %v253
        %v273 = vpack.c.bf16 %v256, %v255
        %v274 = vpack.c.bf16 %v258, %v257
        %v275 = vld [vmem:[%s1] sm:$0xff]
        %v276 = vld [vmem:[%s1 + $0x8] sm:$0xff]
        %v277 = vld [vmem:[%s1 + $0x10] sm:$0xff]
        %v278 = vld [vmem:[%s1 + $0x18] sm:$0xff]
        %v279 = vld [vmem:[%s1 + $0x20] sm:$0xff]
        %v280 = vld [vmem:[%s1 + $0x28] sm:$0xff]
        %v281 = vld [vmem:[%s1 + $0x30] sm:$0xff]
        %v282 = vld [vmem:[%s1 + $0x38] sm:$0xff]
        %v283 = vld [vmem:[%s1 + $0x40] sm:$0xff]
        %v284 = vld [vmem:[%s1 + $0x48] sm:$0xff]
        %v285 = vld [vmem:[%s1 + $0x50] sm:$0xff]
        %v286 = vld [vmem:[%s1 + $0x58] sm:$0xff]
        %v287 = vld [vmem:[%s1 + $0x60] sm:$0xff]
        %v288 = vld [vmem:[%s1 + $0x68] sm:$0xff]
        %v289 = vld [vmem:[%s1 + $0x70] sm:$0xff]
        %v290 = vld [vmem:[%s1 + $0x78] sm:$0xff]
        %v291 = vld [vmem:[%s2] sm:$0x3]
        %v293 = vlaneseq
        %v294 = vshrl.u32 %v293, 7
        %v295 = vsub.s32 0, %v294
        %v296 = vrot.slane %v291, %v295
        %v297 = vlaneseq
        %v298 = vshrl.u32 %v297, 7
        %v299 = vsub.s32 1, %v298
        %v300 = vrot.slane %v291, %v299
        %v319 = vunpack.c.l.b16 %v275
        %v320 = vunpack.c.h.b16 %v275
        %v321 = vunpack.c.l.b16 %v276
        %v322 = vunpack.c.h.b16 %v276
        %v323 = vunpack.c.l.b16 %v277
        %v324 = vunpack.c.h.b16 %v277
        %v325 = vunpack.c.l.b16 %v278
        %v326 = vunpack.c.h.b16 %v278
        %v327 = vunpack.c.l.b16 %v279
        %v328 = vunpack.c.h.b16 %v279
        %v329 = vunpack.c.l.b16 %v280
        %v330 = vunpack.c.h.b16 %v280
        %v331 = vunpack.c.l.b16 %v281
        %v332 = vunpack.c.h.b16 %v281
        %v333 = vunpack.c.l.b16 %v282
        %v334 = vunpack.c.h.b16 %v282
        %v335 = vunpack.c.l.b16 %v283
        %v336 = vunpack.c.h.b16 %v283
        %v337 = vunpack.c.l.b16 %v284
        %v338 = vunpack.c.h.b16 %v284
        %v339 = vunpack.c.l.b16 %v285
        %v340 = vunpack.c.h.b16 %v285
        %v341 = vunpack.c.l.b16 %v286
        %v342 = vunpack.c.h.b16 %v286
        %v343 = vunpack.c.l.b16 %v287
        %v344 = vunpack.c.h.b16 %v287
        %v345 = vunpack.c.l.b16 %v288
        %v346 = vunpack.c.h.b16 %v288
        %v347 = vunpack.c.l.b16 %v289
        %v348 = vunpack.c.h.b16 %v289
        %v349 = vunpack.c.l.b16 %v290
        %v350 = vunpack.c.h.b16 %v290
        %v351 = vpack.c.b16 %v321, %v319
        %v352 = vpack.c.b16 %v322, %v320
        %v353 = vpack.c.b16 %v325, %v323
        %v354 = vpack.c.b16 %v326, %v324
        %v355 = vpack.c.b16 %v329, %v327
        %v356 = vpack.c.b16 %v330, %v328
        %v357 = vpack.c.b16 %v333, %v331
        %v358 = vpack.c.b16 %v334, %v332
        %v359 = vpack.c.b16 %v337, %v335
        %v360 = vpack.c.b16 %v338, %v336
        %v361 = vpack.c.b16 %v341, %v339
        %v362 = vpack.c.b16 %v342, %v340
        %v363 = vpack.c.b16 %v345, %v343
        %v364 = vpack.c.b16 %v346, %v344
        %v365 = vpack.c.b16 %v349, %v347
        %v366 = vpack.c.b16 %v350, %v348
        %383 = vmatprep.subr.bf16.mxu0 %v366
        %384 = vmatpush1.bf16.msra.mxu0 %v365
        %385 = vmatprep.subr.bf16.mxu0 %v364
        %386 = vmatpush1.bf16.msra.mxu0 %v363
        %387 = vmatprep.subr.bf16.mxu0 %v362
        %388 = vmatpush1.bf16.msra.mxu0 %v361
        %389 = vmatprep.subr.bf16.mxu0 %v360
        %390 = vmatpush1.bf16.msra.mxu0 %v359
        %391 = vmatprep.subr.bf16.mxu0 %v358
        %392 = vmatpush1.bf16.msra.mxu0 %v357
        %393 = vmatprep.subr.bf16.mxu0 %v356
        %394 = vmatpush1.bf16.msra.mxu0 %v355
        %395 = vmatprep.subr.bf16.mxu0 %v354
        %396 = vmatpush1.bf16.msra.mxu0 %v353
        %397 = vmatprep.subr.bf16.mxu0 %v352
        %398 = vmatpush1.bf16.msra.mxu0 %v351
        %399 = vmatprep.subr.bf16.mxu0 0
        %400 = vmatpush2.bf16.msra.mxu0 0
        %401 = vmatprep.subr.bf16.mxu0 0
        %402 = vmatpush2.bf16.msra.mxu0 0
        %403 = vmatprep.subr.bf16.mxu0 0
        %404 = vmatpush2.bf16.msra.mxu0 0
        %405 = vmatprep.subr.bf16.mxu0 0
        %406 = vmatpush2.bf16.msra.mxu0 0
        %407 = vmatprep.subr.bf16.mxu0 0
        %408 = vmatpush2.bf16.msra.mxu0 0
        %409 = vmatprep.subr.bf16.mxu0 0
        %410 = vmatpush2.bf16.msra.mxu0 0
        %411 = vmatprep.subr.bf16.mxu0 0
        %412 = vmatpush2.bf16.msra.mxu0 0
        %413 = vmatprep.subr.bf16.mxu0 0
        %414 = vmatpush2.bf16.msra.mxu0 0
        %415 = vmatprep.mubr.bf16.mxu0 0
        %416 = vmatmul.mubr.bf16.gmra.mxu0 %v259
        %v417 = vpop.f32.mrf.mxu0
        %v418 = vadd.f32 %v296, %v417
        %v419 = vpop.f32.mrf.mxu0
        %v420 = vadd.f32 %v300, %v419
        %v421 = vpop.f32.mrf.mxu0
        %v422 = vadd.f32 %v296, %v421
        %v423 = vpop.f32.mrf.mxu0
        %v424 = vadd.f32 %v300, %v423
        %425 = vmatprep.mubr.bf16.mxu0 0
        %426 = vmatmul.mubr.bf16.gmra.mxu0 %v260
        %v427 = vpop.f32.mrf.mxu0
        %v428 = vadd.f32 %v296, %v427
        %v429 = vpop.f32.mrf.mxu0
        %v430 = vadd.f32 %v300, %v429
        %v431 = vpop.f32.mrf.mxu0
        %v432 = vadd.f32 %v296, %v431
        %v433 = vpop.f32.mrf.mxu0
        %v434 = vadd.f32 %v300, %v433
        %435 = vmatprep.mubr.bf16.mxu0 0
        %436 = vmatmul.mubr.bf16.gmra.mxu0 %v261
        %v437 = vpop.f32.mrf.mxu0
        %v438 = vadd.f32 %v296, %v437
        %v439 = vpop.f32.mrf.mxu0
        %v440 = vadd.f32 %v300, %v439
        %v441 = vpop.f32.mrf.mxu0
        %v442 = vadd.f32 %v296, %v441
        %v443 = vpop.f32.mrf.mxu0
        %v444 = vadd.f32 %v300, %v443
        %445 = vmatprep.mubr.bf16.mxu0 0
        %446 = vmatmul.mubr.bf16.gmra.mxu0 %v262
        %v447 = vpop.f32.mrf.mxu0
        %v448 = vadd.f32 %v296, %v447
        %v449 = vpop.f32.mrf.mxu0
        %v450 = vadd.f32 %v300, %v449
        %v451 = vpop.f32.mrf.mxu0
        %v452 = vadd.f32 %v296, %v451
        %v453 = vpop.f32.mrf.mxu0
        %v454 = vadd.f32 %v300, %v453
        %455 = vmatprep.mubr.bf16.mxu0 0
        %456 = vmatmul.mubr.bf16.gmra.mxu0 %v263
        %v457 = vpop.f32.mrf.mxu0
        %v458 = vadd.f32 %v296, %v457
        %v459 = vpop.f32.mrf.mxu0
        %v460 = vadd.f32 %v300, %v459
        %v461 = vpop.f32.mrf.mxu0
        %v462 = vadd.f32 %v296, %v461
        %v463 = vpop.f32.mrf.mxu0
        %v464 = vadd.f32 %v300, %v463
        %465 = vmatprep.mubr.bf16.mxu0 0
        %466 = vmatmul.mubr.bf16.gmra.mxu0 %v264
        %v467 = vpop.f32.mrf.mxu0
        %v468 = vadd.f32 %v296, %v467
        %v469 = vpop.f32.mrf.mxu0
        %v470 = vadd.f32 %v300, %v469
        %v471 = vpop.f32.mrf.mxu0
        %v472 = vadd.f32 %v296, %v471
        %v473 = vpop.f32.mrf.mxu0
        %v474 = vadd.f32 %v300, %v473
        %475 = vmatprep.mubr.bf16.mxu0 0
        %476 = vmatmul.mubr.bf16.gmra.mxu0 %v265
        %v477 = vpop.f32.mrf.mxu0
        %v478 = vadd.f32 %v296, %v477
        %v479 = vpop.f32.mrf.mxu0
        %v480 = vadd.f32 %v300, %v479
        %v481 = vpop.f32.mrf.mxu0
        %v482 = vadd.f32 %v296, %v481
        %v483 = vpop.f32.mrf.mxu0
        %v484 = vadd.f32 %v300, %v483
        %485 = vmatprep.mubr.bf16.mxu0 0
        %486 = vmatmul.mubr.bf16.gmra.mxu0 %v266
        %v487 = vpop.f32.mrf.mxu0
        %v488 = vadd.f32 %v296, %v487
        %v489 = vpop.f32.mrf.mxu0
        %v490 = vadd.f32 %v300, %v489
        %v491 = vpop.f32.mrf.mxu0
        %v492 = vadd.f32 %v296, %v491
        %v493 = vpop.f32.mrf.mxu0
        %v494 = vadd.f32 %v300, %v493
        %495 = vmatprep.mubr.bf16.mxu0 0
        %496 = vmatmul.mubr.bf16.gmra.mxu0 %v267
        %v497 = vpop.f32.mrf.mxu0
        %v498 = vadd.f32 %v296, %v497
        %v499 = vpop.f32.mrf.mxu0
        %v500 = vadd.f32 %v300, %v499
        %v501 = vpop.f32.mrf.mxu0
        %v502 = vadd.f32 %v296, %v501
        %v503 = vpop.f32.mrf.mxu0
        %v504 = vadd.f32 %v300, %v503
        %505 = vmatprep.mubr.bf16.mxu0 0
        %506 = vmatmul.mubr.bf16.gmra.mxu0 %v268
        %v507 = vpop.f32.mrf.mxu0
        %v508 = vadd.f32 %v296, %v507
        %v509 = vpop.f32.mrf.mxu0
        %v510 = vadd.f32 %v300, %v509
        %v511 = vpop.f32.mrf.mxu0
        %v512 = vadd.f32 %v296, %v511
        %v513 = vpop.f32.mrf.mxu0
        %v514 = vadd.f32 %v300, %v513
        %515 = vmatprep.mubr.bf16.mxu0 0
        %516 = vmatmul.mubr.bf16.gmra.mxu0 %v269
        %v517 = vpop.f32.mrf.mxu0
        %v518 = vadd.f32 %v296, %v517
        %v519 = vpop.f32.mrf.mxu0
        %v520 = vadd.f32 %v300, %v519
        %v521 = vpop.f32.mrf.mxu0
        %v522 = vadd.f32 %v296, %v521
        %v523 = vpop.f32.mrf.mxu0
        %v524 = vadd.f32 %v300, %v523
        %525 = vmatprep.mubr.bf16.mxu0 0
        %526 = vmatmul.mubr.bf16.gmra.mxu0 %v270
        %v527 = vpop.f32.mrf.mxu0
        %v528 = vadd.f32 %v296, %v527
        %v529 = vpop.f32.mrf.mxu0
        %v530 = vadd.f32 %v300, %v529
        %v531 = vpop.f32.mrf.mxu0
        %v532 = vadd.f32 %v296, %v531
        %v533 = vpop.f32.mrf.mxu0
        %v534 = vadd.f32 %v300, %v533
        %535 = vmatprep.mubr.bf16.mxu0 0
        %536 = vmatmul.mubr.bf16.gmra.mxu0 %v271
        %v537 = vpop.f32.mrf.mxu0
        %v538 = vadd.f32 %v296, %v537
        %v539 = vpop.f32.mrf.mxu0
        %v540 = vadd.f32 %v300, %v539
        %v541 = vpop.f32.mrf.mxu0
        %v542 = vadd.f32 %v296, %v541
        %v543 = vpop.f32.mrf.mxu0
        %v544 = vadd.f32 %v300, %v543
        %545 = vmatprep.mubr.bf16.mxu0 0
        %546 = vmatmul.mubr.bf16.gmra.mxu0 %v272
        %v547 = vpop.f32.mrf.mxu0
        %v548 = vadd.f32 %v296, %v547
        %v549 = vpop.f32.mrf.mxu0
        %v550 = vadd.f32 %v300, %v549
        %v551 = vpop.f32.mrf.mxu0
        %v552 = vadd.f32 %v296, %v551
        %v553 = vpop.f32.mrf.mxu0
        %v554 = vadd.f32 %v300, %v553
        %555 = vmatprep.mubr.bf16.mxu0 0
        %556 = vmatmul.mubr.bf16.gmra.mxu0 %v273
        %v557 = vpop.f32.mrf.mxu0
        %v558 = vadd.f32 %v296, %v557
        %v559 = vpop.f32.mrf.mxu0
        %v560 = vadd.f32 %v300, %v559
        %v561 = vpop.f32.mrf.mxu0
        %v562 = vadd.f32 %v296, %v561
        %v563 = vpop.f32.mrf.mxu0
        %v564 = vadd.f32 %v300, %v563
        %565 = vmatprep.mubr.bf16.mxu0 0
        %566 = vmatmul.mubr.bf16.gmra.mxu0 %v274
        %v567 = vpop.f32.mrf.mxu0
        %v568 = vadd.f32 %v296, %v567
        %v569 = vpop.f32.mrf.mxu0
        %v570 = vadd.f32 %v300, %v569
        %v571 = vpop.f32.mrf.mxu0
        %v572 = vadd.f32 %v296, %v571
        %v573 = vpop.f32.mrf.mxu0
        %v574 = vadd.f32 %v300, %v573
        %575 = vdwg.mxu0
        %v576 = vxor.u32 %v418, 2147483648
        %v577 = vxor.u32 %v420, 2147483648
        %v578 = vxor.u32 %v422, 2147483648
        %v579 = vxor.u32 %v424, 2147483648
        %v580 = vxor.u32 %v428, 2147483648
        %v581 = vxor.u32 %v430, 2147483648
        %v582 = vxor.u32 %v432, 2147483648
        %v583 = vxor.u32 %v434, 2147483648
        %v584 = vxor.u32 %v438, 2147483648
        %v585 = vxor.u32 %v440, 2147483648
        %v586 = vxor.u32 %v442, 2147483648
        %v587 = vxor.u32 %v444, 2147483648
        %v588 = vxor.u32 %v448, 2147483648
        %v589 = vxor.u32 %v450, 2147483648
        %v590 = vxor.u32 %v452, 2147483648
        %v591 = vxor.u32 %v454, 2147483648
        %v592 = vxor.u32 %v458, 2147483648
        %v593 = vxor.u32 %v460, 2147483648
        %v594 = vxor.u32 %v462, 2147483648
        %v595 = vxor.u32 %v464, 2147483648
        %v596 = vxor.u32 %v468, 2147483648
        %v597 = vxor.u32 %v470, 2147483648
        %v598 = vxor.u32 %v472, 2147483648
        %v599 = vxor.u32 %v474, 2147483648
        %v600 = vxor.u32 %v478, 2147483648
        %v601 = vxor.u32 %v480, 2147483648
        %v602 = vxor.u32 %v482, 2147483648
        %v603 = vxor.u32 %v484, 2147483648
        %v604 = vxor.u32 %v488, 2147483648
        %v605 = vxor.u32 %v490, 2147483648
        %v606 = vxor.u32 %v492, 2147483648
        %v607 = vxor.u32 %v494, 2147483648
        %v608 = vxor.u32 %v498, 2147483648
        %v609 = vxor.u32 %v500, 2147483648
        %v610 = vxor.u32 %v502, 2147483648
        %v611 = vxor.u32 %v504, 2147483648
        %v612 = vxor.u32 %v508, 2147483648
        %v613 = vxor.u32 %v510, 2147483648
        %v614 = vxor.u32 %v512, 2147483648
        %v615 = vxor.u32 %v514, 2147483648
        %v616 = vxor.u32 %v518, 2147483648
        %v617 = vxor.u32 %v520, 2147483648
        %v618 = vxor.u32 %v522, 2147483648
        %v619 = vxor.u32 %v524, 2147483648
        %v620 = vxor.u32 %v528, 2147483648
        %v621 = vxor.u32 %v530, 2147483648
        %v622 = vxor.u32 %v532, 2147483648
        %v623 = vxor.u32 %v534, 2147483648
        %v624 = vxor.u32 %v538, 2147483648
        %v625 = vxor.u32 %v540, 2147483648
        %v626 = vxor.u32 %v542, 2147483648
        %v627 = vxor.u32 %v544, 2147483648
        %v628 = vxor.u32 %v548, 2147483648
        %v629 = vxor.u32 %v550, 2147483648
        %v630 = vxor.u32 %v552, 2147483648
        %v631 = vxor.u32 %v554, 2147483648
        %v632 = vxor.u32 %v558, 2147483648
        %v633 = vxor.u32 %v560, 2147483648
        %v634 = vxor.u32 %v562, 2147483648
        %v635 = vxor.u32 %v564, 2147483648
        %v636 = vxor.u32 %v568, 2147483648
        %v637 = vxor.u32 %v570, 2147483648
        %v638 = vxor.u32 %v572, 2147483648
        %v639 = vxor.u32 %v574, 2147483648
        %v640 = vmul.f32 %v576, 1.442695
        %v641 = vpow.pop %v640
        %v642 = vmul.f32 %v577, 1.442695
        %v643 = vpow.pop %v642
        %v644 = vmul.f32 %v578, 1.442695
        %v645 = vpow.pop %v644
        %v646 = vmul.f32 %v579, 1.442695
        %v647 = vpow.pop %v646
        %v648 = vmul.f32 %v580, 1.442695
        %v649 = vpow.pop %v648
        %v650 = vmul.f32 %v581, 1.442695
        %v651 = vpow.pop %v650
        %v652 = vmul.f32 %v582, 1.442695
        %v653 = vpow.pop %v652
        %v654 = vmul.f32 %v583, 1.442695
        %v655 = vpow.pop %v654
        %v656 = vmul.f32 %v584, 1.442695
        %v657 = vpow.pop %v656
        %v658 = vmul.f32 %v585, 1.442695
        %v659 = vpow.pop %v658
        %v660 = vmul.f32 %v586, 1.442695
        %v661 = vpow.pop %v660
        %v662 = vmul.f32 %v587, 1.442695
        %v663 = vpow.pop %v662
        %v664 = vmul.f32 %v588, 1.442695
        %v665 = vpow.pop %v664
        %v666 = vmul.f32 %v589, 1.442695
        %v667 = vpow.pop %v666
        %v668 = vmul.f32 %v590, 1.442695
        %v669 = vpow.pop %v668
        %v670 = vmul.f32 %v591, 1.442695
        %v671 = vpow.pop %v670
        %v672 = vmul.f32 %v592, 1.442695
        %v673 = vpow.pop %v672
        %v674 = vmul.f32 %v593, 1.442695
        %v675 = vpow.pop %v674
        %v676 = vmul.f32 %v594, 1.442695
        %v677 = vpow.pop %v676
        %v678 = vmul.f32 %v595, 1.442695
        %v679 = vpow.pop %v678
        %v680 = vmul.f32 %v596, 1.442695
        %v681 = vpow.pop %v680
        %v682 = vmul.f32 %v597, 1.442695
        %v683 = vpow.pop %v682
        %v684 = vmul.f32 %v598, 1.442695
        %v685 = vpow.pop %v684
        %v686 = vmul.f32 %v599, 1.442695
        %v687 = vpow.pop %v686
        %v688 = vmul.f32 %v600, 1.442695
        %v689 = vpow.pop %v688
        %v690 = vmul.f32 %v601, 1.442695
        %v691 = vpow.pop %v690
        %v692 = vmul.f32 %v602, 1.442695
        %v693 = vpow.pop %v692
        %v694 = vmul.f32 %v603, 1.442695
        %v695 = vpow.pop %v694
        %v696 = vmul.f32 %v604, 1.442695
        %v697 = vpow.pop %v696
        %v698 = vmul.f32 %v605, 1.442695
        %v699 = vpow.pop %v698
        %v700 = vmul.f32 %v606, 1.442695
        %v701 = vpow.pop %v700
        %v702 = vmul.f32 %v607, 1.442695
        %v703 = vpow.pop %v702
        %v704 = vmul.f32 %v608, 1.442695
        %v705 = vpow.pop %v704
        %v706 = vmul.f32 %v609, 1.442695
        %v707 = vpow.pop %v706
        %v708 = vmul.f32 %v610, 1.442695
        %v709 = vpow.pop %v708
        %v710 = vmul.f32 %v611, 1.442695
        %v711 = vpow.pop %v710
        %v712 = vmul.f32 %v612, 1.442695
        %v713 = vpow.pop %v712
        %v714 = vmul.f32 %v613, 1.442695
        %v715 = vpow.pop %v714
        %v716 = vmul.f32 %v614, 1.442695
        %v717 = vpow.pop %v716
        %v718 = vmul.f32 %v615, 1.442695
        %v719 = vpow.pop %v718
        %v720 = vmul.f32 %v616, 1.442695
        %v721 = vpow.pop %v720
        %v722 = vmul.f32 %v617, 1.442695
        %v723 = vpow.pop %v722
        %v724 = vmul.f32 %v618, 1.442695
        %v725 = vpow.pop %v724
        %v726 = vmul.f32 %v619, 1.442695
        %v727 = vpow.pop %v726
        %v728 = vmul.f32 %v620, 1.442695
        %v729 = vpow.pop %v728
        %v730 = vmul.f32 %v621, 1.442695
        %v731 = vpow.pop %v730
        %v732 = vmul.f32 %v622, 1.442695
        %v733 = vpow.pop %v732
        %v734 = vmul.f32 %v623, 1.442695
        %v735 = vpow.pop %v734
        %v736 = vmul.f32 %v624, 1.442695
        %v737 = vpow.pop %v736
        %v738 = vmul.f32 %v625, 1.442695
        %v739 = vpow.pop %v738
        %v740 = vmul.f32 %v626, 1.442695
        %v741 = vpow.pop %v740
        %v742 = vmul.f32 %v627, 1.442695
        %v743 = vpow.pop %v742
        %v744 = vmul.f32 %v628, 1.442695
        %v745 = vpow.pop %v744
        %v746 = vmul.f32 %v629, 1.442695
        %v747 = vpow.pop %v746
        %v748 = vmul.f32 %v630, 1.442695
        %v749 = vpow.pop %v748
        %v750 = vmul.f32 %v631, 1.442695
        %v751 = vpow.pop %v750
        %v752 = vmul.f32 %v632, 1.442695
        %v753 = vpow.pop %v752
        %v754 = vmul.f32 %v633, 1.442695
        %v755 = vpow.pop %v754
        %v756 = vmul.f32 %v634, 1.442695
        %v757 = vpow.pop %v756
        %v758 = vmul.f32 %v635, 1.442695
        %v759 = vpow.pop %v758
        %v760 = vmul.f32 %v636, 1.442695
        %v761 = vpow.pop %v760
        %v762 = vmul.f32 %v637, 1.442695
        %v763 = vpow.pop %v762
        %v764 = vmul.f32 %v638, 1.442695
        %v765 = vpow.pop %v764
        %v766 = vmul.f32 %v639, 1.442695
        %v767 = vpow.pop %v766
        %v768 = vadd.f32 %v641, 1.0
        %v769 = vadd.f32 %v643, 1.0
        %v770 = vadd.f32 %v645, 1.0
        %v771 = vadd.f32 %v647, 1.0
        %v772 = vadd.f32 %v649, 1.0
        %v773 = vadd.f32 %v651, 1.0
        %v774 = vadd.f32 %v653, 1.0
        %v775 = vadd.f32 %v655, 1.0
        %v776 = vadd.f32 %v657, 1.0
        %v777 = vadd.f32 %v659, 1.0
        %v778 = vadd.f32 %v661, 1.0
        %v779 = vadd.f32 %v663, 1.0
        %v780 = vadd.f32 %v665, 1.0
        %v781 = vadd.f32 %v667, 1.0
        %v782 = vadd.f32 %v669, 1.0
        %v783 = vadd.f32 %v671, 1.0
        %v784 = vadd.f32 %v673, 1.0
        %v785 = vadd.f32 %v675, 1.0
        %v786 = vadd.f32 %v677, 1.0
        %v787 = vadd.f32 %v679, 1.0
        %v788 = vadd.f32 %v681, 1.0
        %v789 = vadd.f32 %v683, 1.0
        %v790 = vadd.f32 %v685, 1.0
        %v791 = vadd.f32 %v687, 1.0
        %v792 = vadd.f32 %v689, 1.0
        %v793 = vadd.f32 %v691, 1.0
        %v794 = vadd.f32 %v693, 1.0
        %v795 = vadd.f32 %v695, 1.0
        %v796 = vadd.f32 %v697, 1.0
        %v797 = vadd.f32 %v699, 1.0
        %v798 = vadd.f32 %v701, 1.0
        %v799 = vadd.f32 %v703, 1.0
        %v800 = vadd.f32 %v705, 1.0
        %v801 = vadd.f32 %v707, 1.0
        %v802 = vadd.f32 %v709, 1.0
        %v803 = vadd.f32 %v711, 1.0
        %v804 = vadd.f32 %v713, 1.0
        %v805 = vadd.f32 %v715, 1.0
        %v806 = vadd.f32 %v717, 1.0
        %v807 = vadd.f32 %v719, 1.0
        %v808 = vadd.f32 %v721, 1.0
        %v809 = vadd.f32 %v723, 1.0
        %v810 = vadd.f32 %v725, 1.0
        %v811 = vadd.f32 %v727, 1.0
        %v812 = vadd.f32 %v729, 1.0
        %v813 = vadd.f32 %v731, 1.0
        %v814 = vadd.f32 %v733, 1.0
        %v815 = vadd.f32 %v735, 1.0
        %v816 = vadd.f32 %v737, 1.0
        %v817 = vadd.f32 %v739, 1.0
        %v818 = vadd.f32 %v741, 1.0
        %v819 = vadd.f32 %v743, 1.0
        %v820 = vadd.f32 %v745, 1.0
        %v821 = vadd.f32 %v747, 1.0
        %v822 = vadd.f32 %v749, 1.0
        %v823 = vadd.f32 %v751, 1.0
        %v824 = vadd.f32 %v753, 1.0
        %v825 = vadd.f32 %v755, 1.0
        %v826 = vadd.f32 %v757, 1.0
        %v827 = vadd.f32 %v759, 1.0
        %v828 = vadd.f32 %v761, 1.0
        %v829 = vadd.f32 %v763, 1.0
        %v830 = vadd.f32 %v765, 1.0
        %v831 = vadd.f32 %v767, 1.0
        %v832 = vrcp.pop %v768
        %v833 = vmul.f32 1.0, %v832
        %v834 = vrcp.pop %v769
        %v835 = vmul.f32 1.0, %v834
        %v836 = vrcp.pop %v770
        %v837 = vmul.f32 1.0, %v836
        %v838 = vrcp.pop %v771
        %v839 = vmul.f32 1.0, %v838
        %v840 = vrcp.pop %v772
        %v841 = vmul.f32 1.0, %v840
        %v842 = vrcp.pop %v773
        %v843 = vmul.f32 1.0, %v842
        %v844 = vrcp.pop %v774
        %v845 = vmul.f32 1.0, %v844
        %v846 = vrcp.pop %v775
        %v847 = vmul.f32 1.0, %v846
        %v848 = vrcp.pop %v776
        %v849 = vmul.f32 1.0, %v848
        %v850 = vrcp.pop %v777
        %v851 = vmul.f32 1.0, %v850
        %v852 = vrcp.pop %v778
        %v853 = vmul.f32 1.0, %v852
        %v854 = vrcp.pop %v779
        %v855 = vmul.f32 1.0, %v854
        %v856 = vrcp.pop %v780
        %v857 = vmul.f32 1.0, %v856
        %v858 = vrcp.pop %v781
        %v859 = vmul.f32 1.0, %v858
        %v860 = vrcp.pop %v782
        %v861 = vmul.f32 1.0, %v860
        %v862 = vrcp.pop %v783
        %v863 = vmul.f32 1.0, %v862
        %v864 = vrcp.pop %v784
        %v865 = vmul.f32 1.0, %v864
        %v866 = vrcp.pop %v785
        %v867 = vmul.f32 1.0, %v866
        %v868 = vrcp.pop %v786
        %v869 = vmul.f32 1.0, %v868
        %v870 = vrcp.pop %v787
        %v871 = vmul.f32 1.0, %v870
        %v872 = vrcp.pop %v788
        %v873 = vmul.f32 1.0, %v872
        %v874 = vrcp.pop %v789
        %v875 = vmul.f32 1.0, %v874
        %v876 = vrcp.pop %v790
        %v877 = vmul.f32 1.0, %v876
        %v878 = vrcp.pop %v791
        %v879 = vmul.f32 1.0, %v878
        %v880 = vrcp.pop %v792
        %v881 = vmul.f32 1.0, %v880
        %v882 = vrcp.pop %v793
        %v883 = vmul.f32 1.0, %v882
        %v884 = vrcp.pop %v794
        %v885 = vmul.f32 1.0, %v884
        %v886 = vrcp.pop %v795
        %v887 = vmul.f32 1.0, %v886
        %v888 = vrcp.pop %v796
        %v889 = vmul.f32 1.0, %v888
        %v890 = vrcp.pop %v797
        %v891 = vmul.f32 1.0, %v890
        %v892 = vrcp.pop %v798
        %v893 = vmul.f32 1.0, %v892
        %v894 = vrcp.pop %v799
        %v895 = vmul.f32 1.0, %v894
        %v896 = vrcp.pop %v800
        %v897 = vmul.f32 1.0, %v896
        %v898 = vrcp.pop %v801
        %v899 = vmul.f32 1.0, %v898
        %v900 = vrcp.pop %v802
        %v901 = vmul.f32 1.0, %v900
        %v902 = vrcp.pop %v803
        %v903 = vmul.f32 1.0, %v902
        %v904 = vrcp.pop %v804
        %v905 = vmul.f32 1.0, %v904
        %v906 = vrcp.pop %v805
        %v907 = vmul.f32 1.0, %v906
        %v908 = vrcp.pop %v806
        %v909 = vmul.f32 1.0, %v908
        %v910 = vrcp.pop %v807
        %v911 = vmul.f32 1.0, %v910
        %v912 = vrcp.pop %v808
        %v913 = vmul.f32 1.0, %v912
        %v914 = vrcp.pop %v809
        %v915 = vmul.f32 1.0, %v914
        %v916 = vrcp.pop %v810
        %v917 = vmul.f32 1.0, %v916
        %v918 = vrcp.pop %v811
        %v919 = vmul.f32 1.0, %v918
        %v920 = vrcp.pop %v812
        %v921 = vmul.f32 1.0, %v920
        %v922 = vrcp.pop %v813
        %v923 = vmul.f32 1.0, %v922
        %v924 = vrcp.pop %v814
        %v925 = vmul.f32 1.0, %v924
        %v926 = vrcp.pop %v815
        %v927 = vmul.f32 1.0, %v926
        %v928 = vrcp.pop %v816
        %v929 = vmul.f32 1.0, %v928
        %v930 = vrcp.pop %v817
        %v931 = vmul.f32 1.0, %v930
        %v932 = vrcp.pop %v818
        %v933 = vmul.f32 1.0, %v932
        %v934 = vrcp.pop %v819
        %v935 = vmul.f32 1.0, %v934
        %v936 = vrcp.pop %v820
        %v937 = vmul.f32 1.0, %v936
        %v938 = vrcp.pop %v821
        %v939 = vmul.f32 1.0, %v938
        %v940 = vrcp.pop %v822
        %v941 = vmul.f32 1.0, %v940
        %v942 = vrcp.pop %v823
        %v943 = vmul.f32 1.0, %v942
        %v944 = vrcp.pop %v824
        %v945 = vmul.f32 1.0, %v944
        %v946 = vrcp.pop %v825
        %v947 = vmul.f32 1.0, %v946
        %v948 = vrcp.pop %v826
        %v949 = vmul.f32 1.0, %v948
        %v950 = vrcp.pop %v827
        %v951 = vmul.f32 1.0, %v950
        %v952 = vrcp.pop %v828
        %v953 = vmul.f32 1.0, %v952
        %v954 = vrcp.pop %v829
        %v955 = vmul.f32 1.0, %v954
        %v956 = vrcp.pop %v830
        %v957 = vmul.f32 1.0, %v956
        %v958 = vrcp.pop %v831
        %v959 = vmul.f32 1.0, %v958
        %v960 = vmul.f32 %v418, %v833
        %v961 = vmul.f32 %v420, %v835
        %v962 = vmul.f32 %v422, %v837
        %v963 = vmul.f32 %v424, %v839
        %v964 = vmul.f32 %v428, %v841
        %v965 = vmul.f32 %v430, %v843
        %v966 = vmul.f32 %v432, %v845
        %v967 = vmul.f32 %v434, %v847
        %v968 = vmul.f32 %v438, %v849
        %v969 = vmul.f32 %v440, %v851
        %v970 = vmul.f32 %v442, %v853
        %v971 = vmul.f32 %v444, %v855
        %v972 = vmul.f32 %v448, %v857
        %v973 = vmul.f32 %v450, %v859
        %v974 = vmul.f32 %v452, %v861
        %v975 = vmul.f32 %v454, %v863
        %v976 = vmul.f32 %v458, %v865
        %v977 = vmul.f32 %v460, %v867
        %v978 = vmul.f32 %v462, %v869
        %v979 = vmul.f32 %v464, %v871
        %v980 = vmul.f32 %v468, %v873
        %v981 = vmul.f32 %v470, %v875
        %v982 = vmul.f32 %v472, %v877
        %v983 = vmul.f32 %v474, %v879
        %v984 = vmul.f32 %v478, %v881
        %v985 = vmul.f32 %v480, %v883
        %v986 = vmul.f32 %v482, %v885
        %v987 = vmul.f32 %v484, %v887
        %v988 = vmul.f32 %v488, %v889
        %v989 = vmul.f32 %v490, %v891
        %v990 = vmul.f32 %v492, %v893
        %v991 = vmul.f32 %v494, %v895
        %v992 = vmul.f32 %v498, %v897
        %v993 = vmul.f32 %v500, %v899
        %v994 = vmul.f32 %v502, %v901
        %v995 = vmul.f32 %v504, %v903
        %v996 = vmul.f32 %v508, %v905
        %v997 = vmul.f32 %v510, %v907
        %v998 = vmul.f32 %v512, %v909
        %v999 = vmul.f32 %v514, %v911
        %v1000 = vmul.f32 %v518, %v913
        %v1001 = vmul.f32 %v520, %v915
        %v1002 = vmul.f32 %v522, %v917
        %v1003 = vmul.f32 %v524, %v919
        %v1004 = vmul.f32 %v528, %v921
        %v1005 = vmul.f32 %v530, %v923
        %v1006 = vmul.f32 %v532, %v925
        %v1007 = vmul.f32 %v534, %v927
        %v1008 = vmul.f32 %v538, %v929
        %v1009 = vmul.f32 %v540, %v931
        %v1010 = vmul.f32 %v542, %v933
        %v1011 = vmul.f32 %v544, %v935
        %v1012 = vmul.f32 %v548, %v937
        %v1013 = vmul.f32 %v550, %v939
        %v1014 = vmul.f32 %v552, %v941
        %v1015 = vmul.f32 %v554, %v943
        %v1016 = vmul.f32 %v558, %v945
        %v1017 = vmul.f32 %v560, %v947
        %v1018 = vmul.f32 %v562, %v949
        %v1019 = vmul.f32 %v564, %v951
        %v1020 = vmul.f32 %v568, %v953
        %v1021 = vmul.f32 %v570, %v955
        %v1022 = vmul.f32 %v572, %v957
        %v1023 = vmul.f32 %v574, %v959
        %v1024 = vpack.c.bf16 %v962, %v960
        %v1025 = vpack.c.bf16 %v963, %v961
        %v1026 = vpack.c.bf16 %v966, %v964
        %v1027 = vpack.c.bf16 %v967, %v965
        %v1028 = vpack.c.bf16 %v970, %v968
        %v1029 = vpack.c.bf16 %v971, %v969
        %v1030 = vpack.c.bf16 %v974, %v972
        %v1031 = vpack.c.bf16 %v975, %v973
        %v1032 = vpack.c.bf16 %v978, %v976
        %v1033 = vpack.c.bf16 %v979, %v977
        %v1034 = vpack.c.bf16 %v982, %v980
        %v1035 = vpack.c.bf16 %v983, %v981
        %v1036 = vpack.c.bf16 %v986, %v984
        %v1037 = vpack.c.bf16 %v987, %v985
        %v1038 = vpack.c.bf16 %v990, %v988
        %v1039 = vpack.c.bf16 %v991, %v989
        %v1040 = vpack.c.bf16 %v994, %v992
        %v1041 = vpack.c.bf16 %v995, %v993
        %v1042 = vpack.c.bf16 %v998, %v996
        %v1043 = vpack.c.bf16 %v999, %v997
        %v1044 = vpack.c.bf16 %v1002, %v1000
        %v1045 = vpack.c.bf16 %v1003, %v1001
        %v1046 = vpack.c.bf16 %v1006, %v1004
        %v1047 = vpack.c.bf16 %v1007, %v1005
        %v1048 = vpack.c.bf16 %v1010, %v1008
        %v1049 = vpack.c.bf16 %v1011, %v1009
        %v1050 = vpack.c.bf16 %v1014, %v1012
        %v1051 = vpack.c.bf16 %v1015, %v1013
        %v1052 = vpack.c.bf16 %v1018, %v1016
        %v1053 = vpack.c.bf16 %v1019, %v1017
        %v1054 = vpack.c.bf16 %v1022, %v1020
        %v1055 = vpack.c.bf16 %v1023, %v1021
        %v1056 = vld [vmem:[%s3] sm:$0xf]
        %v1057 = vld [vmem:[%s3 + $0x4] sm:$0xf]
        %v1058 = vld [vmem:[%s3 + $0x8] sm:$0xf]
        %v1059 = vld [vmem:[%s3 + $0xc] sm:$0xf]
        %v1060 = vld [vmem:[%s3 + $0x10] sm:$0xf]
        %v1061 = vld [vmem:[%s3 + $0x14] sm:$0xf]
        %v1062 = vld [vmem:[%s3 + $0x18] sm:$0xf]
        %v1063 = vld [vmem:[%s3 + $0x1c] sm:$0xf]
        %v1064 = vld [vmem:[%s3 + $0x20] sm:$0xf]
        %v1065 = vld [vmem:[%s3 + $0x24] sm:$0xf]
        %v1066 = vld [vmem:[%s3 + $0x28] sm:$0xf]
        %v1067 = vld [vmem:[%s3 + $0x2c] sm:$0xf]
        %v1068 = vld [vmem:[%s3 + $0x30] sm:$0xf]
        %v1069 = vld [vmem:[%s3 + $0x34] sm:$0xf]
        %v1070 = vld [vmem:[%s3 + $0x38] sm:$0xf]
        %v1071 = vld [vmem:[%s3 + $0x3c] sm:$0xf]
        %v1072 = vld [vmem:[%s3 + $0x40] sm:$0xf]
        %v1073 = vld [vmem:[%s3 + $0x44] sm:$0xf]
        %v1074 = vld [vmem:[%s3 + $0x48] sm:$0xf]
        %v1075 = vld [vmem:[%s3 + $0x4c] sm:$0xf]
        %v1076 = vld [vmem:[%s3 + $0x50] sm:$0xf]
        %v1077 = vld [vmem:[%s3 + $0x54] sm:$0xf]
        %v1078 = vld [vmem:[%s3 + $0x58] sm:$0xf]
        %v1079 = vld [vmem:[%s3 + $0x5c] sm:$0xf]
        %v1080 = vld [vmem:[%s3 + $0x60] sm:$0xf]
        %v1081 = vld [vmem:[%s3 + $0x64] sm:$0xf]
        %v1082 = vld [vmem:[%s3 + $0x68] sm:$0xf]
        %v1083 = vld [vmem:[%s3 + $0x6c] sm:$0xf]
        %v1084 = vld [vmem:[%s3 + $0x70] sm:$0xf]
        %v1085 = vld [vmem:[%s3 + $0x74] sm:$0xf]
        %v1086 = vld [vmem:[%s3 + $0x78] sm:$0xf]
        %v1087 = vld [vmem:[%s3 + $0x7c] sm:$0xf]
        %v1088 = vld [vmem:[%s4] sm:$0x1]
        %v1090 = vlaneseq
        %v1091 = vshrl.u32 %v1090, 7
        %v1092 = vsub.s32 0, %v1091
        %v1093 = vrot.slane %v1088, %v1092
        %v1127 = vunpack.c.l.b16 %v1056
        %v1128 = vunpack.c.l.b16 %v1057
        %v1129 = vunpack.c.l.b16 %v1058
        %v1130 = vunpack.c.l.b16 %v1059
        %v1131 = vunpack.c.l.b16 %v1060
        %v1132 = vunpack.c.l.b16 %v1061
        %v1133 = vunpack.c.l.b16 %v1062
        %v1134 = vunpack.c.l.b16 %v1063
        %v1135 = vunpack.c.l.b16 %v1064
        %v1136 = vunpack.c.l.b16 %v1065
        %v1137 = vunpack.c.l.b16 %v1066
        %v1138 = vunpack.c.l.b16 %v1067
        %v1139 = vunpack.c.l.b16 %v1068
        %v1140 = vunpack.c.l.b16 %v1069
        %v1141 = vunpack.c.l.b16 %v1070
        %v1142 = vunpack.c.l.b16 %v1071
        %v1143 = vunpack.c.l.b16 %v1072
        %v1144 = vunpack.c.l.b16 %v1073
        %v1145 = vunpack.c.l.b16 %v1074
        %v1146 = vunpack.c.l.b16 %v1075
        %v1147 = vunpack.c.l.b16 %v1076
        %v1148 = vunpack.c.l.b16 %v1077
        %v1149 = vunpack.c.l.b16 %v1078
        %v1150 = vunpack.c.l.b16 %v1079
        %v1151 = vunpack.c.l.b16 %v1080
        %v1152 = vunpack.c.l.b16 %v1081
        %v1153 = vunpack.c.l.b16 %v1082
        %v1154 = vunpack.c.l.b16 %v1083
        %v1155 = vunpack.c.l.b16 %v1084
        %v1156 = vunpack.c.l.b16 %v1085
        %v1157 = vunpack.c.l.b16 %v1086
        %v1158 = vunpack.c.l.b16 %v1087
        %v1159 = vpack.c.b16 %v1128, %v1127
        %v1160 = vpack.c.b16 %v1130, %v1129
        %v1161 = vpack.c.b16 %v1132, %v1131
        %v1162 = vpack.c.b16 %v1134, %v1133
        %v1163 = vpack.c.b16 %v1136, %v1135
        %v1164 = vpack.c.b16 %v1138, %v1137
        %v1165 = vpack.c.b16 %v1140, %v1139
        %v1166 = vpack.c.b16 %v1142, %v1141
        %v1167 = vpack.c.b16 %v1144, %v1143
        %v1168 = vpack.c.b16 %v1146, %v1145
        %v1169 = vpack.c.b16 %v1148, %v1147
        %v1170 = vpack.c.b16 %v1150, %v1149
        %v1171 = vpack.c.b16 %v1152, %v1151
        %v1172 = vpack.c.b16 %v1154, %v1153
        %v1173 = vpack.c.b16 %v1156, %v1155
        %v1174 = vpack.c.b16 %v1158, %v1157
        %1191 = vmatprep.subr.bf16.mxu0 0
        %1192 = vmatpush1.bf16.msra.mxu0 %v1166
        %1193 = vmatprep.subr.bf16.mxu0 0
        %1194 = vmatpush1.bf16.msra.mxu0 %v1165
        %1195 = vmatprep.subr.bf16.mxu0 0
        %1196 = vmatpush1.bf16.msra.mxu0 %v1164
        %1197 = vmatprep.subr.bf16.mxu0 0
        %1198 = vmatpush1.bf16.msra.mxu0 %v1163
        %1199 = vmatprep.subr.bf16.mxu0 0
        %1200 = vmatpush1.bf16.msra.mxu0 %v1162
        %1201 = vmatprep.subr.bf16.mxu0 0
        %1202 = vmatpush1.bf16.msra.mxu0 %v1161
        %1203 = vmatprep.subr.bf16.mxu0 0
        %1204 = vmatpush1.bf16.msra.mxu0 %v1160
        %1205 = vmatprep.subr.bf16.mxu0 0
        %1206 = vmatpush1.bf16.msra.mxu0 %v1159
        %1207 = vmatprep.subr.bf16.mxu0 0
        %1208 = vmatpush2.bf16.msra.mxu0 %v1174
        %1209 = vmatprep.subr.bf16.mxu0 0
        %1210 = vmatpush2.bf16.msra.mxu0 %v1173
        %1211 = vmatprep.subr.bf16.mxu0 0
        %1212 = vmatpush2.bf16.msra.mxu0 %v1172
        %1213 = vmatprep.subr.bf16.mxu0 0
        %1214 = vmatpush2.bf16.msra.mxu0 %v1171
        %1215 = vmatprep.subr.bf16.mxu0 0
        %1216 = vmatpush2.bf16.msra.mxu0 %v1170
        %1217 = vmatprep.subr.bf16.mxu0 0
        %1218 = vmatpush2.bf16.msra.mxu0 %v1169
        %1219 = vmatprep.subr.bf16.mxu0 0
        %1220 = vmatpush2.bf16.msra.mxu0 %v1168
        %1221 = vmatprep.subr.bf16.mxu0 0
        %1222 = vmatpush2.bf16.msra.mxu0 %v1167
        %1223 = vmatprep.mubr.bf16.mxu0 %v1025
        %1224 = vmatmul.mubr.bf16.gmra.mxu0 %v1024
        %v1225 = vpop.f32.mrf.mxu0
        %v1226 = vadd.f32 %v1093, %v1225
        %v1227 = vpop.f32.mrf.mxu0
        %v1228 = vpop.f32.mrf.mxu0
        %v1229 = vadd.f32 %v1093, %v1228
        %v1230 = vpop.f32.mrf.mxu0
        %1231 = vmatprep.mubr.bf16.mxu0 %v1027
        %1232 = vmatmul.mubr.bf16.gmra.mxu0 %v1026
        %v1233 = vpop.f32.mrf.mxu0
        %v1234 = vadd.f32 %v1093, %v1233
        %v1235 = vpop.f32.mrf.mxu0
        %v1236 = vpop.f32.mrf.mxu0
        %v1237 = vadd.f32 %v1093, %v1236
        %v1238 = vpop.f32.mrf.mxu0
        %1239 = vmatprep.mubr.bf16.mxu0 %v1029
        %1240 = vmatmul.mubr.bf16.gmra.mxu0 %v1028
        %v1241 = vpop.f32.mrf.mxu0
        %v1242 = vadd.f32 %v1093, %v1241
        %v1243 = vpop.f32.mrf.mxu0
        %v1244 = vpop.f32.mrf.mxu0
        %v1245 = vadd.f32 %v1093, %v1244
        %v1246 = vpop.f32.mrf.mxu0
        %1247 = vmatprep.mubr.bf16.mxu0 %v1031
        %1248 = vmatmul.mubr.bf16.gmra.mxu0 %v1030
        %v1249 = vpop.f32.mrf.mxu0
        %v1250 = vadd.f32 %v1093, %v1249
        %v1251 = vpop.f32.mrf.mxu0
        %v1252 = vpop.f32.mrf.mxu0
        %v1253 = vadd.f32 %v1093, %v1252
        %v1254 = vpop.f32.mrf.mxu0
        %1255 = vmatprep.mubr.bf16.mxu0 %v1033
        %1256 = vmatmul.mubr.bf16.gmra.mxu0 %v1032
        %v1257 = vpop.f32.mrf.mxu0
        %v1258 = vadd.f32 %v1093, %v1257
        %v1259 = vpop.f32.mrf.mxu0
        %v1260 = vpop.f32.mrf.mxu0
        %v1261 = vadd.f32 %v1093, %v1260
        %v1262 = vpop.f32.mrf.mxu0
        %1263 = vmatprep.mubr.bf16.mxu0 %v1035
        %1264 = vmatmul.mubr.bf16.gmra.mxu0 %v1034
        %v1265 = vpop.f32.mrf.mxu0
        %v1266 = vadd.f32 %v1093, %v1265
        %v1267 = vpop.f32.mrf.mxu0
        %v1268 = vpop.f32.mrf.mxu0
        %v1269 = vadd.f32 %v1093, %v1268
        %v1270 = vpop.f32.mrf.mxu0
        %1271 = vmatprep.mubr.bf16.mxu0 %v1037
        %1272 = vmatmul.mubr.bf16.gmra.mxu0 %v1036
        %v1273 = vpop.f32.mrf.mxu0
        %v1274 = vadd.f32 %v1093, %v1273
        %v1275 = vpop.f32.mrf.mxu0
        %v1276 = vpop.f32.mrf.mxu0
        %v1277 = vadd.f32 %v1093, %v1276
        %v1278 = vpop.f32.mrf.mxu0
        %1279 = vmatprep.mubr.bf16.mxu0 %v1039
        %1280 = vmatmul.mubr.bf16.gmra.mxu0 %v1038
        %v1281 = vpop.f32.mrf.mxu0
        %v1282 = vadd.f32 %v1093, %v1281
        %v1283 = vpop.f32.mrf.mxu0
        %v1284 = vpop.f32.mrf.mxu0
        %v1285 = vadd.f32 %v1093, %v1284
        %v1286 = vpop.f32.mrf.mxu0
        %1287 = vmatprep.mubr.bf16.mxu0 %v1041
        %1288 = vmatmul.mubr.bf16.gmra.mxu0 %v1040
        %v1289 = vpop.f32.mrf.mxu0
        %v1290 = vadd.f32 %v1093, %v1289
        %v1291 = vpop.f32.mrf.mxu0
        %v1292 = vpop.f32.mrf.mxu0
        %v1293 = vadd.f32 %v1093, %v1292
        %v1294 = vpop.f32.mrf.mxu0
        %1295 = vmatprep.mubr.bf16.mxu0 %v1043
        %1296 = vmatmul.mubr.bf16.gmra.mxu0 %v1042
        %v1297 = vpop.f32.mrf.mxu0
        %v1298 = vadd.f32 %v1093, %v1297
        %v1299 = vpop.f32.mrf.mxu0
        %v1300 = vpop.f32.mrf.mxu0
        %v1301 = vadd.f32 %v1093, %v1300
        %v1302 = vpop.f32.mrf.mxu0
        %1303 = vmatprep.mubr.bf16.mxu0 %v1045
        %1304 = vmatmul.mubr.bf16.gmra.mxu0 %v1044
        %v1305 = vpop.f32.mrf.mxu0
        %v1306 = vadd.f32 %v1093, %v1305
        %v1307 = vpop.f32.mrf.mxu0
        %v1308 = vpop.f32.mrf.mxu0
        %v1309 = vadd.f32 %v1093, %v1308
        %v1310 = vpop.f32.mrf.mxu0
        %1311 = vmatprep.mubr.bf16.mxu0 %v1047
        %1312 = vmatmul.mubr.bf16.gmra.mxu0 %v1046
        %v1313 = vpop.f32.mrf.mxu0
        %v1314 = vadd.f32 %v1093, %v1313
        %v1315 = vpop.f32.mrf.mxu0
        %v1316 = vpop.f32.mrf.mxu0
        %v1317 = vadd.f32 %v1093, %v1316
        %v1318 = vpop.f32.mrf.mxu0
        %1319 = vmatprep.mubr.bf16.mxu0 %v1049
        %1320 = vmatmul.mubr.bf16.gmra.mxu0 %v1048
        %v1321 = vpop.f32.mrf.mxu0
        %v1322 = vadd.f32 %v1093, %v1321
        %v1323 = vpop.f32.mrf.mxu0
        %v1324 = vpop.f32.mrf.mxu0
        %v1325 = vadd.f32 %v1093, %v1324
        %v1326 = vpop.f32.mrf.mxu0
        %1327 = vmatprep.mubr.bf16.mxu0 %v1051
        %1328 = vmatmul.mubr.bf16.gmra.mxu0 %v1050
        %v1329 = vpop.f32.mrf.mxu0
        %v1330 = vadd.f32 %v1093, %v1329
        %v1331 = vpop.f32.mrf.mxu0
        %v1332 = vpop.f32.mrf.mxu0
        %v1333 = vadd.f32 %v1093, %v1332
        %v1334 = vpop.f32.mrf.mxu0
        %1335 = vmatprep.mubr.bf16.mxu0 %v1053
        %1336 = vmatmul.mubr.bf16.gmra.mxu0 %v1052
        %v1337 = vpop.f32.mrf.mxu0
        %v1338 = vadd.f32 %v1093, %v1337
        %v1339 = vpop.f32.mrf.mxu0
        %v1340 = vpop.f32.mrf.mxu0
        %v1341 = vadd.f32 %v1093, %v1340
        %v1342 = vpop.f32.mrf.mxu0
        %1343 = vmatprep.mubr.bf16.mxu0 %v1055
        %1344 = vmatmul.mubr.bf16.gmra.mxu0 %v1054
        %v1345 = vpop.f32.mrf.mxu0
        %v1346 = vadd.f32 %v1093, %v1345
        %v1347 = vpop.f32.mrf.mxu0
        %v1348 = vpop.f32.mrf.mxu0
        %v1349 = vadd.f32 %v1093, %v1348
        %v1350 = vpop.f32.mrf.mxu0
        %1351 = vdwg.mxu0
        %v1352 = vadd.f32 %v1226, %v227
        %v1353 = vadd.f32 %v1229, %v228
        %v1354 = vadd.f32 %v1234, %v229
        %v1355 = vadd.f32 %v1237, %v230
        %v1356 = vadd.f32 %v1242, %v231
        %v1357 = vadd.f32 %v1245, %v232
        %v1358 = vadd.f32 %v1250, %v233
        %v1359 = vadd.f32 %v1253, %v234
        %v1360 = vadd.f32 %v1258, %v235
        %v1361 = vadd.f32 %v1261, %v236
        %v1362 = vadd.f32 %v1266, %v237
        %v1363 = vadd.f32 %v1269, %v238
        %v1364 = vadd.f32 %v1274, %v239
        %v1365 = vadd.f32 %v1277, %v240
        %v1366 = vadd.f32 %v1282, %v241
        %v1367 = vadd.f32 %v1285, %v242
        %v1368 = vadd.f32 %v1290, %v243
        %v1369 = vadd.f32 %v1293, %v244
        %v1370 = vadd.f32 %v1298, %v245
        %v1371 = vadd.f32 %v1301, %v246
        %v1372 = vadd.f32 %v1306, %v247
        %v1373 = vadd.f32 %v1309, %v248
        %v1374 = vadd.f32 %v1314, %v249
        %v1375 = vadd.f32 %v1317, %v250
        %v1376 = vadd.f32 %v1322, %v251
        %v1377 = vadd.f32 %v1325, %v252
        %v1378 = vadd.f32 %v1330, %v253
        %v1379 = vadd.f32 %v1333, %v254
        %v1380 = vadd.f32 %v1338, %v255
        %v1381 = vadd.f32 %v1341, %v256
        %v1382 = vadd.f32 %v1346, %v257
        %v1383 = vadd.f32 %v1349, %v258
        %1384 = vst [vmem:[%s218] sm:$0xff] %v1352
        %1385 = vst [vmem:[%s218 + $0x8] sm:$0xff] %v1353
        %1386 = vst [vmem:[%s218 + $0x10] sm:$0xff] %v1354
        %1387 = vst [vmem:[%s218 + $0x18] sm:$0xff] %v1355
        %1388 = vst [vmem:[%s218 + $0x20] sm:$0xff] %v1356
        %1389 = vst [vmem:[%s218 + $0x28] sm:$0xff] %v1357
        %1390 = vst [vmem:[%s218 + $0x30] sm:$0xff] %v1358
        %1391 = vst [vmem:[%s218 + $0x38] sm:$0xff] %v1359
        %1392 = vst [vmem:[%s218 + $0x40] sm:$0xff] %v1360
        %1393 = vst [vmem:[%s218 + $0x48] sm:$0xff] %v1361
        %1394 = vst [vmem:[%s218 + $0x50] sm:$0xff] %v1362
        %1395 = vst [vmem:[%s218 + $0x58] sm:$0xff] %v1363
        %1396 = vst [vmem:[%s218 + $0x60] sm:$0xff] %v1364
        %1397 = vst [vmem:[%s218 + $0x68] sm:$0xff] %v1365
        %1398 = vst [vmem:[%s218 + $0x70] sm:$0xff] %v1366
        %1399 = vst [vmem:[%s218 + $0x78] sm:$0xff] %v1367
        %1400 = vst [vmem:[%s218 + $0x80] sm:$0xff] %v1368
        %1401 = vst [vmem:[%s218 + $0x88] sm:$0xff] %v1369
        %1402 = vst [vmem:[%s218 + $0x90] sm:$0xff] %v1370
        %1403 = vst [vmem:[%s218 + $0x98] sm:$0xff] %v1371
        %1404 = vst [vmem:[%s218 + $0xa0] sm:$0xff] %v1372
        %1405 = vst [vmem:[%s218 + $0xa8] sm:$0xff] %v1373
        %1406 = vst [vmem:[%s218 + $0xb0] sm:$0xff] %v1374
        %1407 = vst [vmem:[%s218 + $0xb8] sm:$0xff] %v1375
        %1408 = vst [vmem:[%s218 + $0xc0] sm:$0xff] %v1376
        %1409 = vst [vmem:[%s218 + $0xc8] sm:$0xff] %v1377
        %1410 = vst [vmem:[%s218 + $0xd0] sm:$0xff] %v1378
        %1411 = vst [vmem:[%s218 + $0xd8] sm:$0xff] %v1379
        %1412 = vst [vmem:[%s218 + $0xe0] sm:$0xff] %v1380
        %1413 = vst [vmem:[%s218 + $0xe8] sm:$0xff] %v1381
        %1414 = vst [vmem:[%s218 + $0xf0] sm:$0xff] %v1382
        %1415 = vst [vmem:[%s218 + $0xf8] sm:$0xff] %v1383
        %s1416 = sand.u32 %s137, 1
        %s1417 = scalar_lea.sflag [#allocation3], %s1416
        %s1418 = sand.u32 %s137, 1
        %s1419 = smul.addr %s1418, 256
        %s1420 = scalar_lea.vmem [#allocation2], %s1419
        // Predicated region
        $region41: #{psablock_forward.7} parent=39 // pred_check
          %p1421 = pneg %p147
        $region42: #{psablock_forward.7} parent=39 // pred_check_branch
          %1423 = sbr.rel (%p1421) target = $region44
        $region43: #{psablock_forward.7} parent=39 // pred_region
          %s1424 = smul.u32 32, %s19
          %s1426 = ssub.s32 4096, 4096
          %1427 = vsyncadd %s1417, %s1426
          %s1428 = smul.addr %s1424, 128
          %s1429 = scalar_lea.hbm %s5, %s1428
          %s1430 = sshll.u32 %s1420, 4
          %s1431 = int_to_ptr.vmem [resolvable:$true] %s1430
          %1436 = dma.vmem_to_hbm [thread:$0]  %s1431, 4096, %s1429, %s1417, 128, 128, 8
        $region44: #{psablock_forward.7} parent=39 // pred_fallthru
          _
      $region40: #{psablock_forward.7} parent=5 // pred_fallthru
        _
      %p1437 = scmp.le.s32.totalorder 2, %s14
      // Predicated region
      $region45: #{psablock_forward.7} parent=5 // pred_check
        %p1438 = pneg %p1437
      $region46: #{psablock_forward.7} parent=5 // pred_check_branch
        %1440 = sbr.rel (%p1438) target = $region48
      $region47: #{psablock_forward.7} parent=5 // pred_region
        %s1441 = ssub.s32 %s14, 2
        // Predicated region
        $region49: #{psablock_forward.7} parent=47 // pred_check
          %p1442 = pneg %p153
        $region50: #{psablock_forward.7} parent=47 // pred_check_branch
          %1444 = sbr.rel (%p1442) target = $region52
        $region51: #{psablock_forward.7} parent=47 // pred_region
          %s1445 = sand.u32 %s138, 1
          %s1446 = scalar_lea.sflag [#allocation3], %s1445
          %s1447 = sand.u32 %s138, 1
          %s1448 = smul.addr %s1447, 256
          %s1449 = scalar_lea.vmem [#allocation2], %s1448
          %1450 = dma.done %s1446, 4096
        $region52: #{psablock_forward.7} parent=47 // pred_fallthru
          _
      $region48: #{psablock_forward.7} parent=5 // pred_fallthru
        _
    $region6: #{psablock_forward.7} parent=1 // loop_footer
      %s18 = sadd.s32 1, %s14
    $region7: #{psablock_forward.7} parent=1 // loop_footer_branch
      %13 = sbr.rel target = $region3
    $region8: #{psablock_forward.7} parent=1 // loop_exit
      _
    %1451 = vsyncpa [#allocation3], 1
    %s1452 = scalar_lea.sflag [#allocation3], 1
    %1453 = vsyncpa %s1452, 1

// kernel: psablock_forward.5
$region0: #{psablock_forward.5}
  #allocation0 [shape = 'u32[]', space=smem, size = 0x4, offset = 0x4, fixed_abs, tag = 'smem constant byte address 0x4 - core index']
  #allocation1 [shape = 'u32[144,128]{1,0:T(1,128)}', space=vmem, size = 0x12000, scoped, tag = 'internal scratch']
  %s0 = inlined_call_operand.vmem [shape: bf16[2,18,18,128], index: 0, kind: input, shape index: {}]
  %s1 = inlined_call_operand.vmem [shape: f32[9,128], index: 1, kind: input, shape index: {}]
  %s2 = inlined_call_operand.vmem [shape: f32[1,128], index: 2, kind: input, shape index: {}]
  %s3 = inlined_call_operand.vmem [shape: bf16[2,16,16,128], index: 3, kind: output, shape index: {}]
  %s4 = sld [smem:[#allocation0]]
  $region45: #{psablock_forward.5} parent=0
    _
  %s6 = ssub.s32 1, %s4
  %s7 = scalar_select 0, %s6, %s4
  loop: start=0, step=1, limit=4
  $region2: #{psablock_forward.5} parent=0 // loop_pre_header
    _
  $region3: #{psablock_forward.5} parent=0 // loop_header
    %s9 = sphi 0, %s13
    %p10 = scmp.ge.s32.totalorder %s9, 4
    %s19 = sphi 0, %s21
    %s22 = sphi 0, %s19
    %s23 = sphi 0, %s22
    %s39 = sphi 0, %s23
    %s43 = sphi 0, %s43
    %s45 = sphi 0, %s43
    %s46 = sphi 0, %s45
    %s60 = sphi 0, %s46
    %s64 = sphi 0, %s64
    %s66 = sphi 0, %s64
    %s67 = sphi 0, %s66
    %s81 = sphi 0, %s67
    %s87 = sphi 0, %s89
    %s90 = sphi 0, %s87
    %s91 = sphi 0, %s90
    %s107 = sphi 0, %s91
  $region4: #{psablock_forward.5} parent=0 // loop_header_branch
    %12 = sbr.rel (%p10) target = $region8
  $region5: #{psablock_forward.5} parent=0 // loop_body
    %s14 = ssub.s32 %s9, 1
    %s15 = ssub.s32 %s9, 2
    %s16 = sadd.s32 %s9, 1
    %s17 = ssub.s32 %s9, %s16
    %p18 = scmp.eq.s32.totalorder %s17, 0
    %s20 = sadd.s32 %s19, 1
    %s21 = scalar_select %p18, %s19, %s20
    %p24 = pneg %p18
    %p25 = scmp.eq.s32.totalorder %s9, 1
    %p26 = por %p24, %p25
    %p27 = scmp.ne.s32.totalorder %s19, %s22
    %p28 = scmp.eq.s32.totalorder %s9, 0
    %p29 = por %p27, %p28
    %p30 = scmp.ne.s32.totalorder %s19, %s22
    %p31 = scmp.eq.s32.totalorder %s14, 1
    %p32 = por %p30, %p31
    %p33 = scmp.ne.s32.totalorder %s22, %s23
    %p34 = scmp.eq.s32.totalorder %s14, 0
    %p35 = por %p33, %p34
    %p36 = scmp.ne.s32.totalorder %s22, %s23
    %p37 = scmp.eq.s32.totalorder %s15, 1
    %p38 = por %p36, %p37
    %p40 = scmp.ne.s32.totalorder %s23, %s39
    %p41 = scmp.eq.s32.totalorder %s15, 0
    %p42 = por %p40, %p41
    %s44 = sadd.s32 %s43, 1
    %p47 = scmp.eq.s32.totalorder %s9, 1
    %p48 = scmp.ne.s32.totalorder %s43, %s45
    %p49 = scmp.eq.s32.totalorder %s9, 0
    %p50 = por %p48, %p49
    %p51 = scmp.ne.s32.totalorder %s43, %s45
    %p52 = scmp.eq.s32.totalorder %s14, 1
    %p53 = por %p51, %p52
    %p54 = scmp.ne.s32.totalorder %s45, %s46
    %p55 = scmp.eq.s32.totalorder %s14, 0
    %p56 = por %p54, %p55
    %p57 = scmp.ne.s32.totalorder %s45, %s46
    %p58 = scmp.eq.s32.totalorder %s15, 1
    %p59 = por %p57, %p58
    %p61 = scmp.ne.s32.totalorder %s46, %s60
    %p62 = scmp.eq.s32.totalorder %s15, 0
    %p63 = por %p61, %p62
    %s65 = sadd.s32 %s64, 1
    %p68 = scmp.eq.s32.totalorder %s9, 1
    %p69 = scmp.ne.s32.totalorder %s64, %s66
    %p70 = scmp.eq.s32.totalorder %s9, 0
    %p71 = por %p69, %p70
    %p72 = scmp.ne.s32.totalorder %s64, %s66
    %p73 = scmp.eq.s32.totalorder %s14, 1
    %p74 = por %p72, %p73
    %p75 = scmp.ne.s32.totalorder %s66, %s67
    %p76 = scmp.eq.s32.totalorder %s14, 0
    %p77 = por %p75, %p76
    %p78 = scmp.ne.s32.totalorder %s66, %s67
    %p79 = scmp.eq.s32.totalorder %s15, 1
    %p80 = por %p78, %p79
    %p82 = scmp.ne.s32.totalorder %s67, %s81
    %p83 = scmp.eq.s32.totalorder %s15, 0
    %p84 = por %p82, %p83
    %s85 = ssub.s32 %s9, %s16
    %p86 = scmp.eq.s32.totalorder %s85, 0
    %s88 = sadd.s32 %s87, 1
    %s89 = scalar_select %p86, %s87, %s88
    %p92 = pneg %p86
    %p93 = scmp.eq.s32.totalorder %s9, 1
    %p94 = por %p92, %p93
    %p95 = scmp.ne.s32.totalorder %s87, %s90
    %p96 = scmp.eq.s32.totalorder %s9, 0
    %p97 = por %p95, %p96
    %p98 = scmp.ne.s32.totalorder %s87, %s90
    %p99 = scmp.eq.s32.totalorder %s14, 1
    %p100 = por %p98, %p99
    %p101 = scmp.ne.s32.totalorder %s90, %s91
    %p102 = scmp.eq.s32.totalorder %s14, 0
    %p103 = por %p101, %p102
    %p104 = scmp.ne.s32.totalorder %s90, %s91
    %p105 = scmp.eq.s32.totalorder %s15, 1
    %p106 = por %p104, %p105
    %p108 = scmp.ne.s32.totalorder %s91, %s107
    %p109 = scmp.eq.s32.totalorder %s15, 0
    %p110 = por %p108, %p109
    %p111 = scmp.le.s32.totalorder 1, %s9
    %p112 = scmp.lt.s32.totalorder %s9, 3
    %p113 = pnand %p111, %p112
    %p114 = pneg %p113
    // Predicated region
    $region9: #{psablock_forward.5} parent=5 // pred_check
      _
    $region10: #{psablock_forward.5} parent=5 // pred_check_branch
      %116 = sbr.rel (%p113) target = $region12
    $region11: #{psablock_forward.5} parent=5 // pred_region
      %s117 = ssub.s32 %s9, 1
      // Predicated region
      $region13: #{psablock_forward.5} parent=11 // pred_check
        %p118 = pneg %p56
      $region14: #{psablock_forward.5} parent=11 // pred_check_branch
        %120 = sbr.rel (%p118) target = $region16
      $region15: #{psablock_forward.5} parent=11 // pred_region
        _
      $region16: #{psablock_forward.5} parent=11 // pred_fallthru
        _
      // Predicated region
      $region17: #{psablock_forward.5} parent=11 // pred_check
        %p121 = pneg %p77
      $region18: #{psablock_forward.5} parent=11 // pred_check_branch
        %123 = sbr.rel (%p121) target = $region20
      $region19: #{psablock_forward.5} parent=11 // pred_region
        _
      $region20: #{psablock_forward.5} parent=11 // pred_fallthru
        _
    $region12: #{psablock_forward.5} parent=5 // pred_fallthru
      _
    %p124 = scmp.lt.s32.totalorder %s9, 2
    // Predicated region
    $region21: #{psablock_forward.5} parent=5 // pred_check
      %p125 = pneg %p124
    $region22: #{psablock_forward.5} parent=5 // pred_check_branch
      %127 = sbr.rel (%p125) target = $region24
    $region23: #{psablock_forward.5} parent=5 // pred_region
      // Predicated region
      $region25: #{psablock_forward.5} parent=23 // pred_check
        %p128 = pneg %p29
      $region26: #{psablock_forward.5} parent=23 // pred_check_branch
        %130 = sbr.rel (%p128) target = $region28
      $region27: #{psablock_forward.5} parent=23 // pred_region
        %p131 = scmp.lt.s32.totalorder %s9, 1
        %s132 = scalar_select %p131, %s9, 1
        %s133 = smul.addr %s132, 54
        %s134 = smul.addr %s133, 4
        %s135 = scalar_lea.vmem %s0, %s134
      $region28: #{psablock_forward.5} parent=23 // pred_fallthru
        _
    $region24: #{psablock_forward.5} parent=5 // pred_fallthru
      _
    %p136 = scmp.le.s32.totalorder 1, %s9
    %p137 = scmp.lt.s32.totalorder %s9, 3
    %p138 = pnand %p136, %p137
    %p139 = pneg %p138
    // Predicated region
    $region29: #{psablock_forward.5} parent=5 // pred_check
      _
    $region30: #{psablock_forward.5} parent=5 // pred_check_branch
      %141 = sbr.rel (%p138) target = $region32
    $region31: #{psablock_forward.5} parent=5 // pred_region
      %s142 = ssub.s32 %s9, 1
      %p143 = scmp.lt.s32.totalorder %s14, 1
      %s144 = scalar_select %p143, %s14, 1
      %s145 = smul.addr %s144, 54
      %s146 = smul.addr %s145, 4
      %s147 = scalar_lea.vmem %s0, %s146
      %p148 = pneg %p35
      %p149 = pneg %p32
      %p150 = pneg %p56
      %p151 = pneg %p53
      %p152 = pneg %p77
      %p153 = pneg %p74
      %p154 = pneg %p103
      %p155 = pneg %p100
      %p156 = scmp.lt.s32.totalorder %s14, 1
      %s157 = scalar_select %p156, %s14, 1
      %s158 = smul.addr %s157, 32
      %s159 = smul.addr %s158, 4
      %s160 = scalar_lea.vmem %s3, %s159
      %p161 = scmp.lt.s32.totalorder %s14, 1
      %s162 = scalar_select %p161, %s14, 1
      %s163 = smul.addr %s162, 54
      %s164 = smul.addr %s163, 4
      %s165 = scalar_lea.vmem %s0, %s164
      %p166 = scmp.lt.s32.totalorder %s14, 1
      %s167 = scalar_select %p166, %s14, 1
      %s168 = smul.addr %s167, 32
      %s169 = smul.addr %s168, 4
      %s170 = scalar_lea.vmem %s3, %s169
      %v171 = vld [vmem:[%s165] sm:$0xf]
      %v172 = vld [vmem:[%s165 + $0x4] sm:$0xf]
      %v173 = vld [vmem:[%s165 + $0xc] sm:$0xf]
      %v174 = vld [vmem:[%s165 + $0x10] sm:$0xf]
      %v175 = vld [vmem:[%s165 + $0x18] sm:$0xf]
      %v176 = vld [vmem:[%s165 + $0x1c] sm:$0xf]
      %v177 = vld [vmem:[%s165 + $0x24] sm:$0xf]
      %v178 = vld [vmem:[%s165 + $0x28] sm:$0xf]
      %v179 = vld [vmem:[%s165 + $0x30] sm:$0xf]
      %v180 = vld [vmem:[%s165 + $0x34] sm:$0xf]
      %v181 = vld [vmem:[%s165 + $0x3c] sm:$0xf]
      %v182 = vld [vmem:[%s165 + $0x40] sm:$0xf]
      %v183 = vld [vmem:[%s165 + $0x48] sm:$0xf]
      %v184 = vld [vmem:[%s165 + $0x4c] sm:$0xf]
      %v185 = vld [vmem:[%s165 + $0x54] sm:$0xf]
      %v186 = vld [vmem:[%s165 + $0x58] sm:$0xf]
      %v187 = vld [vmem:[%s165 + $0x60] sm:$0xf]
      %v188 = vld [vmem:[%s165 + $0x64] sm:$0xf]
      %v189 = vld [vmem:[%s165 + $0x6c] sm:$0xf]
      %v190 = vld [vmem:[%s165 + $0x70] sm:$0xf]
      %v191 = vld [vmem:[%s165 + $0x78] sm:$0xf]
      %v192 = vld [vmem:[%s165 + $0x7c] sm:$0xf]
      %v193 = vld [vmem:[%s165 + $0x84] sm:$0xf]
      %v194 = vld [vmem:[%s165 + $0x88] sm:$0xf]
      %v195 = vld [vmem:[%s165 + $0x90] sm:$0xf]
      %v196 = vld [vmem:[%s165 + $0x94] sm:$0xf]
      %v197 = vld [vmem:[%s165 + $0x9c] sm:$0xf]
      %v198 = vld [vmem:[%s165 + $0xa0] sm:$0xf]
      %v199 = vld [vmem:[%s165 + $0xa8] sm:$0xf]
      %v200 = vld [vmem:[%s165 + $0xac] sm:$0xf]
      %v201 = vld [vmem:[%s165 + $0xb4] sm:$0xf]
      %v202 = vld [vmem:[%s165 + $0xb8] sm:$0xf]
      %v203 = vunpack.c.l.bf16 %v171
      %v204 = vunpack.c.l.bf16 %v172
      %v205 = vunpack.c.l.bf16 %v173
      %v206 = vunpack.c.l.bf16 %v174
      %v207 = vunpack.c.l.bf16 %v175
      %v208 = vunpack.c.l.bf16 %v176
      %v209 = vunpack.c.l.bf16 %v177
      %v210 = vunpack.c.l.bf16 %v178
      %v211 = vunpack.c.l.bf16 %v179
      %v212 = vunpack.c.l.bf16 %v180
      %v213 = vunpack.c.l.bf16 %v181
      %v214 = vunpack.c.l.bf16 %v182
      %v215 = vunpack.c.l.bf16 %v183
      %v216 = vunpack.c.l.bf16 %v184
      %v217 = vunpack.c.l.bf16 %v185
      %v218 = vunpack.c.l.bf16 %v186
      %v219 = vunpack.c.l.bf16 %v187
      %v220 = vunpack.c.l.bf16 %v188
      %v221 = vunpack.c.l.bf16 %v189
      %v222 = vunpack.c.l.bf16 %v190
      %v223 = vunpack.c.l.bf16 %v191
      %v224 = vunpack.c.l.bf16 %v192
      %v225 = vunpack.c.l.bf16 %v193
      %v226 = vunpack.c.l.bf16 %v194
      %v227 = vunpack.c.l.bf16 %v195
      %v228 = vunpack.c.l.bf16 %v196
      %v229 = vunpack.c.l.bf16 %v197
      %v230 = vunpack.c.l.bf16 %v198
      %v231 = vunpack.c.l.bf16 %v199
      %v232 = vunpack.c.l.bf16 %v200
      %v233 = vunpack.c.l.bf16 %v201
      %v234 = vunpack.c.l.bf16 %v202
      %v235 = vld [vmem:[%s1] sm:$0x1]
      %v236 = vlaneseq
      %v237 = vshrl.u32 %v236, 7
      %v238 = vsub.s32 0, %v237
      %v239 = vrot.slane %v235, %v238
      %v240 = vmul.f32 %v203, %v239
      %v241 = vmul.f32 %v204, %v239
      %v242 = vmul.f32 %v205, %v239
      %v243 = vmul.f32 %v206, %v239
      %v244 = vmul.f32 %v207, %v239
      %v245 = vmul.f32 %v208, %v239
      %v246 = vmul.f32 %v209, %v239
      %v247 = vmul.f32 %v210, %v239
      %v248 = vmul.f32 %v211, %v239
      %v249 = vmul.f32 %v212, %v239
      %v250 = vmul.f32 %v213, %v239
      %v251 = vmul.f32 %v214, %v239
      %v252 = vmul.f32 %v215, %v239
      %v253 = vmul.f32 %v216, %v239
      %v254 = vmul.f32 %v217, %v239
      %v255 = vmul.f32 %v218, %v239
      %v256 = vmul.f32 %v219, %v239
      %v257 = vmul.f32 %v220, %v239
      %v258 = vmul.f32 %v221, %v239
      %v259 = vmul.f32 %v222, %v239
      %v260 = vmul.f32 %v223, %v239
      %v261 = vmul.f32 %v224, %v239
      %v262 = vmul.f32 %v225, %v239
      %v263 = vmul.f32 %v226, %v239
      %v264 = vmul.f32 %v227, %v239
      %v265 = vmul.f32 %v228, %v239
      %v266 = vmul.f32 %v229, %v239
      %v267 = vmul.f32 %v230, %v239
      %v268 = vmul.f32 %v231, %v239
      %v269 = vmul.f32 %v232, %v239
      %v270 = vmul.f32 %v233, %v239
      %v271 = vmul.f32 %v234, %v239
      %v272 = vadd.f32 %v240, 0.0
      %v273 = vadd.f32 %v241, 0.0
      %v274 = vadd.f32 %v242, 0.0
      %v275 = vadd.f32 %v243, 0.0
      %v276 = vadd.f32 %v244, 0.0
      %v277 = vadd.f32 %v245, 0.0
      %v278 = vadd.f32 %v246, 0.0
      %v279 = vadd.f32 %v247, 0.0
      %v280 = vadd.f32 %v248, 0.0
      %v281 = vadd.f32 %v249, 0.0
      %v282 = vadd.f32 %v250, 0.0
      %v283 = vadd.f32 %v251, 0.0
      %v284 = vadd.f32 %v252, 0.0
      %v285 = vadd.f32 %v253, 0.0
      %v286 = vadd.f32 %v254, 0.0
      %v287 = vadd.f32 %v255, 0.0
      %v288 = vadd.f32 %v256, 0.0
      %v289 = vadd.f32 %v257, 0.0
      %v290 = vadd.f32 %v258, 0.0
      %v291 = vadd.f32 %v259, 0.0
      %v292 = vadd.f32 %v260, 0.0
      %v293 = vadd.f32 %v261, 0.0
      %v294 = vadd.f32 %v262, 0.0
      %v295 = vadd.f32 %v263, 0.0
      %v296 = vadd.f32 %v264, 0.0
      %v297 = vadd.f32 %v265, 0.0
      %v298 = vadd.f32 %v266, 0.0
      %v299 = vadd.f32 %v267, 0.0
      %v300 = vadd.f32 %v268, 0.0
      %v301 = vadd.f32 %v269, 0.0
      %v302 = vadd.f32 %v270, 0.0
      %v303 = vadd.f32 %v271, 0.0
      %v304 = vld [vmem:[%s165 + $0x8] sm:$0x1]
      %v305 = vld [vmem:[%s165 + $0x14] sm:$0x1]
      %v306 = vld [vmem:[%s165 + $0x20] sm:$0x1]
      %v307 = vld [vmem:[%s165 + $0x2c] sm:$0x1]
      %v308 = vld [vmem:[%s165 + $0x38] sm:$0x1]
      %v309 = vld [vmem:[%s165 + $0x44] sm:$0x1]
      %v310 = vld [vmem:[%s165 + $0x50] sm:$0x1]
      %v311 = vld [vmem:[%s165 + $0x5c] sm:$0x1]
      %v312 = vld [vmem:[%s165 + $0x68] sm:$0x1]
      %v313 = vld [vmem:[%s165 + $0x74] sm:$0x1]
      %v314 = vld [vmem:[%s165 + $0x80] sm:$0x1]
      %v315 = vld [vmem:[%s165 + $0x8c] sm:$0x1]
      %v316 = vld [vmem:[%s165 + $0x98] sm:$0x1]
      %v317 = vld [vmem:[%s165 + $0xa4] sm:$0x1]
      %v318 = vld [vmem:[%s165 + $0xb0] sm:$0x1]
      %v319 = vld [vmem:[%s165 + $0xbc] sm:$0x1]
      %v320 = vunpack.c.l.bf16 %v304
      %v321 = vunpack.c.l.bf16 %v305
      %v322 = vunpack.c.l.bf16 %v306
      %v323 = vunpack.c.l.bf16 %v307
      %v324 = vunpack.c.l.bf16 %v308
      %v325 = vunpack.c.l.bf16 %v309
      %v326 = vunpack.c.l.bf16 %v310
      %v327 = vunpack.c.l.bf16 %v311
      %v328 = vunpack.c.l.bf16 %v312
      %v329 = vunpack.c.l.bf16 %v313
      %v330 = vunpack.c.l.bf16 %v314
      %v331 = vunpack.c.l.bf16 %v315
      %v332 = vunpack.c.l.bf16 %v316
      %v333 = vunpack.c.l.bf16 %v317
      %v334 = vunpack.c.l.bf16 %v318
      %v335 = vunpack.c.l.bf16 %v319
      %v336 = vld [vmem:[%s1 + $0x1] sm:$0x1]
      %v337 = vlaneseq
      %v338 = vshrl.u32 %v337, 7
      %v339 = vsub.s32 0, %v338
      %v340 = vrot.slane %v336, %v339
      %v341 = vmul.f32 %v203, %v340
      %v342 = vmul.f32 %v204, %v340
      %v343 = vmul.f32 %v320, %v340
      %v344 = vmul.f32 %v205, %v340
      %v345 = vmul.f32 %v206, %v340
      %v346 = vmul.f32 %v321, %v340
      %v347 = vmul.f32 %v207, %v340
      %v348 = vmul.f32 %v208, %v340
      %v349 = vmul.f32 %v322, %v340
      %v350 = vmul.f32 %v209, %v340
      %v351 = vmul.f32 %v210, %v340
      %v352 = vmul.f32 %v323, %v340
      %v353 = vmul.f32 %v211, %v340
      %v354 = vmul.f32 %v212, %v340
      %v355 = vmul.f32 %v324, %v340
      %v356 = vmul.f32 %v213, %v340
      %v357 = vmul.f32 %v214, %v340
      %v358 = vmul.f32 %v325, %v340
      %v359 = vmul.f32 %v215, %v340
      %v360 = vmul.f32 %v216, %v340
      %v361 = vmul.f32 %v326, %v340
      %v362 = vmul.f32 %v217, %v340
      %v363 = vmul.f32 %v218, %v340
      %v364 = vmul.f32 %v327, %v340
      %v365 = vmul.f32 %v219, %v340
      %v366 = vmul.f32 %v220, %v340
      %v367 = vmul.f32 %v328, %v340
      %v368 = vmul.f32 %v221, %v340
      %v369 = vmul.f32 %v222, %v340
      %v370 = vmul.f32 %v329, %v340
      %v371 = vmul.f32 %v223, %v340
      %v372 = vmul.f32 %v224, %v340
      %v373 = vmul.f32 %v330, %v340
      %v374 = vmul.f32 %v225, %v340
      %v375 = vmul.f32 %v226, %v340
      %v376 = vmul.f32 %v331, %v340
      %v377 = vmul.f32 %v227, %v340
      %v378 = vmul.f32 %v228, %v340
      %v379 = vmul.f32 %v332, %v340
      %v380 = vmul.f32 %v229, %v340
      %v381 = vmul.f32 %v230, %v340
      %v382 = vmul.f32 %v333, %v340
      %v383 = vmul.f32 %v231, %v340
      %v384 = vmul.f32 %v232, %v340
      %v385 = vmul.f32 %v334, %v340
      %v386 = vmul.f32 %v233, %v340
      %v387 = vmul.f32 %v234, %v340
      %v388 = vmul.f32 %v335, %v340
      %vm437 = vcmask 1046528
      %v438 = vrot.slane %v341, 1
      %v439 = vrot.slane %v342, 1
      %v440 = vsel %vm437, %v438, %v439
      %v441 = vrot.slane %v343, 1
      %v442 = vsel %vm437, %v439, %v441
      %v443 = vrot.slane %v344, 1
      %v444 = vrot.slane %v345, 1
      %v445 = vsel %vm437, %v443, %v444
      %v446 = vrot.slane %v346, 1
      %v447 = vsel %vm437, %v444, %v446
      %v448 = vrot.slane %v347, 1
      %v449 = vrot.slane %v348, 1
      %v450 = vsel %vm437, %v448, %v449
      %v451 = vrot.slane %v349, 1
      %v452 = vsel %vm437, %v449, %v451
      %v453 = vrot.slane %v350, 1
      %v454 = vrot.slane %v351, 1
      %v455 = vsel %vm437, %v453, %v454
      %v456 = vrot.slane %v352, 1
      %v457 = vsel %vm437, %v454, %v456
      %v458 = vrot.slane %v353, 1
      %v459 = vrot.slane %v354, 1
      %v460 = vsel %vm437, %v458, %v459
      %v461 = vrot.slane %v355, 1
      %v462 = vsel %vm437, %v459, %v461
      %v463 = vrot.slane %v356, 1
      %v464 = vrot.slane %v357, 1
      %v465 = vsel %vm437, %v463, %v464
      %v466 = vrot.slane %v358, 1
      %v467 = vsel %vm437, %v464, %v466
      %v468 = vrot.slane %v359, 1
      %v469 = vrot.slane %v360, 1
      %v470 = vsel %vm437, %v468, %v469
      %v471 = vrot.slane %v361, 1
      %v472 = vsel %vm437, %v469, %v471
      %v473 = vrot.slane %v362, 1
      %v474 = vrot.slane %v363, 1
      %v475 = vsel %vm437, %v473, %v474
      %v476 = vrot.slane %v364, 1
      %v477 = vsel %vm437, %v474, %v476
      %v478 = vrot.slane %v365, 1
      %v479 = vrot.slane %v366, 1
      %v480 = vsel %vm437, %v478, %v479
      %v481 = vrot.slane %v367, 1
      %v482 = vsel %vm437, %v479, %v481
      %v483 = vrot.slane %v368, 1
      %v484 = vrot.slane %v369, 1
      %v485 = vsel %vm437, %v483, %v484
      %v486 = vrot.slane %v370, 1
      %v487 = vsel %vm437, %v484, %v486
      %v488 = vrot.slane %v371, 1
      %v489 = vrot.slane %v372, 1
      %v490 = vsel %vm437, %v488, %v489
      %v491 = vrot.slane %v373, 1
      %v492 = vsel %vm437, %v489, %v491
      %v493 = vrot.slane %v374, 1
      %v494 = vrot.slane %v375, 1
      %v495 = vsel %vm437, %v493, %v494
      %v496 = vrot.slane %v376, 1
      %v497 = vsel %vm437, %v494, %v496
      %v498 = vrot.slane %v377, 1
      %v499 = vrot.slane %v378, 1
      %v500 = vsel %vm437, %v498, %v499
      %v501 = vrot.slane %v379, 1
      %v502 = vsel %vm437, %v499, %v501
      %v503 = vrot.slane %v380, 1
      %v504 = vrot.slane %v381, 1
      %v505 = vsel %vm437, %v503, %v504
      %v506 = vrot.slane %v382, 1
      %v507 = vsel %vm437, %v504, %v506
      %v508 = vrot.slane %v383, 1
      %v509 = vrot.slane %v384, 1
      %v510 = vsel %vm437, %v508, %v509
      %v511 = vrot.slane %v385, 1
      %v512 = vsel %vm437, %v509, %v511
      %v513 = vrot.slane %v386, 1
      %v514 = vrot.slane %v387, 1
      %v515 = vsel %vm437, %v513, %v514
      %v516 = vrot.slane %v388, 1
      %v517 = vsel %vm437, %v514, %v516
      %v550 = vadd.f32 %v272, %v440
      %v551 = vadd.f32 %v273, %v442
      %v552 = vadd.f32 %v274, %v445
      %v553 = vadd.f32 %v275, %v447
      %v554 = vadd.f32 %v276, %v450
      %v555 = vadd.f32 %v277, %v452
      %v556 = vadd.f32 %v278, %v455
      %v557 = vadd.f32 %v279, %v457
      %v558 = vadd.f32 %v280, %v460
      %v559 = vadd.f32 %v281, %v462
      %v560 = vadd.f32 %v282, %v465
      %v561 = vadd.f32 %v283, %v467
      %v562 = vadd.f32 %v284, %v470
      %v563 = vadd.f32 %v285, %v472
      %v564 = vadd.f32 %v286, %v475
      %v565 = vadd.f32 %v287, %v477
      %v566 = vadd.f32 %v288, %v480
      %v567 = vadd.f32 %v289, %v482
      %v568 = vadd.f32 %v290, %v485
      %v569 = vadd.f32 %v291, %v487
      %v570 = vadd.f32 %v292, %v490
      %v571 = vadd.f32 %v293, %v492
      %v572 = vadd.f32 %v294, %v495
      %v573 = vadd.f32 %v295, %v497
      %v574 = vadd.f32 %v296, %v500
      %v575 = vadd.f32 %v297, %v502
      %v576 = vadd.f32 %v298, %v505
      %v577 = vadd.f32 %v299, %v507
      %v578 = vadd.f32 %v300, %v510
      %v579 = vadd.f32 %v301, %v512
      %v580 = vadd.f32 %v302, %v515
      %v581 = vadd.f32 %v303, %v517
      %v582 = vld [vmem:[%s165] sm:$0xe]
      %v583 = vld [vmem:[%s165 + $0xc] sm:$0xe]
      %v584 = vld [vmem:[%s165 + $0x18] sm:$0xe]
      %v585 = vld [vmem:[%s165 + $0x24] sm:$0xe]
      %v586 = vld [vmem:[%s165 + $0x30] sm:$0xe]
      %v587 = vld [vmem:[%s165 + $0x3c] sm:$0xe]
      %v588 = vld [vmem:[%s165 + $0x48] sm:$0xe]
      %v589 = vld [vmem:[%s165 + $0x54] sm:$0xe]
      %v590 = vld [vmem:[%s165 + $0x60] sm:$0xe]
      %v591 = vld [vmem:[%s165 + $0x6c] sm:$0xe]
      %v592 = vld [vmem:[%s165 + $0x78] sm:$0xe]
      %v593 = vld [vmem:[%s165 + $0x84] sm:$0xe]
      %v594 = vld [vmem:[%s165 + $0x90] sm:$0xe]
      %v595 = vld [vmem:[%s165 + $0x9c] sm:$0xe]
      %v596 = vld [vmem:[%s165 + $0xa8] sm:$0xe]
      %v597 = vld [vmem:[%s165 + $0xb4] sm:$0xe]
      %v598 = vunpack.c.l.bf16 %v582
      %v599 = vunpack.c.l.bf16 %v583
      %v600 = vunpack.c.l.bf16 %v584
      %v601 = vunpack.c.l.bf16 %v585
      %v602 = vunpack.c.l.bf16 %v586
      %v603 = vunpack.c.l.bf16 %v587
      %v604 = vunpack.c.l.bf16 %v588
      %v605 = vunpack.c.l.bf16 %v589
      %v606 = vunpack.c.l.bf16 %v590
      %v607 = vunpack.c.l.bf16 %v591
      %v608 = vunpack.c.l.bf16 %v592
      %v609 = vunpack.c.l.bf16 %v593
      %v610 = vunpack.c.l.bf16 %v594
      %v611 = vunpack.c.l.bf16 %v595
      %v612 = vunpack.c.l.bf16 %v596
      %v613 = vunpack.c.l.bf16 %v597
      %v614 = vld [vmem:[%s1 + $0x2] sm:$0x1]
      %v615 = vlaneseq
      %v616 = vshrl.u32 %v615, 7
      %v617 = vsub.s32 0, %v616
      %v618 = vrot.slane %v614, %v617
      %v619 = vmul.f32 %v598, %v618
      %v620 = vmul.f32 %v204, %v618
      %v621 = vmul.f32 %v320, %v618
      %v622 = vmul.f32 %v599, %v618
      %v623 = vmul.f32 %v206, %v618
      %v624 = vmul.f32 %v321, %v618
      %v625 = vmul.f32 %v600, %v618
      %v626 = vmul.f32 %v208, %v618
      %v627 = vmul.f32 %v322, %v618
      %v628 = vmul.f32 %v601, %v618
      %v629 = vmul.f32 %v210, %v618
      %v630 = vmul.f32 %v323, %v618
      %v631 = vmul.f32 %v602, %v618
      %v632 = vmul.f32 %v212, %v618
      %v633 = vmul.f32 %v324, %v618
      %v634 = vmul.f32 %v603, %v618
      %v635 = vmul.f32 %v214, %v618
      %v636 = vmul.f32 %v325, %v618
      %v637 = vmul.f32 %v604, %v618
      %v638 = vmul.f32 %v216, %v618
      %v639 = vmul.f32 %v326, %v618
      %v640 = vmul.f32 %v605, %v618
      %v641 = vmul.f32 %v218, %v618
      %v642 = vmul.f32 %v327, %v618
      %v643 = vmul.f32 %v606, %v618
      %v644 = vmul.f32 %v220, %v618
      %v645 = vmul.f32 %v328, %v618
      %v646 = vmul.f32 %v607, %v618
      %v647 = vmul.f32 %v222, %v618
      %v648 = vmul.f32 %v329, %v618
      %v649 = vmul.f32 %v608, %v618
      %v650 = vmul.f32 %v224, %v618
      %v651 = vmul.f32 %v330, %v618
      %v652 = vmul.f32 %v609, %v618
      %v653 = vmul.f32 %v226, %v618
      %v654 = vmul.f32 %v331, %v618
      %v655 = vmul.f32 %v610, %v618
      %v656 = vmul.f32 %v228, %v618
      %v657 = vmul.f32 %v332, %v618
      %v658 = vmul.f32 %v611, %v618
      %v659 = vmul.f32 %v230, %v618
      %v660 = vmul.f32 %v333, %v618
      %v661 = vmul.f32 %v612, %v618
      %v662 = vmul.f32 %v232, %v618
      %v663 = vmul.f32 %v334, %v618
      %v664 = vmul.f32 %v613, %v618
      %v665 = vmul.f32 %v234, %v618
      %v666 = vmul.f32 %v335, %v618
      %vm715 = vcmask 1045504
      %v716 = vrot.slane %v619, 2
      %v717 = vrot.slane %v620, 2
      %v718 = vsel %vm715, %v716, %v717
      %v719 = vrot.slane %v621, 2
      %v720 = vsel %vm715, %v717, %v719
      %v721 = vrot.slane %v622, 2
      %v722 = vrot.slane %v623, 2
      %v723 = vsel %vm715, %v721, %v722
      %v724 = vrot.slane %v624, 2
      %v725 = vsel %vm715, %v722, %v724
      %v726 = vrot.slane %v625, 2
      %v727 = vrot.slane %v626, 2
      %v728 = vsel %vm715, %v726, %v727
      %v729 = vrot.slane %v627, 2
      %v730 = vsel %vm715, %v727, %v729
      %v731 = vrot.slane %v628, 2
      %v732 = vrot.slane %v629, 2
      %v733 = vsel %vm715, %v731, %v732
      %v734 = vrot.slane %v630, 2
      %v735 = vsel %vm715, %v732, %v734
      %v736 = vrot.slane %v631, 2
      %v737 = vrot.slane %v632, 2
      %v738 = vsel %vm715, %v736, %v737
      %v739 = vrot.slane %v633, 2
      %v740 = vsel %vm715, %v737, %v739
      %v741 = vrot.slane %v634, 2
      %v742 = vrot.slane %v635, 2
      %v743 = vsel %vm715, %v741, %v742
      %v744 = vrot.slane %v636, 2
      %v745 = vsel %vm715, %v742, %v744
      %v746 = vrot.slane %v637, 2
      %v747 = vrot.slane %v638, 2
      %v748 = vsel %vm715, %v746, %v747
      %v749 = vrot.slane %v639, 2
      %v750 = vsel %vm715, %v747, %v749
      %v751 = vrot.slane %v640, 2
      %v752 = vrot.slane %v641, 2
      %v753 = vsel %vm715, %v751, %v752
      %v754 = vrot.slane %v642, 2
      %v755 = vsel %vm715, %v752, %v754
      %v756 = vrot.slane %v643, 2
      %v757 = vrot.slane %v644, 2
      %v758 = vsel %vm715, %v756, %v757
      %v759 = vrot.slane %v645, 2
      %v760 = vsel %vm715, %v757, %v759
      %v761 = vrot.slane %v646, 2
      %v762 = vrot.slane %v647, 2
      %v763 = vsel %vm715, %v761, %v762
      %v764 = vrot.slane %v648, 2
      %v765 = vsel %vm715, %v762, %v764
      %v766 = vrot.slane %v649, 2
      %v767 = vrot.slane %v650, 2
      %v768 = vsel %vm715, %v766, %v767
      %v769 = vrot.slane %v651, 2
      %v770 = vsel %vm715, %v767, %v769
      %v771 = vrot.slane %v652, 2
      %v772 = vrot.slane %v653, 2
      %v773 = vsel %vm715, %v771, %v772
      %v774 = vrot.slane %v654, 2
      %v775 = vsel %vm715, %v772, %v774
      %v776 = vrot.slane %v655, 2
      %v777 = vrot.slane %v656, 2
      %v778 = vsel %vm715, %v776, %v777
      %v779 = vrot.slane %v657, 2
      %v780 = vsel %vm715, %v777, %v779
      %v781 = vrot.slane %v658, 2
      %v782 = vrot.slane %v659, 2
      %v783 = vsel %vm715, %v781, %v782
      %v784 = vrot.slane %v660, 2
      %v785 = vsel %vm715, %v782, %v784
      %v786 = vrot.slane %v661, 2
      %v787 = vrot.slane %v662, 2
      %v788 = vsel %vm715, %v786, %v787
      %v789 = vrot.slane %v663, 2
      %v790 = vsel %vm715, %v787, %v789
      %v791 = vrot.slane %v664, 2
      %v792 = vrot.slane %v665, 2
      %v793 = vsel %vm715, %v791, %v792
      %v794 = vrot.slane %v666, 2
      %v795 = vsel %vm715, %v792, %v794
      %v828 = vadd.f32 %v550, %v718
      %v829 = vadd.f32 %v551, %v720
      %v830 = vadd.f32 %v552, %v723
      %v831 = vadd.f32 %v553, %v725
      %v832 = vadd.f32 %v554, %v728
      %v833 = vadd.f32 %v555, %v730
      %v834 = vadd.f32 %v556, %v733
      %v835 = vadd.f32 %v557, %v735
      %v836 = vadd.f32 %v558, %v738
      %v837 = vadd.f32 %v559, %v740
      %v838 = vadd.f32 %v560, %v743
      %v839 = vadd.f32 %v561, %v745
      %v840 = vadd.f32 %v562, %v748
      %v841 = vadd.f32 %v563, %v750
      %v842 = vadd.f32 %v564, %v753
      %v843 = vadd.f32 %v565, %v755
      %v844 = vadd.f32 %v566, %v758
      %v845 = vadd.f32 %v567, %v760
      %v846 = vadd.f32 %v568, %v763
      %v847 = vadd.f32 %v569, %v765
      %v848 = vadd.f32 %v570, %v768
      %v849 = vadd.f32 %v571, %v770
      %v850 = vadd.f32 %v572, %v773
      %v851 = vadd.f32 %v573, %v775
      %v852 = vadd.f32 %v574, %v778
      %v853 = vadd.f32 %v575, %v780
      %v854 = vadd.f32 %v576, %v783
      %v855 = vadd.f32 %v577, %v785
      %v856 = vadd.f32 %v578, %v788
      %v857 = vadd.f32 %v579, %v790
      %v858 = vadd.f32 %v580, %v793
      %v859 = vadd.f32 %v581, %v795
      %s860 = scalar_lea.vmem %s165, 12
      %v861 = vld [vmem:[%s860] sm:$0xf]
      %v862 = vld [vmem:[%s860 + $0x4] sm:$0xf]
      %v863 = vld [vmem:[%s860 + $0xc] sm:$0xf]
      %v864 = vld [vmem:[%s860 + $0x10] sm:$0xf]
      %v865 = vld [vmem:[%s860 + $0x18] sm:$0xf]
      %v866 = vld [vmem:[%s860 + $0x1c] sm:$0xf]
      %v867 = vld [vmem:[%s860 + $0x24] sm:$0xf]
      %v868 = vld [vmem:[%s860 + $0x28] sm:$0xf]
      %v869 = vld [vmem:[%s860 + $0x30] sm:$0xf]
      %v870 = vld [vmem:[%s860 + $0x34] sm:$0xf]
      %v871 = vld [vmem:[%s860 + $0x3c] sm:$0xf]
      %v872 = vld [vmem:[%s860 + $0x40] sm:$0xf]
      %v873 = vld [vmem:[%s860 + $0x48] sm:$0xf]
      %v874 = vld [vmem:[%s860 + $0x4c] sm:$0xf]
      %v875 = vld [vmem:[%s860 + $0x54] sm:$0xf]
      %v876 = vld [vmem:[%s860 + $0x58] sm:$0xf]
      %v877 = vld [vmem:[%s860 + $0x60] sm:$0xf]
      %v878 = vld [vmem:[%s860 + $0x64] sm:$0xf]
      %v879 = vld [vmem:[%s860 + $0x6c] sm:$0xf]
      %v880 = vld [vmem:[%s860 + $0x70] sm:$0xf]
      %v881 = vld [vmem:[%s860 + $0x78] sm:$0xf]
      %v882 = vld [vmem:[%s860 + $0x7c] sm:$0xf]
      %v883 = vld [vmem:[%s860 + $0x84] sm:$0xf]
      %v884 = vld [vmem:[%s860 + $0x88] sm:$0xf]
      %v885 = vld [vmem:[%s860 + $0x90] sm:$0xf]
      %v886 = vld [vmem:[%s860 + $0x94] sm:$0xf]
      %v887 = vld [vmem:[%s860 + $0x9c] sm:$0xf]
      %v888 = vld [vmem:[%s860 + $0xa0] sm:$0xf]
      %v889 = vld [vmem:[%s860 + $0xa8] sm:$0xf]
      %v890 = vld [vmem:[%s860 + $0xac] sm:$0xf]
      %v891 = vld [vmem:[%s860 + $0xb4] sm:$0xf]
      %v892 = vld [vmem:[%s860 + $0xb8] sm:$0xf]
      %v893 = vunpack.c.l.bf16 %v861
      %v894 = vunpack.c.l.bf16 %v862
      %v895 = vunpack.c.l.bf16 %v863
      %v896 = vunpack.c.l.bf16 %v864
      %v897 = vunpack.c.l.bf16 %v865
      %v898 = vunpack.c.l.bf16 %v866
      %v899 = vunpack.c.l.bf16 %v867
      %v900 = vunpack.c.l.bf16 %v868
      %v901 = vunpack.c.l.bf16 %v869
      %v902 = vunpack.c.l.bf16 %v870
      %v903 = vunpack.c.l.bf16 %v871
      %v904 = vunpack.c.l.bf16 %v872
      %v905 = vunpack.c.l.bf16 %v873
      %v906 = vunpack.c.l.bf16 %v874
      %v907 = vunpack.c.l.bf16 %v875
      %v908 = vunpack.c.l.bf16 %v876
      %v909 = vunpack.c.l.bf16 %v877
      %v910 = vunpack.c.l.bf16 %v878
      %v911 = vunpack.c.l.bf16 %v879
      %v912 = vunpack.c.l.bf16 %v880
      %v913 = vunpack.c.l.bf16 %v881
      %v914 = vunpack.c.l.bf16 %v882
      %v915 = vunpack.c.l.bf16 %v883
      %v916 = vunpack.c.l.bf16 %v884
      %v917 = vunpack.c.l.bf16 %v885
      %v918 = vunpack.c.l.bf16 %v886
      %v919 = vunpack.c.l.bf16 %v887
      %v920 = vunpack.c.l.bf16 %v888
      %v921 = vunpack.c.l.bf16 %v889
      %v922 = vunpack.c.l.bf16 %v890
      %v923 = vunpack.c.l.bf16 %v891
      %v924 = vunpack.c.l.bf16 %v892
      %v925 = vld [vmem:[%s1 + $0x3] sm:$0x1]
      %v926 = vlaneseq
      %v927 = vshrl.u32 %v926, 7
      %v928 = vsub.s32 0, %v927
      %v929 = vrot.slane %v925, %v928
      %v930 = vmul.f32 %v893, %v929
      %v931 = vmul.f32 %v894, %v929
      %v932 = vmul.f32 %v895, %v929
      %v933 = vmul.f32 %v896, %v929
      %v934 = vmul.f32 %v897, %v929
      %v935 = vmul.f32 %v898, %v929
      %v936 = vmul.f32 %v899, %v929
      %v937 = vmul.f32 %v900, %v929
      %v938 = vmul.f32 %v901, %v929
      %v939 = vmul.f32 %v902, %v929
      %v940 = vmul.f32 %v903, %v929
      %v941 = vmul.f32 %v904, %v929
      %v942 = vmul.f32 %v905, %v929
      %v943 = vmul.f32 %v906, %v929
      %v944 = vmul.f32 %v907, %v929
      %v945 = vmul.f32 %v908, %v929
      %v946 = vmul.f32 %v909, %v929
      %v947 = vmul.f32 %v910, %v929
      %v948 = vmul.f32 %v911, %v929
      %v949 = vmul.f32 %v912, %v929
      %v950 = vmul.f32 %v913, %v929
      %v951 = vmul.f32 %v914, %v929
      %v952 = vmul.f32 %v915, %v929
      %v953 = vmul.f32 %v916, %v929
      %v954 = vmul.f32 %v917, %v929
      %v955 = vmul.f32 %v918, %v929
      %v956 = vmul.f32 %v919, %v929
      %v957 = vmul.f32 %v920, %v929
      %v958 = vmul.f32 %v921, %v929
      %v959 = vmul.f32 %v922, %v929
      %v960 = vmul.f32 %v923, %v929
      %v961 = vmul.f32 %v924, %v929
      %v962 = vadd.f32 %v828, %v930
      %v963 = vadd.f32 %v829, %v931
      %v964 = vadd.f32 %v830, %v932
      %v965 = vadd.f32 %v831, %v933
      %v966 = vadd.f32 %v832, %v934
      %v967 = vadd.f32 %v833, %v935
      %v968 = vadd.f32 %v834, %v936
      %v969 = vadd.f32 %v835, %v937
      %v970 = vadd.f32 %v836, %v938
      %v971 = vadd.f32 %v837, %v939
      %v972 = vadd.f32 %v838, %v940
      %v973 = vadd.f32 %v839, %v941
      %v974 = vadd.f32 %v840, %v942
      %v975 = vadd.f32 %v841, %v943
      %v976 = vadd.f32 %v842, %v944
      %v977 = vadd.f32 %v843, %v945
      %v978 = vadd.f32 %v844, %v946
      %v979 = vadd.f32 %v845, %v947
      %v980 = vadd.f32 %v846, %v948
      %v981 = vadd.f32 %v847, %v949
      %v982 = vadd.f32 %v848, %v950
      %v983 = vadd.f32 %v849, %v951
      %v984 = vadd.f32 %v850, %v952
      %v985 = vadd.f32 %v851, %v953
      %v986 = vadd.f32 %v852, %v954
      %v987 = vadd.f32 %v853, %v955
      %v988 = vadd.f32 %v854, %v956
      %v989 = vadd.f32 %v855, %v957
      %v990 = vadd.f32 %v856, %v958
      %v991 = vadd.f32 %v857, %v959
      %v992 = vadd.f32 %v858, %v960
      %v993 = vadd.f32 %v859, %v961
      %v994 = vld [vmem:[%s860 + $0x8] sm:$0x1]
      %v995 = vld [vmem:[%s860 + $0x14] sm:$0x1]
      %v996 = vld [vmem:[%s860 + $0x20] sm:$0x1]
      %v997 = vld [vmem:[%s860 + $0x2c] sm:$0x1]
      %v998 = vld [vmem:[%s860 + $0x38] sm:$0x1]
      %v999 = vld [vmem:[%s860 + $0x44] sm:$0x1]
      %v1000 = vld [vmem:[%s860 + $0x50] sm:$0x1]
      %v1001 = vld [vmem:[%s860 + $0x5c] sm:$0x1]
      %v1002 = vld [vmem:[%s860 + $0x68] sm:$0x1]
      %v1003 = vld [vmem:[%s860 + $0x74] sm:$0x1]
      %v1004 = vld [vmem:[%s860 + $0x80] sm:$0x1]
      %v1005 = vld [vmem:[%s860 + $0x8c] sm:$0x1]
      %v1006 = vld [vmem:[%s860 + $0x98] sm:$0x1]
      %v1007 = vld [vmem:[%s860 + $0xa4] sm:$0x1]
      %v1008 = vld [vmem:[%s860 + $0xb0] sm:$0x1]
      %v1009 = vld [vmem:[%s860 + $0xbc] sm:$0x1]
      %v1010 = vunpack.c.l.bf16 %v994
      %v1011 = vunpack.c.l.bf16 %v995
      %v1012 = vunpack.c.l.bf16 %v996
      %v1013 = vunpack.c.l.bf16 %v997
      %v1014 = vunpack.c.l.bf16 %v998
      %v1015 = vunpack.c.l.bf16 %v999
      %v1016 = vunpack.c.l.bf16 %v1000
      %v1017 = vunpack.c.l.bf16 %v1001
      %v1018 = vunpack.c.l.bf16 %v1002
      %v1019 = vunpack.c.l.bf16 %v1003
      %v1020 = vunpack.c.l.bf16 %v1004
      %v1021 = vunpack.c.l.bf16 %v1005
      %v1022 = vunpack.c.l.bf16 %v1006
      %v1023 = vunpack.c.l.bf16 %v1007
      %v1024 = vunpack.c.l.bf16 %v1008
      %v1025 = vunpack.c.l.bf16 %v1009
      %v1026 = vld [vmem:[%s1 + $0x4] sm:$0x1]
      %v1027 = vlaneseq
      %v1028 = vshrl.u32 %v1027, 7
      %v1029 = vsub.s32 0, %v1028
      %v1030 = vrot.slane %v1026, %v1029
      %v1031 = vmul.f32 %v893, %v1030
      %v1032 = vmul.f32 %v894, %v1030
      %v1033 = vmul.f32 %v1010, %v1030
      %v1034 = vmul.f32 %v895, %v1030
      %v1035 = vmul.f32 %v896, %v1030
      %v1036 = vmul.f32 %v1011, %v1030
      %v1037 = vmul.f32 %v897, %v1030
      %v1038 = vmul.f32 %v898, %v1030
      %v1039 = vmul.f32 %v1012, %v1030
      %v1040 = vmul.f32 %v899, %v1030
      %v1041 = vmul.f32 %v900, %v1030
      %v1042 = vmul.f32 %v1013, %v1030
      %v1043 = vmul.f32 %v901, %v1030
      %v1044 = vmul.f32 %v902, %v1030
      %v1045 = vmul.f32 %v1014, %v1030
      %v1046 = vmul.f32 %v903, %v1030
      %v1047 = vmul.f32 %v904, %v1030
      %v1048 = vmul.f32 %v1015, %v1030
      %v1049 = vmul.f32 %v905, %v1030
      %v1050 = vmul.f32 %v906, %v1030
      %v1051 = vmul.f32 %v1016, %v1030
      %v1052 = vmul.f32 %v907, %v1030
      %v1053 = vmul.f32 %v908, %v1030
      %v1054 = vmul.f32 %v1017, %v1030
      %v1055 = vmul.f32 %v909, %v1030
      %v1056 = vmul.f32 %v910, %v1030
      %v1057 = vmul.f32 %v1018, %v1030
      %v1058 = vmul.f32 %v911, %v1030
      %v1059 = vmul.f32 %v912, %v1030
      %v1060 = vmul.f32 %v1019, %v1030
      %v1061 = vmul.f32 %v913, %v1030
      %v1062 = vmul.f32 %v914, %v1030
      %v1063 = vmul.f32 %v1020, %v1030
      %v1064 = vmul.f32 %v915, %v1030
      %v1065 = vmul.f32 %v916, %v1030
      %v1066 = vmul.f32 %v1021, %v1030
      %v1067 = vmul.f32 %v917, %v1030
      %v1068 = vmul.f32 %v918, %v1030
      %v1069 = vmul.f32 %v1022, %v1030
      %v1070 = vmul.f32 %v919, %v1030
      %v1071 = vmul.f32 %v920, %v1030
      %v1072 = vmul.f32 %v1023, %v1030
      %v1073 = vmul.f32 %v921, %v1030
      %v1074 = vmul.f32 %v922, %v1030
      %v1075 = vmul.f32 %v1024, %v1030
      %v1076 = vmul.f32 %v923, %v1030
      %v1077 = vmul.f32 %v924, %v1030
      %v1078 = vmul.f32 %v1025, %v1030
      %v1127 = vrot.slane %v1031, 1
      %v1128 = vrot.slane %v1032, 1
      %v1129 = vsel %vm437, %v1127, %v1128
      %v1130 = vrot.slane %v1033, 1
      %v1131 = vsel %vm437, %v1128, %v1130
      %v1132 = vrot.slane %v1034, 1
      %v1133 = vrot.slane %v1035, 1
      %v1134 = vsel %vm437, %v1132, %v1133
      %v1135 = vrot.slane %v1036, 1
      %v1136 = vsel %vm437, %v1133, %v1135
      %v1137 = vrot.slane %v1037, 1
      %v1138 = vrot.slane %v1038, 1
      %v1139 = vsel %vm437, %v1137, %v1138
      %v1140 = vrot.slane %v1039, 1
      %v1141 = vsel %vm437, %v1138, %v1140
      %v1142 = vrot.slane %v1040, 1
      %v1143 = vrot.slane %v1041, 1
      %v1144 = vsel %vm437, %v1142, %v1143
      %v1145 = vrot.slane %v1042, 1
      %v1146 = vsel %vm437, %v1143, %v1145
      %v1147 = vrot.slane %v1043, 1
      %v1148 = vrot.slane %v1044, 1
      %v1149 = vsel %vm437, %v1147, %v1148
      %v1150 = vrot.slane %v1045, 1
      %v1151 = vsel %vm437, %v1148, %v1150
      %v1152 = vrot.slane %v1046, 1
      %v1153 = vrot.slane %v1047, 1
      %v1154 = vsel %vm437, %v1152, %v1153
      %v1155 = vrot.slane %v1048, 1
      %v1156 = vsel %vm437, %v1153, %v1155
      %v1157 = vrot.slane %v1049, 1
      %v1158 = vrot.slane %v1050, 1
      %v1159 = vsel %vm437, %v1157, %v1158
      %v1160 = vrot.slane %v1051, 1
      %v1161 = vsel %vm437, %v1158, %v1160
      %v1162 = vrot.slane %v1052, 1
      %v1163 = vrot.slane %v1053, 1
      %v1164 = vsel %vm437, %v1162, %v1163
      %v1165 = vrot.slane %v1054, 1
      %v1166 = vsel %vm437, %v1163, %v1165
      %v1167 = vrot.slane %v1055, 1
      %v1168 = vrot.slane %v1056, 1
      %v1169 = vsel %vm437, %v1167, %v1168
      %v1170 = vrot.slane %v1057, 1
      %v1171 = vsel %vm437, %v1168, %v1170
      %v1172 = vrot.slane %v1058, 1
      %v1173 = vrot.slane %v1059, 1
      %v1174 = vsel %vm437, %v1172, %v1173
      %v1175 = vrot.slane %v1060, 1
      %v1176 = vsel %vm437, %v1173, %v1175
      %v1177 = vrot.slane %v1061, 1
      %v1178 = vrot.slane %v1062, 1
      %v1179 = vsel %vm437, %v1177, %v1178
      %v1180 = vrot.slane %v1063, 1
      %v1181 = vsel %vm437, %v1178, %v1180
      %v1182 = vrot.slane %v1064, 1
      %v1183 = vrot.slane %v1065, 1
      %v1184 = vsel %vm437, %v1182, %v1183
      %v1185 = vrot.slane %v1066, 1
      %v1186 = vsel %vm437, %v1183, %v1185
      %v1187 = vrot.slane %v1067, 1
      %v1188 = vrot.slane %v1068, 1
      %v1189 = vsel %vm437, %v1187, %v1188
      %v1190 = vrot.slane %v1069, 1
      %v1191 = vsel %vm437, %v1188, %v1190
      %v1192 = vrot.slane %v1070, 1
      %v1193 = vrot.slane %v1071, 1
      %v1194 = vsel %vm437, %v1192, %v1193
      %v1195 = vrot.slane %v1072, 1
      %v1196 = vsel %vm437, %v1193, %v1195
      %v1197 = vrot.slane %v1073, 1
      %v1198 = vrot.slane %v1074, 1
      %v1199 = vsel %vm437, %v1197, %v1198
      %v1200 = vrot.slane %v1075, 1
      %v1201 = vsel %vm437, %v1198, %v1200
      %v1202 = vrot.slane %v1076, 1
      %v1203 = vrot.slane %v1077, 1
      %v1204 = vsel %vm437, %v1202, %v1203
      %v1205 = vrot.slane %v1078, 1
      %v1206 = vsel %vm437, %v1203, %v1205
      %v1239 = vadd.f32 %v962, %v1129
      %v1240 = vadd.f32 %v963, %v1131
      %v1241 = vadd.f32 %v964, %v1134
      %v1242 = vadd.f32 %v965, %v1136
      %v1243 = vadd.f32 %v966, %v1139
      %v1244 = vadd.f32 %v967, %v1141
      %v1245 = vadd.f32 %v968, %v1144
      %v1246 = vadd.f32 %v969, %v1146
      %v1247 = vadd.f32 %v970, %v1149
      %v1248 = vadd.f32 %v971, %v1151
      %v1249 = vadd.f32 %v972, %v1154
      %v1250 = vadd.f32 %v973, %v1156
      %v1251 = vadd.f32 %v974, %v1159
      %v1252 = vadd.f32 %v975, %v1161
      %v1253 = vadd.f32 %v976, %v1164
      %v1254 = vadd.f32 %v977, %v1166
      %v1255 = vadd.f32 %v978, %v1169
      %v1256 = vadd.f32 %v979, %v1171
      %v1257 = vadd.f32 %v980, %v1174
      %v1258 = vadd.f32 %v981, %v1176
      %v1259 = vadd.f32 %v982, %v1179
      %v1260 = vadd.f32 %v983, %v1181
      %v1261 = vadd.f32 %v984, %v1184
      %v1262 = vadd.f32 %v985, %v1186
      %v1263 = vadd.f32 %v986, %v1189
      %v1264 = vadd.f32 %v987, %v1191
      %v1265 = vadd.f32 %v988, %v1194
      %v1266 = vadd.f32 %v989, %v1196
      %v1267 = vadd.f32 %v990, %v1199
      %v1268 = vadd.f32 %v991, %v1201
      %v1269 = vadd.f32 %v992, %v1204
      %v1270 = vadd.f32 %v993, %v1206
      %v1271 = vld [vmem:[%s860] sm:$0xe]
      %v1272 = vld [vmem:[%s860 + $0xc] sm:$0xe]
      %v1273 = vld [vmem:[%s860 + $0x18] sm:$0xe]
      %v1274 = vld [vmem:[%s860 + $0x24] sm:$0xe]
      %v1275 = vld [vmem:[%s860 + $0x30] sm:$0xe]
      %v1276 = vld [vmem:[%s860 + $0x3c] sm:$0xe]
      %v1277 = vld [vmem:[%s860 + $0x48] sm:$0xe]
      %v1278 = vld [vmem:[%s860 + $0x54] sm:$0xe]
      %v1279 = vld [vmem:[%s860 + $0x60] sm:$0xe]
      %v1280 = vld [vmem:[%s860 + $0x6c] sm:$0xe]
      %v1281 = vld [vmem:[%s860 + $0x78] sm:$0xe]
      %v1282 = vld [vmem:[%s860 + $0x84] sm:$0xe]
      %v1283 = vld [vmem:[%s860 + $0x90] sm:$0xe]
      %v1284 = vld [vmem:[%s860 + $0x9c] sm:$0xe]
      %v1285 = vld [vmem:[%s860 + $0xa8] sm:$0xe]
      %v1286 = vld [vmem:[%s860 + $0xb4] sm:$0xe]
      %v1287 = vunpack.c.l.bf16 %v1271
      %v1288 = vunpack.c.l.bf16 %v1272
      %v1289 = vunpack.c.l.bf16 %v1273
      %v1290 = vunpack.c.l.bf16 %v1274
      %v1291 = vunpack.c.l.bf16 %v1275
      %v1292 = vunpack.c.l.bf16 %v1276
      %v1293 = vunpack.c.l.bf16 %v1277
      %v1294 = vunpack.c.l.bf16 %v1278
      %v1295 = vunpack.c.l.bf16 %v1279
      %v1296 = vunpack.c.l.bf16 %v1280
      %v1297 = vunpack.c.l.bf16 %v1281
      %v1298 = vunpack.c.l.bf16 %v1282
      %v1299 = vunpack.c.l.bf16 %v1283
      %v1300 = vunpack.c.l.bf16 %v1284
      %v1301 = vunpack.c.l.bf16 %v1285
      %v1302 = vunpack.c.l.bf16 %v1286
      %v1303 = vld [vmem:[%s1 + $0x5] sm:$0x1]
      %v1304 = vlaneseq
      %v1305 = vshrl.u32 %v1304, 7
      %v1306 = vsub.s32 0, %v1305
      %v1307 = vrot.slane %v1303, %v1306
      %v1308 = vmul.f32 %v1287, %v1307
      %v1309 = vmul.f32 %v894, %v1307
      %v1310 = vmul.f32 %v1010, %v1307
      %v1311 = vmul.f32 %v1288, %v1307
      %v1312 = vmul.f32 %v896, %v1307
      %v1313 = vmul.f32 %v1011, %v1307
      %v1314 = vmul.f32 %v1289, %v1307
      %v1315 = vmul.f32 %v898, %v1307
      %v1316 = vmul.f32 %v1012, %v1307
      %v1317 = vmul.f32 %v1290, %v1307
      %v1318 = vmul.f32 %v900, %v1307
      %v1319 = vmul.f32 %v1013, %v1307
      %v1320 = vmul.f32 %v1291, %v1307
      %v1321 = vmul.f32 %v902, %v1307
      %v1322 = vmul.f32 %v1014, %v1307
      %v1323 = vmul.f32 %v1292, %v1307
      %v1324 = vmul.f32 %v904, %v1307
      %v1325 = vmul.f32 %v1015, %v1307
      %v1326 = vmul.f32 %v1293, %v1307
      %v1327 = vmul.f32 %v906, %v1307
      %v1328 = vmul.f32 %v1016, %v1307
      %v1329 = vmul.f32 %v1294, %v1307
      %v1330 = vmul.f32 %v908, %v1307
      %v1331 = vmul.f32 %v1017, %v1307
      %v1332 = vmul.f32 %v1295, %v1307
      %v1333 = vmul.f32 %v910, %v1307
      %v1334 = vmul.f32 %v1018, %v1307
      %v1335 = vmul.f32 %v1296, %v1307
      %v1336 = vmul.f32 %v912, %v1307
      %v1337 = vmul.f32 %v1019, %v1307
      %v1338 = vmul.f32 %v1297, %v1307
      %v1339 = vmul.f32 %v914, %v1307
      %v1340 = vmul.f32 %v1020, %v1307
      %v1341 = vmul.f32 %v1298, %v1307
      %v1342 = vmul.f32 %v916, %v1307
      %v1343 = vmul.f32 %v1021, %v1307
      %v1344 = vmul.f32 %v1299, %v1307
      %v1345 = vmul.f32 %v918, %v1307
      %v1346 = vmul.f32 %v1022, %v1307
      %v1347 = vmul.f32 %v1300, %v1307
      %v1348 = vmul.f32 %v920, %v1307
      %v1349 = vmul.f32 %v1023, %v1307
      %v1350 = vmul.f32 %v1301, %v1307
      %v1351 = vmul.f32 %v922, %v1307
      %v1352 = vmul.f32 %v1024, %v1307
      %v1353 = vmul.f32 %v1302, %v1307
      %v1354 = vmul.f32 %v924, %v1307
      %v1355 = vmul.f32 %v1025, %v1307
      %v1404 = vrot.slane %v1308, 2
      %v1405 = vrot.slane %v1309, 2
      %v1406 = vsel %vm715, %v1404, %v1405
      %v1407 = vrot.slane %v1310, 2
      %v1408 = vsel %vm715, %v1405, %v1407
      %v1409 = vrot.slane %v1311, 2
      %v1410 = vrot.slane %v1312, 2
      %v1411 = vsel %vm715, %v1409, %v1410
      %v1412 = vrot.slane %v1313, 2
      %v1413 = vsel %vm715, %v1410, %v1412
      %v1414 = vrot.slane %v1314, 2
      %v1415 = vrot.slane %v1315, 2
      %v1416 = vsel %vm715, %v1414, %v1415
      %v1417 = vrot.slane %v1316, 2
      %v1418 = vsel %vm715, %v1415, %v1417
      %v1419 = vrot.slane %v1317, 2
      %v1420 = vrot.slane %v1318, 2
      %v1421 = vsel %vm715, %v1419, %v1420
      %v1422 = vrot.slane %v1319, 2
      %v1423 = vsel %vm715, %v1420, %v1422
      %v1424 = vrot.slane %v1320, 2
      %v1425 = vrot.slane %v1321, 2
      %v1426 = vsel %vm715, %v1424, %v1425
      %v1427 = vrot.slane %v1322, 2
      %v1428 = vsel %vm715, %v1425, %v1427
      %v1429 = vrot.slane %v1323, 2
      %v1430 = vrot.slane %v1324, 2
      %v1431 = vsel %vm715, %v1429, %v1430
      %v1432 = vrot.slane %v1325, 2
      %v1433 = vsel %vm715, %v1430, %v1432
      %v1434 = vrot.slane %v1326, 2
      %v1435 = vrot.slane %v1327, 2
      %v1436 = vsel %vm715, %v1434, %v1435
      %v1437 = vrot.slane %v1328, 2
      %v1438 = vsel %vm715, %v1435, %v1437
      %v1439 = vrot.slane %v1329, 2
      %v1440 = vrot.slane %v1330, 2
      %v1441 = vsel %vm715, %v1439, %v1440
      %v1442 = vrot.slane %v1331, 2
      %v1443 = vsel %vm715, %v1440, %v1442
      %v1444 = vrot.slane %v1332, 2
      %v1445 = vrot.slane %v1333, 2
      %v1446 = vsel %vm715, %v1444, %v1445
      %v1447 = vrot.slane %v1334, 2
      %v1448 = vsel %vm715, %v1445, %v1447
      %v1449 = vrot.slane %v1335, 2
      %v1450 = vrot.slane %v1336, 2
      %v1451 = vsel %vm715, %v1449, %v1450
      %v1452 = vrot.slane %v1337, 2
      %v1453 = vsel %vm715, %v1450, %v1452
      %v1454 = vrot.slane %v1338, 2
      %v1455 = vrot.slane %v1339, 2
      %v1456 = vsel %vm715, %v1454, %v1455
      %v1457 = vrot.slane %v1340, 2
      %v1458 = vsel %vm715, %v1455, %v1457
      %v1459 = vrot.slane %v1341, 2
      %v1460 = vrot.slane %v1342, 2
      %v1461 = vsel %vm715, %v1459, %v1460
      %v1462 = vrot.slane %v1343, 2
      %v1463 = vsel %vm715, %v1460, %v1462
      %v1464 = vrot.slane %v1344, 2
      %v1465 = vrot.slane %v1345, 2
      %v1466 = vsel %vm715, %v1464, %v1465
      %v1467 = vrot.slane %v1346, 2
      %v1468 = vsel %vm715, %v1465, %v1467
      %v1469 = vrot.slane %v1347, 2
      %v1470 = vrot.slane %v1348, 2
      %v1471 = vsel %vm715, %v1469, %v1470
      %v1472 = vrot.slane %v1349, 2
      %v1473 = vsel %vm715, %v1470, %v1472
      %v1474 = vrot.slane %v1350, 2
      %v1475 = vrot.slane %v1351, 2
      %v1476 = vsel %vm715, %v1474, %v1475
      %v1477 = vrot.slane %v1352, 2
      %v1478 = vsel %vm715, %v1475, %v1477
      %v1479 = vrot.slane %v1353, 2
      %v1480 = vrot.slane %v1354, 2
      %v1481 = vsel %vm715, %v1479, %v1480
      %v1482 = vrot.slane %v1355, 2
      %v1483 = vsel %vm715, %v1480, %v1482
      %v1516 = vadd.f32 %v1239, %v1406
      %v1517 = vadd.f32 %v1240, %v1408
      %v1518 = vadd.f32 %v1241, %v1411
      %v1519 = vadd.f32 %v1242, %v1413
      %v1520 = vadd.f32 %v1243, %v1416
      %v1521 = vadd.f32 %v1244, %v1418
      %v1522 = vadd.f32 %v1245, %v1421
      %v1523 = vadd.f32 %v1246, %v1423
      %v1524 = vadd.f32 %v1247, %v1426
      %v1525 = vadd.f32 %v1248, %v1428
      %v1526 = vadd.f32 %v1249, %v1431
      %v1527 = vadd.f32 %v1250, %v1433
      %v1528 = vadd.f32 %v1251, %v1436
      %v1529 = vadd.f32 %v1252, %v1438
      %v1530 = vadd.f32 %v1253, %v1441
      %v1531 = vadd.f32 %v1254, %v1443
      %v1532 = vadd.f32 %v1255, %v1446
      %v1533 = vadd.f32 %v1256, %v1448
      %v1534 = vadd.f32 %v1257, %v1451
      %v1535 = vadd.f32 %v1258, %v1453
      %v1536 = vadd.f32 %v1259, %v1456
      %v1537 = vadd.f32 %v1260, %v1458
      %v1538 = vadd.f32 %v1261, %v1461
      %v1539 = vadd.f32 %v1262, %v1463
      %v1540 = vadd.f32 %v1263, %v1466
      %v1541 = vadd.f32 %v1264, %v1468
      %v1542 = vadd.f32 %v1265, %v1471
      %v1543 = vadd.f32 %v1266, %v1473
      %v1544 = vadd.f32 %v1267, %v1476
      %v1545 = vadd.f32 %v1268, %v1478
      %v1546 = vadd.f32 %v1269, %v1481
      %v1547 = vadd.f32 %v1270, %v1483
      %s1548 = scalar_lea.vmem %s165, 24
      %v1549 = vld [vmem:[%s1548] sm:$0xf]
      %v1550 = vld [vmem:[%s1548 + $0x4] sm:$0xf]
      %v1551 = vld [vmem:[%s1548 + $0xc] sm:$0xf]
      %v1552 = vld [vmem:[%s1548 + $0x10] sm:$0xf]
      %v1553 = vld [vmem:[%s1548 + $0x18] sm:$0xf]
      %v1554 = vld [vmem:[%s1548 + $0x1c] sm:$0xf]
      %v1555 = vld [vmem:[%s1548 + $0x24] sm:$0xf]
      %v1556 = vld [vmem:[%s1548 + $0x28] sm:$0xf]
      %v1557 = vld [vmem:[%s1548 + $0x30] sm:$0xf]
      %v1558 = vld [vmem:[%s1548 + $0x34] sm:$0xf]
      %v1559 = vld [vmem:[%s1548 + $0x3c] sm:$0xf]
      %v1560 = vld [vmem:[%s1548 + $0x40] sm:$0xf]
      %v1561 = vld [vmem:[%s1548 + $0x48] sm:$0xf]
      %v1562 = vld [vmem:[%s1548 + $0x4c] sm:$0xf]
      %v1563 = vld [vmem:[%s1548 + $0x54] sm:$0xf]
      %v1564 = vld [vmem:[%s1548 + $0x58] sm:$0xf]
      %v1565 = vld [vmem:[%s1548 + $0x60] sm:$0xf]
      %v1566 = vld [vmem:[%s1548 + $0x64] sm:$0xf]
      %v1567 = vld [vmem:[%s1548 + $0x6c] sm:$0xf]
      %v1568 = vld [vmem:[%s1548 + $0x70] sm:$0xf]
      %v1569 = vld [vmem:[%s1548 + $0x78] sm:$0xf]
      %v1570 = vld [vmem:[%s1548 + $0x7c] sm:$0xf]
      %v1571 = vld [vmem:[%s1548 + $0x84] sm:$0xf]
      %v1572 = vld [vmem:[%s1548 + $0x88] sm:$0xf]
      %v1573 = vld [vmem:[%s1548 + $0x90] sm:$0xf]
      %v1574 = vld [vmem:[%s1548 + $0x94] sm:$0xf]
      %v1575 = vld [vmem:[%s1548 + $0x9c] sm:$0xf]
      %v1576 = vld [vmem:[%s1548 + $0xa0] sm:$0xf]
      %v1577 = vld [vmem:[%s1548 + $0xa8] sm:$0xf]
      %v1578 = vld [vmem:[%s1548 + $0xac] sm:$0xf]
      %v1579 = vld [vmem:[%s1548 + $0xb4] sm:$0xf]
      %v1580 = vld [vmem:[%s1548 + $0xb8] sm:$0xf]
      %v1581 = vunpack.c.l.bf16 %v1549
      %v1582 = vunpack.c.l.bf16 %v1550
      %v1583 = vunpack.c.l.bf16 %v1551
      %v1584 = vunpack.c.l.bf16 %v1552
      %v1585 = vunpack.c.l.bf16 %v1553
      %v1586 = vunpack.c.l.bf16 %v1554
      %v1587 = vunpack.c.l.bf16 %v1555
      %v1588 = vunpack.c.l.bf16 %v1556
      %v1589 = vunpack.c.l.bf16 %v1557
      %v1590 = vunpack.c.l.bf16 %v1558
      %v1591 = vunpack.c.l.bf16 %v1559
      %v1592 = vunpack.c.l.bf16 %v1560
      %v1593 = vunpack.c.l.bf16 %v1561
      %v1594 = vunpack.c.l.bf16 %v1562
      %v1595 = vunpack.c.l.bf16 %v1563
      %v1596 = vunpack.c.l.bf16 %v1564
      %v1597 = vunpack.c.l.bf16 %v1565
      %v1598 = vunpack.c.l.bf16 %v1566
      %v1599 = vunpack.c.l.bf16 %v1567
      %v1600 = vunpack.c.l.bf16 %v1568
      %v1601 = vunpack.c.l.bf16 %v1569
      %v1602 = vunpack.c.l.bf16 %v1570
      %v1603 = vunpack.c.l.bf16 %v1571
      %v1604 = vunpack.c.l.bf16 %v1572
      %v1605 = vunpack.c.l.bf16 %v1573
      %v1606 = vunpack.c.l.bf16 %v1574
      %v1607 = vunpack.c.l.bf16 %v1575
      %v1608 = vunpack.c.l.bf16 %v1576
      %v1609 = vunpack.c.l.bf16 %v1577
      %v1610 = vunpack.c.l.bf16 %v1578
      %v1611 = vunpack.c.l.bf16 %v1579
      %v1612 = vunpack.c.l.bf16 %v1580
      %v1613 = vld [vmem:[%s1 + $0x6] sm:$0x1]
      %v1614 = vlaneseq
      %v1615 = vshrl.u32 %v1614, 7
      %v1616 = vsub.s32 0, %v1615
      %v1617 = vrot.slane %v1613, %v1616
      %v1618 = vmul.f32 %v1581, %v1617
      %v1619 = vmul.f32 %v1582, %v1617
      %v1620 = vmul.f32 %v1583, %v1617
      %v1621 = vmul.f32 %v1584, %v1617
      %v1622 = vmul.f32 %v1585, %v1617
      %v1623 = vmul.f32 %v1586, %v1617
      %v1624 = vmul.f32 %v1587, %v1617
      %v1625 = vmul.f32 %v1588, %v1617
      %v1626 = vmul.f32 %v1589, %v1617
      %v1627 = vmul.f32 %v1590, %v1617
      %v1628 = vmul.f32 %v1591, %v1617
      %v1629 = vmul.f32 %v1592, %v1617
      %v1630 = vmul.f32 %v1593, %v1617
      %v1631 = vmul.f32 %v1594, %v1617
      %v1632 = vmul.f32 %v1595, %v1617
      %v1633 = vmul.f32 %v1596, %v1617
      %v1634 = vmul.f32 %v1597, %v1617
      %v1635 = vmul.f32 %v1598, %v1617
      %v1636 = vmul.f32 %v1599, %v1617
      %v1637 = vmul.f32 %v1600, %v1617
      %v1638 = vmul.f32 %v1601, %v1617
      %v1639 = vmul.f32 %v1602, %v1617
      %v1640 = vmul.f32 %v1603, %v1617
      %v1641 = vmul.f32 %v1604, %v1617
      %v1642 = vmul.f32 %v1605, %v1617
      %v1643 = vmul.f32 %v1606, %v1617
      %v1644 = vmul.f32 %v1607, %v1617
      %v1645 = vmul.f32 %v1608, %v1617
      %v1646 = vmul.f32 %v1609, %v1617
      %v1647 = vmul.f32 %v1610, %v1617
      %v1648 = vmul.f32 %v1611, %v1617
      %v1649 = vmul.f32 %v1612, %v1617
      %v1650 = vadd.f32 %v1516, %v1618
      %v1651 = vadd.f32 %v1517, %v1619
      %v1652 = vadd.f32 %v1518, %v1620
      %v1653 = vadd.f32 %v1519, %v1621
      %v1654 = vadd.f32 %v1520, %v1622
      %v1655 = vadd.f32 %v1521, %v1623
      %v1656 = vadd.f32 %v1522, %v1624
      %v1657 = vadd.f32 %v1523, %v1625
      %v1658 = vadd.f32 %v1524, %v1626
      %v1659 = vadd.f32 %v1525, %v1627
      %v1660 = vadd.f32 %v1526, %v1628
      %v1661 = vadd.f32 %v1527, %v1629
      %v1662 = vadd.f32 %v1528, %v1630
      %v1663 = vadd.f32 %v1529, %v1631
      %v1664 = vadd.f32 %v1530, %v1632
      %v1665 = vadd.f32 %v1531, %v1633
      %v1666 = vadd.f32 %v1532, %v1634
      %v1667 = vadd.f32 %v1533, %v1635
      %v1668 = vadd.f32 %v1534, %v1636
      %v1669 = vadd.f32 %v1535, %v1637
      %v1670 = vadd.f32 %v1536, %v1638
      %v1671 = vadd.f32 %v1537, %v1639
      %v1672 = vadd.f32 %v1538, %v1640
      %v1673 = vadd.f32 %v1539, %v1641
      %v1674 = vadd.f32 %v1540, %v1642
      %v1675 = vadd.f32 %v1541, %v1643
      %v1676 = vadd.f32 %v1542, %v1644
      %v1677 = vadd.f32 %v1543, %v1645
      %v1678 = vadd.f32 %v1544, %v1646
      %v1679 = vadd.f32 %v1545, %v1647
      %v1680 = vadd.f32 %v1546, %v1648
      %v1681 = vadd.f32 %v1547, %v1649
      %v1682 = vld [vmem:[%s1548 + $0x8] sm:$0x1]
      %v1683 = vld [vmem:[%s1548 + $0x14] sm:$0x1]
      %v1684 = vld [vmem:[%s1548 + $0x20] sm:$0x1]
      %v1685 = vld [vmem:[%s1548 + $0x2c] sm:$0x1]
      %v1686 = vld [vmem:[%s1548 + $0x38] sm:$0x1]
      %v1687 = vld [vmem:[%s1548 + $0x44] sm:$0x1]
      %v1688 = vld [vmem:[%s1548 + $0x50] sm:$0x1]
      %v1689 = vld [vmem:[%s1548 + $0x5c] sm:$0x1]
      %v1690 = vld [vmem:[%s1548 + $0x68] sm:$0x1]
      %v1691 = vld [vmem:[%s1548 + $0x74] sm:$0x1]
      %v1692 = vld [vmem:[%s1548 + $0x80] sm:$0x1]
      %v1693 = vld [vmem:[%s1548 + $0x8c] sm:$0x1]
      %v1694 = vld [vmem:[%s1548 + $0x98] sm:$0x1]
      %v1695 = vld [vmem:[%s1548 + $0xa4] sm:$0x1]
      %v1696 = vld [vmem:[%s1548 + $0xb0] sm:$0x1]
      %v1697 = vld [vmem:[%s1548 + $0xbc] sm:$0x1]
      %v1698 = vunpack.c.l.bf16 %v1682
      %v1699 = vunpack.c.l.bf16 %v1683
      %v1700 = vunpack.c.l.bf16 %v1684
      %v1701 = vunpack.c.l.bf16 %v1685
      %v1702 = vunpack.c.l.bf16 %v1686
      %v1703 = vunpack.c.l.bf16 %v1687
      %v1704 = vunpack.c.l.bf16 %v1688
      %v1705 = vunpack.c.l.bf16 %v1689
      %v1706 = vunpack.c.l.bf16 %v1690
      %v1707 = vunpack.c.l.bf16 %v1691
      %v1708 = vunpack.c.l.bf16 %v1692
      %v1709 = vunpack.c.l.bf16 %v1693
      %v1710 = vunpack.c.l.bf16 %v1694
      %v1711 = vunpack.c.l.bf16 %v1695
      %v1712 = vunpack.c.l.bf16 %v1696
      %v1713 = vunpack.c.l.bf16 %v1697
      %v1714 = vld [vmem:[%s1 + $0x7] sm:$0x1]
      %v1715 = vlaneseq
      %v1716 = vshrl.u32 %v1715, 7
      %v1717 = vsub.s32 0, %v1716
      %v1718 = vrot.slane %v1714, %v1717
      %v1719 = vmul.f32 %v1581, %v1718
      %v1720 = vmul.f32 %v1582, %v1718
      %v1721 = vmul.f32 %v1698, %v1718
      %v1722 = vmul.f32 %v1583, %v1718
      %v1723 = vmul.f32 %v1584, %v1718
      %v1724 = vmul.f32 %v1699, %v1718
      %v1725 = vmul.f32 %v1585, %v1718
      %v1726 = vmul.f32 %v1586, %v1718
      %v1727 = vmul.f32 %v1700, %v1718
      %v1728 = vmul.f32 %v1587, %v1718
      %v1729 = vmul.f32 %v1588, %v1718
      %v1730 = vmul.f32 %v1701, %v1718
      %v1731 = vmul.f32 %v1589, %v1718
      %v1732 = vmul.f32 %v1590, %v1718
      %v1733 = vmul.f32 %v1702, %v1718
      %v1734 = vmul.f32 %v1591, %v1718
      %v1735 = vmul.f32 %v1592, %v1718
      %v1736 = vmul.f32 %v1703, %v1718
      %v1737 = vmul.f32 %v1593, %v1718
      %v1738 = vmul.f32 %v1594, %v1718
      %v1739 = vmul.f32 %v1704, %v1718
      %v1740 = vmul.f32 %v1595, %v1718
      %v1741 = vmul.f32 %v1596, %v1718
      %v1742 = vmul.f32 %v1705, %v1718
      %v1743 = vmul.f32 %v1597, %v1718
      %v1744 = vmul.f32 %v1598, %v1718
      %v1745 = vmul.f32 %v1706, %v1718
      %v1746 = vmul.f32 %v1599, %v1718
      %v1747 = vmul.f32 %v1600, %v1718
      %v1748 = vmul.f32 %v1707, %v1718
      %v1749 = vmul.f32 %v1601, %v1718
      %v1750 = vmul.f32 %v1602, %v1718
      %v1751 = vmul.f32 %v1708, %v1718
      %v1752 = vmul.f32 %v1603, %v1718
      %v1753 = vmul.f32 %v1604, %v1718
      %v1754 = vmul.f32 %v1709, %v1718
      %v1755 = vmul.f32 %v1605, %v1718
      %v1756 = vmul.f32 %v1606, %v1718
      %v1757 = vmul.f32 %v1710, %v1718
      %v1758 = vmul.f32 %v1607, %v1718
      %v1759 = vmul.f32 %v1608, %v1718
      %v1760 = vmul.f32 %v1711, %v1718
      %v1761 = vmul.f32 %v1609, %v1718
      %v1762 = vmul.f32 %v1610, %v1718
      %v1763 = vmul.f32 %v1712, %v1718
      %v1764 = vmul.f32 %v1611, %v1718
      %v1765 = vmul.f32 %v1612, %v1718
      %v1766 = vmul.f32 %v1713, %v1718
      %v1815 = vrot.slane %v1719, 1
      %v1816 = vrot.slane %v1720, 1
      %v1817 = vsel %vm437, %v1815, %v1816
      %v1818 = vrot.slane %v1721, 1
      %v1819 = vsel %vm437, %v1816, %v1818
      %v1820 = vrot.slane %v1722, 1
      %v1821 = vrot.slane %v1723, 1
      %v1822 = vsel %vm437, %v1820, %v1821
      %v1823 = vrot.slane %v1724, 1
      %v1824 = vsel %vm437, %v1821, %v1823
      %v1825 = vrot.slane %v1725, 1
      %v1826 = vrot.slane %v1726, 1
      %v1827 = vsel %vm437, %v1825, %v1826
      %v1828 = vrot.slane %v1727, 1
      %v1829 = vsel %vm437, %v1826, %v1828
      %v1830 = vrot.slane %v1728, 1
      %v1831 = vrot.slane %v1729, 1
      %v1832 = vsel %vm437, %v1830, %v1831
      %v1833 = vrot.slane %v1730, 1
      %v1834 = vsel %vm437, %v1831, %v1833
      %v1835 = vrot.slane %v1731, 1
      %v1836 = vrot.slane %v1732, 1
      %v1837 = vsel %vm437, %v1835, %v1836
      %v1838 = vrot.slane %v1733, 1
      %v1839 = vsel %vm437, %v1836, %v1838
      %v1840 = vrot.slane %v1734, 1
      %v1841 = vrot.slane %v1735, 1
      %v1842 = vsel %vm437, %v1840, %v1841
      %v1843 = vrot.slane %v1736, 1
      %v1844 = vsel %vm437, %v1841, %v1843
      %v1845 = vrot.slane %v1737, 1
      %v1846 = vrot.slane %v1738, 1
      %v1847 = vsel %vm437, %v1845, %v1846
      %v1848 = vrot.slane %v1739, 1
      %v1849 = vsel %vm437, %v1846, %v1848
      %v1850 = vrot.slane %v1740, 1
      %v1851 = vrot.slane %v1741, 1
      %v1852 = vsel %vm437, %v1850, %v1851
      %v1853 = vrot.slane %v1742, 1
      %v1854 = vsel %vm437, %v1851, %v1853
      %v1855 = vrot.slane %v1743, 1
      %v1856 = vrot.slane %v1744, 1
      %v1857 = vsel %vm437, %v1855, %v1856
      %v1858 = vrot.slane %v1745, 1
      %v1859 = vsel %vm437, %v1856, %v1858
      %v1860 = vrot.slane %v1746, 1
      %v1861 = vrot.slane %v1747, 1
      %v1862 = vsel %vm437, %v1860, %v1861
      %v1863 = vrot.slane %v1748, 1
      %v1864 = vsel %vm437, %v1861, %v1863
      %v1865 = vrot.slane %v1749, 1
      %v1866 = vrot.slane %v1750, 1
      %v1867 = vsel %vm437, %v1865, %v1866
      %v1868 = vrot.slane %v1751, 1
      %v1869 = vsel %vm437, %v1866, %v1868
      %v1870 = vrot.slane %v1752, 1
      %v1871 = vrot.slane %v1753, 1
      %v1872 = vsel %vm437, %v1870, %v1871
      %v1873 = vrot.slane %v1754, 1
      %v1874 = vsel %vm437, %v1871, %v1873
      %v1875 = vrot.slane %v1755, 1
      %v1876 = vrot.slane %v1756, 1
      %v1877 = vsel %vm437, %v1875, %v1876
      %v1878 = vrot.slane %v1757, 1
      %v1879 = vsel %vm437, %v1876, %v1878
      %v1880 = vrot.slane %v1758, 1
      %v1881 = vrot.slane %v1759, 1
      %v1882 = vsel %vm437, %v1880, %v1881
      %v1883 = vrot.slane %v1760, 1
      %v1884 = vsel %vm437, %v1881, %v1883
      %v1885 = vrot.slane %v1761, 1
      %v1886 = vrot.slane %v1762, 1
      %v1887 = vsel %vm437, %v1885, %v1886
      %v1888 = vrot.slane %v1763, 1
      %v1889 = vsel %vm437, %v1886, %v1888
      %v1890 = vrot.slane %v1764, 1
      %v1891 = vrot.slane %v1765, 1
      %v1892 = vsel %vm437, %v1890, %v1891
      %v1893 = vrot.slane %v1766, 1
      %v1894 = vsel %vm437, %v1891, %v1893
      %v1927 = vadd.f32 %v1650, %v1817
      %v1928 = vadd.f32 %v1651, %v1819
      %v1929 = vadd.f32 %v1652, %v1822
      %v1930 = vadd.f32 %v1653, %v1824
      %v1931 = vadd.f32 %v1654, %v1827
      %v1932 = vadd.f32 %v1655, %v1829
      %v1933 = vadd.f32 %v1656, %v1832
      %v1934 = vadd.f32 %v1657, %v1834
      %v1935 = vadd.f32 %v1658, %v1837
      %v1936 = vadd.f32 %v1659, %v1839
      %v1937 = vadd.f32 %v1660, %v1842
      %v1938 = vadd.f32 %v1661, %v1844
      %v1939 = vadd.f32 %v1662, %v1847
      %v1940 = vadd.f32 %v1663, %v1849
      %v1941 = vadd.f32 %v1664, %v1852
      %v1942 = vadd.f32 %v1665, %v1854
      %v1943 = vadd.f32 %v1666, %v1857
      %v1944 = vadd.f32 %v1667, %v1859
      %v1945 = vadd.f32 %v1668, %v1862
      %v1946 = vadd.f32 %v1669, %v1864
      %v1947 = vadd.f32 %v1670, %v1867
      %v1948 = vadd.f32 %v1671, %v1869
      %v1949 = vadd.f32 %v1672, %v1872
      %v1950 = vadd.f32 %v1673, %v1874
      %v1951 = vadd.f32 %v1674, %v1877
      %v1952 = vadd.f32 %v1675, %v1879
      %v1953 = vadd.f32 %v1676, %v1882
      %v1954 = vadd.f32 %v1677, %v1884
      %v1955 = vadd.f32 %v1678, %v1887
      %v1956 = vadd.f32 %v1679, %v1889
      %v1957 = vadd.f32 %v1680, %v1892
      %v1958 = vadd.f32 %v1681, %v1894
      %v1959 = vld [vmem:[%s1548] sm:$0xe]
      %v1960 = vld [vmem:[%s1548 + $0xc] sm:$0xe]
      %v1961 = vld [vmem:[%s1548 + $0x18] sm:$0xe]
      %v1962 = vld [vmem:[%s1548 + $0x24] sm:$0xe]
      %v1963 = vld [vmem:[%s1548 + $0x30] sm:$0xe]
      %v1964 = vld [vmem:[%s1548 + $0x3c] sm:$0xe]
      %v1965 = vld [vmem:[%s1548 + $0x48] sm:$0xe]
      %v1966 = vld [vmem:[%s1548 + $0x54] sm:$0xe]
      %v1967 = vld [vmem:[%s1548 + $0x60] sm:$0xe]
      %v1968 = vld [vmem:[%s1548 + $0x6c] sm:$0xe]
      %v1969 = vld [vmem:[%s1548 + $0x78] sm:$0xe]
      %v1970 = vld [vmem:[%s1548 + $0x84] sm:$0xe]
      %v1971 = vld [vmem:[%s1548 + $0x90] sm:$0xe]
      %v1972 = vld [vmem:[%s1548 + $0x9c] sm:$0xe]
      %v1973 = vld [vmem:[%s1548 + $0xa8] sm:$0xe]
      %v1974 = vld [vmem:[%s1548 + $0xb4] sm:$0xe]
      %v1975 = vunpack.c.l.bf16 %v1959
      %v1976 = vunpack.c.l.bf16 %v1960
      %v1977 = vunpack.c.l.bf16 %v1961
      %v1978 = vunpack.c.l.bf16 %v1962
      %v1979 = vunpack.c.l.bf16 %v1963
      %v1980 = vunpack.c.l.bf16 %v1964
      %v1981 = vunpack.c.l.bf16 %v1965
      %v1982 = vunpack.c.l.bf16 %v1966
      %v1983 = vunpack.c.l.bf16 %v1967
      %v1984 = vunpack.c.l.bf16 %v1968
      %v1985 = vunpack.c.l.bf16 %v1969
      %v1986 = vunpack.c.l.bf16 %v1970
      %v1987 = vunpack.c.l.bf16 %v1971
      %v1988 = vunpack.c.l.bf16 %v1972
      %v1989 = vunpack.c.l.bf16 %v1973
      %v1990 = vunpack.c.l.bf16 %v1974
      %v1991 = vld [vmem:[%s1 + $0x8] sm:$0x1]
      %v1992 = vlaneseq
      %v1993 = vshrl.u32 %v1992, 7
      %v1994 = vsub.s32 0, %v1993
      %v1995 = vrot.slane %v1991, %v1994
      %v1996 = vmul.f32 %v1975, %v1995
      %v1997 = vmul.f32 %v1582, %v1995
      %v1998 = vmul.f32 %v1698, %v1995
      %v1999 = vmul.f32 %v1976, %v1995
      %v2000 = vmul.f32 %v1584, %v1995
      %v2001 = vmul.f32 %v1699, %v1995
      %v2002 = vmul.f32 %v1977, %v1995
      %v2003 = vmul.f32 %v1586, %v1995
      %v2004 = vmul.f32 %v1700, %v1995
      %v2005 = vmul.f32 %v1978, %v1995
      %v2006 = vmul.f32 %v1588, %v1995
      %v2007 = vmul.f32 %v1701, %v1995
      %v2008 = vmul.f32 %v1979, %v1995
      %v2009 = vmul.f32 %v1590, %v1995
      %v2010 = vmul.f32 %v1702, %v1995
      %v2011 = vmul.f32 %v1980, %v1995
      %v2012 = vmul.f32 %v1592, %v1995
      %v2013 = vmul.f32 %v1703, %v1995
      %v2014 = vmul.f32 %v1981, %v1995
      %v2015 = vmul.f32 %v1594, %v1995
      %v2016 = vmul.f32 %v1704, %v1995
      %v2017 = vmul.f32 %v1982, %v1995
      %v2018 = vmul.f32 %v1596, %v1995
      %v2019 = vmul.f32 %v1705, %v1995
      %v2020 = vmul.f32 %v1983, %v1995
      %v2021 = vmul.f32 %v1598, %v1995
      %v2022 = vmul.f32 %v1706, %v1995
      %v2023 = vmul.f32 %v1984, %v1995
      %v2024 = vmul.f32 %v1600, %v1995
      %v2025 = vmul.f32 %v1707, %v1995
      %v2026 = vmul.f32 %v1985, %v1995
      %v2027 = vmul.f32 %v1602, %v1995
      %v2028 = vmul.f32 %v1708, %v1995
      %v2029 = vmul.f32 %v1986, %v1995
      %v2030 = vmul.f32 %v1604, %v1995
      %v2031 = vmul.f32 %v1709, %v1995
      %v2032 = vmul.f32 %v1987, %v1995
      %v2033 = vmul.f32 %v1606, %v1995
      %v2034 = vmul.f32 %v1710, %v1995
      %v2035 = vmul.f32 %v1988, %v1995
      %v2036 = vmul.f32 %v1608, %v1995
      %v2037 = vmul.f32 %v1711, %v1995
      %v2038 = vmul.f32 %v1989, %v1995
      %v2039 = vmul.f32 %v1610, %v1995
      %v2040 = vmul.f32 %v1712, %v1995
      %v2041 = vmul.f32 %v1990, %v1995
      %v2042 = vmul.f32 %v1612, %v1995
      %v2043 = vmul.f32 %v1713, %v1995
      %v2092 = vrot.slane %v1996, 2
      %v2093 = vrot.slane %v1997, 2
      %v2094 = vsel %vm715, %v2092, %v2093
      %v2095 = vrot.slane %v1998, 2
      %v2096 = vsel %vm715, %v2093, %v2095
      %v2097 = vrot.slane %v1999, 2
      %v2098 = vrot.slane %v2000, 2
      %v2099 = vsel %vm715, %v2097, %v2098
      %v2100 = vrot.slane %v2001, 2
      %v2101 = vsel %vm715, %v2098, %v2100
      %v2102 = vrot.slane %v2002, 2
      %v2103 = vrot.slane %v2003, 2
      %v2104 = vsel %vm715, %v2102, %v2103
      %v2105 = vrot.slane %v2004, 2
      %v2106 = vsel %vm715, %v2103, %v2105
      %v2107 = vrot.slane %v2005, 2
      %v2108 = vrot.slane %v2006, 2
      %v2109 = vsel %vm715, %v2107, %v2108
      %v2110 = vrot.slane %v2007, 2
      %v2111 = vsel %vm715, %v2108, %v2110
      %v2112 = vrot.slane %v2008, 2
      %v2113 = vrot.slane %v2009, 2
      %v2114 = vsel %vm715, %v2112, %v2113
      %v2115 = vrot.slane %v2010, 2
      %v2116 = vsel %vm715, %v2113, %v2115
      %v2117 = vrot.slane %v2011, 2
      %v2118 = vrot.slane %v2012, 2
      %v2119 = vsel %vm715, %v2117, %v2118
      %v2120 = vrot.slane %v2013, 2
      %v2121 = vsel %vm715, %v2118, %v2120
      %v2122 = vrot.slane %v2014, 2
      %v2123 = vrot.slane %v2015, 2
      %v2124 = vsel %vm715, %v2122, %v2123
      %v2125 = vrot.slane %v2016, 2
      %v2126 = vsel %vm715, %v2123, %v2125
      %v2127 = vrot.slane %v2017, 2
      %v2128 = vrot.slane %v2018, 2
      %v2129 = vsel %vm715, %v2127, %v2128
      %v2130 = vrot.slane %v2019, 2
      %v2131 = vsel %vm715, %v2128, %v2130
      %v2132 = vrot.slane %v2020, 2
      %v2133 = vrot.slane %v2021, 2
      %v2134 = vsel %vm715, %v2132, %v2133
      %v2135 = vrot.slane %v2022, 2
      %v2136 = vsel %vm715, %v2133, %v2135
      %v2137 = vrot.slane %v2023, 2
      %v2138 = vrot.slane %v2024, 2
      %v2139 = vsel %vm715, %v2137, %v2138
      %v2140 = vrot.slane %v2025, 2
      %v2141 = vsel %vm715, %v2138, %v2140
      %v2142 = vrot.slane %v2026, 2
      %v2143 = vrot.slane %v2027, 2
      %v2144 = vsel %vm715, %v2142, %v2143
      %v2145 = vrot.slane %v2028, 2
      %v2146 = vsel %vm715, %v2143, %v2145
      %v2147 = vrot.slane %v2029, 2
      %v2148 = vrot.slane %v2030, 2
      %v2149 = vsel %vm715, %v2147, %v2148
      %v2150 = vrot.slane %v2031, 2
      %v2151 = vsel %vm715, %v2148, %v2150
      %v2152 = vrot.slane %v2032, 2
      %v2153 = vrot.slane %v2033, 2
      %v2154 = vsel %vm715, %v2152, %v2153
      %v2155 = vrot.slane %v2034, 2
      %v2156 = vsel %vm715, %v2153, %v2155
      %v2157 = vrot.slane %v2035, 2
      %v2158 = vrot.slane %v2036, 2
      %v2159 = vsel %vm715, %v2157, %v2158
      %v2160 = vrot.slane %v2037, 2
      %v2161 = vsel %vm715, %v2158, %v2160
      %v2162 = vrot.slane %v2038, 2
      %v2163 = vrot.slane %v2039, 2
      %v2164 = vsel %vm715, %v2162, %v2163
      %v2165 = vrot.slane %v2040, 2
      %v2166 = vsel %vm715, %v2163, %v2165
      %v2167 = vrot.slane %v2041, 2
      %v2168 = vrot.slane %v2042, 2
      %v2169 = vsel %vm715, %v2167, %v2168
      %v2170 = vrot.slane %v2043, 2
      %v2171 = vsel %vm715, %v2168, %v2170
      %v2204 = vadd.f32 %v1927, %v2094
      %v2205 = vadd.f32 %v1928, %v2096
      %v2206 = vadd.f32 %v1929, %v2099
      %v2207 = vadd.f32 %v1930, %v2101
      %v2208 = vadd.f32 %v1931, %v2104
      %v2209 = vadd.f32 %v1932, %v2106
      %v2210 = vadd.f32 %v1933, %v2109
      %v2211 = vadd.f32 %v1934, %v2111
      %v2212 = vadd.f32 %v1935, %v2114
      %v2213 = vadd.f32 %v1936, %v2116
      %v2214 = vadd.f32 %v1937, %v2119
      %v2215 = vadd.f32 %v1938, %v2121
      %v2216 = vadd.f32 %v1939, %v2124
      %v2217 = vadd.f32 %v1940, %v2126
      %v2218 = vadd.f32 %v1941, %v2129
      %v2219 = vadd.f32 %v1942, %v2131
      %v2220 = vadd.f32 %v1943, %v2134
      %v2221 = vadd.f32 %v1944, %v2136
      %v2222 = vadd.f32 %v1945, %v2139
      %v2223 = vadd.f32 %v1946, %v2141
      %v2224 = vadd.f32 %v1947, %v2144
      %v2225 = vadd.f32 %v1948, %v2146
      %v2226 = vadd.f32 %v1949, %v2149
      %v2227 = vadd.f32 %v1950, %v2151
      %v2228 = vadd.f32 %v1951, %v2154
      %v2229 = vadd.f32 %v1952, %v2156
      %v2230 = vadd.f32 %v1953, %v2159
      %v2231 = vadd.f32 %v1954, %v2161
      %v2232 = vadd.f32 %v1955, %v2164
      %v2233 = vadd.f32 %v1956, %v2166
      %v2234 = vadd.f32 %v1957, %v2169
      %v2235 = vadd.f32 %v1958, %v2171
      %v2236 = vld [vmem:[%s2] sm:$0x1]
      %v2238 = vlaneseq
      %v2239 = vshrl.u32 %v2238, 7
      %v2240 = vsub.s32 0, %v2239
      %v2241 = vrot.slane %v2236, %v2240
      %v2243 = vadd.f32 %v2204, %v2241
      %v2244 = vadd.f32 %v2205, %v2241
      %v2245 = vadd.f32 %v2206, %v2241
      %v2246 = vadd.f32 %v2207, %v2241
      %v2247 = vadd.f32 %v2208, %v2241
      %v2248 = vadd.f32 %v2209, %v2241
      %v2249 = vadd.f32 %v2210, %v2241
      %v2250 = vadd.f32 %v2211, %v2241
      %v2251 = vadd.f32 %v2212, %v2241
      %v2252 = vadd.f32 %v2213, %v2241
      %v2253 = vadd.f32 %v2214, %v2241
      %v2254 = vadd.f32 %v2215, %v2241
      %v2255 = vadd.f32 %v2216, %v2241
      %v2256 = vadd.f32 %v2217, %v2241
      %v2257 = vadd.f32 %v2218, %v2241
      %v2258 = vadd.f32 %v2219, %v2241
      %v2259 = vadd.f32 %v2220, %v2241
      %v2260 = vadd.f32 %v2221, %v2241
      %v2261 = vadd.f32 %v2222, %v2241
      %v2262 = vadd.f32 %v2223, %v2241
      %v2263 = vadd.f32 %v2224, %v2241
      %v2264 = vadd.f32 %v2225, %v2241
      %v2265 = vadd.f32 %v2226, %v2241
      %v2266 = vadd.f32 %v2227, %v2241
      %v2267 = vadd.f32 %v2228, %v2241
      %v2268 = vadd.f32 %v2229, %v2241
      %v2269 = vadd.f32 %v2230, %v2241
      %v2270 = vadd.f32 %v2231, %v2241
      %v2271 = vadd.f32 %v2232, %v2241
      %v2272 = vadd.f32 %v2233, %v2241
      %v2273 = vadd.f32 %v2234, %v2241
      %v2274 = vadd.f32 %v2235, %v2241
      %v2275 = vpack.c.bf16 %v2244, %v2243
      %v2276 = vpack.c.bf16 %v2246, %v2245
      %v2277 = vpack.c.bf16 %v2248, %v2247
      %v2278 = vpack.c.bf16 %v2250, %v2249
      %v2279 = vpack.c.bf16 %v2252, %v2251
      %v2280 = vpack.c.bf16 %v2254, %v2253
      %v2281 = vpack.c.bf16 %v2256, %v2255
      %v2282 = vpack.c.bf16 %v2258, %v2257
      %v2283 = vpack.c.bf16 %v2260, %v2259
      %v2284 = vpack.c.bf16 %v2262, %v2261
      %v2285 = vpack.c.bf16 %v2264, %v2263
      %v2286 = vpack.c.bf16 %v2266, %v2265
      %v2287 = vpack.c.bf16 %v2268, %v2267
      %v2288 = vpack.c.bf16 %v2270, %v2269
      %v2289 = vpack.c.bf16 %v2272, %v2271
      %v2290 = vpack.c.bf16 %v2274, %v2273
      %v2307 = vunpack.c.l.b16 %v2275
      %v2308 = vunpack.c.h.b16 %v2275
      %v2309 = vunpack.c.l.b16 %v2276
      %v2310 = vunpack.c.h.b16 %v2276
      %v2311 = vunpack.c.l.b16 %v2277
      %v2312 = vunpack.c.h.b16 %v2277
      %v2313 = vunpack.c.l.b16 %v2278
      %v2314 = vunpack.c.h.b16 %v2278
      %v2315 = vunpack.c.l.b16 %v2279
      %v2316 = vunpack.c.h.b16 %v2279
      %v2317 = vunpack.c.l.b16 %v2280
      %v2318 = vunpack.c.h.b16 %v2280
      %v2319 = vunpack.c.l.b16 %v2281
      %v2320 = vunpack.c.h.b16 %v2281
      %v2321 = vunpack.c.l.b16 %v2282
      %v2322 = vunpack.c.h.b16 %v2282
      %v2323 = vunpack.c.l.b16 %v2283
      %v2324 = vunpack.c.h.b16 %v2283
      %v2325 = vunpack.c.l.b16 %v2284
      %v2326 = vunpack.c.h.b16 %v2284
      %v2327 = vunpack.c.l.b16 %v2285
      %v2328 = vunpack.c.h.b16 %v2285
      %v2329 = vunpack.c.l.b16 %v2286
      %v2330 = vunpack.c.h.b16 %v2286
      %v2331 = vunpack.c.l.b16 %v2287
      %v2332 = vunpack.c.h.b16 %v2287
      %v2333 = vunpack.c.l.b16 %v2288
      %v2334 = vunpack.c.h.b16 %v2288
      %v2335 = vunpack.c.l.b16 %v2289
      %v2336 = vunpack.c.h.b16 %v2289
      %v2337 = vunpack.c.l.b16 %v2290
      %v2338 = vunpack.c.h.b16 %v2290
      %v2339 = vpack.c.b16 %v2307, %v2307
      %v2340 = vpack.c.b16 %v2308, %v2308
      %v2341 = vpack.c.b16 %v2309, %v2309
      %v2342 = vpack.c.b16 %v2310, %v2310
      %v2343 = vpack.c.b16 %v2311, %v2311
      %v2344 = vpack.c.b16 %v2312, %v2312
      %v2345 = vpack.c.b16 %v2313, %v2313
      %v2346 = vpack.c.b16 %v2314, %v2314
      %v2347 = vpack.c.b16 %v2315, %v2315
      %v2348 = vpack.c.b16 %v2316, %v2316
      %v2349 = vpack.c.b16 %v2317, %v2317
      %v2350 = vpack.c.b16 %v2318, %v2318
      %v2351 = vpack.c.b16 %v2319, %v2319
      %v2352 = vpack.c.b16 %v2320, %v2320
      %v2353 = vpack.c.b16 %v2321, %v2321
      %v2354 = vpack.c.b16 %v2322, %v2322
      %v2355 = vpack.c.b16 %v2323, %v2323
      %v2356 = vpack.c.b16 %v2324, %v2324
      %v2357 = vpack.c.b16 %v2325, %v2325
      %v2358 = vpack.c.b16 %v2326, %v2326
      %v2359 = vpack.c.b16 %v2327, %v2327
      %v2360 = vpack.c.b16 %v2328, %v2328
      %v2361 = vpack.c.b16 %v2329, %v2329
      %v2362 = vpack.c.b16 %v2330, %v2330
      %v2363 = vpack.c.b16 %v2331, %v2331
      %v2364 = vpack.c.b16 %v2332, %v2332
      %v2365 = vpack.c.b16 %v2333, %v2333
      %v2366 = vpack.c.b16 %v2334, %v2334
      %v2367 = vpack.c.b16 %v2335, %v2335
      %v2368 = vpack.c.b16 %v2336, %v2336
      %v2369 = vpack.c.b16 %v2337, %v2337
      %v2370 = vpack.c.b16 %v2338, %v2338
      %2403 = vst [vmem:[%s170] sm:$0xf] %v2339
      %2404 = vst [vmem:[%s170 + $0x4] sm:$0xf] %v2340
      %2405 = vst [vmem:[%s170 + $0x8] sm:$0xf] %v2341
      %2406 = vst [vmem:[%s170 + $0xc] sm:$0xf] %v2342
      %2407 = vst [vmem:[%s170 + $0x10] sm:$0xf] %v2343
      %2408 = vst [vmem:[%s170 + $0x14] sm:$0xf] %v2344
      %2409 = vst [vmem:[%s170 + $0x18] sm:$0xf] %v2345
      %2410 = vst [vmem:[%s170 + $0x1c] sm:$0xf] %v2346
      %2411 = vst [vmem:[%s170 + $0x20] sm:$0xf] %v2347
      %2412 = vst [vmem:[%s170 + $0x24] sm:$0xf] %v2348
      %2413 = vst [vmem:[%s170 + $0x28] sm:$0xf] %v2349
      %2414 = vst [vmem:[%s170 + $0x2c] sm:$0xf] %v2350
      %2415 = vst [vmem:[%s170 + $0x30] sm:$0xf] %v2351
      %2416 = vst [vmem:[%s170 + $0x34] sm:$0xf] %v2352
      %2417 = vst [vmem:[%s170 + $0x38] sm:$0xf] %v2353
      %2418 = vst [vmem:[%s170 + $0x3c] sm:$0xf] %v2354
      %2419 = vst [vmem:[%s170 + $0x40] sm:$0xf] %v2355
      %2420 = vst [vmem:[%s170 + $0x44] sm:$0xf] %v2356
      %2421 = vst [vmem:[%s170 + $0x48] sm:$0xf] %v2357
      %2422 = vst [vmem:[%s170 + $0x4c] sm:$0xf] %v2358
      %2423 = vst [vmem:[%s170 + $0x50] sm:$0xf] %v2359
      %2424 = vst [vmem:[%s170 + $0x54] sm:$0xf] %v2360
      %2425 = vst [vmem:[%s170 + $0x58] sm:$0xf] %v2361
      %2426 = vst [vmem:[%s170 + $0x5c] sm:$0xf] %v2362
      %2427 = vst [vmem:[%s170 + $0x60] sm:$0xf] %v2363
      %2428 = vst [vmem:[%s170 + $0x64] sm:$0xf] %v2364
      %2429 = vst [vmem:[%s170 + $0x68] sm:$0xf] %v2365
      %2430 = vst [vmem:[%s170 + $0x6c] sm:$0xf] %v2366
      %2431 = vst [vmem:[%s170 + $0x70] sm:$0xf] %v2367
      %2432 = vst [vmem:[%s170 + $0x74] sm:$0xf] %v2368
      %2433 = vst [vmem:[%s170 + $0x78] sm:$0xf] %v2369
      %2434 = vst [vmem:[%s170 + $0x7c] sm:$0xf] %v2370
      %p2435 = scmp.lt.s32.totalorder %s14, 1
      %s2436 = scalar_select %p2435, %s14, 1
      %s2437 = smul.addr %s2436, 32
      %s2438 = smul.addr %s2437, 4
      %s2439 = scalar_lea.vmem %s3, %s2438
      // Predicated region
      $region33: #{psablock_forward.5} parent=31 // pred_check
        %p2440 = pneg %p100
      $region34: #{psablock_forward.5} parent=31 // pred_check_branch
        %2442 = sbr.rel (%p2440) target = $region36
      $region35: #{psablock_forward.5} parent=31 // pred_region
        _
      $region36: #{psablock_forward.5} parent=31 // pred_fallthru
        _
    $region32: #{psablock_forward.5} parent=5 // pred_fallthru
      _
    %p2443 = scmp.le.s32.totalorder 2, %s9
    // Predicated region
    $region37: #{psablock_forward.5} parent=5 // pred_check
      %p2444 = pneg %p2443
    $region38: #{psablock_forward.5} parent=5 // pred_check_branch
      %2446 = sbr.rel (%p2444) target = $region40
    $region39: #{psablock_forward.5} parent=5 // pred_region
      %s2447 = ssub.s32 %s9, 2
      // Predicated region
      $region41: #{psablock_forward.5} parent=39 // pred_check
        %p2448 = pneg %p106
      $region42: #{psablock_forward.5} parent=39 // pred_check_branch
        %2450 = sbr.rel (%p2448) target = $region44
      $region43: #{psablock_forward.5} parent=39 // pred_region
        %p2451 = scmp.lt.s32.totalorder %s15, 1
        %s2452 = scalar_select %p2451, %s15, 1
        %s2453 = smul.addr %s2452, 32
        %s2454 = smul.addr %s2453, 4
        %s2455 = scalar_lea.vmem %s3, %s2454
      $region44: #{psablock_forward.5} parent=39 // pred_fallthru
        _
    $region40: #{psablock_forward.5} parent=5 // pred_fallthru
      _
  $region6: #{psablock_forward.5} parent=0 // loop_footer
    %s13 = sadd.s32 1, %s9
  $region7: #{psablock_forward.5} parent=0 // loop_footer_branch
    %8 = sbr.rel target = $region3
  $region8: #{psablock_forward.5} parent=0 // loop_exit
    _

// kernel: psablock_forward.6
$region0: #{psablock_forward.6}
  #allocation0 [shape = 'u32[]', space=smem, size = 0x4, offset = 0x4, fixed_abs, tag = 'smem constant byte address 0x4 - core index']
  #allocation1 [shape = 'u32[144,128]{1,0:T(1,128)}', space=vmem, size = 0x12000, scoped, tag = 'internal scratch']
  %s0 = inlined_call_operand.vmem [shape: bf16[2,256,256], index: 0, kind: input, shape index: {}]
  %s1 = inlined_call_operand.vmem [shape: bf16[2,256,128], index: 1, kind: input, shape index: {}]
  %s2 = inlined_call_operand.vmem [shape: f32[2,256,128], index: 2, kind: input, shape index: {}]
  %s3 = inlined_call_operand.vmem [shape: bf16[128,128], index: 3, kind: input, shape index: {}]
  %s4 = inlined_call_operand.vmem [shape: f32[1,128], index: 4, kind: input, shape index: {}]
  %s5 = inlined_call_operand.vmem [shape: f32[2,256,128], index: 5, kind: output, shape index: {}]
  %s6 = sld [smem:[#allocation0]]
  $region53: #{psablock_forward.6} parent=0
    _
  %s8 = ssub.s32 1, %s6
  %s9 = scalar_select 0, %s8, %s6
  loop: start=0, step=1, limit=4
  $region2: #{psablock_forward.6} parent=0 // loop_pre_header
    _
  $region3: #{psablock_forward.6} parent=0 // loop_header
    %s11 = sphi 0, %s15
    %p12 = scmp.ge.s32.totalorder %s11, 4
    %s21 = sphi 0, %s23
    %s24 = sphi 0, %s21
    %s25 = sphi 0, %s24
    %s41 = sphi 0, %s25
    %s47 = sphi 0, %s49
    %s50 = sphi 0, %s47
    %s51 = sphi 0, %s50
    %s67 = sphi 0, %s51
    %s73 = sphi 0, %s75
    %s76 = sphi 0, %s73
    %s77 = sphi 0, %s76
    %s93 = sphi 0, %s77
    %s97 = sphi 0, %s97
    %s99 = sphi 0, %s97
    %s100 = sphi 0, %s99
    %s114 = sphi 0, %s100
    %s118 = sphi 0, %s118
    %s120 = sphi 0, %s118
    %s121 = sphi 0, %s120
    %s135 = sphi 0, %s121
    %s141 = sphi 0, %s143
    %s144 = sphi 0, %s141
    %s145 = sphi 0, %s144
    %s161 = sphi 0, %s145
  $region4: #{psablock_forward.6} parent=0 // loop_header_branch
    %14 = sbr.rel (%p12) target = $region8
  $region5: #{psablock_forward.6} parent=0 // loop_body
    %s16 = ssub.s32 %s11, 1
    %s17 = ssub.s32 %s11, 2
    %s18 = sadd.s32 %s11, 1
    %s19 = ssub.s32 %s11, %s18
    %p20 = scmp.eq.s32.totalorder %s19, 0
    %s22 = sadd.s32 %s21, 1
    %s23 = scalar_select %p20, %s21, %s22
    %p26 = pneg %p20
    %p27 = scmp.eq.s32.totalorder %s11, 1
    %p28 = por %p26, %p27
    %p29 = scmp.ne.s32.totalorder %s21, %s24
    %p30 = scmp.eq.s32.totalorder %s11, 0
    %p31 = por %p29, %p30
    %p32 = scmp.ne.s32.totalorder %s21, %s24
    %p33 = scmp.eq.s32.totalorder %s16, 1
    %p34 = por %p32, %p33
    %p35 = scmp.ne.s32.totalorder %s24, %s25
    %p36 = scmp.eq.s32.totalorder %s16, 0
    %p37 = por %p35, %p36
    %p38 = scmp.ne.s32.totalorder %s24, %s25
    %p39 = scmp.eq.s32.totalorder %s17, 1
    %p40 = por %p38, %p39
    %p42 = scmp.ne.s32.totalorder %s25, %s41
    %p43 = scmp.eq.s32.totalorder %s17, 0
    %p44 = por %p42, %p43
    %s45 = ssub.s32 %s11, %s18
    %p46 = scmp.eq.s32.totalorder %s45, 0
    %s48 = sadd.s32 %s47, 1
    %s49 = scalar_select %p46, %s47, %s48
    %p52 = pneg %p46
    %p53 = scmp.eq.s32.totalorder %s11, 1
    %p54 = por %p52, %p53
    %p55 = scmp.ne.s32.totalorder %s47, %s50
    %p56 = scmp.eq.s32.totalorder %s11, 0
    %p57 = por %p55, %p56
    %p58 = scmp.ne.s32.totalorder %s47, %s50
    %p59 = scmp.eq.s32.totalorder %s16, 1
    %p60 = por %p58, %p59
    %p61 = scmp.ne.s32.totalorder %s50, %s51
    %p62 = scmp.eq.s32.totalorder %s16, 0
    %p63 = por %p61, %p62
    %p64 = scmp.ne.s32.totalorder %s50, %s51
    %p65 = scmp.eq.s32.totalorder %s17, 1
    %p66 = por %p64, %p65
    %p68 = scmp.ne.s32.totalorder %s51, %s67
    %p69 = scmp.eq.s32.totalorder %s17, 0
    %p70 = por %p68, %p69
    %s71 = ssub.s32 %s11, %s18
    %p72 = scmp.eq.s32.totalorder %s71, 0
    %s74 = sadd.s32 %s73, 1
    %s75 = scalar_select %p72, %s73, %s74
    %p78 = pneg %p72
    %p79 = scmp.eq.s32.totalorder %s11, 1
    %p80 = por %p78, %p79
    %p81 = scmp.ne.s32.totalorder %s73, %s76
    %p82 = scmp.eq.s32.totalorder %s11, 0
    %p83 = por %p81, %p82
    %p84 = scmp.ne.s32.totalorder %s73, %s76
    %p85 = scmp.eq.s32.totalorder %s16, 1
    %p86 = por %p84, %p85
    %p87 = scmp.ne.s32.totalorder %s76, %s77
    %p88 = scmp.eq.s32.totalorder %s16, 0
    %p89 = por %p87, %p88
    %p90 = scmp.ne.s32.totalorder %s76, %s77
    %p91 = scmp.eq.s32.totalorder %s17, 1
    %p92 = por %p90, %p91
    %p94 = scmp.ne.s32.totalorder %s77, %s93
    %p95 = scmp.eq.s32.totalorder %s17, 0
    %p96 = por %p94, %p95
    %s98 = sadd.s32 %s97, 1
    %p101 = scmp.eq.s32.totalorder %s11, 1
    %p102 = scmp.ne.s32.totalorder %s97, %s99
    %p103 = scmp.eq.s32.totalorder %s11, 0
    %p104 = por %p102, %p103
    %p105 = scmp.ne.s32.totalorder %s97, %s99
    %p106 = scmp.eq.s32.totalorder %s16, 1
    %p107 = por %p105, %p106
    %p108 = scmp.ne.s32.totalorder %s99, %s100
    %p109 = scmp.eq.s32.totalorder %s16, 0
    %p110 = por %p108, %p109
    %p111 = scmp.ne.s32.totalorder %s99, %s100
    %p112 = scmp.eq.s32.totalorder %s17, 1
    %p113 = por %p111, %p112
    %p115 = scmp.ne.s32.totalorder %s100, %s114
    %p116 = scmp.eq.s32.totalorder %s17, 0
    %p117 = por %p115, %p116
    %s119 = sadd.s32 %s118, 1
    %p122 = scmp.eq.s32.totalorder %s11, 1
    %p123 = scmp.ne.s32.totalorder %s118, %s120
    %p124 = scmp.eq.s32.totalorder %s11, 0
    %p125 = por %p123, %p124
    %p126 = scmp.ne.s32.totalorder %s118, %s120
    %p127 = scmp.eq.s32.totalorder %s16, 1
    %p128 = por %p126, %p127
    %p129 = scmp.ne.s32.totalorder %s120, %s121
    %p130 = scmp.eq.s32.totalorder %s16, 0
    %p131 = por %p129, %p130
    %p132 = scmp.ne.s32.totalorder %s120, %s121
    %p133 = scmp.eq.s32.totalorder %s17, 1
    %p134 = por %p132, %p133
    %p136 = scmp.ne.s32.totalorder %s121, %s135
    %p137 = scmp.eq.s32.totalorder %s17, 0
    %p138 = por %p136, %p137
    %s139 = ssub.s32 %s11, %s18
    %p140 = scmp.eq.s32.totalorder %s139, 0
    %s142 = sadd.s32 %s141, 1
    %s143 = scalar_select %p140, %s141, %s142
    %p146 = pneg %p140
    %p147 = scmp.eq.s32.totalorder %s11, 1
    %p148 = por %p146, %p147
    %p149 = scmp.ne.s32.totalorder %s141, %s144
    %p150 = scmp.eq.s32.totalorder %s11, 0
    %p151 = por %p149, %p150
    %p152 = scmp.ne.s32.totalorder %s141, %s144
    %p153 = scmp.eq.s32.totalorder %s16, 1
    %p154 = por %p152, %p153
    %p155 = scmp.ne.s32.totalorder %s144, %s145
    %p156 = scmp.eq.s32.totalorder %s16, 0
    %p157 = por %p155, %p156
    %p158 = scmp.ne.s32.totalorder %s144, %s145
    %p159 = scmp.eq.s32.totalorder %s17, 1
    %p160 = por %p158, %p159
    %p162 = scmp.ne.s32.totalorder %s145, %s161
    %p163 = scmp.eq.s32.totalorder %s17, 0
    %p164 = por %p162, %p163
    %p165 = scmp.le.s32.totalorder 1, %s11
    %p166 = scmp.lt.s32.totalorder %s11, 3
    %p167 = pnand %p165, %p166
    %p168 = pneg %p167
    // Predicated region
    $region9: #{psablock_forward.6} parent=5 // pred_check
      _
    $region10: #{psablock_forward.6} parent=5 // pred_check_branch
      %170 = sbr.rel (%p167) target = $region12
    $region11: #{psablock_forward.6} parent=5 // pred_region
      %s171 = ssub.s32 %s11, 1
      // Predicated region
      $region13: #{psablock_forward.6} parent=11 // pred_check
        %p172 = pneg %p110
      $region14: #{psablock_forward.6} parent=11 // pred_check_branch
        %174 = sbr.rel (%p172) target = $region16
      $region15: #{psablock_forward.6} parent=11 // pred_region
        _
      $region16: #{psablock_forward.6} parent=11 // pred_fallthru
        _
      // Predicated region
      $region17: #{psablock_forward.6} parent=11 // pred_check
        %p175 = pneg %p131
      $region18: #{psablock_forward.6} parent=11 // pred_check_branch
        %177 = sbr.rel (%p175) target = $region20
      $region19: #{psablock_forward.6} parent=11 // pred_region
        _
      $region20: #{psablock_forward.6} parent=11 // pred_fallthru
        _
    $region12: #{psablock_forward.6} parent=5 // pred_fallthru
      _
    %p178 = scmp.lt.s32.totalorder %s11, 2
    // Predicated region
    $region21: #{psablock_forward.6} parent=5 // pred_check
      %p179 = pneg %p178
    $region22: #{psablock_forward.6} parent=5 // pred_check_branch
      %181 = sbr.rel (%p179) target = $region24
    $region23: #{psablock_forward.6} parent=5 // pred_region
      // Predicated region
      $region25: #{psablock_forward.6} parent=23 // pred_check
        %p182 = pneg %p31
      $region26: #{psablock_forward.6} parent=23 // pred_check_branch
        %184 = sbr.rel (%p182) target = $region28
      $region27: #{psablock_forward.6} parent=23 // pred_region
        %p185 = scmp.lt.s32.totalorder %s11, 1
        %s186 = scalar_select %p185, %s11, 1
        %s187 = smul.addr %s186, 64
        %s188 = smul.addr %s187, 4
        %s189 = scalar_lea.vmem %s0, %s188
      $region28: #{psablock_forward.6} parent=23 // pred_fallthru
        _
      // Predicated region
      $region29: #{psablock_forward.6} parent=23 // pred_check
        %p190 = pneg %p57
      $region30: #{psablock_forward.6} parent=23 // pred_check_branch
        %192 = sbr.rel (%p190) target = $region32
      $region31: #{psablock_forward.6} parent=23 // pred_region
        %p193 = scmp.lt.s32.totalorder %s11, 1
        %s194 = scalar_select %p193, %s11, 1
        %s195 = smul.addr %s194, 32
        %s196 = smul.addr %s195, 4
        %s197 = scalar_lea.vmem %s1, %s196
      $region32: #{psablock_forward.6} parent=23 // pred_fallthru
        _
      // Predicated region
      $region33: #{psablock_forward.6} parent=23 // pred_check
        %p198 = pneg %p83
      $region34: #{psablock_forward.6} parent=23 // pred_check_branch
        %200 = sbr.rel (%p198) target = $region36
      $region35: #{psablock_forward.6} parent=23 // pred_region
        %p201 = scmp.lt.s32.totalorder %s11, 1
        %s202 = scalar_select %p201, %s11, 1
        %s203 = smul.addr %s202, 32
        %s204 = smul.addr %s203, 8
        %s205 = scalar_lea.vmem %s2, %s204
      $region36: #{psablock_forward.6} parent=23 // pred_fallthru
        _
    $region24: #{psablock_forward.6} parent=5 // pred_fallthru
      _
    %p206 = scmp.le.s32.totalorder 1, %s11
    %p207 = scmp.lt.s32.totalorder %s11, 3
    %p208 = pnand %p206, %p207
    %p209 = pneg %p208
    // Predicated region
    $region37: #{psablock_forward.6} parent=5 // pred_check
      _
    $region38: #{psablock_forward.6} parent=5 // pred_check_branch
      %211 = sbr.rel (%p208) target = $region40
    $region39: #{psablock_forward.6} parent=5 // pred_region
      %s212 = ssub.s32 %s11, 1
      %p213 = scmp.lt.s32.totalorder %s16, 1
      %s214 = scalar_select %p213, %s16, 1
      %s215 = smul.addr %s214, 64
      %s216 = smul.addr %s215, 4
      %s217 = scalar_lea.vmem %s0, %s216
      %p218 = pneg %p37
      %p219 = pneg %p34
      %p220 = scmp.lt.s32.totalorder %s16, 1
      %s221 = scalar_select %p220, %s16, 1
      %s222 = smul.addr %s221, 32
      %s223 = smul.addr %s222, 4
      %s224 = scalar_lea.vmem %s1, %s223
      %p225 = pneg %p63
      %p226 = pneg %p60
      %p227 = scmp.lt.s32.totalorder %s16, 1
      %s228 = scalar_select %p227, %s16, 1
      %s229 = smul.addr %s228, 32
      %s230 = smul.addr %s229, 8
      %s231 = scalar_lea.vmem %s2, %s230
      %p232 = pneg %p89
      %p233 = pneg %p86
      %p234 = pneg %p110
      %p235 = pneg %p107
      %p236 = pneg %p131
      %p237 = pneg %p128
      %p238 = pneg %p157
      %p239 = pneg %p154
      %p240 = scmp.lt.s32.totalorder %s16, 1
      %s241 = scalar_select %p240, %s16, 1
      %s242 = smul.addr %s241, 32
      %s243 = smul.addr %s242, 8
      %s244 = scalar_lea.vmem %s5, %s243
      %p245 = scmp.lt.s32.totalorder %s16, 1
      %s246 = scalar_select %p245, %s16, 1
      %s247 = smul.addr %s246, 64
      %s248 = smul.addr %s247, 4
      %s249 = scalar_lea.vmem %s0, %s248
      %p250 = scmp.lt.s32.totalorder %s16, 1
      %s251 = scalar_select %p250, %s16, 1
      %s252 = smul.addr %s251, 32
      %s253 = smul.addr %s252, 4
      %s254 = scalar_lea.vmem %s1, %s253
      %p255 = scmp.lt.s32.totalorder %s16, 1
      %s256 = scalar_select %p255, %s16, 1
      %s257 = smul.addr %s256, 32
      %s258 = smul.addr %s257, 8
      %s259 = scalar_lea.vmem %s2, %s258
      %p260 = scmp.lt.s32.totalorder %s16, 1
      %s261 = scalar_select %p260, %s16, 1
      %s262 = smul.addr %s261, 32
      %s263 = smul.addr %s262, 8
      %s264 = scalar_lea.vmem %s5, %s263
      %v266 = vld [vmem:[%s254] sm:$0xf]
      %v267 = vld [vmem:[%s254 + $0x4] sm:$0xf]
      %v268 = vld [vmem:[%s254 + $0x8] sm:$0xf]
      %v269 = vld [vmem:[%s254 + $0xc] sm:$0xf]
      %v270 = vld [vmem:[%s254 + $0x10] sm:$0xf]
      %v271 = vld [vmem:[%s254 + $0x14] sm:$0xf]
      %v272 = vld [vmem:[%s254 + $0x18] sm:$0xf]
      %v273 = vld [vmem:[%s254 + $0x1c] sm:$0xf]
      %v274 = vld [vmem:[%s254 + $0x20] sm:$0xf]
      %v275 = vld [vmem:[%s254 + $0x24] sm:$0xf]
      %v276 = vld [vmem:[%s254 + $0x28] sm:$0xf]
      %v277 = vld [vmem:[%s254 + $0x2c] sm:$0xf]
      %v278 = vld [vmem:[%s254 + $0x30] sm:$0xf]
      %v279 = vld [vmem:[%s254 + $0x34] sm:$0xf]
      %v280 = vld [vmem:[%s254 + $0x38] sm:$0xf]
      %v281 = vld [vmem:[%s254 + $0x3c] sm:$0xf]
      %v282 = vld [vmem:[%s254 + $0x40] sm:$0xf]
      %v283 = vld [vmem:[%s254 + $0x44] sm:$0xf]
      %v284 = vld [vmem:[%s254 + $0x48] sm:$0xf]
      %v285 = vld [vmem:[%s254 + $0x4c] sm:$0xf]
      %v286 = vld [vmem:[%s254 + $0x50] sm:$0xf]
      %v287 = vld [vmem:[%s254 + $0x54] sm:$0xf]
      %v288 = vld [vmem:[%s254 + $0x58] sm:$0xf]
      %v289 = vld [vmem:[%s254 + $0x5c] sm:$0xf]
      %v290 = vld [vmem:[%s254 + $0x60] sm:$0xf]
      %v291 = vld [vmem:[%s254 + $0x64] sm:$0xf]
      %v292 = vld [vmem:[%s254 + $0x68] sm:$0xf]
      %v293 = vld [vmem:[%s254 + $0x6c] sm:$0xf]
      %v294 = vld [vmem:[%s254 + $0x70] sm:$0xf]
      %v295 = vld [vmem:[%s254 + $0x74] sm:$0xf]
      %v296 = vld [vmem:[%s254 + $0x78] sm:$0xf]
      %v297 = vld [vmem:[%s254 + $0x7c] sm:$0xf]
      %v298 = vld [vmem:[%s3] sm:$0xf]
      %v299 = vld [vmem:[%s3 + $0x4] sm:$0xf]
      %v300 = vld [vmem:[%s3 + $0x8] sm:$0xf]
      %v301 = vld [vmem:[%s3 + $0xc] sm:$0xf]
      %v302 = vld [vmem:[%s3 + $0x10] sm:$0xf]
      %v303 = vld [vmem:[%s3 + $0x14] sm:$0xf]
      %v304 = vld [vmem:[%s3 + $0x18] sm:$0xf]
      %v305 = vld [vmem:[%s3 + $0x1c] sm:$0xf]
      %v306 = vld [vmem:[%s3 + $0x20] sm:$0xf]
      %v307 = vld [vmem:[%s3 + $0x24] sm:$0xf]
      %v308 = vld [vmem:[%s3 + $0x28] sm:$0xf]
      %v309 = vld [vmem:[%s3 + $0x2c] sm:$0xf]
      %v310 = vld [vmem:[%s3 + $0x30] sm:$0xf]
      %v311 = vld [vmem:[%s3 + $0x34] sm:$0xf]
      %v312 = vld [vmem:[%s3 + $0x38] sm:$0xf]
      %v313 = vld [vmem:[%s3 + $0x3c] sm:$0xf]
      %v314 = vld [vmem:[%s4] sm:$0x1]
      %v316 = vlaneseq
      %v317 = vshrl.u32 %v316, 7
      %v318 = vsub.s32 0, %v317
      %v319 = vrot.slane %v314, %v318
      %v353 = vunpack.c.l.b16 %v266
      %v354 = vunpack.c.l.b16 %v267
      %v355 = vunpack.c.l.b16 %v268
      %v356 = vunpack.c.l.b16 %v269
      %v357 = vunpack.c.l.b16 %v270
      %v358 = vunpack.c.l.b16 %v271
      %v359 = vunpack.c.l.b16 %v272
      %v360 = vunpack.c.l.b16 %v273
      %v361 = vunpack.c.l.b16 %v274
      %v362 = vunpack.c.l.b16 %v275
      %v363 = vunpack.c.l.b16 %v276
      %v364 = vunpack.c.l.b16 %v277
      %v365 = vunpack.c.l.b16 %v278
      %v366 = vunpack.c.l.b16 %v279
      %v367 = vunpack.c.l.b16 %v280
      %v368 = vunpack.c.l.b16 %v281
      %v369 = vunpack.c.l.b16 %v282
      %v370 = vunpack.c.l.b16 %v283
      %v371 = vunpack.c.l.b16 %v284
      %v372 = vunpack.c.l.b16 %v285
      %v373 = vunpack.c.l.b16 %v286
      %v374 = vunpack.c.l.b16 %v287
      %v375 = vunpack.c.l.b16 %v288
      %v376 = vunpack.c.l.b16 %v289
      %v377 = vunpack.c.l.b16 %v290
      %v378 = vunpack.c.l.b16 %v291
      %v379 = vunpack.c.l.b16 %v292
      %v380 = vunpack.c.l.b16 %v293
      %v381 = vunpack.c.l.b16 %v294
      %v382 = vunpack.c.l.b16 %v295
      %v383 = vunpack.c.l.b16 %v296
      %v384 = vunpack.c.l.b16 %v297
      %v385 = vpack.c.b16 %v354, %v353
      %v386 = vpack.c.b16 %v356, %v355
      %v387 = vpack.c.b16 %v358, %v357
      %v388 = vpack.c.b16 %v360, %v359
      %v389 = vpack.c.b16 %v362, %v361
      %v390 = vpack.c.b16 %v364, %v363
      %v391 = vpack.c.b16 %v366, %v365
      %v392 = vpack.c.b16 %v368, %v367
      %v393 = vpack.c.b16 %v370, %v369
      %v394 = vpack.c.b16 %v372, %v371
      %v395 = vpack.c.b16 %v374, %v373
      %v396 = vpack.c.b16 %v376, %v375
      %v397 = vpack.c.b16 %v378, %v377
      %v398 = vpack.c.b16 %v380, %v379
      %v399 = vpack.c.b16 %v382, %v381
      %v400 = vpack.c.b16 %v384, %v383
      %v433 = vunpack.c.l.b16 %v298
      %v434 = vunpack.c.l.b16 %v299
      %v435 = vunpack.c.l.b16 %v300
      %v436 = vunpack.c.l.b16 %v301
      %v437 = vunpack.c.l.b16 %v302
      %v438 = vunpack.c.l.b16 %v303
      %v439 = vunpack.c.l.b16 %v304
      %v440 = vunpack.c.l.b16 %v305
      %v441 = vunpack.c.l.b16 %v306
      %v442 = vunpack.c.l.b16 %v307
      %v443 = vunpack.c.l.b16 %v308
      %v444 = vunpack.c.l.b16 %v309
      %v445 = vunpack.c.l.b16 %v310
      %v446 = vunpack.c.l.b16 %v311
      %v447 = vunpack.c.l.b16 %v312
      %v448 = vunpack.c.l.b16 %v313
      %v449 = vpack.c.b16 %v434, %v433
      %v450 = vpack.c.b16 %v436, %v435
      %v451 = vpack.c.b16 %v438, %v437
      %v452 = vpack.c.b16 %v440, %v439
      %v453 = vpack.c.b16 %v442, %v441
      %v454 = vpack.c.b16 %v444, %v443
      %v455 = vpack.c.b16 %v446, %v445
      %v456 = vpack.c.b16 %v448, %v447
      %465 = vmatprep.subr.bf16.mxu0 0
      %466 = vmatpush1.bf16.msra.mxu0 %v456
      %467 = vmatprep.subr.bf16.mxu0 0
      %468 = vmatpush1.bf16.msra.mxu0 %v455
      %469 = vmatprep.subr.bf16.mxu0 0
      %470 = vmatpush1.bf16.msra.mxu0 %v454
      %471 = vmatprep.subr.bf16.mxu0 0
      %472 = vmatpush1.bf16.msra.mxu0 %v453
      %473 = vmatprep.subr.bf16.mxu0 0
      %474 = vmatpush1.bf16.msra.mxu0 %v452
      %475 = vmatprep.subr.bf16.mxu0 0
      %476 = vmatpush1.bf16.msra.mxu0 %v451
      %477 = vmatprep.subr.bf16.mxu0 0
      %478 = vmatpush1.bf16.msra.mxu0 %v450
      %479 = vmatprep.subr.bf16.mxu0 0
      %480 = vmatpush1.bf16.msra.mxu0 %v449
      %481 = vmatprep.subr.bf16.mxu0 0
      %482 = vmatpush2.bf16.msra.mxu0 0
      %483 = vmatprep.subr.bf16.mxu0 0
      %484 = vmatpush2.bf16.msra.mxu0 0
      %485 = vmatprep.subr.bf16.mxu0 0
      %486 = vmatpush2.bf16.msra.mxu0 0
      %487 = vmatprep.subr.bf16.mxu0 0
      %488 = vmatpush2.bf16.msra.mxu0 0
      %489 = vmatprep.subr.bf16.mxu0 0
      %490 = vmatpush2.bf16.msra.mxu0 0
      %491 = vmatprep.subr.bf16.mxu0 0
      %492 = vmatpush2.bf16.msra.mxu0 0
      %493 = vmatprep.subr.bf16.mxu0 0
      %494 = vmatpush2.bf16.msra.mxu0 0
      %495 = vmatprep.subr.bf16.mxu0 0
      %496 = vmatpush2.bf16.msra.mxu0 0
      %497 = vmatprep.mubr.bf16.mxu0 0
      %498 = vmatmul.mubr.bf16.gmra.mxu0 %v385
      %v499 = vpop.f32.mrf.mxu0
      %v500 = vadd.f32 %v319, %v499
      %v501 = vpop.f32.mrf.mxu0
      %v502 = vpop.f32.mrf.mxu0
      %v503 = vadd.f32 %v319, %v502
      %v504 = vpop.f32.mrf.mxu0
      %505 = vmatprep.mubr.bf16.mxu0 0
      %506 = vmatmul.mubr.bf16.gmra.mxu0 %v386
      %v507 = vpop.f32.mrf.mxu0
      %v508 = vadd.f32 %v319, %v507
      %v509 = vpop.f32.mrf.mxu0
      %v510 = vpop.f32.mrf.mxu0
      %v511 = vadd.f32 %v319, %v510
      %v512 = vpop.f32.mrf.mxu0
      %513 = vmatprep.mubr.bf16.mxu0 0
      %514 = vmatmul.mubr.bf16.gmra.mxu0 %v387
      %v515 = vpop.f32.mrf.mxu0
      %v516 = vadd.f32 %v319, %v515
      %v517 = vpop.f32.mrf.mxu0
      %v518 = vpop.f32.mrf.mxu0
      %v519 = vadd.f32 %v319, %v518
      %v520 = vpop.f32.mrf.mxu0
      %521 = vmatprep.mubr.bf16.mxu0 0
      %522 = vmatmul.mubr.bf16.gmra.mxu0 %v388
      %v523 = vpop.f32.mrf.mxu0
      %v524 = vadd.f32 %v319, %v523
      %v525 = vpop.f32.mrf.mxu0
      %v526 = vpop.f32.mrf.mxu0
      %v527 = vadd.f32 %v319, %v526
      %v528 = vpop.f32.mrf.mxu0
      %529 = vmatprep.mubr.bf16.mxu0 0
      %530 = vmatmul.mubr.bf16.gmra.mxu0 %v389
      %v531 = vpop.f32.mrf.mxu0
      %v532 = vadd.f32 %v319, %v531
      %v533 = vpop.f32.mrf.mxu0
      %v534 = vpop.f32.mrf.mxu0
      %v535 = vadd.f32 %v319, %v534
      %v536 = vpop.f32.mrf.mxu0
      %537 = vmatprep.mubr.bf16.mxu0 0
      %538 = vmatmul.mubr.bf16.gmra.mxu0 %v390
      %v539 = vpop.f32.mrf.mxu0
      %v540 = vadd.f32 %v319, %v539
      %v541 = vpop.f32.mrf.mxu0
      %v542 = vpop.f32.mrf.mxu0
      %v543 = vadd.f32 %v319, %v542
      %v544 = vpop.f32.mrf.mxu0
      %545 = vmatprep.mubr.bf16.mxu0 0
      %546 = vmatmul.mubr.bf16.gmra.mxu0 %v391
      %v547 = vpop.f32.mrf.mxu0
      %v548 = vadd.f32 %v319, %v547
      %v549 = vpop.f32.mrf.mxu0
      %v550 = vpop.f32.mrf.mxu0
      %v551 = vadd.f32 %v319, %v550
      %v552 = vpop.f32.mrf.mxu0
      %553 = vmatprep.mubr.bf16.mxu0 0
      %554 = vmatmul.mubr.bf16.gmra.mxu0 %v392
      %v555 = vpop.f32.mrf.mxu0
      %v556 = vadd.f32 %v319, %v555
      %v557 = vpop.f32.mrf.mxu0
      %v558 = vpop.f32.mrf.mxu0
      %v559 = vadd.f32 %v319, %v558
      %v560 = vpop.f32.mrf.mxu0
      %561 = vmatprep.mubr.bf16.mxu0 0
      %562 = vmatmul.mubr.bf16.gmra.mxu0 %v393
      %v563 = vpop.f32.mrf.mxu0
      %v564 = vadd.f32 %v319, %v563
      %v565 = vpop.f32.mrf.mxu0
      %v566 = vpop.f32.mrf.mxu0
      %v567 = vadd.f32 %v319, %v566
      %v568 = vpop.f32.mrf.mxu0
      %569 = vmatprep.mubr.bf16.mxu0 0
      %570 = vmatmul.mubr.bf16.gmra.mxu0 %v394
      %v571 = vpop.f32.mrf.mxu0
      %v572 = vadd.f32 %v319, %v571
      %v573 = vpop.f32.mrf.mxu0
      %v574 = vpop.f32.mrf.mxu0
      %v575 = vadd.f32 %v319, %v574
      %v576 = vpop.f32.mrf.mxu0
      %577 = vmatprep.mubr.bf16.mxu0 0
      %578 = vmatmul.mubr.bf16.gmra.mxu0 %v395
      %v579 = vpop.f32.mrf.mxu0
      %v580 = vadd.f32 %v319, %v579
      %v581 = vpop.f32.mrf.mxu0
      %v582 = vpop.f32.mrf.mxu0
      %v583 = vadd.f32 %v319, %v582
      %v584 = vpop.f32.mrf.mxu0
      %585 = vmatprep.mubr.bf16.mxu0 0
      %586 = vmatmul.mubr.bf16.gmra.mxu0 %v396
      %v587 = vpop.f32.mrf.mxu0
      %v588 = vadd.f32 %v319, %v587
      %v589 = vpop.f32.mrf.mxu0
      %v590 = vpop.f32.mrf.mxu0
      %v591 = vadd.f32 %v319, %v590
      %v592 = vpop.f32.mrf.mxu0
      %593 = vmatprep.mubr.bf16.mxu0 0
      %594 = vmatmul.mubr.bf16.gmra.mxu0 %v397
      %v595 = vpop.f32.mrf.mxu0
      %v596 = vadd.f32 %v319, %v595
      %v597 = vpop.f32.mrf.mxu0
      %v598 = vpop.f32.mrf.mxu0
      %v599 = vadd.f32 %v319, %v598
      %v600 = vpop.f32.mrf.mxu0
      %601 = vmatprep.mubr.bf16.mxu0 0
      %602 = vmatmul.mubr.bf16.gmra.mxu0 %v398
      %v603 = vpop.f32.mrf.mxu0
      %v604 = vadd.f32 %v319, %v603
      %v605 = vpop.f32.mrf.mxu0
      %v606 = vpop.f32.mrf.mxu0
      %v607 = vadd.f32 %v319, %v606
      %v608 = vpop.f32.mrf.mxu0
      %609 = vmatprep.mubr.bf16.mxu0 0
      %610 = vmatmul.mubr.bf16.gmra.mxu0 %v399
      %v611 = vpop.f32.mrf.mxu0
      %v612 = vadd.f32 %v319, %v611
      %v613 = vpop.f32.mrf.mxu0
      %v614 = vpop.f32.mrf.mxu0
      %v615 = vadd.f32 %v319, %v614
      %v616 = vpop.f32.mrf.mxu0
      %617 = vmatprep.mubr.bf16.mxu0 0
      %618 = vmatmul.mubr.bf16.gmra.mxu0 %v400
      %v619 = vpop.f32.mrf.mxu0
      %v620 = vadd.f32 %v319, %v619
      %v621 = vpop.f32.mrf.mxu0
      %v622 = vpop.f32.mrf.mxu0
      %v623 = vadd.f32 %v319, %v622
      %v624 = vpop.f32.mrf.mxu0
      %625 = vdwg.mxu0
      %v626 = vld [vmem:[%s259] sm:$0xff]
      %v627 = vld [vmem:[%s259 + $0x8] sm:$0xff]
      %v628 = vld [vmem:[%s259 + $0x10] sm:$0xff]
      %v629 = vld [vmem:[%s259 + $0x18] sm:$0xff]
      %v630 = vld [vmem:[%s259 + $0x20] sm:$0xff]
      %v631 = vld [vmem:[%s259 + $0x28] sm:$0xff]
      %v632 = vld [vmem:[%s259 + $0x30] sm:$0xff]
      %v633 = vld [vmem:[%s259 + $0x38] sm:$0xff]
      %v634 = vld [vmem:[%s259 + $0x40] sm:$0xff]
      %v635 = vld [vmem:[%s259 + $0x48] sm:$0xff]
      %v636 = vld [vmem:[%s259 + $0x50] sm:$0xff]
      %v637 = vld [vmem:[%s259 + $0x58] sm:$0xff]
      %v638 = vld [vmem:[%s259 + $0x60] sm:$0xff]
      %v639 = vld [vmem:[%s259 + $0x68] sm:$0xff]
      %v640 = vld [vmem:[%s259 + $0x70] sm:$0xff]
      %v641 = vld [vmem:[%s259 + $0x78] sm:$0xff]
      %v642 = vld [vmem:[%s259 + $0x80] sm:$0xff]
      %v643 = vld [vmem:[%s259 + $0x88] sm:$0xff]
      %v644 = vld [vmem:[%s259 + $0x90] sm:$0xff]
      %v645 = vld [vmem:[%s259 + $0x98] sm:$0xff]
      %v646 = vld [vmem:[%s259 + $0xa0] sm:$0xff]
      %v647 = vld [vmem:[%s259 + $0xa8] sm:$0xff]
      %v648 = vld [vmem:[%s259 + $0xb0] sm:$0xff]
      %v649 = vld [vmem:[%s259 + $0xb8] sm:$0xff]
      %v650 = vld [vmem:[%s259 + $0xc0] sm:$0xff]
      %v651 = vld [vmem:[%s259 + $0xc8] sm:$0xff]
      %v652 = vld [vmem:[%s259 + $0xd0] sm:$0xff]
      %v653 = vld [vmem:[%s259 + $0xd8] sm:$0xff]
      %v654 = vld [vmem:[%s259 + $0xe0] sm:$0xff]
      %v655 = vld [vmem:[%s259 + $0xe8] sm:$0xff]
      %v656 = vld [vmem:[%s259 + $0xf0] sm:$0xff]
      %v657 = vld [vmem:[%s259 + $0xf8] sm:$0xff]
      %v658 = vadd.f32 %v500, %v626
      %v659 = vadd.f32 %v503, %v627
      %v660 = vadd.f32 %v508, %v628
      %v661 = vadd.f32 %v511, %v629
      %v662 = vadd.f32 %v516, %v630
      %v663 = vadd.f32 %v519, %v631
      %v664 = vadd.f32 %v524, %v632
      %v665 = vadd.f32 %v527, %v633
      %v666 = vadd.f32 %v532, %v634
      %v667 = vadd.f32 %v535, %v635
      %v668 = vadd.f32 %v540, %v636
      %v669 = vadd.f32 %v543, %v637
      %v670 = vadd.f32 %v548, %v638
      %v671 = vadd.f32 %v551, %v639
      %v672 = vadd.f32 %v556, %v640
      %v673 = vadd.f32 %v559, %v641
      %v674 = vadd.f32 %v564, %v642
      %v675 = vadd.f32 %v567, %v643
      %v676 = vadd.f32 %v572, %v644
      %v677 = vadd.f32 %v575, %v645
      %v678 = vadd.f32 %v580, %v646
      %v679 = vadd.f32 %v583, %v647
      %v680 = vadd.f32 %v588, %v648
      %v681 = vadd.f32 %v591, %v649
      %v682 = vadd.f32 %v596, %v650
      %v683 = vadd.f32 %v599, %v651
      %v684 = vadd.f32 %v604, %v652
      %v685 = vadd.f32 %v607, %v653
      %v686 = vadd.f32 %v612, %v654
      %v687 = vadd.f32 %v615, %v655
      %v688 = vadd.f32 %v620, %v656
      %v689 = vadd.f32 %v623, %v657
      %v690 = vld [vmem:[%s249] sm:$0xf]
      %v691 = vld [vmem:[%s249 + $0x8] sm:$0xf]
      %v692 = vld [vmem:[%s249 + $0x10] sm:$0xf]
      %v693 = vld [vmem:[%s249 + $0x18] sm:$0xf]
      %v694 = vld [vmem:[%s249 + $0x20] sm:$0xf]
      %v695 = vld [vmem:[%s249 + $0x28] sm:$0xf]
      %v696 = vld [vmem:[%s249 + $0x30] sm:$0xf]
      %v697 = vld [vmem:[%s249 + $0x38] sm:$0xf]
      %v698 = vld [vmem:[%s249 + $0x40] sm:$0xf]
      %v699 = vld [vmem:[%s249 + $0x48] sm:$0xf]
      %v700 = vld [vmem:[%s249 + $0x50] sm:$0xf]
      %v701 = vld [vmem:[%s249 + $0x58] sm:$0xf]
      %v702 = vld [vmem:[%s249 + $0x60] sm:$0xf]
      %v703 = vld [vmem:[%s249 + $0x68] sm:$0xf]
      %v704 = vld [vmem:[%s249 + $0x70] sm:$0xf]
      %v705 = vld [vmem:[%s249 + $0x78] sm:$0xf]
      %v706 = vld [vmem:[%s249 + $0x80] sm:$0xf]
      %v707 = vld [vmem:[%s249 + $0x88] sm:$0xf]
      %v708 = vld [vmem:[%s249 + $0x90] sm:$0xf]
      %v709 = vld [vmem:[%s249 + $0x98] sm:$0xf]
      %v710 = vld [vmem:[%s249 + $0xa0] sm:$0xf]
      %v711 = vld [vmem:[%s249 + $0xa8] sm:$0xf]
      %v712 = vld [vmem:[%s249 + $0xb0] sm:$0xf]
      %v713 = vld [vmem:[%s249 + $0xb8] sm:$0xf]
      %v714 = vld [vmem:[%s249 + $0xc0] sm:$0xf]
      %v715 = vld [vmem:[%s249 + $0xc8] sm:$0xf]
      %v716 = vld [vmem:[%s249 + $0xd0] sm:$0xf]
      %v717 = vld [vmem:[%s249 + $0xd8] sm:$0xf]
      %v718 = vld [vmem:[%s249 + $0xe0] sm:$0xf]
      %v719 = vld [vmem:[%s249 + $0xe8] sm:$0xf]
      %v720 = vld [vmem:[%s249 + $0xf0] sm:$0xf]
      %v721 = vld [vmem:[%s249 + $0xf8] sm:$0xf]
      %v754 = vunpack.c.l.b16 %v690
      %v755 = vunpack.c.l.b16 %v691
      %v756 = vunpack.c.l.b16 %v692
      %v757 = vunpack.c.l.b16 %v693
      %v758 = vunpack.c.l.b16 %v694
      %v759 = vunpack.c.l.b16 %v695
      %v760 = vunpack.c.l.b16 %v696
      %v761 = vunpack.c.l.b16 %v697
      %v762 = vunpack.c.l.b16 %v698
      %v763 = vunpack.c.l.b16 %v699
      %v764 = vunpack.c.l.b16 %v700
      %v765 = vunpack.c.l.b16 %v701
      %v766 = vunpack.c.l.b16 %v702
      %v767 = vunpack.c.l.b16 %v703
      %v768 = vunpack.c.l.b16 %v704
      %v769 = vunpack.c.l.b16 %v705
      %v770 = vunpack.c.l.b16 %v706
      %v771 = vunpack.c.l.b16 %v707
      %v772 = vunpack.c.l.b16 %v708
      %v773 = vunpack.c.l.b16 %v709
      %v774 = vunpack.c.l.b16 %v710
      %v775 = vunpack.c.l.b16 %v711
      %v776 = vunpack.c.l.b16 %v712
      %v777 = vunpack.c.l.b16 %v713
      %v778 = vunpack.c.l.b16 %v714
      %v779 = vunpack.c.l.b16 %v715
      %v780 = vunpack.c.l.b16 %v716
      %v781 = vunpack.c.l.b16 %v717
      %v782 = vunpack.c.l.b16 %v718
      %v783 = vunpack.c.l.b16 %v719
      %v784 = vunpack.c.l.b16 %v720
      %v785 = vunpack.c.l.b16 %v721
      %v786 = vpack.c.b16 %v755, %v754
      %v787 = vpack.c.b16 %v757, %v756
      %v788 = vpack.c.b16 %v759, %v758
      %v789 = vpack.c.b16 %v761, %v760
      %v790 = vpack.c.b16 %v763, %v762
      %v791 = vpack.c.b16 %v765, %v764
      %v792 = vpack.c.b16 %v767, %v766
      %v793 = vpack.c.b16 %v769, %v768
      %v794 = vpack.c.b16 %v771, %v770
      %v795 = vpack.c.b16 %v773, %v772
      %v796 = vpack.c.b16 %v775, %v774
      %v797 = vpack.c.b16 %v777, %v776
      %v798 = vpack.c.b16 %v779, %v778
      %v799 = vpack.c.b16 %v781, %v780
      %v800 = vpack.c.b16 %v783, %v782
      %v801 = vpack.c.b16 %v785, %v784
      %802 = vrot.lane.b32.xlu0 %v786, 112
      %v803 = vpop.permute.xlu0 %802
      %804 = vrot.lane.b32.xlu0 %v787, 112
      %v805 = vpop.permute.xlu0 %804
      %806 = vrot.lane.b32.xlu0 %v788, 112
      %v807 = vpop.permute.xlu0 %806
      %808 = vrot.lane.b32.xlu0 %v789, 112
      %v809 = vpop.permute.xlu0 %808
      %810 = vrot.lane.b32.xlu0 %v790, 112
      %v811 = vpop.permute.xlu0 %810
      %812 = vrot.lane.b32.xlu0 %v791, 112
      %v813 = vpop.permute.xlu0 %812
      %814 = vrot.lane.b32.xlu0 %v792, 112
      %v815 = vpop.permute.xlu0 %814
      %816 = vrot.lane.b32.xlu0 %v793, 112
      %v817 = vpop.permute.xlu0 %816
      %818 = vrot.lane.b32.xlu0 %v794, 112
      %v819 = vpop.permute.xlu0 %818
      %820 = vrot.lane.b32.xlu0 %v795, 112
      %v821 = vpop.permute.xlu0 %820
      %822 = vrot.lane.b32.xlu0 %v796, 112
      %v823 = vpop.permute.xlu0 %822
      %824 = vrot.lane.b32.xlu0 %v797, 112
      %v825 = vpop.permute.xlu0 %824
      %826 = vrot.lane.b32.xlu0 %v798, 112
      %v827 = vpop.permute.xlu0 %826
      %828 = vrot.lane.b32.xlu0 %v799, 112
      %v829 = vpop.permute.xlu0 %828
      %830 = vrot.lane.b32.xlu0 %v800, 112
      %v831 = vpop.permute.xlu0 %830
      %832 = vrot.lane.b32.xlu0 %v801, 112
      %v833 = vpop.permute.xlu0 %832
      %vm834 = vcmask 130048
      %v836 = vsel %vm834, %v786, 0
      %v839 = vsel %vm834, %v787, 0
      %v842 = vsel %vm834, %v788, 0
      %v845 = vsel %vm834, %v789, 0
      %v848 = vsel %vm834, %v790, 0
      %v851 = vsel %vm834, %v791, 0
      %v854 = vsel %vm834, %v792, 0
      %v857 = vsel %vm834, %v793, 0
      %v860 = vsel %vm834, %v794, 0
      %v863 = vsel %vm834, %v795, 0
      %v866 = vsel %vm834, %v796, 0
      %v869 = vsel %vm834, %v797, 0
      %v872 = vsel %vm834, %v798, 0
      %v875 = vsel %vm834, %v799, 0
      %v878 = vsel %vm834, %v800, 0
      %v881 = vsel %vm834, %v801, 0
      %v884 = vsel %vm834, %v803, 0
      %v887 = vsel %vm834, %v805, 0
      %v890 = vsel %vm834, %v807, 0
      %v893 = vsel %vm834, %v809, 0
      %v896 = vsel %vm834, %v811, 0
      %v899 = vsel %vm834, %v813, 0
      %v902 = vsel %vm834, %v815, 0
      %v905 = vsel %vm834, %v817, 0
      %v908 = vsel %vm834, %v819, 0
      %v911 = vsel %vm834, %v821, 0
      %v914 = vsel %vm834, %v823, 0
      %v917 = vsel %vm834, %v825, 0
      %v920 = vsel %vm834, %v827, 0
      %v923 = vsel %vm834, %v829, 0
      %v926 = vsel %vm834, %v831, 0
      %v929 = vsel %vm834, %v833, 0
      %931 = vmatprep.subr.bf16.mxu0 0
      %932 = vmatpush1.bf16.xpose.msra.mxu0 %v905
      %933 = vmatprep.subr.bf16.mxu0 0
      %934 = vmatpush1.bf16.xpose.msra.mxu0 %v902
      %935 = vmatprep.subr.bf16.mxu0 0
      %936 = vmatpush1.bf16.xpose.msra.mxu0 %v899
      %937 = vmatprep.subr.bf16.mxu0 0
      %938 = vmatpush1.bf16.xpose.msra.mxu0 %v896
      %939 = vmatprep.subr.bf16.mxu0 0
      %940 = vmatpush1.bf16.xpose.msra.mxu0 %v893
      %941 = vmatprep.subr.bf16.mxu0 0
      %942 = vmatpush1.bf16.xpose.msra.mxu0 %v890
      %943 = vmatprep.subr.bf16.mxu0 0
      %944 = vmatpush1.bf16.xpose.msra.mxu0 %v887
      %945 = vmatprep.subr.bf16.mxu0 0
      %946 = vmatpush1.bf16.xpose.msra.mxu0 %v884
      %947 = vmatprep.subr.bf16.mxu0 0
      %948 = vmatpush2.bf16.xpose.msra.mxu0 %v929
      %949 = vmatprep.subr.bf16.mxu0 0
      %950 = vmatpush2.bf16.xpose.msra.mxu0 %v926
      %951 = vmatprep.subr.bf16.mxu0 0
      %952 = vmatpush2.bf16.xpose.msra.mxu0 %v923
      %953 = vmatprep.subr.bf16.mxu0 0
      %954 = vmatpush2.bf16.xpose.msra.mxu0 %v920
      %955 = vmatprep.subr.bf16.mxu0 0
      %956 = vmatpush2.bf16.xpose.msra.mxu0 %v917
      %957 = vmatprep.subr.bf16.mxu0 0
      %958 = vmatpush2.bf16.xpose.msra.mxu0 %v914
      %959 = vmatprep.subr.bf16.mxu0 0
      %960 = vmatpush2.bf16.xpose.msra.mxu0 %v911
      %961 = vmatprep.subr.bf16.mxu0 0
      %962 = vmatpush2.bf16.xpose.msra.mxu0 %v908
      %963 = vmatprep.mubr.bf16.mxu0 0
      %964 = vmatmul.mubr.bf16.gmra.mxu0 %v836
      %v965 = vpop.f32.mrf.mxu0
      %v966 = vadd.f32 0.0, %v965
      %v967 = vpop.f32.mrf.mxu0
      %v968 = vadd.f32 0.0, %v967
      %v969 = vpop.f32.mrf.mxu0
      %v970 = vadd.f32 0.0, %v969
      %v971 = vpop.f32.mrf.mxu0
      %v972 = vadd.f32 0.0, %v971
      %973 = vmatprep.mubr.bf16.mxu0 0
      %974 = vmatmul.mubr.bf16.gmra.mxu0 %v839
      %v975 = vpop.f32.mrf.mxu0
      %v976 = vadd.f32 0.0, %v975
      %v977 = vpop.f32.mrf.mxu0
      %v978 = vadd.f32 0.0, %v977
      %v979 = vpop.f32.mrf.mxu0
      %v980 = vadd.f32 0.0, %v979
      %v981 = vpop.f32.mrf.mxu0
      %v982 = vadd.f32 0.0, %v981
      %983 = vmatprep.mubr.bf16.mxu0 0
      %984 = vmatmul.mubr.bf16.gmra.mxu0 %v842
      %v985 = vpop.f32.mrf.mxu0
      %v986 = vadd.f32 0.0, %v985
      %v987 = vpop.f32.mrf.mxu0
      %v988 = vadd.f32 0.0, %v987
      %v989 = vpop.f32.mrf.mxu0
      %v990 = vadd.f32 0.0, %v989
      %v991 = vpop.f32.mrf.mxu0
      %v992 = vadd.f32 0.0, %v991
      %993 = vmatprep.mubr.bf16.mxu0 0
      %994 = vmatmul.mubr.bf16.gmra.mxu0 %v845
      %v995 = vpop.f32.mrf.mxu0
      %v996 = vadd.f32 0.0, %v995
      %v997 = vpop.f32.mrf.mxu0
      %v998 = vadd.f32 0.0, %v997
      %v999 = vpop.f32.mrf.mxu0
      %v1000 = vadd.f32 0.0, %v999
      %v1001 = vpop.f32.mrf.mxu0
      %v1002 = vadd.f32 0.0, %v1001
      %1003 = vmatprep.mubr.bf16.mxu0 0
      %1004 = vmatmul.mubr.bf16.gmra.mxu0 %v848
      %v1005 = vpop.f32.mrf.mxu0
      %v1006 = vadd.f32 0.0, %v1005
      %v1007 = vpop.f32.mrf.mxu0
      %v1008 = vadd.f32 0.0, %v1007
      %v1009 = vpop.f32.mrf.mxu0
      %v1010 = vadd.f32 0.0, %v1009
      %v1011 = vpop.f32.mrf.mxu0
      %v1012 = vadd.f32 0.0, %v1011
      %1013 = vmatprep.mubr.bf16.mxu0 0
      %1014 = vmatmul.mubr.bf16.gmra.mxu0 %v851
      %v1015 = vpop.f32.mrf.mxu0
      %v1016 = vadd.f32 0.0, %v1015
      %v1017 = vpop.f32.mrf.mxu0
      %v1018 = vadd.f32 0.0, %v1017
      %v1019 = vpop.f32.mrf.mxu0
      %v1020 = vadd.f32 0.0, %v1019
      %v1021 = vpop.f32.mrf.mxu0
      %v1022 = vadd.f32 0.0, %v1021
      %1023 = vmatprep.mubr.bf16.mxu0 0
      %1024 = vmatmul.mubr.bf16.gmra.mxu0 %v854
      %v1025 = vpop.f32.mrf.mxu0
      %v1026 = vadd.f32 0.0, %v1025
      %v1027 = vpop.f32.mrf.mxu0
      %v1028 = vadd.f32 0.0, %v1027
      %v1029 = vpop.f32.mrf.mxu0
      %v1030 = vadd.f32 0.0, %v1029
      %v1031 = vpop.f32.mrf.mxu0
      %v1032 = vadd.f32 0.0, %v1031
      %1033 = vmatprep.mubr.bf16.mxu0 0
      %1034 = vmatmul.mubr.bf16.gmra.mxu0 %v857
      %v1035 = vpop.f32.mrf.mxu0
      %v1036 = vadd.f32 0.0, %v1035
      %v1037 = vpop.f32.mrf.mxu0
      %v1038 = vadd.f32 0.0, %v1037
      %v1039 = vpop.f32.mrf.mxu0
      %v1040 = vadd.f32 0.0, %v1039
      %v1041 = vpop.f32.mrf.mxu0
      %v1042 = vadd.f32 0.0, %v1041
      %1043 = vmatprep.mubr.bf16.mxu0 0
      %1044 = vmatmul.mubr.bf16.gmra.mxu0 %v860
      %v1045 = vpop.f32.mrf.mxu0
      %v1046 = vadd.f32 0.0, %v1045
      %v1047 = vpop.f32.mrf.mxu0
      %v1048 = vadd.f32 0.0, %v1047
      %v1049 = vpop.f32.mrf.mxu0
      %v1050 = vadd.f32 0.0, %v1049
      %v1051 = vpop.f32.mrf.mxu0
      %v1052 = vadd.f32 0.0, %v1051
      %1053 = vmatprep.mubr.bf16.mxu0 0
      %1054 = vmatmul.mubr.bf16.gmra.mxu0 %v863
      %v1055 = vpop.f32.mrf.mxu0
      %v1056 = vadd.f32 0.0, %v1055
      %v1057 = vpop.f32.mrf.mxu0
      %v1058 = vadd.f32 0.0, %v1057
      %v1059 = vpop.f32.mrf.mxu0
      %v1060 = vadd.f32 0.0, %v1059
      %v1061 = vpop.f32.mrf.mxu0
      %v1062 = vadd.f32 0.0, %v1061
      %1063 = vmatprep.mubr.bf16.mxu0 0
      %1064 = vmatmul.mubr.bf16.gmra.mxu0 %v866
      %v1065 = vpop.f32.mrf.mxu0
      %v1066 = vadd.f32 0.0, %v1065
      %v1067 = vpop.f32.mrf.mxu0
      %v1068 = vadd.f32 0.0, %v1067
      %v1069 = vpop.f32.mrf.mxu0
      %v1070 = vadd.f32 0.0, %v1069
      %v1071 = vpop.f32.mrf.mxu0
      %v1072 = vadd.f32 0.0, %v1071
      %1073 = vmatprep.mubr.bf16.mxu0 0
      %1074 = vmatmul.mubr.bf16.gmra.mxu0 %v869
      %v1075 = vpop.f32.mrf.mxu0
      %v1076 = vadd.f32 0.0, %v1075
      %v1077 = vpop.f32.mrf.mxu0
      %v1078 = vadd.f32 0.0, %v1077
      %v1079 = vpop.f32.mrf.mxu0
      %v1080 = vadd.f32 0.0, %v1079
      %v1081 = vpop.f32.mrf.mxu0
      %v1082 = vadd.f32 0.0, %v1081
      %1083 = vmatprep.mubr.bf16.mxu0 0
      %1084 = vmatmul.mubr.bf16.gmra.mxu0 %v872
      %v1085 = vpop.f32.mrf.mxu0
      %v1086 = vadd.f32 0.0, %v1085
      %v1087 = vpop.f32.mrf.mxu0
      %v1088 = vadd.f32 0.0, %v1087
      %v1089 = vpop.f32.mrf.mxu0
      %v1090 = vadd.f32 0.0, %v1089
      %v1091 = vpop.f32.mrf.mxu0
      %v1092 = vadd.f32 0.0, %v1091
      %1093 = vmatprep.mubr.bf16.mxu0 0
      %1094 = vmatmul.mubr.bf16.gmra.mxu0 %v875
      %v1095 = vpop.f32.mrf.mxu0
      %v1096 = vadd.f32 0.0, %v1095
      %v1097 = vpop.f32.mrf.mxu0
      %v1098 = vadd.f32 0.0, %v1097
      %v1099 = vpop.f32.mrf.mxu0
      %v1100 = vadd.f32 0.0, %v1099
      %v1101 = vpop.f32.mrf.mxu0
      %v1102 = vadd.f32 0.0, %v1101
      %1103 = vmatprep.mubr.bf16.mxu0 0
      %1104 = vmatmul.mubr.bf16.gmra.mxu0 %v878
      %v1105 = vpop.f32.mrf.mxu0
      %v1106 = vadd.f32 0.0, %v1105
      %v1107 = vpop.f32.mrf.mxu0
      %v1108 = vadd.f32 0.0, %v1107
      %v1109 = vpop.f32.mrf.mxu0
      %v1110 = vadd.f32 0.0, %v1109
      %v1111 = vpop.f32.mrf.mxu0
      %v1112 = vadd.f32 0.0, %v1111
      %1113 = vmatprep.mubr.bf16.mxu0 0
      %1114 = vmatmul.mubr.bf16.gmra.mxu0 %v881
      %v1115 = vpop.f32.mrf.mxu0
      %v1116 = vadd.f32 0.0, %v1115
      %v1117 = vpop.f32.mrf.mxu0
      %v1118 = vadd.f32 0.0, %v1117
      %v1119 = vpop.f32.mrf.mxu0
      %v1120 = vadd.f32 0.0, %v1119
      %v1121 = vpop.f32.mrf.mxu0
      %v1122 = vadd.f32 0.0, %v1121
      %1123 = vdwg.mxu0
      %v1124 = vmul.f32 %v966, 0.25
      %v1125 = vmul.f32 %v968, 0.25
      %v1126 = vmul.f32 %v970, 0.25
      %v1127 = vmul.f32 %v972, 0.25
      %v1128 = vmul.f32 %v976, 0.25
      %v1129 = vmul.f32 %v978, 0.25
      %v1130 = vmul.f32 %v980, 0.25
      %v1131 = vmul.f32 %v982, 0.25
      %v1132 = vmul.f32 %v986, 0.25
      %v1133 = vmul.f32 %v988, 0.25
      %v1134 = vmul.f32 %v990, 0.25
      %v1135 = vmul.f32 %v992, 0.25
      %v1136 = vmul.f32 %v996, 0.25
      %v1137 = vmul.f32 %v998, 0.25
      %v1138 = vmul.f32 %v1000, 0.25
      %v1139 = vmul.f32 %v1002, 0.25
      %v1140 = vmul.f32 %v1006, 0.25
      %v1141 = vmul.f32 %v1008, 0.25
      %v1142 = vmul.f32 %v1010, 0.25
      %v1143 = vmul.f32 %v1012, 0.25
      %v1144 = vmul.f32 %v1016, 0.25
      %v1145 = vmul.f32 %v1018, 0.25
      %v1146 = vmul.f32 %v1020, 0.25
      %v1147 = vmul.f32 %v1022, 0.25
      %v1148 = vmul.f32 %v1026, 0.25
      %v1149 = vmul.f32 %v1028, 0.25
      %v1150 = vmul.f32 %v1030, 0.25
      %v1151 = vmul.f32 %v1032, 0.25
      %v1152 = vmul.f32 %v1036, 0.25
      %v1153 = vmul.f32 %v1038, 0.25
      %v1154 = vmul.f32 %v1040, 0.25
      %v1155 = vmul.f32 %v1042, 0.25
      %v1156 = vmul.f32 %v1046, 0.25
      %v1157 = vmul.f32 %v1048, 0.25
      %v1158 = vmul.f32 %v1050, 0.25
      %v1159 = vmul.f32 %v1052, 0.25
      %v1160 = vmul.f32 %v1056, 0.25
      %v1161 = vmul.f32 %v1058, 0.25
      %v1162 = vmul.f32 %v1060, 0.25
      %v1163 = vmul.f32 %v1062, 0.25
      %v1164 = vmul.f32 %v1066, 0.25
      %v1165 = vmul.f32 %v1068, 0.25
      %v1166 = vmul.f32 %v1070, 0.25
      %v1167 = vmul.f32 %v1072, 0.25
      %v1168 = vmul.f32 %v1076, 0.25
      %v1169 = vmul.f32 %v1078, 0.25
      %v1170 = vmul.f32 %v1080, 0.25
      %v1171 = vmul.f32 %v1082, 0.25
      %v1172 = vmul.f32 %v1086, 0.25
      %v1173 = vmul.f32 %v1088, 0.25
      %v1174 = vmul.f32 %v1090, 0.25
      %v1175 = vmul.f32 %v1092, 0.25
      %v1176 = vmul.f32 %v1096, 0.25
      %v1177 = vmul.f32 %v1098, 0.25
      %v1178 = vmul.f32 %v1100, 0.25
      %v1179 = vmul.f32 %v1102, 0.25
      %v1180 = vmul.f32 %v1106, 0.25
      %v1181 = vmul.f32 %v1108, 0.25
      %v1182 = vmul.f32 %v1110, 0.25
      %v1183 = vmul.f32 %v1112, 0.25
      %v1184 = vmul.f32 %v1116, 0.25
      %v1185 = vmul.f32 %v1118, 0.25
      %v1186 = vmul.f32 %v1120, 0.25
      %v1187 = vmul.f32 %v1122, 0.25
      %v1188 = vmax.f32 %v1124, %v1125
      %1189 = vmax.xlane.f32.xlu0 %v1188
      %v1190 = vpop.xlane.xlu0 %1189
      %v1191 = vmax.f32 %v1126, %v1127
      %1192 = vmax.xlane.f32.xlu0 %v1191
      %v1193 = vpop.xlane.xlu0 %1192
      %v1194 = vmax.f32 %v1128, %v1129
      %1195 = vmax.xlane.f32.xlu0 %v1194
      %v1196 = vpop.xlane.xlu0 %1195
      %v1197 = vmax.f32 %v1130, %v1131
      %1198 = vmax.xlane.f32.xlu0 %v1197
      %v1199 = vpop.xlane.xlu0 %1198
      %v1200 = vmax.f32 %v1132, %v1133
      %1201 = vmax.xlane.f32.xlu0 %v1200
      %v1202 = vpop.xlane.xlu0 %1201
      %v1203 = vmax.f32 %v1134, %v1135
      %1204 = vmax.xlane.f32.xlu0 %v1203
      %v1205 = vpop.xlane.xlu0 %1204
      %v1206 = vmax.f32 %v1136, %v1137
      %1207 = vmax.xlane.f32.xlu0 %v1206
      %v1208 = vpop.xlane.xlu0 %1207
      %v1209 = vmax.f32 %v1138, %v1139
      %1210 = vmax.xlane.f32.xlu0 %v1209
      %v1211 = vpop.xlane.xlu0 %1210
      %v1212 = vmax.f32 %v1140, %v1141
      %1213 = vmax.xlane.f32.xlu0 %v1212
      %v1214 = vpop.xlane.xlu0 %1213
      %v1215 = vmax.f32 %v1142, %v1143
      %1216 = vmax.xlane.f32.xlu0 %v1215
      %v1217 = vpop.xlane.xlu0 %1216
      %v1218 = vmax.f32 %v1144, %v1145
      %1219 = vmax.xlane.f32.xlu0 %v1218
      %v1220 = vpop.xlane.xlu0 %1219
      %v1221 = vmax.f32 %v1146, %v1147
      %1222 = vmax.xlane.f32.xlu0 %v1221
      %v1223 = vpop.xlane.xlu0 %1222
      %v1224 = vmax.f32 %v1148, %v1149
      %1225 = vmax.xlane.f32.xlu0 %v1224
      %v1226 = vpop.xlane.xlu0 %1225
      %v1227 = vmax.f32 %v1150, %v1151
      %1228 = vmax.xlane.f32.xlu0 %v1227
      %v1229 = vpop.xlane.xlu0 %1228
      %v1230 = vmax.f32 %v1152, %v1153
      %1231 = vmax.xlane.f32.xlu0 %v1230
      %v1232 = vpop.xlane.xlu0 %1231
      %v1233 = vmax.f32 %v1154, %v1155
      %1234 = vmax.xlane.f32.xlu0 %v1233
      %v1235 = vpop.xlane.xlu0 %1234
      %v1236 = vmax.f32 %v1156, %v1157
      %1237 = vmax.xlane.f32.xlu0 %v1236
      %v1238 = vpop.xlane.xlu0 %1237
      %v1239 = vmax.f32 %v1158, %v1159
      %1240 = vmax.xlane.f32.xlu0 %v1239
      %v1241 = vpop.xlane.xlu0 %1240
      %v1242 = vmax.f32 %v1160, %v1161
      %1243 = vmax.xlane.f32.xlu0 %v1242
      %v1244 = vpop.xlane.xlu0 %1243
      %v1245 = vmax.f32 %v1162, %v1163
      %1246 = vmax.xlane.f32.xlu0 %v1245
      %v1247 = vpop.xlane.xlu0 %1246
      %v1248 = vmax.f32 %v1164, %v1165
      %1249 = vmax.xlane.f32.xlu0 %v1248
      %v1250 = vpop.xlane.xlu0 %1249
      %v1251 = vmax.f32 %v1166, %v1167
      %1252 = vmax.xlane.f32.xlu0 %v1251
      %v1253 = vpop.xlane.xlu0 %1252
      %v1254 = vmax.f32 %v1168, %v1169
      %1255 = vmax.xlane.f32.xlu0 %v1254
      %v1256 = vpop.xlane.xlu0 %1255
      %v1257 = vmax.f32 %v1170, %v1171
      %1258 = vmax.xlane.f32.xlu0 %v1257
      %v1259 = vpop.xlane.xlu0 %1258
      %v1260 = vmax.f32 %v1172, %v1173
      %1261 = vmax.xlane.f32.xlu0 %v1260
      %v1262 = vpop.xlane.xlu0 %1261
      %v1263 = vmax.f32 %v1174, %v1175
      %1264 = vmax.xlane.f32.xlu0 %v1263
      %v1265 = vpop.xlane.xlu0 %1264
      %v1266 = vmax.f32 %v1176, %v1177
      %1267 = vmax.xlane.f32.xlu0 %v1266
      %v1268 = vpop.xlane.xlu0 %1267
      %v1269 = vmax.f32 %v1178, %v1179
      %1270 = vmax.xlane.f32.xlu0 %v1269
      %v1271 = vpop.xlane.xlu0 %1270
      %v1272 = vmax.f32 %v1180, %v1181
      %1273 = vmax.xlane.f32.xlu0 %v1272
      %v1274 = vpop.xlane.xlu0 %1273
      %v1275 = vmax.f32 %v1182, %v1183
      %1276 = vmax.xlane.f32.xlu0 %v1275
      %v1277 = vpop.xlane.xlu0 %1276
      %v1278 = vmax.f32 %v1184, %v1185
      %1279 = vmax.xlane.f32.xlu0 %v1278
      %v1280 = vpop.xlane.xlu0 %1279
      %v1281 = vmax.f32 %v1186, %v1187
      %1282 = vmax.xlane.f32.xlu0 %v1281
      %v1283 = vpop.xlane.xlu0 %1282
      %v1284 = vsub.f32 %v1124, %v1190
      %v1285 = vsub.f32 %v1125, %v1190
      %v1286 = vsub.f32 %v1126, %v1193
      %v1287 = vsub.f32 %v1127, %v1193
      %v1288 = vsub.f32 %v1128, %v1196
      %v1289 = vsub.f32 %v1129, %v1196
      %v1290 = vsub.f32 %v1130, %v1199
      %v1291 = vsub.f32 %v1131, %v1199
      %v1292 = vsub.f32 %v1132, %v1202
      %v1293 = vsub.f32 %v1133, %v1202
      %v1294 = vsub.f32 %v1134, %v1205
      %v1295 = vsub.f32 %v1135, %v1205
      %v1296 = vsub.f32 %v1136, %v1208
      %v1297 = vsub.f32 %v1137, %v1208
      %v1298 = vsub.f32 %v1138, %v1211
      %v1299 = vsub.f32 %v1139, %v1211
      %v1300 = vsub.f32 %v1140, %v1214
      %v1301 = vsub.f32 %v1141, %v1214
      %v1302 = vsub.f32 %v1142, %v1217
      %v1303 = vsub.f32 %v1143, %v1217
      %v1304 = vsub.f32 %v1144, %v1220
      %v1305 = vsub.f32 %v1145, %v1220
      %v1306 = vsub.f32 %v1146, %v1223
      %v1307 = vsub.f32 %v1147, %v1223
      %v1308 = vsub.f32 %v1148, %v1226
      %v1309 = vsub.f32 %v1149, %v1226
      %v1310 = vsub.f32 %v1150, %v1229
      %v1311 = vsub.f32 %v1151, %v1229
      %v1312 = vsub.f32 %v1152, %v1232
      %v1313 = vsub.f32 %v1153, %v1232
      %v1314 = vsub.f32 %v1154, %v1235
      %v1315 = vsub.f32 %v1155, %v1235
      %v1316 = vsub.f32 %v1156, %v1238
      %v1317 = vsub.f32 %v1157, %v1238
      %v1318 = vsub.f32 %v1158, %v1241
      %v1319 = vsub.f32 %v1159, %v1241
      %v1320 = vsub.f32 %v1160, %v1244
      %v1321 = vsub.f32 %v1161, %v1244
      %v1322 = vsub.f32 %v1162, %v1247
      %v1323 = vsub.f32 %v1163, %v1247
      %v1324 = vsub.f32 %v1164, %v1250
      %v1325 = vsub.f32 %v1165, %v1250
      %v1326 = vsub.f32 %v1166, %v1253
      %v1327 = vsub.f32 %v1167, %v1253
      %v1328 = vsub.f32 %v1168, %v1256
      %v1329 = vsub.f32 %v1169, %v1256
      %v1330 = vsub.f32 %v1170, %v1259
      %v1331 = vsub.f32 %v1171, %v1259
      %v1332 = vsub.f32 %v1172, %v1262
      %v1333 = vsub.f32 %v1173, %v1262
      %v1334 = vsub.f32 %v1174, %v1265
      %v1335 = vsub.f32 %v1175, %v1265
      %v1336 = vsub.f32 %v1176, %v1268
      %v1337 = vsub.f32 %v1177, %v1268
      %v1338 = vsub.f32 %v1178, %v1271
      %v1339 = vsub.f32 %v1179, %v1271
      %v1340 = vsub.f32 %v1180, %v1274
      %v1341 = vsub.f32 %v1181, %v1274
      %v1342 = vsub.f32 %v1182, %v1277
      %v1343 = vsub.f32 %v1183, %v1277
      %v1344 = vsub.f32 %v1184, %v1280
      %v1345 = vsub.f32 %v1185, %v1280
      %v1346 = vsub.f32 %v1186, %v1283
      %v1347 = vsub.f32 %v1187, %v1283
      %v1348 = vmul.f32 %v1284, 1.442695
      %v1349 = vpow.pop %v1348
      %v1350 = vmul.f32 %v1285, 1.442695
      %v1351 = vpow.pop %v1350
      %v1352 = vmul.f32 %v1286, 1.442695
      %v1353 = vpow.pop %v1352
      %v1354 = vmul.f32 %v1287, 1.442695
      %v1355 = vpow.pop %v1354
      %v1356 = vmul.f32 %v1288, 1.442695
      %v1357 = vpow.pop %v1356
      %v1358 = vmul.f32 %v1289, 1.442695
      %v1359 = vpow.pop %v1358
      %v1360 = vmul.f32 %v1290, 1.442695
      %v1361 = vpow.pop %v1360
      %v1362 = vmul.f32 %v1291, 1.442695
      %v1363 = vpow.pop %v1362
      %v1364 = vmul.f32 %v1292, 1.442695
      %v1365 = vpow.pop %v1364
      %v1366 = vmul.f32 %v1293, 1.442695
      %v1367 = vpow.pop %v1366
      %v1368 = vmul.f32 %v1294, 1.442695
      %v1369 = vpow.pop %v1368
      %v1370 = vmul.f32 %v1295, 1.442695
      %v1371 = vpow.pop %v1370
      %v1372 = vmul.f32 %v1296, 1.442695
      %v1373 = vpow.pop %v1372
      %v1374 = vmul.f32 %v1297, 1.442695
      %v1375 = vpow.pop %v1374
      %v1376 = vmul.f32 %v1298, 1.442695
      %v1377 = vpow.pop %v1376
      %v1378 = vmul.f32 %v1299, 1.442695
      %v1379 = vpow.pop %v1378
      %v1380 = vmul.f32 %v1300, 1.442695
      %v1381 = vpow.pop %v1380
      %v1382 = vmul.f32 %v1301, 1.442695
      %v1383 = vpow.pop %v1382
      %v1384 = vmul.f32 %v1302, 1.442695
      %v1385 = vpow.pop %v1384
      %v1386 = vmul.f32 %v1303, 1.442695
      %v1387 = vpow.pop %v1386
      %v1388 = vmul.f32 %v1304, 1.442695
      %v1389 = vpow.pop %v1388
      %v1390 = vmul.f32 %v1305, 1.442695
      %v1391 = vpow.pop %v1390
      %v1392 = vmul.f32 %v1306, 1.442695
      %v1393 = vpow.pop %v1392
      %v1394 = vmul.f32 %v1307, 1.442695
      %v1395 = vpow.pop %v1394
      %v1396 = vmul.f32 %v1308, 1.442695
      %v1397 = vpow.pop %v1396
      %v1398 = vmul.f32 %v1309, 1.442695
      %v1399 = vpow.pop %v1398
      %v1400 = vmul.f32 %v1310, 1.442695
      %v1401 = vpow.pop %v1400
      %v1402 = vmul.f32 %v1311, 1.442695
      %v1403 = vpow.pop %v1402
      %v1404 = vmul.f32 %v1312, 1.442695
      %v1405 = vpow.pop %v1404
      %v1406 = vmul.f32 %v1313, 1.442695
      %v1407 = vpow.pop %v1406
      %v1408 = vmul.f32 %v1314, 1.442695
      %v1409 = vpow.pop %v1408
      %v1410 = vmul.f32 %v1315, 1.442695
      %v1411 = vpow.pop %v1410
      %v1412 = vmul.f32 %v1316, 1.442695
      %v1413 = vpow.pop %v1412
      %v1414 = vmul.f32 %v1317, 1.442695
      %v1415 = vpow.pop %v1414
      %v1416 = vmul.f32 %v1318, 1.442695
      %v1417 = vpow.pop %v1416
      %v1418 = vmul.f32 %v1319, 1.442695
      %v1419 = vpow.pop %v1418
      %v1420 = vmul.f32 %v1320, 1.442695
      %v1421 = vpow.pop %v1420
      %v1422 = vmul.f32 %v1321, 1.442695
      %v1423 = vpow.pop %v1422
      %v1424 = vmul.f32 %v1322, 1.442695
      %v1425 = vpow.pop %v1424
      %v1426 = vmul.f32 %v1323, 1.442695
      %v1427 = vpow.pop %v1426
      %v1428 = vmul.f32 %v1324, 1.442695
      %v1429 = vpow.pop %v1428
      %v1430 = vmul.f32 %v1325, 1.442695
      %v1431 = vpow.pop %v1430
      %v1432 = vmul.f32 %v1326, 1.442695
      %v1433 = vpow.pop %v1432
      %v1434 = vmul.f32 %v1327, 1.442695
      %v1435 = vpow.pop %v1434
      %v1436 = vmul.f32 %v1328, 1.442695
      %v1437 = vpow.pop %v1436
      %v1438 = vmul.f32 %v1329, 1.442695
      %v1439 = vpow.pop %v1438
      %v1440 = vmul.f32 %v1330, 1.442695
      %v1441 = vpow.pop %v1440
      %v1442 = vmul.f32 %v1331, 1.442695
      %v1443 = vpow.pop %v1442
      %v1444 = vmul.f32 %v1332, 1.442695
      %v1445 = vpow.pop %v1444
      %v1446 = vmul.f32 %v1333, 1.442695
      %v1447 = vpow.pop %v1446
      %v1448 = vmul.f32 %v1334, 1.442695
      %v1449 = vpow.pop %v1448
      %v1450 = vmul.f32 %v1335, 1.442695
      %v1451 = vpow.pop %v1450
      %v1452 = vmul.f32 %v1336, 1.442695
      %v1453 = vpow.pop %v1452
      %v1454 = vmul.f32 %v1337, 1.442695
      %v1455 = vpow.pop %v1454
      %v1456 = vmul.f32 %v1338, 1.442695
      %v1457 = vpow.pop %v1456
      %v1458 = vmul.f32 %v1339, 1.442695
      %v1459 = vpow.pop %v1458
      %v1460 = vmul.f32 %v1340, 1.442695
      %v1461 = vpow.pop %v1460
      %v1462 = vmul.f32 %v1341, 1.442695
      %v1463 = vpow.pop %v1462
      %v1464 = vmul.f32 %v1342, 1.442695
      %v1465 = vpow.pop %v1464
      %v1466 = vmul.f32 %v1343, 1.442695
      %v1467 = vpow.pop %v1466
      %v1468 = vmul.f32 %v1344, 1.442695
      %v1469 = vpow.pop %v1468
      %v1470 = vmul.f32 %v1345, 1.442695
      %v1471 = vpow.pop %v1470
      %v1472 = vmul.f32 %v1346, 1.442695
      %v1473 = vpow.pop %v1472
      %v1474 = vmul.f32 %v1347, 1.442695
      %v1475 = vpow.pop %v1474
      %v1476 = vadd.f32 %v1349, %v1351
      %1477 = vadd.xlane.f32.xlu0 %v1476
      %v1478 = vpop.xlane.xlu0 %1477
      %v1479 = vadd.f32 %v1353, %v1355
      %1480 = vadd.xlane.f32.xlu0 %v1479
      %v1481 = vpop.xlane.xlu0 %1480
      %v1482 = vadd.f32 %v1357, %v1359
      %1483 = vadd.xlane.f32.xlu0 %v1482
      %v1484 = vpop.xlane.xlu0 %1483
      %v1485 = vadd.f32 %v1361, %v1363
      %1486 = vadd.xlane.f32.xlu0 %v1485
      %v1487 = vpop.xlane.xlu0 %1486
      %v1488 = vadd.f32 %v1365, %v1367
      %1489 = vadd.xlane.f32.xlu0 %v1488
      %v1490 = vpop.xlane.xlu0 %1489
      %v1491 = vadd.f32 %v1369, %v1371
      %1492 = vadd.xlane.f32.xlu0 %v1491
      %v1493 = vpop.xlane.xlu0 %1492
      %v1494 = vadd.f32 %v1373, %v1375
      %1495 = vadd.xlane.f32.xlu0 %v1494
      %v1496 = vpop.xlane.xlu0 %1495
      %v1497 = vadd.f32 %v1377, %v1379
      %1498 = vadd.xlane.f32.xlu0 %v1497
      %v1499 = vpop.xlane.xlu0 %1498
      %v1500 = vadd.f32 %v1381, %v1383
      %1501 = vadd.xlane.f32.xlu0 %v1500
      %v1502 = vpop.xlane.xlu0 %1501
      %v1503 = vadd.f32 %v1385, %v1387
      %1504 = vadd.xlane.f32.xlu0 %v1503
      %v1505 = vpop.xlane.xlu0 %1504
      %v1506 = vadd.f32 %v1389, %v1391
      %1507 = vadd.xlane.f32.xlu0 %v1506
      %v1508 = vpop.xlane.xlu0 %1507
      %v1509 = vadd.f32 %v1393, %v1395
      %1510 = vadd.xlane.f32.xlu0 %v1509
      %v1511 = vpop.xlane.xlu0 %1510
      %v1512 = vadd.f32 %v1397, %v1399
      %1513 = vadd.xlane.f32.xlu0 %v1512
      %v1514 = vpop.xlane.xlu0 %1513
      %v1515 = vadd.f32 %v1401, %v1403
      %1516 = vadd.xlane.f32.xlu0 %v1515
      %v1517 = vpop.xlane.xlu0 %1516
      %v1518 = vadd.f32 %v1405, %v1407
      %1519 = vadd.xlane.f32.xlu0 %v1518
      %v1520 = vpop.xlane.xlu0 %1519
      %v1521 = vadd.f32 %v1409, %v1411
      %1522 = vadd.xlane.f32.xlu0 %v1521
      %v1523 = vpop.xlane.xlu0 %1522
      %v1524 = vadd.f32 %v1413, %v1415
      %1525 = vadd.xlane.f32.xlu0 %v1524
      %v1526 = vpop.xlane.xlu0 %1525
      %v1527 = vadd.f32 %v1417, %v1419
      %1528 = vadd.xlane.f32.xlu0 %v1527
      %v1529 = vpop.xlane.xlu0 %1528
      %v1530 = vadd.f32 %v1421, %v1423
      %1531 = vadd.xlane.f32.xlu0 %v1530
      %v1532 = vpop.xlane.xlu0 %1531
      %v1533 = vadd.f32 %v1425, %v1427
      %1534 = vadd.xlane.f32.xlu0 %v1533
      %v1535 = vpop.xlane.xlu0 %1534
      %v1536 = vadd.f32 %v1429, %v1431
      %1537 = vadd.xlane.f32.xlu0 %v1536
      %v1538 = vpop.xlane.xlu0 %1537
      %v1539 = vadd.f32 %v1433, %v1435
      %1540 = vadd.xlane.f32.xlu0 %v1539
      %v1541 = vpop.xlane.xlu0 %1540
      %v1542 = vadd.f32 %v1437, %v1439
      %1543 = vadd.xlane.f32.xlu0 %v1542
      %v1544 = vpop.xlane.xlu0 %1543
      %v1545 = vadd.f32 %v1441, %v1443
      %1546 = vadd.xlane.f32.xlu0 %v1545
      %v1547 = vpop.xlane.xlu0 %1546
      %v1548 = vadd.f32 %v1445, %v1447
      %1549 = vadd.xlane.f32.xlu0 %v1548
      %v1550 = vpop.xlane.xlu0 %1549
      %v1551 = vadd.f32 %v1449, %v1451
      %1552 = vadd.xlane.f32.xlu0 %v1551
      %v1553 = vpop.xlane.xlu0 %1552
      %v1554 = vadd.f32 %v1453, %v1455
      %1555 = vadd.xlane.f32.xlu0 %v1554
      %v1556 = vpop.xlane.xlu0 %1555
      %v1557 = vadd.f32 %v1457, %v1459
      %1558 = vadd.xlane.f32.xlu0 %v1557
      %v1559 = vpop.xlane.xlu0 %1558
      %v1560 = vadd.f32 %v1461, %v1463
      %1561 = vadd.xlane.f32.xlu0 %v1560
      %v1562 = vpop.xlane.xlu0 %1561
      %v1563 = vadd.f32 %v1465, %v1467
      %1564 = vadd.xlane.f32.xlu0 %v1563
      %v1565 = vpop.xlane.xlu0 %1564
      %v1566 = vadd.f32 %v1469, %v1471
      %1567 = vadd.xlane.f32.xlu0 %v1566
      %v1568 = vpop.xlane.xlu0 %1567
      %v1569 = vadd.f32 %v1473, %v1475
      %1570 = vadd.xlane.f32.xlu0 %v1569
      %v1571 = vpop.xlane.xlu0 %1570
      %v1572 = vrcp.pop %v1478
      %v1573 = vrcp.pop %v1481
      %v1574 = vrcp.pop %v1484
      %v1575 = vrcp.pop %v1487
      %v1576 = vrcp.pop %v1490
      %v1577 = vrcp.pop %v1493
      %v1578 = vrcp.pop %v1496
      %v1579 = vrcp.pop %v1499
      %v1580 = vrcp.pop %v1502
      %v1581 = vrcp.pop %v1505
      %v1582 = vrcp.pop %v1508
      %v1583 = vrcp.pop %v1511
      %v1584 = vrcp.pop %v1514
      %v1585 = vrcp.pop %v1517
      %v1586 = vrcp.pop %v1520
      %v1587 = vrcp.pop %v1523
      %v1588 = vrcp.pop %v1526
      %v1589 = vrcp.pop %v1529
      %v1590 = vrcp.pop %v1532
      %v1591 = vrcp.pop %v1535
      %v1592 = vrcp.pop %v1538
      %v1593 = vrcp.pop %v1541
      %v1594 = vrcp.pop %v1544
      %v1595 = vrcp.pop %v1547
      %v1596 = vrcp.pop %v1550
      %v1597 = vrcp.pop %v1553
      %v1598 = vrcp.pop %v1556
      %v1599 = vrcp.pop %v1559
      %v1600 = vrcp.pop %v1562
      %v1601 = vrcp.pop %v1565
      %v1602 = vrcp.pop %v1568
      %v1603 = vrcp.pop %v1571
      %v1604 = vmul.f32 %v1349, %v1572
      %v1605 = vmul.f32 %v1351, %v1572
      %v1606 = vmul.f32 %v1353, %v1573
      %v1607 = vmul.f32 %v1355, %v1573
      %v1608 = vmul.f32 %v1357, %v1574
      %v1609 = vmul.f32 %v1359, %v1574
      %v1610 = vmul.f32 %v1361, %v1575
      %v1611 = vmul.f32 %v1363, %v1575
      %v1612 = vmul.f32 %v1365, %v1576
      %v1613 = vmul.f32 %v1367, %v1576
      %v1614 = vmul.f32 %v1369, %v1577
      %v1615 = vmul.f32 %v1371, %v1577
      %v1616 = vmul.f32 %v1373, %v1578
      %v1617 = vmul.f32 %v1375, %v1578
      %v1618 = vmul.f32 %v1377, %v1579
      %v1619 = vmul.f32 %v1379, %v1579
      %v1620 = vmul.f32 %v1381, %v1580
      %v1621 = vmul.f32 %v1383, %v1580
      %v1622 = vmul.f32 %v1385, %v1581
      %v1623 = vmul.f32 %v1387, %v1581
      %v1624 = vmul.f32 %v1389, %v1582
      %v1625 = vmul.f32 %v1391, %v1582
      %v1626 = vmul.f32 %v1393, %v1583
      %v1627 = vmul.f32 %v1395, %v1583
      %v1628 = vmul.f32 %v1397, %v1584
      %v1629 = vmul.f32 %v1399, %v1584
      %v1630 = vmul.f32 %v1401, %v1585
      %v1631 = vmul.f32 %v1403, %v1585
      %v1632 = vmul.f32 %v1405, %v1586
      %v1633 = vmul.f32 %v1407, %v1586
      %v1634 = vmul.f32 %v1409, %v1587
      %v1635 = vmul.f32 %v1411, %v1587
      %v1636 = vmul.f32 %v1413, %v1588
      %v1637 = vmul.f32 %v1415, %v1588
      %v1638 = vmul.f32 %v1417, %v1589
      %v1639 = vmul.f32 %v1419, %v1589
      %v1640 = vmul.f32 %v1421, %v1590
      %v1641 = vmul.f32 %v1423, %v1590
      %v1642 = vmul.f32 %v1425, %v1591
      %v1643 = vmul.f32 %v1427, %v1591
      %v1644 = vmul.f32 %v1429, %v1592
      %v1645 = vmul.f32 %v1431, %v1592
      %v1646 = vmul.f32 %v1433, %v1593
      %v1647 = vmul.f32 %v1435, %v1593
      %v1648 = vmul.f32 %v1437, %v1594
      %v1649 = vmul.f32 %v1439, %v1594
      %v1650 = vmul.f32 %v1441, %v1595
      %v1651 = vmul.f32 %v1443, %v1595
      %v1652 = vmul.f32 %v1445, %v1596
      %v1653 = vmul.f32 %v1447, %v1596
      %v1654 = vmul.f32 %v1449, %v1597
      %v1655 = vmul.f32 %v1451, %v1597
      %v1656 = vmul.f32 %v1453, %v1598
      %v1657 = vmul.f32 %v1455, %v1598
      %v1658 = vmul.f32 %v1457, %v1599
      %v1659 = vmul.f32 %v1459, %v1599
      %v1660 = vmul.f32 %v1461, %v1600
      %v1661 = vmul.f32 %v1463, %v1600
      %v1662 = vmul.f32 %v1465, %v1601
      %v1663 = vmul.f32 %v1467, %v1601
      %v1664 = vmul.f32 %v1469, %v1602
      %v1665 = vmul.f32 %v1471, %v1602
      %v1666 = vmul.f32 %v1473, %v1603
      %v1667 = vmul.f32 %v1475, %v1603
      %v1668 = vpack.c.bf16 %v1606, %v1604
      %v1669 = vpack.c.bf16 %v1607, %v1605
      %v1670 = vpack.c.bf16 %v1610, %v1608
      %v1671 = vpack.c.bf16 %v1611, %v1609
      %v1672 = vpack.c.bf16 %v1614, %v1612
      %v1673 = vpack.c.bf16 %v1615, %v1613
      %v1674 = vpack.c.bf16 %v1618, %v1616
      %v1675 = vpack.c.bf16 %v1619, %v1617
      %v1676 = vpack.c.bf16 %v1622, %v1620
      %v1677 = vpack.c.bf16 %v1623, %v1621
      %v1678 = vpack.c.bf16 %v1626, %v1624
      %v1679 = vpack.c.bf16 %v1627, %v1625
      %v1680 = vpack.c.bf16 %v1630, %v1628
      %v1681 = vpack.c.bf16 %v1631, %v1629
      %v1682 = vpack.c.bf16 %v1634, %v1632
      %v1683 = vpack.c.bf16 %v1635, %v1633
      %v1684 = vpack.c.bf16 %v1638, %v1636
      %v1685 = vpack.c.bf16 %v1639, %v1637
      %v1686 = vpack.c.bf16 %v1642, %v1640
      %v1687 = vpack.c.bf16 %v1643, %v1641
      %v1688 = vpack.c.bf16 %v1646, %v1644
      %v1689 = vpack.c.bf16 %v1647, %v1645
      %v1690 = vpack.c.bf16 %v1650, %v1648
      %v1691 = vpack.c.bf16 %v1651, %v1649
      %v1692 = vpack.c.bf16 %v1654, %v1652
      %v1693 = vpack.c.bf16 %v1655, %v1653
      %v1694 = vpack.c.bf16 %v1658, %v1656
      %v1695 = vpack.c.bf16 %v1659, %v1657
      %v1696 = vpack.c.bf16 %v1662, %v1660
      %v1697 = vpack.c.bf16 %v1663, %v1661
      %v1698 = vpack.c.bf16 %v1666, %v1664
      %v1699 = vpack.c.bf16 %v1667, %v1665
      %1700 = vrot.lane.b32.xlu0 %v786, 96
      %v1701 = vpop.permute.xlu0 %1700
      %1702 = vrot.lane.b32.xlu0 %v787, 96
      %v1703 = vpop.permute.xlu0 %1702
      %1704 = vrot.lane.b32.xlu0 %v788, 96
      %v1705 = vpop.permute.xlu0 %1704
      %1706 = vrot.lane.b32.xlu0 %v789, 96
      %v1707 = vpop.permute.xlu0 %1706
      %1708 = vrot.lane.b32.xlu0 %v790, 96
      %v1709 = vpop.permute.xlu0 %1708
      %1710 = vrot.lane.b32.xlu0 %v791, 96
      %v1711 = vpop.permute.xlu0 %1710
      %1712 = vrot.lane.b32.xlu0 %v792, 96
      %v1713 = vpop.permute.xlu0 %1712
      %1714 = vrot.lane.b32.xlu0 %v793, 96
      %v1715 = vpop.permute.xlu0 %1714
      %1716 = vrot.lane.b32.xlu0 %v794, 96
      %v1717 = vpop.permute.xlu0 %1716
      %1718 = vrot.lane.b32.xlu0 %v795, 96
      %v1719 = vpop.permute.xlu0 %1718
      %1720 = vrot.lane.b32.xlu0 %v796, 96
      %v1721 = vpop.permute.xlu0 %1720
      %1722 = vrot.lane.b32.xlu0 %v797, 96
      %v1723 = vpop.permute.xlu0 %1722
      %1724 = vrot.lane.b32.xlu0 %v798, 96
      %v1725 = vpop.permute.xlu0 %1724
      %1726 = vrot.lane.b32.xlu0 %v799, 96
      %v1727 = vpop.permute.xlu0 %1726
      %1728 = vrot.lane.b32.xlu0 %v800, 96
      %v1729 = vpop.permute.xlu0 %1728
      %1730 = vrot.lane.b32.xlu0 %v801, 96
      %v1731 = vpop.permute.xlu0 %1730
      %1748 = vmatprep.subr.bf16.mxu0 0
      %1749 = vmatpush1.bf16.msra.mxu0 %v1715
      %1750 = vmatprep.subr.bf16.mxu0 0
      %1751 = vmatpush1.bf16.msra.mxu0 %v1713
      %1752 = vmatprep.subr.bf16.mxu0 0
      %1753 = vmatpush1.bf16.msra.mxu0 %v1711
      %1754 = vmatprep.subr.bf16.mxu0 0
      %1755 = vmatpush1.bf16.msra.mxu0 %v1709
      %1756 = vmatprep.subr.bf16.mxu0 0
      %1757 = vmatpush1.bf16.msra.mxu0 %v1707
      %1758 = vmatprep.subr.bf16.mxu0 0
      %1759 = vmatpush1.bf16.msra.mxu0 %v1705
      %1760 = vmatprep.subr.bf16.mxu0 0
      %1761 = vmatpush1.bf16.msra.mxu0 %v1703
      %1762 = vmatprep.subr.bf16.mxu0 0
      %1763 = vmatpush1.bf16.msra.mxu0 %v1701
      %1764 = vmatprep.subr.bf16.mxu0 0
      %1765 = vmatpush2.bf16.msra.mxu0 %v1731
      %1766 = vmatprep.subr.bf16.mxu0 0
      %1767 = vmatpush2.bf16.msra.mxu0 %v1729
      %1768 = vmatprep.subr.bf16.mxu0 0
      %1769 = vmatpush2.bf16.msra.mxu0 %v1727
      %1770 = vmatprep.subr.bf16.mxu0 0
      %1771 = vmatpush2.bf16.msra.mxu0 %v1725
      %1772 = vmatprep.subr.bf16.mxu0 0
      %1773 = vmatpush2.bf16.msra.mxu0 %v1723
      %1774 = vmatprep.subr.bf16.mxu0 0
      %1775 = vmatpush2.bf16.msra.mxu0 %v1721
      %1776 = vmatprep.subr.bf16.mxu0 0
      %1777 = vmatpush2.bf16.msra.mxu0 %v1719
      %1778 = vmatprep.subr.bf16.mxu0 0
      %1779 = vmatpush2.bf16.msra.mxu0 %v1717
      %1780 = vmatprep.mubr.bf16.mxu0 %v1669
      %1781 = vmatmul.mubr.bf16.gmra.mxu0 %v1668
      %v1782 = vpop.f32.mrf.mxu0
      %v1783 = vadd.f32 0.0, %v1782
      %v1784 = vpop.f32.mrf.mxu0
      %v1785 = vpop.f32.mrf.mxu0
      %v1786 = vadd.f32 0.0, %v1785
      %v1787 = vpop.f32.mrf.mxu0
      %1788 = vmatprep.mubr.bf16.mxu0 %v1671
      %1789 = vmatmul.mubr.bf16.gmra.mxu0 %v1670
      %v1790 = vpop.f32.mrf.mxu0
      %v1791 = vadd.f32 0.0, %v1790
      %v1792 = vpop.f32.mrf.mxu0
      %v1793 = vpop.f32.mrf.mxu0
      %v1794 = vadd.f32 0.0, %v1793
      %v1795 = vpop.f32.mrf.mxu0
      %1796 = vmatprep.mubr.bf16.mxu0 %v1673
      %1797 = vmatmul.mubr.bf16.gmra.mxu0 %v1672
      %v1798 = vpop.f32.mrf.mxu0
      %v1799 = vadd.f32 0.0, %v1798
      %v1800 = vpop.f32.mrf.mxu0
      %v1801 = vpop.f32.mrf.mxu0
      %v1802 = vadd.f32 0.0, %v1801
      %v1803 = vpop.f32.mrf.mxu0
      %1804 = vmatprep.mubr.bf16.mxu0 %v1675
      %1805 = vmatmul.mubr.bf16.gmra.mxu0 %v1674
      %v1806 = vpop.f32.mrf.mxu0
      %v1807 = vadd.f32 0.0, %v1806
      %v1808 = vpop.f32.mrf.mxu0
      %v1809 = vpop.f32.mrf.mxu0
      %v1810 = vadd.f32 0.0, %v1809
      %v1811 = vpop.f32.mrf.mxu0
      %1812 = vmatprep.mubr.bf16.mxu0 %v1677
      %1813 = vmatmul.mubr.bf16.gmra.mxu0 %v1676
      %v1814 = vpop.f32.mrf.mxu0
      %v1815 = vadd.f32 0.0, %v1814
      %v1816 = vpop.f32.mrf.mxu0
      %v1817 = vpop.f32.mrf.mxu0
      %v1818 = vadd.f32 0.0, %v1817
      %v1819 = vpop.f32.mrf.mxu0
      %1820 = vmatprep.mubr.bf16.mxu0 %v1679
      %1821 = vmatmul.mubr.bf16.gmra.mxu0 %v1678
      %v1822 = vpop.f32.mrf.mxu0
      %v1823 = vadd.f32 0.0, %v1822
      %v1824 = vpop.f32.mrf.mxu0
      %v1825 = vpop.f32.mrf.mxu0
      %v1826 = vadd.f32 0.0, %v1825
      %v1827 = vpop.f32.mrf.mxu0
      %1828 = vmatprep.mubr.bf16.mxu0 %v1681
      %1829 = vmatmul.mubr.bf16.gmra.mxu0 %v1680
      %v1830 = vpop.f32.mrf.mxu0
      %v1831 = vadd.f32 0.0, %v1830
      %v1832 = vpop.f32.mrf.mxu0
      %v1833 = vpop.f32.mrf.mxu0
      %v1834 = vadd.f32 0.0, %v1833
      %v1835 = vpop.f32.mrf.mxu0
      %1836 = vmatprep.mubr.bf16.mxu0 %v1683
      %1837 = vmatmul.mubr.bf16.gmra.mxu0 %v1682
      %v1838 = vpop.f32.mrf.mxu0
      %v1839 = vadd.f32 0.0, %v1838
      %v1840 = vpop.f32.mrf.mxu0
      %v1841 = vpop.f32.mrf.mxu0
      %v1842 = vadd.f32 0.0, %v1841
      %v1843 = vpop.f32.mrf.mxu0
      %1844 = vmatprep.mubr.bf16.mxu0 %v1685
      %1845 = vmatmul.mubr.bf16.gmra.mxu0 %v1684
      %v1846 = vpop.f32.mrf.mxu0
      %v1847 = vadd.f32 0.0, %v1846
      %v1848 = vpop.f32.mrf.mxu0
      %v1849 = vpop.f32.mrf.mxu0
      %v1850 = vadd.f32 0.0, %v1849
      %v1851 = vpop.f32.mrf.mxu0
      %1852 = vmatprep.mubr.bf16.mxu0 %v1687
      %1853 = vmatmul.mubr.bf16.gmra.mxu0 %v1686
      %v1854 = vpop.f32.mrf.mxu0
      %v1855 = vadd.f32 0.0, %v1854
      %v1856 = vpop.f32.mrf.mxu0
      %v1857 = vpop.f32.mrf.mxu0
      %v1858 = vadd.f32 0.0, %v1857
      %v1859 = vpop.f32.mrf.mxu0
      %1860 = vmatprep.mubr.bf16.mxu0 %v1689
      %1861 = vmatmul.mubr.bf16.gmra.mxu0 %v1688
      %v1862 = vpop.f32.mrf.mxu0
      %v1863 = vadd.f32 0.0, %v1862
      %v1864 = vpop.f32.mrf.mxu0
      %v1865 = vpop.f32.mrf.mxu0
      %v1866 = vadd.f32 0.0, %v1865
      %v1867 = vpop.f32.mrf.mxu0
      %1868 = vmatprep.mubr.bf16.mxu0 %v1691
      %1869 = vmatmul.mubr.bf16.gmra.mxu0 %v1690
      %v1870 = vpop.f32.mrf.mxu0
      %v1871 = vadd.f32 0.0, %v1870
      %v1872 = vpop.f32.mrf.mxu0
      %v1873 = vpop.f32.mrf.mxu0
      %v1874 = vadd.f32 0.0, %v1873
      %v1875 = vpop.f32.mrf.mxu0
      %1876 = vmatprep.mubr.bf16.mxu0 %v1693
      %1877 = vmatmul.mubr.bf16.gmra.mxu0 %v1692
      %v1878 = vpop.f32.mrf.mxu0
      %v1879 = vadd.f32 0.0, %v1878
      %v1880 = vpop.f32.mrf.mxu0
      %v1881 = vpop.f32.mrf.mxu0
      %v1882 = vadd.f32 0.0, %v1881
      %v1883 = vpop.f32.mrf.mxu0
      %1884 = vmatprep.mubr.bf16.mxu0 %v1695
      %1885 = vmatmul.mubr.bf16.gmra.mxu0 %v1694
      %v1886 = vpop.f32.mrf.mxu0
      %v1887 = vadd.f32 0.0, %v1886
      %v1888 = vpop.f32.mrf.mxu0
      %v1889 = vpop.f32.mrf.mxu0
      %v1890 = vadd.f32 0.0, %v1889
      %v1891 = vpop.f32.mrf.mxu0
      %1892 = vmatprep.mubr.bf16.mxu0 %v1697
      %1893 = vmatmul.mubr.bf16.gmra.mxu0 %v1696
      %v1894 = vpop.f32.mrf.mxu0
      %v1895 = vadd.f32 0.0, %v1894
      %v1896 = vpop.f32.mrf.mxu0
      %v1897 = vpop.f32.mrf.mxu0
      %v1898 = vadd.f32 0.0, %v1897
      %v1899 = vpop.f32.mrf.mxu0
      %1900 = vmatprep.mubr.bf16.mxu0 %v1699
      %1901 = vmatmul.mubr.bf16.gmra.mxu0 %v1698
      %v1902 = vpop.f32.mrf.mxu0
      %v1903 = vadd.f32 0.0, %v1902
      %v1904 = vpop.f32.mrf.mxu0
      %v1905 = vpop.f32.mrf.mxu0
      %v1906 = vadd.f32 0.0, %v1905
      %v1907 = vpop.f32.mrf.mxu0
      %1908 = vdwg.mxu0
      %v1909 = vpack.c.bf16 %v1786, %v1783
      %v1910 = vpack.c.bf16 %v1794, %v1791
      %v1911 = vpack.c.bf16 %v1802, %v1799
      %v1912 = vpack.c.bf16 %v1810, %v1807
      %v1913 = vpack.c.bf16 %v1818, %v1815
      %v1914 = vpack.c.bf16 %v1826, %v1823
      %v1915 = vpack.c.bf16 %v1834, %v1831
      %v1916 = vpack.c.bf16 %v1842, %v1839
      %v1917 = vpack.c.bf16 %v1850, %v1847
      %v1918 = vpack.c.bf16 %v1858, %v1855
      %v1919 = vpack.c.bf16 %v1866, %v1863
      %v1920 = vpack.c.bf16 %v1874, %v1871
      %v1921 = vpack.c.bf16 %v1882, %v1879
      %v1922 = vpack.c.bf16 %v1890, %v1887
      %v1923 = vpack.c.bf16 %v1898, %v1895
      %v1924 = vpack.c.bf16 %v1906, %v1903
      %v1925 = vld [vmem:[%s3] sm:$0xf]
      %v1926 = vld [vmem:[%s3 + $0x4] sm:$0xf]
      %v1927 = vld [vmem:[%s3 + $0x8] sm:$0xf]
      %v1928 = vld [vmem:[%s3 + $0xc] sm:$0xf]
      %v1933 = vunpack.c.l.b16 %v1925
      %v1934 = vunpack.c.l.b16 %v1926
      %v1935 = vunpack.c.l.b16 %v1927
      %v1936 = vunpack.c.l.b16 %v1928
      %v1937 = vpack.c.b16 %v1934, %v1933
      %v1938 = vpack.c.b16 %v1936, %v1935
      %vm1941 = vcmask 261120
      %v1943 = vsel %vm1941, %v1909, 0
      %v1946 = vsel %vm1941, %v1910, 0
      %v1949 = vsel %vm1941, %v1911, 0
      %v1952 = vsel %vm1941, %v1912, 0
      %v1955 = vsel %vm1941, %v1913, 0
      %v1958 = vsel %vm1941, %v1914, 0
      %v1961 = vsel %vm1941, %v1915, 0
      %v1964 = vsel %vm1941, %v1916, 0
      %v1967 = vsel %vm1941, %v1917, 0
      %v1970 = vsel %vm1941, %v1918, 0
      %v1973 = vsel %vm1941, %v1919, 0
      %v1976 = vsel %vm1941, %v1920, 0
      %v1979 = vsel %vm1941, %v1921, 0
      %v1982 = vsel %vm1941, %v1922, 0
      %v1985 = vsel %vm1941, %v1923, 0
      %v1988 = vsel %vm1941, %v1924, 0
      %1990 = vmatprep.subr.bf16.mxu0 0
      %1991 = vmatpush1.bf16.msra.mxu0 0
      %1992 = vmatprep.subr.bf16.mxu0 0
      %1993 = vmatpush1.bf16.msra.mxu0 0
      %1994 = vmatprep.subr.bf16.mxu0 0
      %1995 = vmatpush1.bf16.msra.mxu0 0
      %1996 = vmatprep.subr.bf16.mxu0 0
      %1997 = vmatpush1.bf16.msra.mxu0 0
      %1998 = vmatprep.subr.bf16.mxu0 0
      %1999 = vmatpush1.bf16.msra.mxu0 0
      %2000 = vmatprep.subr.bf16.mxu0 0
      %2001 = vmatpush1.bf16.msra.mxu0 0
      %2002 = vmatprep.subr.bf16.mxu0 0
      %2003 = vmatpush1.bf16.msra.mxu0 %v1938
      %2004 = vmatprep.subr.bf16.mxu0 0
      %2005 = vmatpush1.bf16.msra.mxu0 %v1937
      %2006 = vmatprep.subr.bf16.mxu0 0
      %2007 = vmatpush2.bf16.msra.mxu0 0
      %2008 = vmatprep.subr.bf16.mxu0 0
      %2009 = vmatpush2.bf16.msra.mxu0 0
      %2010 = vmatprep.subr.bf16.mxu0 0
      %2011 = vmatpush2.bf16.msra.mxu0 0
      %2012 = vmatprep.subr.bf16.mxu0 0
      %2013 = vmatpush2.bf16.msra.mxu0 0
      %2014 = vmatprep.subr.bf16.mxu0 0
      %2015 = vmatpush2.bf16.msra.mxu0 0
      %2016 = vmatprep.subr.bf16.mxu0 0
      %2017 = vmatpush2.bf16.msra.mxu0 0
      %2018 = vmatprep.subr.bf16.mxu0 0
      %2019 = vmatpush2.bf16.msra.mxu0 0
      %2020 = vmatprep.subr.bf16.mxu0 0
      %2021 = vmatpush2.bf16.msra.mxu0 0
      %2022 = vmatprep.mubr.bf16.mxu0 0
      %2023 = vmatmul.mubr.bf16.gmra.mxu0 %v1943
      %v2024 = vpop.f32.mrf.mxu0
      %v2025 = vadd.f32 0.0, %v2024
      %v2026 = vpop.f32.mrf.mxu0
      %v2027 = vpop.f32.mrf.mxu0
      %v2028 = vadd.f32 0.0, %v2027
      %v2029 = vpop.f32.mrf.mxu0
      %2030 = vmatprep.mubr.bf16.mxu0 0
      %2031 = vmatmul.mubr.bf16.gmra.mxu0 %v1946
      %v2032 = vpop.f32.mrf.mxu0
      %v2033 = vadd.f32 0.0, %v2032
      %v2034 = vpop.f32.mrf.mxu0
      %v2035 = vpop.f32.mrf.mxu0
      %v2036 = vadd.f32 0.0, %v2035
      %v2037 = vpop.f32.mrf.mxu0
      %2038 = vmatprep.mubr.bf16.mxu0 0
      %2039 = vmatmul.mubr.bf16.gmra.mxu0 %v1949
      %v2040 = vpop.f32.mrf.mxu0
      %v2041 = vadd.f32 0.0, %v2040
      %v2042 = vpop.f32.mrf.mxu0
      %v2043 = vpop.f32.mrf.mxu0
      %v2044 = vadd.f32 0.0, %v2043
      %v2045 = vpop.f32.mrf.mxu0
      %2046 = vmatprep.mubr.bf16.mxu0 0
      %2047 = vmatmul.mubr.bf16.gmra.mxu0 %v1952
      %v2048 = vpop.f32.mrf.mxu0
      %v2049 = vadd.f32 0.0, %v2048
      %v2050 = vpop.f32.mrf.mxu0
      %v2051 = vpop.f32.mrf.mxu0
      %v2052 = vadd.f32 0.0, %v2051
      %v2053 = vpop.f32.mrf.mxu0
      %2054 = vmatprep.mubr.bf16.mxu0 0
      %2055 = vmatmul.mubr.bf16.gmra.mxu0 %v1955
      %v2056 = vpop.f32.mrf.mxu0
      %v2057 = vadd.f32 0.0, %v2056
      %v2058 = vpop.f32.mrf.mxu0
      %v2059 = vpop.f32.mrf.mxu0
      %v2060 = vadd.f32 0.0, %v2059
      %v2061 = vpop.f32.mrf.mxu0
      %2062 = vmatprep.mubr.bf16.mxu0 0
      %2063 = vmatmul.mubr.bf16.gmra.mxu0 %v1958
      %v2064 = vpop.f32.mrf.mxu0
      %v2065 = vadd.f32 0.0, %v2064
      %v2066 = vpop.f32.mrf.mxu0
      %v2067 = vpop.f32.mrf.mxu0
      %v2068 = vadd.f32 0.0, %v2067
      %v2069 = vpop.f32.mrf.mxu0
      %2070 = vmatprep.mubr.bf16.mxu0 0
      %2071 = vmatmul.mubr.bf16.gmra.mxu0 %v1961
      %v2072 = vpop.f32.mrf.mxu0
      %v2073 = vadd.f32 0.0, %v2072
      %v2074 = vpop.f32.mrf.mxu0
      %v2075 = vpop.f32.mrf.mxu0
      %v2076 = vadd.f32 0.0, %v2075
      %v2077 = vpop.f32.mrf.mxu0
      %2078 = vmatprep.mubr.bf16.mxu0 0
      %2079 = vmatmul.mubr.bf16.gmra.mxu0 %v1964
      %v2080 = vpop.f32.mrf.mxu0
      %v2081 = vadd.f32 0.0, %v2080
      %v2082 = vpop.f32.mrf.mxu0
      %v2083 = vpop.f32.mrf.mxu0
      %v2084 = vadd.f32 0.0, %v2083
      %v2085 = vpop.f32.mrf.mxu0
      %2086 = vmatprep.mubr.bf16.mxu0 0
      %2087 = vmatmul.mubr.bf16.gmra.mxu0 %v1967
      %v2088 = vpop.f32.mrf.mxu0
      %v2089 = vadd.f32 0.0, %v2088
      %v2090 = vpop.f32.mrf.mxu0
      %v2091 = vpop.f32.mrf.mxu0
      %v2092 = vadd.f32 0.0, %v2091
      %v2093 = vpop.f32.mrf.mxu0
      %2094 = vmatprep.mubr.bf16.mxu0 0
      %2095 = vmatmul.mubr.bf16.gmra.mxu0 %v1970
      %v2096 = vpop.f32.mrf.mxu0
      %v2097 = vadd.f32 0.0, %v2096
      %v2098 = vpop.f32.mrf.mxu0
      %v2099 = vpop.f32.mrf.mxu0
      %v2100 = vadd.f32 0.0, %v2099
      %v2101 = vpop.f32.mrf.mxu0
      %2102 = vmatprep.mubr.bf16.mxu0 0
      %2103 = vmatmul.mubr.bf16.gmra.mxu0 %v1973
      %v2104 = vpop.f32.mrf.mxu0
      %v2105 = vadd.f32 0.0, %v2104
      %v2106 = vpop.f32.mrf.mxu0
      %v2107 = vpop.f32.mrf.mxu0
      %v2108 = vadd.f32 0.0, %v2107
      %v2109 = vpop.f32.mrf.mxu0
      %2110 = vmatprep.mubr.bf16.mxu0 0
      %2111 = vmatmul.mubr.bf16.gmra.mxu0 %v1976
      %v2112 = vpop.f32.mrf.mxu0
      %v2113 = vadd.f32 0.0, %v2112
      %v2114 = vpop.f32.mrf.mxu0
      %v2115 = vpop.f32.mrf.mxu0
      %v2116 = vadd.f32 0.0, %v2115
      %v2117 = vpop.f32.mrf.mxu0
      %2118 = vmatprep.mubr.bf16.mxu0 0
      %2119 = vmatmul.mubr.bf16.gmra.mxu0 %v1979
      %v2120 = vpop.f32.mrf.mxu0
      %v2121 = vadd.f32 0.0, %v2120
      %v2122 = vpop.f32.mrf.mxu0
      %v2123 = vpop.f32.mrf.mxu0
      %v2124 = vadd.f32 0.0, %v2123
      %v2125 = vpop.f32.mrf.mxu0
      %2126 = vmatprep.mubr.bf16.mxu0 0
      %2127 = vmatmul.mubr.bf16.gmra.mxu0 %v1982
      %v2128 = vpop.f32.mrf.mxu0
      %v2129 = vadd.f32 0.0, %v2128
      %v2130 = vpop.f32.mrf.mxu0
      %v2131 = vpop.f32.mrf.mxu0
      %v2132 = vadd.f32 0.0, %v2131
      %v2133 = vpop.f32.mrf.mxu0
      %2134 = vmatprep.mubr.bf16.mxu0 0
      %2135 = vmatmul.mubr.bf16.gmra.mxu0 %v1985
      %v2136 = vpop.f32.mrf.mxu0
      %v2137 = vadd.f32 0.0, %v2136
      %v2138 = vpop.f32.mrf.mxu0
      %v2139 = vpop.f32.mrf.mxu0
      %v2140 = vadd.f32 0.0, %v2139
      %v2141 = vpop.f32.mrf.mxu0
      %2142 = vmatprep.mubr.bf16.mxu0 0
      %2143 = vmatmul.mubr.bf16.gmra.mxu0 %v1988
      %v2144 = vpop.f32.mrf.mxu0
      %v2145 = vadd.f32 0.0, %v2144
      %v2146 = vpop.f32.mrf.mxu0
      %v2147 = vpop.f32.mrf.mxu0
      %v2148 = vadd.f32 0.0, %v2147
      %v2149 = vpop.f32.mrf.mxu0
      %2150 = vdwg.mxu0
      %v2151 = vadd.f32 %v658, %v2025
      %v2152 = vadd.f32 %v659, %v2028
      %v2153 = vadd.f32 %v660, %v2033
      %v2154 = vadd.f32 %v661, %v2036
      %v2155 = vadd.f32 %v662, %v2041
      %v2156 = vadd.f32 %v663, %v2044
      %v2157 = vadd.f32 %v664, %v2049
      %v2158 = vadd.f32 %v665, %v2052
      %v2159 = vadd.f32 %v666, %v2057
      %v2160 = vadd.f32 %v667, %v2060
      %v2161 = vadd.f32 %v668, %v2065
      %v2162 = vadd.f32 %v669, %v2068
      %v2163 = vadd.f32 %v670, %v2073
      %v2164 = vadd.f32 %v671, %v2076
      %v2165 = vadd.f32 %v672, %v2081
      %v2166 = vadd.f32 %v673, %v2084
      %v2167 = vadd.f32 %v674, %v2089
      %v2168 = vadd.f32 %v675, %v2092
      %v2169 = vadd.f32 %v676, %v2097
      %v2170 = vadd.f32 %v677, %v2100
      %v2171 = vadd.f32 %v678, %v2105
      %v2172 = vadd.f32 %v679, %v2108
      %v2173 = vadd.f32 %v680, %v2113
      %v2174 = vadd.f32 %v681, %v2116
      %v2175 = vadd.f32 %v682, %v2121
      %v2176 = vadd.f32 %v683, %v2124
      %v2177 = vadd.f32 %v684, %v2129
      %v2178 = vadd.f32 %v685, %v2132
      %v2179 = vadd.f32 %v686, %v2137
      %v2180 = vadd.f32 %v687, %v2140
      %v2181 = vadd.f32 %v688, %v2145
      %v2182 = vadd.f32 %v689, %v2148
      %2183 = vrot.lane.b32.xlu0 %v786, 64
      %v2184 = vpop.permute.xlu0 %2183
      %2185 = vrot.lane.b32.xlu0 %v787, 64
      %v2186 = vpop.permute.xlu0 %2185
      %2187 = vrot.lane.b32.xlu0 %v788, 64
      %v2188 = vpop.permute.xlu0 %2187
      %2189 = vrot.lane.b32.xlu0 %v789, 64
      %v2190 = vpop.permute.xlu0 %2189
      %2191 = vrot.lane.b32.xlu0 %v790, 64
      %v2192 = vpop.permute.xlu0 %2191
      %2193 = vrot.lane.b32.xlu0 %v791, 64
      %v2194 = vpop.permute.xlu0 %2193
      %2195 = vrot.lane.b32.xlu0 %v792, 64
      %v2196 = vpop.permute.xlu0 %2195
      %2197 = vrot.lane.b32.xlu0 %v793, 64
      %v2198 = vpop.permute.xlu0 %2197
      %2199 = vrot.lane.b32.xlu0 %v794, 64
      %v2200 = vpop.permute.xlu0 %2199
      %2201 = vrot.lane.b32.xlu0 %v795, 64
      %v2202 = vpop.permute.xlu0 %2201
      %2203 = vrot.lane.b32.xlu0 %v796, 64
      %v2204 = vpop.permute.xlu0 %2203
      %2205 = vrot.lane.b32.xlu0 %v797, 64
      %v2206 = vpop.permute.xlu0 %2205
      %2207 = vrot.lane.b32.xlu0 %v798, 64
      %v2208 = vpop.permute.xlu0 %2207
      %2209 = vrot.lane.b32.xlu0 %v799, 64
      %v2210 = vpop.permute.xlu0 %2209
      %2211 = vrot.lane.b32.xlu0 %v800, 64
      %v2212 = vpop.permute.xlu0 %2211
      %2213 = vrot.lane.b32.xlu0 %v801, 64
      %v2214 = vpop.permute.xlu0 %2213
      %2215 = vrot.lane.b32.xlu0 %v786, 48
      %v2216 = vpop.permute.xlu0 %2215
      %2217 = vrot.lane.b32.xlu0 %v787, 48
      %v2218 = vpop.permute.xlu0 %2217
      %2219 = vrot.lane.b32.xlu0 %v788, 48
      %v2220 = vpop.permute.xlu0 %2219
      %2221 = vrot.lane.b32.xlu0 %v789, 48
      %v2222 = vpop.permute.xlu0 %2221
      %2223 = vrot.lane.b32.xlu0 %v790, 48
      %v2224 = vpop.permute.xlu0 %2223
      %2225 = vrot.lane.b32.xlu0 %v791, 48
      %v2226 = vpop.permute.xlu0 %2225
      %2227 = vrot.lane.b32.xlu0 %v792, 48
      %v2228 = vpop.permute.xlu0 %2227
      %2229 = vrot.lane.b32.xlu0 %v793, 48
      %v2230 = vpop.permute.xlu0 %2229
      %2231 = vrot.lane.b32.xlu0 %v794, 48
      %v2232 = vpop.permute.xlu0 %2231
      %2233 = vrot.lane.b32.xlu0 %v795, 48
      %v2234 = vpop.permute.xlu0 %2233
      %2235 = vrot.lane.b32.xlu0 %v796, 48
      %v2236 = vpop.permute.xlu0 %2235
      %2237 = vrot.lane.b32.xlu0 %v797, 48
      %v2238 = vpop.permute.xlu0 %2237
      %2239 = vrot.lane.b32.xlu0 %v798, 48
      %v2240 = vpop.permute.xlu0 %2239
      %2241 = vrot.lane.b32.xlu0 %v799, 48
      %v2242 = vpop.permute.xlu0 %2241
      %2243 = vrot.lane.b32.xlu0 %v800, 48
      %v2244 = vpop.permute.xlu0 %2243
      %2245 = vrot.lane.b32.xlu0 %v801, 48
      %v2246 = vpop.permute.xlu0 %2245
      %v2248 = vsel %vm834, %v2184, 0
      %v2251 = vsel %vm834, %v2186, 0
      %v2254 = vsel %vm834, %v2188, 0
      %v2257 = vsel %vm834, %v2190, 0
      %v2260 = vsel %vm834, %v2192, 0
      %v2263 = vsel %vm834, %v2194, 0
      %v2266 = vsel %vm834, %v2196, 0
      %v2269 = vsel %vm834, %v2198, 0
      %v2272 = vsel %vm834, %v2200, 0
      %v2275 = vsel %vm834, %v2202, 0
      %v2278 = vsel %vm834, %v2204, 0
      %v2281 = vsel %vm834, %v2206, 0
      %v2284 = vsel %vm834, %v2208, 0
      %v2287 = vsel %vm834, %v2210, 0
      %v2290 = vsel %vm834, %v2212, 0
      %v2293 = vsel %vm834, %v2214, 0
      %v2296 = vsel %vm834, %v2216, 0
      %v2299 = vsel %vm834, %v2218, 0
      %v2302 = vsel %vm834, %v2220, 0
      %v2305 = vsel %vm834, %v2222, 0
      %v2308 = vsel %vm834, %v2224, 0
      %v2311 = vsel %vm834, %v2226, 0
      %v2314 = vsel %vm834, %v2228, 0
      %v2317 = vsel %vm834, %v2230, 0
      %v2320 = vsel %vm834, %v2232, 0
      %v2323 = vsel %vm834, %v2234, 0
      %v2326 = vsel %vm834, %v2236, 0
      %v2329 = vsel %vm834, %v2238, 0
      %v2332 = vsel %vm834, %v2240, 0
      %v2335 = vsel %vm834, %v2242, 0
      %v2338 = vsel %vm834, %v2244, 0
      %v2341 = vsel %vm834, %v2246, 0
      %2343 = vmatprep.subr.bf16.mxu0 0
      %2344 = vmatpush1.bf16.xpose.msra.mxu0 %v2317
      %2345 = vmatprep.subr.bf16.mxu0 0
      %2346 = vmatpush1.bf16.xpose.msra.mxu0 %v2314
      %2347 = vmatprep.subr.bf16.mxu0 0
      %2348 = vmatpush1.bf16.xpose.msra.mxu0 %v2311
      %2349 = vmatprep.subr.bf16.mxu0 0
      %2350 = vmatpush1.bf16.xpose.msra.mxu0 %v2308
      %2351 = vmatprep.subr.bf16.mxu0 0
      %2352 = vmatpush1.bf16.xpose.msra.mxu0 %v2305
      %2353 = vmatprep.subr.bf16.mxu0 0
      %2354 = vmatpush1.bf16.xpose.msra.mxu0 %v2302
      %2355 = vmatprep.subr.bf16.mxu0 0
      %2356 = vmatpush1.bf16.xpose.msra.mxu0 %v2299
      %2357 = vmatprep.subr.bf16.mxu0 0
      %2358 = vmatpush1.bf16.xpose.msra.mxu0 %v2296
      %2359 = vmatprep.subr.bf16.mxu0 0
      %2360 = vmatpush2.bf16.xpose.msra.mxu0 %v2341
      %2361 = vmatprep.subr.bf16.mxu0 0
      %2362 = vmatpush2.bf16.xpose.msra.mxu0 %v2338
      %2363 = vmatprep.subr.bf16.mxu0 0
      %2364 = vmatpush2.bf16.xpose.msra.mxu0 %v2335
      %2365 = vmatprep.subr.bf16.mxu0 0
      %2366 = vmatpush2.bf16.xpose.msra.mxu0 %v2332
      %2367 = vmatprep.subr.bf16.mxu0 0
      %2368 = vmatpush2.bf16.xpose.msra.mxu0 %v2329
      %2369 = vmatprep.subr.bf16.mxu0 0
      %2370 = vmatpush2.bf16.xpose.msra.mxu0 %v2326
      %2371 = vmatprep.subr.bf16.mxu0 0
      %2372 = vmatpush2.bf16.xpose.msra.mxu0 %v2323
      %2373 = vmatprep.subr.bf16.mxu0 0
      %2374 = vmatpush2.bf16.xpose.msra.mxu0 %v2320
      %2375 = vmatprep.mubr.bf16.mxu0 0
      %2376 = vmatmul.mubr.bf16.gmra.mxu0 %v2248
      %v2377 = vpop.f32.mrf.mxu0
      %v2378 = vadd.f32 0.0, %v2377
      %v2379 = vpop.f32.mrf.mxu0
      %v2380 = vadd.f32 0.0, %v2379
      %v2381 = vpop.f32.mrf.mxu0
      %v2382 = vadd.f32 0.0, %v2381
      %v2383 = vpop.f32.mrf.mxu0
      %v2384 = vadd.f32 0.0, %v2383
      %2385 = vmatprep.mubr.bf16.mxu0 0
      %2386 = vmatmul.mubr.bf16.gmra.mxu0 %v2251
      %v2387 = vpop.f32.mrf.mxu0
      %v2388 = vadd.f32 0.0, %v2387
      %v2389 = vpop.f32.mrf.mxu0
      %v2390 = vadd.f32 0.0, %v2389
      %v2391 = vpop.f32.mrf.mxu0
      %v2392 = vadd.f32 0.0, %v2391
      %v2393 = vpop.f32.mrf.mxu0
      %v2394 = vadd.f32 0.0, %v2393
      %2395 = vmatprep.mubr.bf16.mxu0 0
      %2396 = vmatmul.mubr.bf16.gmra.mxu0 %v2254
      %v2397 = vpop.f32.mrf.mxu0
      %v2398 = vadd.f32 0.0, %v2397
      %v2399 = vpop.f32.mrf.mxu0
      %v2400 = vadd.f32 0.0, %v2399
      %v2401 = vpop.f32.mrf.mxu0
      %v2402 = vadd.f32 0.0, %v2401
      %v2403 = vpop.f32.mrf.mxu0
      %v2404 = vadd.f32 0.0, %v2403
      %2405 = vmatprep.mubr.bf16.mxu0 0
      %2406 = vmatmul.mubr.bf16.gmra.mxu0 %v2257
      %v2407 = vpop.f32.mrf.mxu0
      %v2408 = vadd.f32 0.0, %v2407
      %v2409 = vpop.f32.mrf.mxu0
      %v2410 = vadd.f32 0.0, %v2409
      %v2411 = vpop.f32.mrf.mxu0
      %v2412 = vadd.f32 0.0, %v2411
      %v2413 = vpop.f32.mrf.mxu0
      %v2414 = vadd.f32 0.0, %v2413
      %2415 = vmatprep.mubr.bf16.mxu0 0
      %2416 = vmatmul.mubr.bf16.gmra.mxu0 %v2260
      %v2417 = vpop.f32.mrf.mxu0
      %v2418 = vadd.f32 0.0, %v2417
      %v2419 = vpop.f32.mrf.mxu0
      %v2420 = vadd.f32 0.0, %v2419
      %v2421 = vpop.f32.mrf.mxu0
      %v2422 = vadd.f32 0.0, %v2421
      %v2423 = vpop.f32.mrf.mxu0
      %v2424 = vadd.f32 0.0, %v2423
      %2425 = vmatprep.mubr.bf16.mxu0 0
      %2426 = vmatmul.mubr.bf16.gmra.mxu0 %v2263
      %v2427 = vpop.f32.mrf.mxu0
      %v2428 = vadd.f32 0.0, %v2427
      %v2429 = vpop.f32.mrf.mxu0
      %v2430 = vadd.f32 0.0, %v2429
      %v2431 = vpop.f32.mrf.mxu0
      %v2432 = vadd.f32 0.0, %v2431
      %v2433 = vpop.f32.mrf.mxu0
      %v2434 = vadd.f32 0.0, %v2433
      %2435 = vmatprep.mubr.bf16.mxu0 0
      %2436 = vmatmul.mubr.bf16.gmra.mxu0 %v2266
      %v2437 = vpop.f32.mrf.mxu0
      %v2438 = vadd.f32 0.0, %v2437
      %v2439 = vpop.f32.mrf.mxu0
      %v2440 = vadd.f32 0.0, %v2439
      %v2441 = vpop.f32.mrf.mxu0
      %v2442 = vadd.f32 0.0, %v2441
      %v2443 = vpop.f32.mrf.mxu0
      %v2444 = vadd.f32 0.0, %v2443
      %2445 = vmatprep.mubr.bf16.mxu0 0
      %2446 = vmatmul.mubr.bf16.gmra.mxu0 %v2269
      %v2447 = vpop.f32.mrf.mxu0
      %v2448 = vadd.f32 0.0, %v2447
      %v2449 = vpop.f32.mrf.mxu0
      %v2450 = vadd.f32 0.0, %v2449
      %v2451 = vpop.f32.mrf.mxu0
      %v2452 = vadd.f32 0.0, %v2451
      %v2453 = vpop.f32.mrf.mxu0
      %v2454 = vadd.f32 0.0, %v2453
      %2455 = vmatprep.mubr.bf16.mxu0 0
      %2456 = vmatmul.mubr.bf16.gmra.mxu0 %v2272
      %v2457 = vpop.f32.mrf.mxu0
      %v2458 = vadd.f32 0.0, %v2457
      %v2459 = vpop.f32.mrf.mxu0
      %v2460 = vadd.f32 0.0, %v2459
      %v2461 = vpop.f32.mrf.mxu0
      %v2462 = vadd.f32 0.0, %v2461
      %v2463 = vpop.f32.mrf.mxu0
      %v2464 = vadd.f32 0.0, %v2463
      %2465 = vmatprep.mubr.bf16.mxu0 0
      %2466 = vmatmul.mubr.bf16.gmra.mxu0 %v2275
      %v2467 = vpop.f32.mrf.mxu0
      %v2468 = vadd.f32 0.0, %v2467
      %v2469 = vpop.f32.mrf.mxu0
      %v2470 = vadd.f32 0.0, %v2469
      %v2471 = vpop.f32.mrf.mxu0
      %v2472 = vadd.f32 0.0, %v2471
      %v2473 = vpop.f32.mrf.mxu0
      %v2474 = vadd.f32 0.0, %v2473
      %2475 = vmatprep.mubr.bf16.mxu0 0
      %2476 = vmatmul.mubr.bf16.gmra.mxu0 %v2278
      %v2477 = vpop.f32.mrf.mxu0
      %v2478 = vadd.f32 0.0, %v2477
      %v2479 = vpop.f32.mrf.mxu0
      %v2480 = vadd.f32 0.0, %v2479
      %v2481 = vpop.f32.mrf.mxu0
      %v2482 = vadd.f32 0.0, %v2481
      %v2483 = vpop.f32.mrf.mxu0
      %v2484 = vadd.f32 0.0, %v2483
      %2485 = vmatprep.mubr.bf16.mxu0 0
      %2486 = vmatmul.mubr.bf16.gmra.mxu0 %v2281
      %v2487 = vpop.f32.mrf.mxu0
      %v2488 = vadd.f32 0.0, %v2487
      %v2489 = vpop.f32.mrf.mxu0
      %v2490 = vadd.f32 0.0, %v2489
      %v2491 = vpop.f32.mrf.mxu0
      %v2492 = vadd.f32 0.0, %v2491
      %v2493 = vpop.f32.mrf.mxu0
      %v2494 = vadd.f32 0.0, %v2493
      %2495 = vmatprep.mubr.bf16.mxu0 0
      %2496 = vmatmul.mubr.bf16.gmra.mxu0 %v2284
      %v2497 = vpop.f32.mrf.mxu0
      %v2498 = vadd.f32 0.0, %v2497
      %v2499 = vpop.f32.mrf.mxu0
      %v2500 = vadd.f32 0.0, %v2499
      %v2501 = vpop.f32.mrf.mxu0
      %v2502 = vadd.f32 0.0, %v2501
      %v2503 = vpop.f32.mrf.mxu0
      %v2504 = vadd.f32 0.0, %v2503
      %2505 = vmatprep.mubr.bf16.mxu0 0
      %2506 = vmatmul.mubr.bf16.gmra.mxu0 %v2287
      %v2507 = vpop.f32.mrf.mxu0
      %v2508 = vadd.f32 0.0, %v2507
      %v2509 = vpop.f32.mrf.mxu0
      %v2510 = vadd.f32 0.0, %v2509
      %v2511 = vpop.f32.mrf.mxu0
      %v2512 = vadd.f32 0.0, %v2511
      %v2513 = vpop.f32.mrf.mxu0
      %v2514 = vadd.f32 0.0, %v2513
      %2515 = vmatprep.mubr.bf16.mxu0 0
      %2516 = vmatmul.mubr.bf16.gmra.mxu0 %v2290
      %v2517 = vpop.f32.mrf.mxu0
      %v2518 = vadd.f32 0.0, %v2517
      %v2519 = vpop.f32.mrf.mxu0
      %v2520 = vadd.f32 0.0, %v2519
      %v2521 = vpop.f32.mrf.mxu0
      %v2522 = vadd.f32 0.0, %v2521
      %v2523 = vpop.f32.mrf.mxu0
      %v2524 = vadd.f32 0.0, %v2523
      %2525 = vmatprep.mubr.bf16.mxu0 0
      %2526 = vmatmul.mubr.bf16.gmra.mxu0 %v2293
      %v2527 = vpop.f32.mrf.mxu0
      %v2528 = vadd.f32 0.0, %v2527
      %v2529 = vpop.f32.mrf.mxu0
      %v2530 = vadd.f32 0.0, %v2529
      %v2531 = vpop.f32.mrf.mxu0
      %v2532 = vadd.f32 0.0, %v2531
      %v2533 = vpop.f32.mrf.mxu0
      %v2534 = vadd.f32 0.0, %v2533
      %2535 = vdwg.mxu0
      %v2536 = vmul.f32 %v2378, 0.25
      %v2537 = vmul.f32 %v2380, 0.25
      %v2538 = vmul.f32 %v2382, 0.25
      %v2539 = vmul.f32 %v2384, 0.25
      %v2540 = vmul.f32 %v2388, 0.25
      %v2541 = vmul.f32 %v2390, 0.25
      %v2542 = vmul.f32 %v2392, 0.25
      %v2543 = vmul.f32 %v2394, 0.25
      %v2544 = vmul.f32 %v2398, 0.25
      %v2545 = vmul.f32 %v2400, 0.25
      %v2546 = vmul.f32 %v2402, 0.25
      %v2547 = vmul.f32 %v2404, 0.25
      %v2548 = vmul.f32 %v2408, 0.25
      %v2549 = vmul.f32 %v2410, 0.25
      %v2550 = vmul.f32 %v2412, 0.25
      %v2551 = vmul.f32 %v2414, 0.25
      %v2552 = vmul.f32 %v2418, 0.25
      %v2553 = vmul.f32 %v2420, 0.25
      %v2554 = vmul.f32 %v2422, 0.25
      %v2555 = vmul.f32 %v2424, 0.25
      %v2556 = vmul.f32 %v2428, 0.25
      %v2557 = vmul.f32 %v2430, 0.25
      %v2558 = vmul.f32 %v2432, 0.25
      %v2559 = vmul.f32 %v2434, 0.25
      %v2560 = vmul.f32 %v2438, 0.25
      %v2561 = vmul.f32 %v2440, 0.25
      %v2562 = vmul.f32 %v2442, 0.25
      %v2563 = vmul.f32 %v2444, 0.25
      %v2564 = vmul.f32 %v2448, 0.25
      %v2565 = vmul.f32 %v2450, 0.25
      %v2566 = vmul.f32 %v2452, 0.25
      %v2567 = vmul.f32 %v2454, 0.25
      %v2568 = vmul.f32 %v2458, 0.25
      %v2569 = vmul.f32 %v2460, 0.25
      %v2570 = vmul.f32 %v2462, 0.25
      %v2571 = vmul.f32 %v2464, 0.25
      %v2572 = vmul.f32 %v2468, 0.25
      %v2573 = vmul.f32 %v2470, 0.25
      %v2574 = vmul.f32 %v2472, 0.25
      %v2575 = vmul.f32 %v2474, 0.25
      %v2576 = vmul.f32 %v2478, 0.25
      %v2577 = vmul.f32 %v2480, 0.25
      %v2578 = vmul.f32 %v2482, 0.25
      %v2579 = vmul.f32 %v2484, 0.25
      %v2580 = vmul.f32 %v2488, 0.25
      %v2581 = vmul.f32 %v2490, 0.25
      %v2582 = vmul.f32 %v2492, 0.25
      %v2583 = vmul.f32 %v2494, 0.25
      %v2584 = vmul.f32 %v2498, 0.25
      %v2585 = vmul.f32 %v2500, 0.25
      %v2586 = vmul.f32 %v2502, 0.25
      %v2587 = vmul.f32 %v2504, 0.25
      %v2588 = vmul.f32 %v2508, 0.25
      %v2589 = vmul.f32 %v2510, 0.25
      %v2590 = vmul.f32 %v2512, 0.25
      %v2591 = vmul.f32 %v2514, 0.25
      %v2592 = vmul.f32 %v2518, 0.25
      %v2593 = vmul.f32 %v2520, 0.25
      %v2594 = vmul.f32 %v2522, 0.25
      %v2595 = vmul.f32 %v2524, 0.25
      %v2596 = vmul.f32 %v2528, 0.25
      %v2597 = vmul.f32 %v2530, 0.25
      %v2598 = vmul.f32 %v2532, 0.25
      %v2599 = vmul.f32 %v2534, 0.25
      %v2600 = vmax.f32 %v2536, %v2537
      %2601 = vmax.xlane.f32.xlu0 %v2600
      %v2602 = vpop.xlane.xlu0 %2601
      %v2603 = vmax.f32 %v2538, %v2539
      %2604 = vmax.xlane.f32.xlu0 %v2603
      %v2605 = vpop.xlane.xlu0 %2604
      %v2606 = vmax.f32 %v2540, %v2541
      %2607 = vmax.xlane.f32.xlu0 %v2606
      %v2608 = vpop.xlane.xlu0 %2607
      %v2609 = vmax.f32 %v2542, %v2543
      %2610 = vmax.xlane.f32.xlu0 %v2609
      %v2611 = vpop.xlane.xlu0 %2610
      %v2612 = vmax.f32 %v2544, %v2545
      %2613 = vmax.xlane.f32.xlu0 %v2612
      %v2614 = vpop.xlane.xlu0 %2613
      %v2615 = vmax.f32 %v2546, %v2547
      %2616 = vmax.xlane.f32.xlu0 %v2615
      %v2617 = vpop.xlane.xlu0 %2616
      %v2618 = vmax.f32 %v2548, %v2549
      %2619 = vmax.xlane.f32.xlu0 %v2618
      %v2620 = vpop.xlane.xlu0 %2619
      %v2621 = vmax.f32 %v2550, %v2551
      %2622 = vmax.xlane.f32.xlu0 %v2621
      %v2623 = vpop.xlane.xlu0 %2622
      %v2624 = vmax.f32 %v2552, %v2553
      %2625 = vmax.xlane.f32.xlu0 %v2624
      %v2626 = vpop.xlane.xlu0 %2625
      %v2627 = vmax.f32 %v2554, %v2555
      %2628 = vmax.xlane.f32.xlu0 %v2627
      %v2629 = vpop.xlane.xlu0 %2628
      %v2630 = vmax.f32 %v2556, %v2557
      %2631 = vmax.xlane.f32.xlu0 %v2630
      %v2632 = vpop.xlane.xlu0 %2631
      %v2633 = vmax.f32 %v2558, %v2559
      %2634 = vmax.xlane.f32.xlu0 %v2633
      %v2635 = vpop.xlane.xlu0 %2634
      %v2636 = vmax.f32 %v2560, %v2561
      %2637 = vmax.xlane.f32.xlu0 %v2636
      %v2638 = vpop.xlane.xlu0 %2637
      %v2639 = vmax.f32 %v2562, %v2563
      %2640 = vmax.xlane.f32.xlu0 %v2639
      %v2641 = vpop.xlane.xlu0 %2640
      %v2642 = vmax.f32 %v2564, %v2565
      %2643 = vmax.xlane.f32.xlu0 %v2642
      %v2644 = vpop.xlane.xlu0 %2643
      %v2645 = vmax.f32 %v2566, %v2567
      %2646 = vmax.xlane.f32.xlu0 %v2645
      %v2647 = vpop.xlane.xlu0 %2646
      %v2648 = vmax.f32 %v2568, %v2569
      %2649 = vmax.xlane.f32.xlu0 %v2648
      %v2650 = vpop.xlane.xlu0 %2649
      %v2651 = vmax.f32 %v2570, %v2571
      %2652 = vmax.xlane.f32.xlu0 %v2651
      %v2653 = vpop.xlane.xlu0 %2652
      %v2654 = vmax.f32 %v2572, %v2573
      %2655 = vmax.xlane.f32.xlu0 %v2654
      %v2656 = vpop.xlane.xlu0 %2655
      %v2657 = vmax.f32 %v2574, %v2575
      %2658 = vmax.xlane.f32.xlu0 %v2657
      %v2659 = vpop.xlane.xlu0 %2658
      %v2660 = vmax.f32 %v2576, %v2577
      %2661 = vmax.xlane.f32.xlu0 %v2660
      %v2662 = vpop.xlane.xlu0 %2661
      %v2663 = vmax.f32 %v2578, %v2579
      %2664 = vmax.xlane.f32.xlu0 %v2663
      %v2665 = vpop.xlane.xlu0 %2664
      %v2666 = vmax.f32 %v2580, %v2581
      %2667 = vmax.xlane.f32.xlu0 %v2666
      %v2668 = vpop.xlane.xlu0 %2667
      %v2669 = vmax.f32 %v2582, %v2583
      %2670 = vmax.xlane.f32.xlu0 %v2669
      %v2671 = vpop.xlane.xlu0 %2670
      %v2672 = vmax.f32 %v2584, %v2585
      %2673 = vmax.xlane.f32.xlu0 %v2672
      %v2674 = vpop.xlane.xlu0 %2673
      %v2675 = vmax.f32 %v2586, %v2587
      %2676 = vmax.xlane.f32.xlu0 %v2675
      %v2677 = vpop.xlane.xlu0 %2676
      %v2678 = vmax.f32 %v2588, %v2589
      %2679 = vmax.xlane.f32.xlu0 %v2678
      %v2680 = vpop.xlane.xlu0 %2679
      %v2681 = vmax.f32 %v2590, %v2591
      %2682 = vmax.xlane.f32.xlu0 %v2681
      %v2683 = vpop.xlane.xlu0 %2682
      %v2684 = vmax.f32 %v2592, %v2593
      %2685 = vmax.xlane.f32.xlu0 %v2684
      %v2686 = vpop.xlane.xlu0 %2685
      %v2687 = vmax.f32 %v2594, %v2595
      %2688 = vmax.xlane.f32.xlu0 %v2687
      %v2689 = vpop.xlane.xlu0 %2688
      %v2690 = vmax.f32 %v2596, %v2597
      %2691 = vmax.xlane.f32.xlu0 %v2690
      %v2692 = vpop.xlane.xlu0 %2691
      %v2693 = vmax.f32 %v2598, %v2599
      %2694 = vmax.xlane.f32.xlu0 %v2693
      %v2695 = vpop.xlane.xlu0 %2694
      %v2696 = vsub.f32 %v2536, %v2602
      %v2697 = vsub.f32 %v2537, %v2602
      %v2698 = vsub.f32 %v2538, %v2605
      %v2699 = vsub.f32 %v2539, %v2605
      %v2700 = vsub.f32 %v2540, %v2608
      %v2701 = vsub.f32 %v2541, %v2608
      %v2702 = vsub.f32 %v2542, %v2611
      %v2703 = vsub.f32 %v2543, %v2611
      %v2704 = vsub.f32 %v2544, %v2614
      %v2705 = vsub.f32 %v2545, %v2614
      %v2706 = vsub.f32 %v2546, %v2617
      %v2707 = vsub.f32 %v2547, %v2617
      %v2708 = vsub.f32 %v2548, %v2620
      %v2709 = vsub.f32 %v2549, %v2620
      %v2710 = vsub.f32 %v2550, %v2623
      %v2711 = vsub.f32 %v2551, %v2623
      %v2712 = vsub.f32 %v2552, %v2626
      %v2713 = vsub.f32 %v2553, %v2626
      %v2714 = vsub.f32 %v2554, %v2629
      %v2715 = vsub.f32 %v2555, %v2629
      %v2716 = vsub.f32 %v2556, %v2632
      %v2717 = vsub.f32 %v2557, %v2632
      %v2718 = vsub.f32 %v2558, %v2635
      %v2719 = vsub.f32 %v2559, %v2635
      %v2720 = vsub.f32 %v2560, %v2638
      %v2721 = vsub.f32 %v2561, %v2638
      %v2722 = vsub.f32 %v2562, %v2641
      %v2723 = vsub.f32 %v2563, %v2641
      %v2724 = vsub.f32 %v2564, %v2644
      %v2725 = vsub.f32 %v2565, %v2644
      %v2726 = vsub.f32 %v2566, %v2647
      %v2727 = vsub.f32 %v2567, %v2647
      %v2728 = vsub.f32 %v2568, %v2650
      %v2729 = vsub.f32 %v2569, %v2650
      %v2730 = vsub.f32 %v2570, %v2653
      %v2731 = vsub.f32 %v2571, %v2653
      %v2732 = vsub.f32 %v2572, %v2656
      %v2733 = vsub.f32 %v2573, %v2656
      %v2734 = vsub.f32 %v2574, %v2659
      %v2735 = vsub.f32 %v2575, %v2659
      %v2736 = vsub.f32 %v2576, %v2662
      %v2737 = vsub.f32 %v2577, %v2662
      %v2738 = vsub.f32 %v2578, %v2665
      %v2739 = vsub.f32 %v2579, %v2665
      %v2740 = vsub.f32 %v2580, %v2668
      %v2741 = vsub.f32 %v2581, %v2668
      %v2742 = vsub.f32 %v2582, %v2671
      %v2743 = vsub.f32 %v2583, %v2671
      %v2744 = vsub.f32 %v2584, %v2674
      %v2745 = vsub.f32 %v2585, %v2674
      %v2746 = vsub.f32 %v2586, %v2677
      %v2747 = vsub.f32 %v2587, %v2677
      %v2748 = vsub.f32 %v2588, %v2680
      %v2749 = vsub.f32 %v2589, %v2680
      %v2750 = vsub.f32 %v2590, %v2683
      %v2751 = vsub.f32 %v2591, %v2683
      %v2752 = vsub.f32 %v2592, %v2686
      %v2753 = vsub.f32 %v2593, %v2686
      %v2754 = vsub.f32 %v2594, %v2689
      %v2755 = vsub.f32 %v2595, %v2689
      %v2756 = vsub.f32 %v2596, %v2692
      %v2757 = vsub.f32 %v2597, %v2692
      %v2758 = vsub.f32 %v2598, %v2695
      %v2759 = vsub.f32 %v2599, %v2695
      %v2760 = vmul.f32 %v2696, 1.442695
      %v2761 = vpow.pop %v2760
      %v2762 = vmul.f32 %v2697, 1.442695
      %v2763 = vpow.pop %v2762
      %v2764 = vmul.f32 %v2698, 1.442695
      %v2765 = vpow.pop %v2764
      %v2766 = vmul.f32 %v2699, 1.442695
      %v2767 = vpow.pop %v2766
      %v2768 = vmul.f32 %v2700, 1.442695
      %v2769 = vpow.pop %v2768
      %v2770 = vmul.f32 %v2701, 1.442695
      %v2771 = vpow.pop %v2770
      %v2772 = vmul.f32 %v2702, 1.442695
      %v2773 = vpow.pop %v2772
      %v2774 = vmul.f32 %v2703, 1.442695
      %v2775 = vpow.pop %v2774
      %v2776 = vmul.f32 %v2704, 1.442695
      %v2777 = vpow.pop %v2776
      %v2778 = vmul.f32 %v2705, 1.442695
      %v2779 = vpow.pop %v2778
      %v2780 = vmul.f32 %v2706, 1.442695
      %v2781 = vpow.pop %v2780
      %v2782 = vmul.f32 %v2707, 1.442695
      %v2783 = vpow.pop %v2782
      %v2784 = vmul.f32 %v2708, 1.442695
      %v2785 = vpow.pop %v2784
      %v2786 = vmul.f32 %v2709, 1.442695
      %v2787 = vpow.pop %v2786
      %v2788 = vmul.f32 %v2710, 1.442695
      %v2789 = vpow.pop %v2788
      %v2790 = vmul.f32 %v2711, 1.442695
      %v2791 = vpow.pop %v2790
      %v2792 = vmul.f32 %v2712, 1.442695
      %v2793 = vpow.pop %v2792
      %v2794 = vmul.f32 %v2713, 1.442695
      %v2795 = vpow.pop %v2794
      %v2796 = vmul.f32 %v2714, 1.442695
      %v2797 = vpow.pop %v2796
      %v2798 = vmul.f32 %v2715, 1.442695
      %v2799 = vpow.pop %v2798
      %v2800 = vmul.f32 %v2716, 1.442695
      %v2801 = vpow.pop %v2800
      %v2802 = vmul.f32 %v2717, 1.442695
      %v2803 = vpow.pop %v2802
      %v2804 = vmul.f32 %v2718, 1.442695
      %v2805 = vpow.pop %v2804
      %v2806 = vmul.f32 %v2719, 1.442695
      %v2807 = vpow.pop %v2806
      %v2808 = vmul.f32 %v2720, 1.442695
      %v2809 = vpow.pop %v2808
      %v2810 = vmul.f32 %v2721, 1.442695
      %v2811 = vpow.pop %v2810
      %v2812 = vmul.f32 %v2722, 1.442695
      %v2813 = vpow.pop %v2812
      %v2814 = vmul.f32 %v2723, 1.442695
      %v2815 = vpow.pop %v2814
      %v2816 = vmul.f32 %v2724, 1.442695
      %v2817 = vpow.pop %v2816
      %v2818 = vmul.f32 %v2725, 1.442695
      %v2819 = vpow.pop %v2818
      %v2820 = vmul.f32 %v2726, 1.442695
      %v2821 = vpow.pop %v2820
      %v2822 = vmul.f32 %v2727, 1.442695
      %v2823 = vpow.pop %v2822
      %v2824 = vmul.f32 %v2728, 1.442695
      %v2825 = vpow.pop %v2824
      %v2826 = vmul.f32 %v2729, 1.442695
      %v2827 = vpow.pop %v2826
      %v2828 = vmul.f32 %v2730, 1.442695
      %v2829 = vpow.pop %v2828
      %v2830 = vmul.f32 %v2731, 1.442695
      %v2831 = vpow.pop %v2830
      %v2832 = vmul.f32 %v2732, 1.442695
      %v2833 = vpow.pop %v2832
      %v2834 = vmul.f32 %v2733, 1.442695
      %v2835 = vpow.pop %v2834
      %v2836 = vmul.f32 %v2734, 1.442695
      %v2837 = vpow.pop %v2836
      %v2838 = vmul.f32 %v2735, 1.442695
      %v2839 = vpow.pop %v2838
      %v2840 = vmul.f32 %v2736, 1.442695
      %v2841 = vpow.pop %v2840
      %v2842 = vmul.f32 %v2737, 1.442695
      %v2843 = vpow.pop %v2842
      %v2844 = vmul.f32 %v2738, 1.442695
      %v2845 = vpow.pop %v2844
      %v2846 = vmul.f32 %v2739, 1.442695
      %v2847 = vpow.pop %v2846
      %v2848 = vmul.f32 %v2740, 1.442695
      %v2849 = vpow.pop %v2848
      %v2850 = vmul.f32 %v2741, 1.442695
      %v2851 = vpow.pop %v2850
      %v2852 = vmul.f32 %v2742, 1.442695
      %v2853 = vpow.pop %v2852
      %v2854 = vmul.f32 %v2743, 1.442695
      %v2855 = vpow.pop %v2854
      %v2856 = vmul.f32 %v2744, 1.442695
      %v2857 = vpow.pop %v2856
      %v2858 = vmul.f32 %v2745, 1.442695
      %v2859 = vpow.pop %v2858
      %v2860 = vmul.f32 %v2746, 1.442695
      %v2861 = vpow.pop %v2860
      %v2862 = vmul.f32 %v2747, 1.442695
      %v2863 = vpow.pop %v2862
      %v2864 = vmul.f32 %v2748, 1.442695
      %v2865 = vpow.pop %v2864
      %v2866 = vmul.f32 %v2749, 1.442695
      %v2867 = vpow.pop %v2866
      %v2868 = vmul.f32 %v2750, 1.442695
      %v2869 = vpow.pop %v2868
      %v2870 = vmul.f32 %v2751, 1.442695
      %v2871 = vpow.pop %v2870
      %v2872 = vmul.f32 %v2752, 1.442695
      %v2873 = vpow.pop %v2872
      %v2874 = vmul.f32 %v2753, 1.442695
      %v2875 = vpow.pop %v2874
      %v2876 = vmul.f32 %v2754, 1.442695
      %v2877 = vpow.pop %v2876
      %v2878 = vmul.f32 %v2755, 1.442695
      %v2879 = vpow.pop %v2878
      %v2880 = vmul.f32 %v2756, 1.442695
      %v2881 = vpow.pop %v2880
      %v2882 = vmul.f32 %v2757, 1.442695
      %v2883 = vpow.pop %v2882
      %v2884 = vmul.f32 %v2758, 1.442695
      %v2885 = vpow.pop %v2884
      %v2886 = vmul.f32 %v2759, 1.442695
      %v2887 = vpow.pop %v2886
      %v2888 = vadd.f32 %v2761, %v2763
      %2889 = vadd.xlane.f32.xlu0 %v2888
      %v2890 = vpop.xlane.xlu0 %2889
      %v2891 = vadd.f32 %v2765, %v2767
      %2892 = vadd.xlane.f32.xlu0 %v2891
      %v2893 = vpop.xlane.xlu0 %2892
      %v2894 = vadd.f32 %v2769, %v2771
      %2895 = vadd.xlane.f32.xlu0 %v2894
      %v2896 = vpop.xlane.xlu0 %2895
      %v2897 = vadd.f32 %v2773, %v2775
      %2898 = vadd.xlane.f32.xlu0 %v2897
      %v2899 = vpop.xlane.xlu0 %2898
      %v2900 = vadd.f32 %v2777, %v2779
      %2901 = vadd.xlane.f32.xlu0 %v2900
      %v2902 = vpop.xlane.xlu0 %2901
      %v2903 = vadd.f32 %v2781, %v2783
      %2904 = vadd.xlane.f32.xlu0 %v2903
      %v2905 = vpop.xlane.xlu0 %2904
      %v2906 = vadd.f32 %v2785, %v2787
      %2907 = vadd.xlane.f32.xlu0 %v2906
      %v2908 = vpop.xlane.xlu0 %2907
      %v2909 = vadd.f32 %v2789, %v2791
      %2910 = vadd.xlane.f32.xlu0 %v2909
      %v2911 = vpop.xlane.xlu0 %2910
      %v2912 = vadd.f32 %v2793, %v2795
      %2913 = vadd.xlane.f32.xlu0 %v2912
      %v2914 = vpop.xlane.xlu0 %2913
      %v2915 = vadd.f32 %v2797, %v2799
      %2916 = vadd.xlane.f32.xlu0 %v2915
      %v2917 = vpop.xlane.xlu0 %2916
      %v2918 = vadd.f32 %v2801, %v2803
      %2919 = vadd.xlane.f32.xlu0 %v2918
      %v2920 = vpop.xlane.xlu0 %2919
      %v2921 = vadd.f32 %v2805, %v2807
      %2922 = vadd.xlane.f32.xlu0 %v2921
      %v2923 = vpop.xlane.xlu0 %2922
      %v2924 = vadd.f32 %v2809, %v2811
      %2925 = vadd.xlane.f32.xlu0 %v2924
      %v2926 = vpop.xlane.xlu0 %2925
      %v2927 = vadd.f32 %v2813, %v2815
      %2928 = vadd.xlane.f32.xlu0 %v2927
      %v2929 = vpop.xlane.xlu0 %2928
      %v2930 = vadd.f32 %v2817, %v2819
      %2931 = vadd.xlane.f32.xlu0 %v2930
      %v2932 = vpop.xlane.xlu0 %2931
      %v2933 = vadd.f32 %v2821, %v2823
      %2934 = vadd.xlane.f32.xlu0 %v2933
      %v2935 = vpop.xlane.xlu0 %2934
      %v2936 = vadd.f32 %v2825, %v2827
      %2937 = vadd.xlane.f32.xlu0 %v2936
      %v2938 = vpop.xlane.xlu0 %2937
      %v2939 = vadd.f32 %v2829, %v2831
      %2940 = vadd.xlane.f32.xlu0 %v2939
      %v2941 = vpop.xlane.xlu0 %2940
      %v2942 = vadd.f32 %v2833, %v2835
      %2943 = vadd.xlane.f32.xlu0 %v2942
      %v2944 = vpop.xlane.xlu0 %2943
      %v2945 = vadd.f32 %v2837, %v2839
      %2946 = vadd.xlane.f32.xlu0 %v2945
      %v2947 = vpop.xlane.xlu0 %2946
      %v2948 = vadd.f32 %v2841, %v2843
      %2949 = vadd.xlane.f32.xlu0 %v2948
      %v2950 = vpop.xlane.xlu0 %2949
      %v2951 = vadd.f32 %v2845, %v2847
      %2952 = vadd.xlane.f32.xlu0 %v2951
      %v2953 = vpop.xlane.xlu0 %2952
      %v2954 = vadd.f32 %v2849, %v2851
      %2955 = vadd.xlane.f32.xlu0 %v2954
      %v2956 = vpop.xlane.xlu0 %2955
      %v2957 = vadd.f32 %v2853, %v2855
      %2958 = vadd.xlane.f32.xlu0 %v2957
      %v2959 = vpop.xlane.xlu0 %2958
      %v2960 = vadd.f32 %v2857, %v2859
      %2961 = vadd.xlane.f32.xlu0 %v2960
      %v2962 = vpop.xlane.xlu0 %2961
      %v2963 = vadd.f32 %v2861, %v2863
      %2964 = vadd.xlane.f32.xlu0 %v2963
      %v2965 = vpop.xlane.xlu0 %2964
      %v2966 = vadd.f32 %v2865, %v2867
      %2967 = vadd.xlane.f32.xlu0 %v2966
      %v2968 = vpop.xlane.xlu0 %2967
      %v2969 = vadd.f32 %v2869, %v2871
      %2970 = vadd.xlane.f32.xlu0 %v2969
      %v2971 = vpop.xlane.xlu0 %2970
      %v2972 = vadd.f32 %v2873, %v2875
      %2973 = vadd.xlane.f32.xlu0 %v2972
      %v2974 = vpop.xlane.xlu0 %2973
      %v2975 = vadd.f32 %v2877, %v2879
      %2976 = vadd.xlane.f32.xlu0 %v2975
      %v2977 = vpop.xlane.xlu0 %2976
      %v2978 = vadd.f32 %v2881, %v2883
      %2979 = vadd.xlane.f32.xlu0 %v2978
      %v2980 = vpop.xlane.xlu0 %2979
      %v2981 = vadd.f32 %v2885, %v2887
      %2982 = vadd.xlane.f32.xlu0 %v2981
      %v2983 = vpop.xlane.xlu0 %2982
      %v2984 = vrcp.pop %v2890
      %v2985 = vrcp.pop %v2893
      %v2986 = vrcp.pop %v2896
      %v2987 = vrcp.pop %v2899
      %v2988 = vrcp.pop %v2902
      %v2989 = vrcp.pop %v2905
      %v2990 = vrcp.pop %v2908
      %v2991 = vrcp.pop %v2911
      %v2992 = vrcp.pop %v2914
      %v2993 = vrcp.pop %v2917
      %v2994 = vrcp.pop %v2920
      %v2995 = vrcp.pop %v2923
      %v2996 = vrcp.pop %v2926
      %v2997 = vrcp.pop %v2929
      %v2998 = vrcp.pop %v2932
      %v2999 = vrcp.pop %v2935
      %v3000 = vrcp.pop %v2938
      %v3001 = vrcp.pop %v2941
      %v3002 = vrcp.pop %v2944
      %v3003 = vrcp.pop %v2947
      %v3004 = vrcp.pop %v2950
      %v3005 = vrcp.pop %v2953
      %v3006 = vrcp.pop %v2956
      %v3007 = vrcp.pop %v2959
      %v3008 = vrcp.pop %v2962
      %v3009 = vrcp.pop %v2965
      %v3010 = vrcp.pop %v2968
      %v3011 = vrcp.pop %v2971
      %v3012 = vrcp.pop %v2974
      %v3013 = vrcp.pop %v2977
      %v3014 = vrcp.pop %v2980
      %v3015 = vrcp.pop %v2983
      %v3016 = vmul.f32 %v2761, %v2984
      %v3017 = vmul.f32 %v2763, %v2984
      %v3018 = vmul.f32 %v2765, %v2985
      %v3019 = vmul.f32 %v2767, %v2985
      %v3020 = vmul.f32 %v2769, %v2986
      %v3021 = vmul.f32 %v2771, %v2986
      %v3022 = vmul.f32 %v2773, %v2987
      %v3023 = vmul.f32 %v2775, %v2987
      %v3024 = vmul.f32 %v2777, %v2988
      %v3025 = vmul.f32 %v2779, %v2988
      %v3026 = vmul.f32 %v2781, %v2989
      %v3027 = vmul.f32 %v2783, %v2989
      %v3028 = vmul.f32 %v2785, %v2990
      %v3029 = vmul.f32 %v2787, %v2990
      %v3030 = vmul.f32 %v2789, %v2991
      %v3031 = vmul.f32 %v2791, %v2991
      %v3032 = vmul.f32 %v2793, %v2992
      %v3033 = vmul.f32 %v2795, %v2992
      %v3034 = vmul.f32 %v2797, %v2993
      %v3035 = vmul.f32 %v2799, %v2993
      %v3036 = vmul.f32 %v2801, %v2994
      %v3037 = vmul.f32 %v2803, %v2994
      %v3038 = vmul.f32 %v2805, %v2995
      %v3039 = vmul.f32 %v2807, %v2995
      %v3040 = vmul.f32 %v2809, %v2996
      %v3041 = vmul.f32 %v2811, %v2996
      %v3042 = vmul.f32 %v2813, %v2997
      %v3043 = vmul.f32 %v2815, %v2997
      %v3044 = vmul.f32 %v2817, %v2998
      %v3045 = vmul.f32 %v2819, %v2998
      %v3046 = vmul.f32 %v2821, %v2999
      %v3047 = vmul.f32 %v2823, %v2999
      %v3048 = vmul.f32 %v2825, %v3000
      %v3049 = vmul.f32 %v2827, %v3000
      %v3050 = vmul.f32 %v2829, %v3001
      %v3051 = vmul.f32 %v2831, %v3001
      %v3052 = vmul.f32 %v2833, %v3002
      %v3053 = vmul.f32 %v2835, %v3002
      %v3054 = vmul.f32 %v2837, %v3003
      %v3055 = vmul.f32 %v2839, %v3003
      %v3056 = vmul.f32 %v2841, %v3004
      %v3057 = vmul.f32 %v2843, %v3004
      %v3058 = vmul.f32 %v2845, %v3005
      %v3059 = vmul.f32 %v2847, %v3005
      %v3060 = vmul.f32 %v2849, %v3006
      %v3061 = vmul.f32 %v2851, %v3006
      %v3062 = vmul.f32 %v2853, %v3007
      %v3063 = vmul.f32 %v2855, %v3007
      %v3064 = vmul.f32 %v2857, %v3008
      %v3065 = vmul.f32 %v2859, %v3008
      %v3066 = vmul.f32 %v2861, %v3009
      %v3067 = vmul.f32 %v2863, %v3009
      %v3068 = vmul.f32 %v2865, %v3010
      %v3069 = vmul.f32 %v2867, %v3010
      %v3070 = vmul.f32 %v2869, %v3011
      %v3071 = vmul.f32 %v2871, %v3011
      %v3072 = vmul.f32 %v2873, %v3012
      %v3073 = vmul.f32 %v2875, %v3012
      %v3074 = vmul.f32 %v2877, %v3013
      %v3075 = vmul.f32 %v2879, %v3013
      %v3076 = vmul.f32 %v2881, %v3014
      %v3077 = vmul.f32 %v2883, %v3014
      %v3078 = vmul.f32 %v2885, %v3015
      %v3079 = vmul.f32 %v2887, %v3015
      %v3080 = vpack.c.bf16 %v3018, %v3016
      %v3081 = vpack.c.bf16 %v3019, %v3017
      %v3082 = vpack.c.bf16 %v3022, %v3020
      %v3083 = vpack.c.bf16 %v3023, %v3021
      %v3084 = vpack.c.bf16 %v3026, %v3024
      %v3085 = vpack.c.bf16 %v3027, %v3025
      %v3086 = vpack.c.bf16 %v3030, %v3028
      %v3087 = vpack.c.bf16 %v3031, %v3029
      %v3088 = vpack.c.bf16 %v3034, %v3032
      %v3089 = vpack.c.bf16 %v3035, %v3033
      %v3090 = vpack.c.bf16 %v3038, %v3036
      %v3091 = vpack.c.bf16 %v3039, %v3037
      %v3092 = vpack.c.bf16 %v3042, %v3040
      %v3093 = vpack.c.bf16 %v3043, %v3041
      %v3094 = vpack.c.bf16 %v3046, %v3044
      %v3095 = vpack.c.bf16 %v3047, %v3045
      %v3096 = vpack.c.bf16 %v3050, %v3048
      %v3097 = vpack.c.bf16 %v3051, %v3049
      %v3098 = vpack.c.bf16 %v3054, %v3052
      %v3099 = vpack.c.bf16 %v3055, %v3053
      %v3100 = vpack.c.bf16 %v3058, %v3056
      %v3101 = vpack.c.bf16 %v3059, %v3057
      %v3102 = vpack.c.bf16 %v3062, %v3060
      %v3103 = vpack.c.bf16 %v3063, %v3061
      %v3104 = vpack.c.bf16 %v3066, %v3064
      %v3105 = vpack.c.bf16 %v3067, %v3065
      %v3106 = vpack.c.bf16 %v3070, %v3068
      %v3107 = vpack.c.bf16 %v3071, %v3069
      %v3108 = vpack.c.bf16 %v3074, %v3072
      %v3109 = vpack.c.bf16 %v3075, %v3073
      %v3110 = vpack.c.bf16 %v3078, %v3076
      %v3111 = vpack.c.bf16 %v3079, %v3077
      %3112 = vrot.lane.b32.xlu0 %v786, 32
      %v3113 = vpop.permute.xlu0 %3112
      %3114 = vrot.lane.b32.xlu0 %v787, 32
      %v3115 = vpop.permute.xlu0 %3114
      %3116 = vrot.lane.b32.xlu0 %v788, 32
      %v3117 = vpop.permute.xlu0 %3116
      %3118 = vrot.lane.b32.xlu0 %v789, 32
      %v3119 = vpop.permute.xlu0 %3118
      %3120 = vrot.lane.b32.xlu0 %v790, 32
      %v3121 = vpop.permute.xlu0 %3120
      %3122 = vrot.lane.b32.xlu0 %v791, 32
      %v3123 = vpop.permute.xlu0 %3122
      %3124 = vrot.lane.b32.xlu0 %v792, 32
      %v3125 = vpop.permute.xlu0 %3124
      %3126 = vrot.lane.b32.xlu0 %v793, 32
      %v3127 = vpop.permute.xlu0 %3126
      %3128 = vrot.lane.b32.xlu0 %v794, 32
      %v3129 = vpop.permute.xlu0 %3128
      %3130 = vrot.lane.b32.xlu0 %v795, 32
      %v3131 = vpop.permute.xlu0 %3130
      %3132 = vrot.lane.b32.xlu0 %v796, 32
      %v3133 = vpop.permute.xlu0 %3132
      %3134 = vrot.lane.b32.xlu0 %v797, 32
      %v3135 = vpop.permute.xlu0 %3134
      %3136 = vrot.lane.b32.xlu0 %v798, 32
      %v3137 = vpop.permute.xlu0 %3136
      %3138 = vrot.lane.b32.xlu0 %v799, 32
      %v3139 = vpop.permute.xlu0 %3138
      %3140 = vrot.lane.b32.xlu0 %v800, 32
      %v3141 = vpop.permute.xlu0 %3140
      %3142 = vrot.lane.b32.xlu0 %v801, 32
      %v3143 = vpop.permute.xlu0 %3142
      %3160 = vmatprep.subr.bf16.mxu0 0
      %3161 = vmatpush1.bf16.msra.mxu0 %v3127
      %3162 = vmatprep.subr.bf16.mxu0 0
      %3163 = vmatpush1.bf16.msra.mxu0 %v3125
      %3164 = vmatprep.subr.bf16.mxu0 0
      %3165 = vmatpush1.bf16.msra.mxu0 %v3123
      %3166 = vmatprep.subr.bf16.mxu0 0
      %3167 = vmatpush1.bf16.msra.mxu0 %v3121
      %3168 = vmatprep.subr.bf16.mxu0 0
      %3169 = vmatpush1.bf16.msra.mxu0 %v3119
      %3170 = vmatprep.subr.bf16.mxu0 0
      %3171 = vmatpush1.bf16.msra.mxu0 %v3117
      %3172 = vmatprep.subr.bf16.mxu0 0
      %3173 = vmatpush1.bf16.msra.mxu0 %v3115
      %3174 = vmatprep.subr.bf16.mxu0 0
      %3175 = vmatpush1.bf16.msra.mxu0 %v3113
      %3176 = vmatprep.subr.bf16.mxu0 0
      %3177 = vmatpush2.bf16.msra.mxu0 %v3143
      %3178 = vmatprep.subr.bf16.mxu0 0
      %3179 = vmatpush2.bf16.msra.mxu0 %v3141
      %3180 = vmatprep.subr.bf16.mxu0 0
      %3181 = vmatpush2.bf16.msra.mxu0 %v3139
      %3182 = vmatprep.subr.bf16.mxu0 0
      %3183 = vmatpush2.bf16.msra.mxu0 %v3137
      %3184 = vmatprep.subr.bf16.mxu0 0
      %3185 = vmatpush2.bf16.msra.mxu0 %v3135
      %3186 = vmatprep.subr.bf16.mxu0 0
      %3187 = vmatpush2.bf16.msra.mxu0 %v3133
      %3188 = vmatprep.subr.bf16.mxu0 0
      %3189 = vmatpush2.bf16.msra.mxu0 %v3131
      %3190 = vmatprep.subr.bf16.mxu0 0
      %3191 = vmatpush2.bf16.msra.mxu0 %v3129
      %3192 = vmatprep.mubr.bf16.mxu0 %v3081
      %3193 = vmatmul.mubr.bf16.gmra.mxu0 %v3080
      %v3194 = vpop.f32.mrf.mxu0
      %v3195 = vadd.f32 0.0, %v3194
      %v3196 = vpop.f32.mrf.mxu0
      %v3197 = vpop.f32.mrf.mxu0
      %v3198 = vadd.f32 0.0, %v3197
      %v3199 = vpop.f32.mrf.mxu0
      %3200 = vmatprep.mubr.bf16.mxu0 %v3083
      %3201 = vmatmul.mubr.bf16.gmra.mxu0 %v3082
      %v3202 = vpop.f32.mrf.mxu0
      %v3203 = vadd.f32 0.0, %v3202
      %v3204 = vpop.f32.mrf.mxu0
      %v3205 = vpop.f32.mrf.mxu0
      %v3206 = vadd.f32 0.0, %v3205
      %v3207 = vpop.f32.mrf.mxu0
      %3208 = vmatprep.mubr.bf16.mxu0 %v3085
      %3209 = vmatmul.mubr.bf16.gmra.mxu0 %v3084
      %v3210 = vpop.f32.mrf.mxu0
      %v3211 = vadd.f32 0.0, %v3210
      %v3212 = vpop.f32.mrf.mxu0
      %v3213 = vpop.f32.mrf.mxu0
      %v3214 = vadd.f32 0.0, %v3213
      %v3215 = vpop.f32.mrf.mxu0
      %3216 = vmatprep.mubr.bf16.mxu0 %v3087
      %3217 = vmatmul.mubr.bf16.gmra.mxu0 %v3086
      %v3218 = vpop.f32.mrf.mxu0
      %v3219 = vadd.f32 0.0, %v3218
      %v3220 = vpop.f32.mrf.mxu0
      %v3221 = vpop.f32.mrf.mxu0
      %v3222 = vadd.f32 0.0, %v3221
      %v3223 = vpop.f32.mrf.mxu0
      %3224 = vmatprep.mubr.bf16.mxu0 %v3089
      %3225 = vmatmul.mubr.bf16.gmra.mxu0 %v3088
      %v3226 = vpop.f32.mrf.mxu0
      %v3227 = vadd.f32 0.0, %v3226
      %v3228 = vpop.f32.mrf.mxu0
      %v3229 = vpop.f32.mrf.mxu0
      %v3230 = vadd.f32 0.0, %v3229
      %v3231 = vpop.f32.mrf.mxu0
      %3232 = vmatprep.mubr.bf16.mxu0 %v3091
      %3233 = vmatmul.mubr.bf16.gmra.mxu0 %v3090
      %v3234 = vpop.f32.mrf.mxu0
      %v3235 = vadd.f32 0.0, %v3234
      %v3236 = vpop.f32.mrf.mxu0
      %v3237 = vpop.f32.mrf.mxu0
      %v3238 = vadd.f32 0.0, %v3237
      %v3239 = vpop.f32.mrf.mxu0
      %3240 = vmatprep.mubr.bf16.mxu0 %v3093
      %3241 = vmatmul.mubr.bf16.gmra.mxu0 %v3092
      %v3242 = vpop.f32.mrf.mxu0
      %v3243 = vadd.f32 0.0, %v3242
      %v3244 = vpop.f32.mrf.mxu0
      %v3245 = vpop.f32.mrf.mxu0
      %v3246 = vadd.f32 0.0, %v3245
      %v3247 = vpop.f32.mrf.mxu0
      %3248 = vmatprep.mubr.bf16.mxu0 %v3095
      %3249 = vmatmul.mubr.bf16.gmra.mxu0 %v3094
      %v3250 = vpop.f32.mrf.mxu0
      %v3251 = vadd.f32 0.0, %v3250
      %v3252 = vpop.f32.mrf.mxu0
      %v3253 = vpop.f32.mrf.mxu0
      %v3254 = vadd.f32 0.0, %v3253
      %v3255 = vpop.f32.mrf.mxu0
      %3256 = vmatprep.mubr.bf16.mxu0 %v3097
      %3257 = vmatmul.mubr.bf16.gmra.mxu0 %v3096
      %v3258 = vpop.f32.mrf.mxu0
      %v3259 = vadd.f32 0.0, %v3258
      %v3260 = vpop.f32.mrf.mxu0
      %v3261 = vpop.f32.mrf.mxu0
      %v3262 = vadd.f32 0.0, %v3261
      %v3263 = vpop.f32.mrf.mxu0
      %3264 = vmatprep.mubr.bf16.mxu0 %v3099
      %3265 = vmatmul.mubr.bf16.gmra.mxu0 %v3098
      %v3266 = vpop.f32.mrf.mxu0
      %v3267 = vadd.f32 0.0, %v3266
      %v3268 = vpop.f32.mrf.mxu0
      %v3269 = vpop.f32.mrf.mxu0
      %v3270 = vadd.f32 0.0, %v3269
      %v3271 = vpop.f32.mrf.mxu0
      %3272 = vmatprep.mubr.bf16.mxu0 %v3101
      %3273 = vmatmul.mubr.bf16.gmra.mxu0 %v3100
      %v3274 = vpop.f32.mrf.mxu0
      %v3275 = vadd.f32 0.0, %v3274
      %v3276 = vpop.f32.mrf.mxu0
      %v3277 = vpop.f32.mrf.mxu0
      %v3278 = vadd.f32 0.0, %v3277
      %v3279 = vpop.f32.mrf.mxu0
      %3280 = vmatprep.mubr.bf16.mxu0 %v3103
      %3281 = vmatmul.mubr.bf16.gmra.mxu0 %v3102
      %v3282 = vpop.f32.mrf.mxu0
      %v3283 = vadd.f32 0.0, %v3282
      %v3284 = vpop.f32.mrf.mxu0
      %v3285 = vpop.f32.mrf.mxu0
      %v3286 = vadd.f32 0.0, %v3285
      %v3287 = vpop.f32.mrf.mxu0
      %3288 = vmatprep.mubr.bf16.mxu0 %v3105
      %3289 = vmatmul.mubr.bf16.gmra.mxu0 %v3104
      %v3290 = vpop.f32.mrf.mxu0
      %v3291 = vadd.f32 0.0, %v3290
      %v3292 = vpop.f32.mrf.mxu0
      %v3293 = vpop.f32.mrf.mxu0
      %v3294 = vadd.f32 0.0, %v3293
      %v3295 = vpop.f32.mrf.mxu0
      %3296 = vmatprep.mubr.bf16.mxu0 %v3107
      %3297 = vmatmul.mubr.bf16.gmra.mxu0 %v3106
      %v3298 = vpop.f32.mrf.mxu0
      %v3299 = vadd.f32 0.0, %v3298
      %v3300 = vpop.f32.mrf.mxu0
      %v3301 = vpop.f32.mrf.mxu0
      %v3302 = vadd.f32 0.0, %v3301
      %v3303 = vpop.f32.mrf.mxu0
      %3304 = vmatprep.mubr.bf16.mxu0 %v3109
      %3305 = vmatmul.mubr.bf16.gmra.mxu0 %v3108
      %v3306 = vpop.f32.mrf.mxu0
      %v3307 = vadd.f32 0.0, %v3306
      %v3308 = vpop.f32.mrf.mxu0
      %v3309 = vpop.f32.mrf.mxu0
      %v3310 = vadd.f32 0.0, %v3309
      %v3311 = vpop.f32.mrf.mxu0
      %3312 = vmatprep.mubr.bf16.mxu0 %v3111
      %3313 = vmatmul.mubr.bf16.gmra.mxu0 %v3110
      %v3314 = vpop.f32.mrf.mxu0
      %v3315 = vadd.f32 0.0, %v3314
      %v3316 = vpop.f32.mrf.mxu0
      %v3317 = vpop.f32.mrf.mxu0
      %v3318 = vadd.f32 0.0, %v3317
      %v3319 = vpop.f32.mrf.mxu0
      %3320 = vdwg.mxu0
      %v3321 = vpack.c.bf16 %v3198, %v3195
      %v3322 = vpack.c.bf16 %v3206, %v3203
      %v3323 = vpack.c.bf16 %v3214, %v3211
      %v3324 = vpack.c.bf16 %v3222, %v3219
      %v3325 = vpack.c.bf16 %v3230, %v3227
      %v3326 = vpack.c.bf16 %v3238, %v3235
      %v3327 = vpack.c.bf16 %v3246, %v3243
      %v3328 = vpack.c.bf16 %v3254, %v3251
      %v3329 = vpack.c.bf16 %v3262, %v3259
      %v3330 = vpack.c.bf16 %v3270, %v3267
      %v3331 = vpack.c.bf16 %v3278, %v3275
      %v3332 = vpack.c.bf16 %v3286, %v3283
      %v3333 = vpack.c.bf16 %v3294, %v3291
      %v3334 = vpack.c.bf16 %v3302, %v3299
      %v3335 = vpack.c.bf16 %v3310, %v3307
      %v3336 = vpack.c.bf16 %v3318, %v3315
      %v3337 = vld [vmem:[%s3 + $0x10] sm:$0xf]
      %v3338 = vld [vmem:[%s3 + $0x14] sm:$0xf]
      %v3339 = vld [vmem:[%s3 + $0x18] sm:$0xf]
      %v3340 = vld [vmem:[%s3 + $0x1c] sm:$0xf]
      %v3345 = vunpack.c.l.b16 %v3337
      %v3346 = vunpack.c.l.b16 %v3338
      %v3347 = vunpack.c.l.b16 %v3339
      %v3348 = vunpack.c.l.b16 %v3340
      %v3349 = vpack.c.b16 %v3346, %v3345
      %v3350 = vpack.c.b16 %v3348, %v3347
      %v3354 = vsel %vm1941, %v3321, 0
      %v3357 = vsel %vm1941, %v3322, 0
      %v3360 = vsel %vm1941, %v3323, 0
      %v3363 = vsel %vm1941, %v3324, 0
      %v3366 = vsel %vm1941, %v3325, 0
      %v3369 = vsel %vm1941, %v3326, 0
      %v3372 = vsel %vm1941, %v3327, 0
      %v3375 = vsel %vm1941, %v3328, 0
      %v3378 = vsel %vm1941, %v3329, 0
      %v3381 = vsel %vm1941, %v3330, 0
      %v3384 = vsel %vm1941, %v3331, 0
      %v3387 = vsel %vm1941, %v3332, 0
      %v3390 = vsel %vm1941, %v3333, 0
      %v3393 = vsel %vm1941, %v3334, 0
      %v3396 = vsel %vm1941, %v3335, 0
      %v3399 = vsel %vm1941, %v3336, 0
      %3401 = vmatprep.subr.bf16.mxu0 0
      %3402 = vmatpush1.bf16.msra.mxu0 0
      %3403 = vmatprep.subr.bf16.mxu0 0
      %3404 = vmatpush1.bf16.msra.mxu0 0
      %3405 = vmatprep.subr.bf16.mxu0 0
      %3406 = vmatpush1.bf16.msra.mxu0 0
      %3407 = vmatprep.subr.bf16.mxu0 0
      %3408 = vmatpush1.bf16.msra.mxu0 0
      %3409 = vmatprep.subr.bf16.mxu0 0
      %3410 = vmatpush1.bf16.msra.mxu0 0
      %3411 = vmatprep.subr.bf16.mxu0 0
      %3412 = vmatpush1.bf16.msra.mxu0 0
      %3413 = vmatprep.subr.bf16.mxu0 0
      %3414 = vmatpush1.bf16.msra.mxu0 %v3350
      %3415 = vmatprep.subr.bf16.mxu0 0
      %3416 = vmatpush1.bf16.msra.mxu0 %v3349
      %3417 = vmatprep.subr.bf16.mxu0 0
      %3418 = vmatpush2.bf16.msra.mxu0 0
      %3419 = vmatprep.subr.bf16.mxu0 0
      %3420 = vmatpush2.bf16.msra.mxu0 0
      %3421 = vmatprep.subr.bf16.mxu0 0
      %3422 = vmatpush2.bf16.msra.mxu0 0
      %3423 = vmatprep.subr.bf16.mxu0 0
      %3424 = vmatpush2.bf16.msra.mxu0 0
      %3425 = vmatprep.subr.bf16.mxu0 0
      %3426 = vmatpush2.bf16.msra.mxu0 0
      %3427 = vmatprep.subr.bf16.mxu0 0
      %3428 = vmatpush2.bf16.msra.mxu0 0
      %3429 = vmatprep.subr.bf16.mxu0 0
      %3430 = vmatpush2.bf16.msra.mxu0 0
      %3431 = vmatprep.subr.bf16.mxu0 0
      %3432 = vmatpush2.bf16.msra.mxu0 0
      %3433 = vmatprep.mubr.bf16.mxu0 0
      %3434 = vmatmul.mubr.bf16.gmra.mxu0 %v3354
      %v3435 = vpop.f32.mrf.mxu0
      %v3436 = vadd.f32 0.0, %v3435
      %v3437 = vpop.f32.mrf.mxu0
      %v3438 = vpop.f32.mrf.mxu0
      %v3439 = vadd.f32 0.0, %v3438
      %v3440 = vpop.f32.mrf.mxu0
      %3441 = vmatprep.mubr.bf16.mxu0 0
      %3442 = vmatmul.mubr.bf16.gmra.mxu0 %v3357
      %v3443 = vpop.f32.mrf.mxu0
      %v3444 = vadd.f32 0.0, %v3443
      %v3445 = vpop.f32.mrf.mxu0
      %v3446 = vpop.f32.mrf.mxu0
      %v3447 = vadd.f32 0.0, %v3446
      %v3448 = vpop.f32.mrf.mxu0
      %3449 = vmatprep.mubr.bf16.mxu0 0
      %3450 = vmatmul.mubr.bf16.gmra.mxu0 %v3360
      %v3451 = vpop.f32.mrf.mxu0
      %v3452 = vadd.f32 0.0, %v3451
      %v3453 = vpop.f32.mrf.mxu0
      %v3454 = vpop.f32.mrf.mxu0
      %v3455 = vadd.f32 0.0, %v3454
      %v3456 = vpop.f32.mrf.mxu0
      %3457 = vmatprep.mubr.bf16.mxu0 0
      %3458 = vmatmul.mubr.bf16.gmra.mxu0 %v3363
      %v3459 = vpop.f32.mrf.mxu0
      %v3460 = vadd.f32 0.0, %v3459
      %v3461 = vpop.f32.mrf.mxu0
      %v3462 = vpop.f32.mrf.mxu0
      %v3463 = vadd.f32 0.0, %v3462
      %v3464 = vpop.f32.mrf.mxu0
      %3465 = vmatprep.mubr.bf16.mxu0 0
      %3466 = vmatmul.mubr.bf16.gmra.mxu0 %v3366
      %v3467 = vpop.f32.mrf.mxu0
      %v3468 = vadd.f32 0.0, %v3467
      %v3469 = vpop.f32.mrf.mxu0
      %v3470 = vpop.f32.mrf.mxu0
      %v3471 = vadd.f32 0.0, %v3470
      %v3472 = vpop.f32.mrf.mxu0
      %3473 = vmatprep.mubr.bf16.mxu0 0
      %3474 = vmatmul.mubr.bf16.gmra.mxu0 %v3369
      %v3475 = vpop.f32.mrf.mxu0
      %v3476 = vadd.f32 0.0, %v3475
      %v3477 = vpop.f32.mrf.mxu0
      %v3478 = vpop.f32.mrf.mxu0
      %v3479 = vadd.f32 0.0, %v3478
      %v3480 = vpop.f32.mrf.mxu0
      %3481 = vmatprep.mubr.bf16.mxu0 0
      %3482 = vmatmul.mubr.bf16.gmra.mxu0 %v3372
      %v3483 = vpop.f32.mrf.mxu0
      %v3484 = vadd.f32 0.0, %v3483
      %v3485 = vpop.f32.mrf.mxu0
      %v3486 = vpop.f32.mrf.mxu0
      %v3487 = vadd.f32 0.0, %v3486
      %v3488 = vpop.f32.mrf.mxu0
      %3489 = vmatprep.mubr.bf16.mxu0 0
      %3490 = vmatmul.mubr.bf16.gmra.mxu0 %v3375
      %v3491 = vpop.f32.mrf.mxu0
      %v3492 = vadd.f32 0.0, %v3491
      %v3493 = vpop.f32.mrf.mxu0
      %v3494 = vpop.f32.mrf.mxu0
      %v3495 = vadd.f32 0.0, %v3494
      %v3496 = vpop.f32.mrf.mxu0
      %3497 = vmatprep.mubr.bf16.mxu0 0
      %3498 = vmatmul.mubr.bf16.gmra.mxu0 %v3378
      %v3499 = vpop.f32.mrf.mxu0
      %v3500 = vadd.f32 0.0, %v3499
      %v3501 = vpop.f32.mrf.mxu0
      %v3502 = vpop.f32.mrf.mxu0
      %v3503 = vadd.f32 0.0, %v3502
      %v3504 = vpop.f32.mrf.mxu0
      %3505 = vmatprep.mubr.bf16.mxu0 0
      %3506 = vmatmul.mubr.bf16.gmra.mxu0 %v3381
      %v3507 = vpop.f32.mrf.mxu0
      %v3508 = vadd.f32 0.0, %v3507
      %v3509 = vpop.f32.mrf.mxu0
      %v3510 = vpop.f32.mrf.mxu0
      %v3511 = vadd.f32 0.0, %v3510
      %v3512 = vpop.f32.mrf.mxu0
      %3513 = vmatprep.mubr.bf16.mxu0 0
      %3514 = vmatmul.mubr.bf16.gmra.mxu0 %v3384
      %v3515 = vpop.f32.mrf.mxu0
      %v3516 = vadd.f32 0.0, %v3515
      %v3517 = vpop.f32.mrf.mxu0
      %v3518 = vpop.f32.mrf.mxu0
      %v3519 = vadd.f32 0.0, %v3518
      %v3520 = vpop.f32.mrf.mxu0
      %3521 = vmatprep.mubr.bf16.mxu0 0
      %3522 = vmatmul.mubr.bf16.gmra.mxu0 %v3387
      %v3523 = vpop.f32.mrf.mxu0
      %v3524 = vadd.f32 0.0, %v3523
      %v3525 = vpop.f32.mrf.mxu0
      %v3526 = vpop.f32.mrf.mxu0
      %v3527 = vadd.f32 0.0, %v3526
      %v3528 = vpop.f32.mrf.mxu0
      %3529 = vmatprep.mubr.bf16.mxu0 0
      %3530 = vmatmul.mubr.bf16.gmra.mxu0 %v3390
      %v3531 = vpop.f32.mrf.mxu0
      %v3532 = vadd.f32 0.0, %v3531
      %v3533 = vpop.f32.mrf.mxu0
      %v3534 = vpop.f32.mrf.mxu0
      %v3535 = vadd.f32 0.0, %v3534
      %v3536 = vpop.f32.mrf.mxu0
      %3537 = vmatprep.mubr.bf16.mxu0 0
      %3538 = vmatmul.mubr.bf16.gmra.mxu0 %v3393
      %v3539 = vpop.f32.mrf.mxu0
      %v3540 = vadd.f32 0.0, %v3539
      %v3541 = vpop.f32.mrf.mxu0
      %v3542 = vpop.f32.mrf.mxu0
      %v3543 = vadd.f32 0.0, %v3542
      %v3544 = vpop.f32.mrf.mxu0
      %3545 = vmatprep.mubr.bf16.mxu0 0
      %3546 = vmatmul.mubr.bf16.gmra.mxu0 %v3396
      %v3547 = vpop.f32.mrf.mxu0
      %v3548 = vadd.f32 0.0, %v3547
      %v3549 = vpop.f32.mrf.mxu0
      %v3550 = vpop.f32.mrf.mxu0
      %v3551 = vadd.f32 0.0, %v3550
      %v3552 = vpop.f32.mrf.mxu0
      %3553 = vmatprep.mubr.bf16.mxu0 0
      %3554 = vmatmul.mubr.bf16.gmra.mxu0 %v3399
      %v3555 = vpop.f32.mrf.mxu0
      %v3556 = vadd.f32 0.0, %v3555
      %v3557 = vpop.f32.mrf.mxu0
      %v3558 = vpop.f32.mrf.mxu0
      %v3559 = vadd.f32 0.0, %v3558
      %v3560 = vpop.f32.mrf.mxu0
      %3561 = vdwg.mxu0
      %v3562 = vadd.f32 %v2151, %v3436
      %v3563 = vadd.f32 %v2152, %v3439
      %v3564 = vadd.f32 %v2153, %v3444
      %v3565 = vadd.f32 %v2154, %v3447
      %v3566 = vadd.f32 %v2155, %v3452
      %v3567 = vadd.f32 %v2156, %v3455
      %v3568 = vadd.f32 %v2157, %v3460
      %v3569 = vadd.f32 %v2158, %v3463
      %v3570 = vadd.f32 %v2159, %v3468
      %v3571 = vadd.f32 %v2160, %v3471
      %v3572 = vadd.f32 %v2161, %v3476
      %v3573 = vadd.f32 %v2162, %v3479
      %v3574 = vadd.f32 %v2163, %v3484
      %v3575 = vadd.f32 %v2164, %v3487
      %v3576 = vadd.f32 %v2165, %v3492
      %v3577 = vadd.f32 %v2166, %v3495
      %v3578 = vadd.f32 %v2167, %v3500
      %v3579 = vadd.f32 %v2168, %v3503
      %v3580 = vadd.f32 %v2169, %v3508
      %v3581 = vadd.f32 %v2170, %v3511
      %v3582 = vadd.f32 %v2171, %v3516
      %v3583 = vadd.f32 %v2172, %v3519
      %v3584 = vadd.f32 %v2173, %v3524
      %v3585 = vadd.f32 %v2174, %v3527
      %v3586 = vadd.f32 %v2175, %v3532
      %v3587 = vadd.f32 %v2176, %v3535
      %v3588 = vadd.f32 %v2177, %v3540
      %v3589 = vadd.f32 %v2178, %v3543
      %v3590 = vadd.f32 %v2179, %v3548
      %v3591 = vadd.f32 %v2180, %v3551
      %v3592 = vadd.f32 %v2181, %v3556
      %v3593 = vadd.f32 %v2182, %v3559
      %v3594 = vld [vmem:[%s249 + $0x4] sm:$0xf]
      %v3595 = vld [vmem:[%s249 + $0xc] sm:$0xf]
      %v3596 = vld [vmem:[%s249 + $0x14] sm:$0xf]
      %v3597 = vld [vmem:[%s249 + $0x1c] sm:$0xf]
      %v3598 = vld [vmem:[%s249 + $0x24] sm:$0xf]
      %v3599 = vld [vmem:[%s249 + $0x2c] sm:$0xf]
      %v3600 = vld [vmem:[%s249 + $0x34] sm:$0xf]
      %v3601 = vld [vmem:[%s249 + $0x3c] sm:$0xf]
      %v3602 = vld [vmem:[%s249 + $0x44] sm:$0xf]
      %v3603 = vld [vmem:[%s249 + $0x4c] sm:$0xf]
      %v3604 = vld [vmem:[%s249 + $0x54] sm:$0xf]
      %v3605 = vld [vmem:[%s249 + $0x5c] sm:$0xf]
      %v3606 = vld [vmem:[%s249 + $0x64] sm:$0xf]
      %v3607 = vld [vmem:[%s249 + $0x6c] sm:$0xf]
      %v3608 = vld [vmem:[%s249 + $0x74] sm:$0xf]
      %v3609 = vld [vmem:[%s249 + $0x7c] sm:$0xf]
      %v3610 = vld [vmem:[%s249 + $0x84] sm:$0xf]
      %v3611 = vld [vmem:[%s249 + $0x8c] sm:$0xf]
      %v3612 = vld [vmem:[%s249 + $0x94] sm:$0xf]
      %v3613 = vld [vmem:[%s249 + $0x9c] sm:$0xf]
      %v3614 = vld [vmem:[%s249 + $0xa4] sm:$0xf]
      %v3615 = vld [vmem:[%s249 + $0xac] sm:$0xf]
      %v3616 = vld [vmem:[%s249 + $0xb4] sm:$0xf]
      %v3617 = vld [vmem:[%s249 + $0xbc] sm:$0xf]
      %v3618 = vld [vmem:[%s249 + $0xc4] sm:$0xf]
      %v3619 = vld [vmem:[%s249 + $0xcc] sm:$0xf]
      %v3620 = vld [vmem:[%s249 + $0xd4] sm:$0xf]
      %v3621 = vld [vmem:[%s249 + $0xdc] sm:$0xf]
      %v3622 = vld [vmem:[%s249 + $0xe4] sm:$0xf]
      %v3623 = vld [vmem:[%s249 + $0xec] sm:$0xf]
      %v3624 = vld [vmem:[%s249 + $0xf4] sm:$0xf]
      %v3625 = vld [vmem:[%s249 + $0xfc] sm:$0xf]
      %v3658 = vunpack.c.l.b16 %v3594
      %v3659 = vunpack.c.l.b16 %v3595
      %v3660 = vunpack.c.l.b16 %v3596
      %v3661 = vunpack.c.l.b16 %v3597
      %v3662 = vunpack.c.l.b16 %v3598
      %v3663 = vunpack.c.l.b16 %v3599
      %v3664 = vunpack.c.l.b16 %v3600
      %v3665 = vunpack.c.l.b16 %v3601
      %v3666 = vunpack.c.l.b16 %v3602
      %v3667 = vunpack.c.l.b16 %v3603
      %v3668 = vunpack.c.l.b16 %v3604
      %v3669 = vunpack.c.l.b16 %v3605
      %v3670 = vunpack.c.l.b16 %v3606
      %v3671 = vunpack.c.l.b16 %v3607
      %v3672 = vunpack.c.l.b16 %v3608
      %v3673 = vunpack.c.l.b16 %v3609
      %v3674 = vunpack.c.l.b16 %v3610
      %v3675 = vunpack.c.l.b16 %v3611
      %v3676 = vunpack.c.l.b16 %v3612
      %v3677 = vunpack.c.l.b16 %v3613
      %v3678 = vunpack.c.l.b16 %v3614
      %v3679 = vunpack.c.l.b16 %v3615
      %v3680 = vunpack.c.l.b16 %v3616
      %v3681 = vunpack.c.l.b16 %v3617
      %v3682 = vunpack.c.l.b16 %v3618
      %v3683 = vunpack.c.l.b16 %v3619
      %v3684 = vunpack.c.l.b16 %v3620
      %v3685 = vunpack.c.l.b16 %v3621
      %v3686 = vunpack.c.l.b16 %v3622
      %v3687 = vunpack.c.l.b16 %v3623
      %v3688 = vunpack.c.l.b16 %v3624
      %v3689 = vunpack.c.l.b16 %v3625
      %v3690 = vpack.c.b16 %v3659, %v3658
      %v3691 = vpack.c.b16 %v3661, %v3660
      %v3692 = vpack.c.b16 %v3663, %v3662
      %v3693 = vpack.c.b16 %v3665, %v3664
      %v3694 = vpack.c.b16 %v3667, %v3666
      %v3695 = vpack.c.b16 %v3669, %v3668
      %v3696 = vpack.c.b16 %v3671, %v3670
      %v3697 = vpack.c.b16 %v3673, %v3672
      %v3698 = vpack.c.b16 %v3675, %v3674
      %v3699 = vpack.c.b16 %v3677, %v3676
      %v3700 = vpack.c.b16 %v3679, %v3678
      %v3701 = vpack.c.b16 %v3681, %v3680
      %v3702 = vpack.c.b16 %v3683, %v3682
      %v3703 = vpack.c.b16 %v3685, %v3684
      %v3704 = vpack.c.b16 %v3687, %v3686
      %v3705 = vpack.c.b16 %v3689, %v3688
      %3706 = vrot.lane.b32.xlu0 %v3690, 112
      %v3707 = vpop.permute.xlu0 %3706
      %3708 = vrot.lane.b32.xlu0 %v3691, 112
      %v3709 = vpop.permute.xlu0 %3708
      %3710 = vrot.lane.b32.xlu0 %v3692, 112
      %v3711 = vpop.permute.xlu0 %3710
      %3712 = vrot.lane.b32.xlu0 %v3693, 112
      %v3713 = vpop.permute.xlu0 %3712
      %3714 = vrot.lane.b32.xlu0 %v3694, 112
      %v3715 = vpop.permute.xlu0 %3714
      %3716 = vrot.lane.b32.xlu0 %v3695, 112
      %v3717 = vpop.permute.xlu0 %3716
      %3718 = vrot.lane.b32.xlu0 %v3696, 112
      %v3719 = vpop.permute.xlu0 %3718
      %3720 = vrot.lane.b32.xlu0 %v3697, 112
      %v3721 = vpop.permute.xlu0 %3720
      %3722 = vrot.lane.b32.xlu0 %v3698, 112
      %v3723 = vpop.permute.xlu0 %3722
      %3724 = vrot.lane.b32.xlu0 %v3699, 112
      %v3725 = vpop.permute.xlu0 %3724
      %3726 = vrot.lane.b32.xlu0 %v3700, 112
      %v3727 = vpop.permute.xlu0 %3726
      %3728 = vrot.lane.b32.xlu0 %v3701, 112
      %v3729 = vpop.permute.xlu0 %3728
      %3730 = vrot.lane.b32.xlu0 %v3702, 112
      %v3731 = vpop.permute.xlu0 %3730
      %3732 = vrot.lane.b32.xlu0 %v3703, 112
      %v3733 = vpop.permute.xlu0 %3732
      %3734 = vrot.lane.b32.xlu0 %v3704, 112
      %v3735 = vpop.permute.xlu0 %3734
      %3736 = vrot.lane.b32.xlu0 %v3705, 112
      %v3737 = vpop.permute.xlu0 %3736
      %v3739 = vsel %vm834, %v3690, 0
      %v3742 = vsel %vm834, %v3691, 0
      %v3745 = vsel %vm834, %v3692, 0
      %v3748 = vsel %vm834, %v3693, 0
      %v3751 = vsel %vm834, %v3694, 0
      %v3754 = vsel %vm834, %v3695, 0
      %v3757 = vsel %vm834, %v3696, 0
      %v3760 = vsel %vm834, %v3697, 0
      %v3763 = vsel %vm834, %v3698, 0
      %v3766 = vsel %vm834, %v3699, 0
      %v3769 = vsel %vm834, %v3700, 0
      %v3772 = vsel %vm834, %v3701, 0
      %v3775 = vsel %vm834, %v3702, 0
      %v3778 = vsel %vm834, %v3703, 0
      %v3781 = vsel %vm834, %v3704, 0
      %v3784 = vsel %vm834, %v3705, 0
      %v3787 = vsel %vm834, %v3707, 0
      %v3790 = vsel %vm834, %v3709, 0
      %v3793 = vsel %vm834, %v3711, 0
      %v3796 = vsel %vm834, %v3713, 0
      %v3799 = vsel %vm834, %v3715, 0
      %v3802 = vsel %vm834, %v3717, 0
      %v3805 = vsel %vm834, %v3719, 0
      %v3808 = vsel %vm834, %v3721, 0
      %v3811 = vsel %vm834, %v3723, 0
      %v3814 = vsel %vm834, %v3725, 0
      %v3817 = vsel %vm834, %v3727, 0
      %v3820 = vsel %vm834, %v3729, 0
      %v3823 = vsel %vm834, %v3731, 0
      %v3826 = vsel %vm834, %v3733, 0
      %v3829 = vsel %vm834, %v3735, 0
      %v3832 = vsel %vm834, %v3737, 0
      %3834 = vmatprep.subr.bf16.mxu0 0
      %3835 = vmatpush1.bf16.xpose.msra.mxu0 %v3808
      %3836 = vmatprep.subr.bf16.mxu0 0
      %3837 = vmatpush1.bf16.xpose.msra.mxu0 %v3805
      %3838 = vmatprep.subr.bf16.mxu0 0
      %3839 = vmatpush1.bf16.xpose.msra.mxu0 %v3802
      %3840 = vmatprep.subr.bf16.mxu0 0
      %3841 = vmatpush1.bf16.xpose.msra.mxu0 %v3799
      %3842 = vmatprep.subr.bf16.mxu0 0
      %3843 = vmatpush1.bf16.xpose.msra.mxu0 %v3796
      %3844 = vmatprep.subr.bf16.mxu0 0
      %3845 = vmatpush1.bf16.xpose.msra.mxu0 %v3793
      %3846 = vmatprep.subr.bf16.mxu0 0
      %3847 = vmatpush1.bf16.xpose.msra.mxu0 %v3790
      %3848 = vmatprep.subr.bf16.mxu0 0
      %3849 = vmatpush1.bf16.xpose.msra.mxu0 %v3787
      %3850 = vmatprep.subr.bf16.mxu0 0
      %3851 = vmatpush2.bf16.xpose.msra.mxu0 %v3832
      %3852 = vmatprep.subr.bf16.mxu0 0
      %3853 = vmatpush2.bf16.xpose.msra.mxu0 %v3829
      %3854 = vmatprep.subr.bf16.mxu0 0
      %3855 = vmatpush2.bf16.xpose.msra.mxu0 %v3826
      %3856 = vmatprep.subr.bf16.mxu0 0
      %3857 = vmatpush2.bf16.xpose.msra.mxu0 %v3823
      %3858 = vmatprep.subr.bf16.mxu0 0
      %3859 = vmatpush2.bf16.xpose.msra.mxu0 %v3820
      %3860 = vmatprep.subr.bf16.mxu0 0
      %3861 = vmatpush2.bf16.xpose.msra.mxu0 %v3817
      %3862 = vmatprep.subr.bf16.mxu0 0
      %3863 = vmatpush2.bf16.xpose.msra.mxu0 %v3814
      %3864 = vmatprep.subr.bf16.mxu0 0
      %3865 = vmatpush2.bf16.xpose.msra.mxu0 %v3811
      %3866 = vmatprep.mubr.bf16.mxu0 0
      %3867 = vmatmul.mubr.bf16.gmra.mxu0 %v3739
      %v3868 = vpop.f32.mrf.mxu0
      %v3869 = vadd.f32 0.0, %v3868
      %v3870 = vpop.f32.mrf.mxu0
      %v3871 = vadd.f32 0.0, %v3870
      %v3872 = vpop.f32.mrf.mxu0
      %v3873 = vadd.f32 0.0, %v3872
      %v3874 = vpop.f32.mrf.mxu0
      %v3875 = vadd.f32 0.0, %v3874
      %3876 = vmatprep.mubr.bf16.mxu0 0
      %3877 = vmatmul.mubr.bf16.gmra.mxu0 %v3742
      %v3878 = vpop.f32.mrf.mxu0
      %v3879 = vadd.f32 0.0, %v3878
      %v3880 = vpop.f32.mrf.mxu0
      %v3881 = vadd.f32 0.0, %v3880
      %v3882 = vpop.f32.mrf.mxu0
      %v3883 = vadd.f32 0.0, %v3882
      %v3884 = vpop.f32.mrf.mxu0
      %v3885 = vadd.f32 0.0, %v3884
      %3886 = vmatprep.mubr.bf16.mxu0 0
      %3887 = vmatmul.mubr.bf16.gmra.mxu0 %v3745
      %v3888 = vpop.f32.mrf.mxu0
      %v3889 = vadd.f32 0.0, %v3888
      %v3890 = vpop.f32.mrf.mxu0
      %v3891 = vadd.f32 0.0, %v3890
      %v3892 = vpop.f32.mrf.mxu0
      %v3893 = vadd.f32 0.0, %v3892
      %v3894 = vpop.f32.mrf.mxu0
      %v3895 = vadd.f32 0.0, %v3894
      %3896 = vmatprep.mubr.bf16.mxu0 0
      %3897 = vmatmul.mubr.bf16.gmra.mxu0 %v3748
      %v3898 = vpop.f32.mrf.mxu0
      %v3899 = vadd.f32 0.0, %v3898
      %v3900 = vpop.f32.mrf.mxu0
      %v3901 = vadd.f32 0.0, %v3900
      %v3902 = vpop.f32.mrf.mxu0
      %v3903 = vadd.f32 0.0, %v3902
      %v3904 = vpop.f32.mrf.mxu0
      %v3905 = vadd.f32 0.0, %v3904
      %3906 = vmatprep.mubr.bf16.mxu0 0
      %3907 = vmatmul.mubr.bf16.gmra.mxu0 %v3751
      %v3908 = vpop.f32.mrf.mxu0
      %v3909 = vadd.f32 0.0, %v3908
      %v3910 = vpop.f32.mrf.mxu0
      %v3911 = vadd.f32 0.0, %v3910
      %v3912 = vpop.f32.mrf.mxu0
      %v3913 = vadd.f32 0.0, %v3912
      %v3914 = vpop.f32.mrf.mxu0
      %v3915 = vadd.f32 0.0, %v3914
      %3916 = vmatprep.mubr.bf16.mxu0 0
      %3917 = vmatmul.mubr.bf16.gmra.mxu0 %v3754
      %v3918 = vpop.f32.mrf.mxu0
      %v3919 = vadd.f32 0.0, %v3918
      %v3920 = vpop.f32.mrf.mxu0
      %v3921 = vadd.f32 0.0, %v3920
      %v3922 = vpop.f32.mrf.mxu0
      %v3923 = vadd.f32 0.0, %v3922
      %v3924 = vpop.f32.mrf.mxu0
      %v3925 = vadd.f32 0.0, %v3924
      %3926 = vmatprep.mubr.bf16.mxu0 0
      %3927 = vmatmul.mubr.bf16.gmra.mxu0 %v3757
      %v3928 = vpop.f32.mrf.mxu0
      %v3929 = vadd.f32 0.0, %v3928
      %v3930 = vpop.f32.mrf.mxu0
      %v3931 = vadd.f32 0.0, %v3930
      %v3932 = vpop.f32.mrf.mxu0
      %v3933 = vadd.f32 0.0, %v3932
      %v3934 = vpop.f32.mrf.mxu0
      %v3935 = vadd.f32 0.0, %v3934
      %3936 = vmatprep.mubr.bf16.mxu0 0
      %3937 = vmatmul.mubr.bf16.gmra.mxu0 %v3760
      %v3938 = vpop.f32.mrf.mxu0
      %v3939 = vadd.f32 0.0, %v3938
      %v3940 = vpop.f32.mrf.mxu0
      %v3941 = vadd.f32 0.0, %v3940
      %v3942 = vpop.f32.mrf.mxu0
      %v3943 = vadd.f32 0.0, %v3942
      %v3944 = vpop.f32.mrf.mxu0
      %v3945 = vadd.f32 0.0, %v3944
      %3946 = vmatprep.mubr.bf16.mxu0 0
      %3947 = vmatmul.mubr.bf16.gmra.mxu0 %v3763
      %v3948 = vpop.f32.mrf.mxu0
      %v3949 = vadd.f32 0.0, %v3948
      %v3950 = vpop.f32.mrf.mxu0
      %v3951 = vadd.f32 0.0, %v3950
      %v3952 = vpop.f32.mrf.mxu0
      %v3953 = vadd.f32 0.0, %v3952
      %v3954 = vpop.f32.mrf.mxu0
      %v3955 = vadd.f32 0.0, %v3954
      %3956 = vmatprep.mubr.bf16.mxu0 0
      %3957 = vmatmul.mubr.bf16.gmra.mxu0 %v3766
      %v3958 = vpop.f32.mrf.mxu0
      %v3959 = vadd.f32 0.0, %v3958
      %v3960 = vpop.f32.mrf.mxu0
      %v3961 = vadd.f32 0.0, %v3960
      %v3962 = vpop.f32.mrf.mxu0
      %v3963 = vadd.f32 0.0, %v3962
      %v3964 = vpop.f32.mrf.mxu0
      %v3965 = vadd.f32 0.0, %v3964
      %3966 = vmatprep.mubr.bf16.mxu0 0
      %3967 = vmatmul.mubr.bf16.gmra.mxu0 %v3769
      %v3968 = vpop.f32.mrf.mxu0
      %v3969 = vadd.f32 0.0, %v3968
      %v3970 = vpop.f32.mrf.mxu0
      %v3971 = vadd.f32 0.0, %v3970
      %v3972 = vpop.f32.mrf.mxu0
      %v3973 = vadd.f32 0.0, %v3972
      %v3974 = vpop.f32.mrf.mxu0
      %v3975 = vadd.f32 0.0, %v3974
      %3976 = vmatprep.mubr.bf16.mxu0 0
      %3977 = vmatmul.mubr.bf16.gmra.mxu0 %v3772
      %v3978 = vpop.f32.mrf.mxu0
      %v3979 = vadd.f32 0.0, %v3978
      %v3980 = vpop.f32.mrf.mxu0
      %v3981 = vadd.f32 0.0, %v3980
      %v3982 = vpop.f32.mrf.mxu0
      %v3983 = vadd.f32 0.0, %v3982
      %v3984 = vpop.f32.mrf.mxu0
      %v3985 = vadd.f32 0.0, %v3984
      %3986 = vmatprep.mubr.bf16.mxu0 0
      %3987 = vmatmul.mubr.bf16.gmra.mxu0 %v3775
      %v3988 = vpop.f32.mrf.mxu0
      %v3989 = vadd.f32 0.0, %v3988
      %v3990 = vpop.f32.mrf.mxu0
      %v3991 = vadd.f32 0.0, %v3990
      %v3992 = vpop.f32.mrf.mxu0
      %v3993 = vadd.f32 0.0, %v3992
      %v3994 = vpop.f32.mrf.mxu0
      %v3995 = vadd.f32 0.0, %v3994
      %3996 = vmatprep.mubr.bf16.mxu0 0
      %3997 = vmatmul.mubr.bf16.gmra.mxu0 %v3778
      %v3998 = vpop.f32.mrf.mxu0
      %v3999 = vadd.f32 0.0, %v3998
      %v4000 = vpop.f32.mrf.mxu0
      %v4001 = vadd.f32 0.0, %v4000
      %v4002 = vpop.f32.mrf.mxu0
      %v4003 = vadd.f32 0.0, %v4002
      %v4004 = vpop.f32.mrf.mxu0
      %v4005 = vadd.f32 0.0, %v4004
      %4006 = vmatprep.mubr.bf16.mxu0 0
      %4007 = vmatmul.mubr.bf16.gmra.mxu0 %v3781
      %v4008 = vpop.f32.mrf.mxu0
      %v4009 = vadd.f32 0.0, %v4008
      %v4010 = vpop.f32.mrf.mxu0
      %v4011 = vadd.f32 0.0, %v4010
      %v4012 = vpop.f32.mrf.mxu0
      %v4013 = vadd.f32 0.0, %v4012
      %v4014 = vpop.f32.mrf.mxu0
      %v4015 = vadd.f32 0.0, %v4014
      %4016 = vmatprep.mubr.bf16.mxu0 0
      %4017 = vmatmul.mubr.bf16.gmra.mxu0 %v3784
      %v4018 = vpop.f32.mrf.mxu0
      %v4019 = vadd.f32 0.0, %v4018
      %v4020 = vpop.f32.mrf.mxu0
      %v4021 = vadd.f32 0.0, %v4020
      %v4022 = vpop.f32.mrf.mxu0
      %v4023 = vadd.f32 0.0, %v4022
      %v4024 = vpop.f32.mrf.mxu0
      %v4025 = vadd.f32 0.0, %v4024
      %4026 = vdwg.mxu0
      %v4027 = vmul.f32 %v3869, 0.25
      %v4028 = vmul.f32 %v3871, 0.25
      %v4029 = vmul.f32 %v3873, 0.25
      %v4030 = vmul.f32 %v3875, 0.25
      %v4031 = vmul.f32 %v3879, 0.25
      %v4032 = vmul.f32 %v3881, 0.25
      %v4033 = vmul.f32 %v3883, 0.25
      %v4034 = vmul.f32 %v3885, 0.25
      %v4035 = vmul.f32 %v3889, 0.25
      %v4036 = vmul.f32 %v3891, 0.25
      %v4037 = vmul.f32 %v3893, 0.25
      %v4038 = vmul.f32 %v3895, 0.25
      %v4039 = vmul.f32 %v3899, 0.25
      %v4040 = vmul.f32 %v3901, 0.25
      %v4041 = vmul.f32 %v3903, 0.25
      %v4042 = vmul.f32 %v3905, 0.25
      %v4043 = vmul.f32 %v3909, 0.25
      %v4044 = vmul.f32 %v3911, 0.25
      %v4045 = vmul.f32 %v3913, 0.25
      %v4046 = vmul.f32 %v3915, 0.25
      %v4047 = vmul.f32 %v3919, 0.25
      %v4048 = vmul.f32 %v3921, 0.25
      %v4049 = vmul.f32 %v3923, 0.25
      %v4050 = vmul.f32 %v3925, 0.25
      %v4051 = vmul.f32 %v3929, 0.25
      %v4052 = vmul.f32 %v3931, 0.25
      %v4053 = vmul.f32 %v3933, 0.25
      %v4054 = vmul.f32 %v3935, 0.25
      %v4055 = vmul.f32 %v3939, 0.25
      %v4056 = vmul.f32 %v3941, 0.25
      %v4057 = vmul.f32 %v3943, 0.25
      %v4058 = vmul.f32 %v3945, 0.25
      %v4059 = vmul.f32 %v3949, 0.25
      %v4060 = vmul.f32 %v3951, 0.25
      %v4061 = vmul.f32 %v3953, 0.25
      %v4062 = vmul.f32 %v3955, 0.25
      %v4063 = vmul.f32 %v3959, 0.25
      %v4064 = vmul.f32 %v3961, 0.25
      %v4065 = vmul.f32 %v3963, 0.25
      %v4066 = vmul.f32 %v3965, 0.25
      %v4067 = vmul.f32 %v3969, 0.25
      %v4068 = vmul.f32 %v3971, 0.25
      %v4069 = vmul.f32 %v3973, 0.25
      %v4070 = vmul.f32 %v3975, 0.25
      %v4071 = vmul.f32 %v3979, 0.25
      %v4072 = vmul.f32 %v3981, 0.25
      %v4073 = vmul.f32 %v3983, 0.25
      %v4074 = vmul.f32 %v3985, 0.25
      %v4075 = vmul.f32 %v3989, 0.25
      %v4076 = vmul.f32 %v3991, 0.25
      %v4077 = vmul.f32 %v3993, 0.25
      %v4078 = vmul.f32 %v3995, 0.25
      %v4079 = vmul.f32 %v3999, 0.25
      %v4080 = vmul.f32 %v4001, 0.25
      %v4081 = vmul.f32 %v4003, 0.25
      %v4082 = vmul.f32 %v4005, 0.25
      %v4083 = vmul.f32 %v4009, 0.25
      %v4084 = vmul.f32 %v4011, 0.25
      %v4085 = vmul.f32 %v4013, 0.25
      %v4086 = vmul.f32 %v4015, 0.25
      %v4087 = vmul.f32 %v4019, 0.25
      %v4088 = vmul.f32 %v4021, 0.25
      %v4089 = vmul.f32 %v4023, 0.25
      %v4090 = vmul.f32 %v4025, 0.25
      %v4091 = vmax.f32 %v4027, %v4028
      %4092 = vmax.xlane.f32.xlu0 %v4091
      %v4093 = vpop.xlane.xlu0 %4092
      %v4094 = vmax.f32 %v4029, %v4030
      %4095 = vmax.xlane.f32.xlu0 %v4094
      %v4096 = vpop.xlane.xlu0 %4095
      %v4097 = vmax.f32 %v4031, %v4032
      %4098 = vmax.xlane.f32.xlu0 %v4097
      %v4099 = vpop.xlane.xlu0 %4098
      %v4100 = vmax.f32 %v4033, %v4034
      %4101 = vmax.xlane.f32.xlu0 %v4100
      %v4102 = vpop.xlane.xlu0 %4101
      %v4103 = vmax.f32 %v4035, %v4036
      %4104 = vmax.xlane.f32.xlu0 %v4103
      %v4105 = vpop.xlane.xlu0 %4104
      %v4106 = vmax.f32 %v4037, %v4038
      %4107 = vmax.xlane.f32.xlu0 %v4106
      %v4108 = vpop.xlane.xlu0 %4107
      %v4109 = vmax.f32 %v4039, %v4040
      %4110 = vmax.xlane.f32.xlu0 %v4109
      %v4111 = vpop.xlane.xlu0 %4110
      %v4112 = vmax.f32 %v4041, %v4042
      %4113 = vmax.xlane.f32.xlu0 %v4112
      %v4114 = vpop.xlane.xlu0 %4113
      %v4115 = vmax.f32 %v4043, %v4044
      %4116 = vmax.xlane.f32.xlu0 %v4115
      %v4117 = vpop.xlane.xlu0 %4116
      %v4118 = vmax.f32 %v4045, %v4046
      %4119 = vmax.xlane.f32.xlu0 %v4118
      %v4120 = vpop.xlane.xlu0 %4119
      %v4121 = vmax.f32 %v4047, %v4048
      %4122 = vmax.xlane.f32.xlu0 %v4121
      %v4123 = vpop.xlane.xlu0 %4122
      %v4124 = vmax.f32 %v4049, %v4050
      %4125 = vmax.xlane.f32.xlu0 %v4124
      %v4126 = vpop.xlane.xlu0 %4125
      %v4127 = vmax.f32 %v4051, %v4052
      %4128 = vmax.xlane.f32.xlu0 %v4127
      %v4129 = vpop.xlane.xlu0 %4128
      %v4130 = vmax.f32 %v4053, %v4054
      %4131 = vmax.xlane.f32.xlu0 %v4130
      %v4132 = vpop.xlane.xlu0 %4131
      %v4133 = vmax.f32 %v4055, %v4056
      %4134 = vmax.xlane.f32.xlu0 %v4133
      %v4135 = vpop.xlane.xlu0 %4134
      %v4136 = vmax.f32 %v4057, %v4058
      %4137 = vmax.xlane.f32.xlu0 %v4136
      %v4138 = vpop.xlane.xlu0 %4137
      %v4139 = vmax.f32 %v4059, %v4060
      %4140 = vmax.xlane.f32.xlu0 %v4139
      %v4141 = vpop.xlane.xlu0 %4140
      %v4142 = vmax.f32 %v4061, %v4062
      %4143 = vmax.xlane.f32.xlu0 %v4142
      %v4144 = vpop.xlane.xlu0 %4143
      %v4145 = vmax.f32 %v4063, %v4064
      %4146 = vmax.xlane.f32.xlu0 %v4145
      %v4147 = vpop.xlane.xlu0 %4146
      %v4148 = vmax.f32 %v4065, %v4066
      %4149 = vmax.xlane.f32.xlu0 %v4148
      %v4150 = vpop.xlane.xlu0 %4149
      %v4151 = vmax.f32 %v4067, %v4068
      %4152 = vmax.xlane.f32.xlu0 %v4151
      %v4153 = vpop.xlane.xlu0 %4152
      %v4154 = vmax.f32 %v4069, %v4070
      %4155 = vmax.xlane.f32.xlu0 %v4154
      %v4156 = vpop.xlane.xlu0 %4155
      %v4157 = vmax.f32 %v4071, %v4072
      %4158 = vmax.xlane.f32.xlu0 %v4157
      %v4159 = vpop.xlane.xlu0 %4158
      %v4160 = vmax.f32 %v4073, %v4074
      %4161 = vmax.xlane.f32.xlu0 %v4160
      %v4162 = vpop.xlane.xlu0 %4161
      %v4163 = vmax.f32 %v4075, %v4076
      %4164 = vmax.xlane.f32.xlu0 %v4163
      %v4165 = vpop.xlane.xlu0 %4164
      %v4166 = vmax.f32 %v4077, %v4078
      %4167 = vmax.xlane.f32.xlu0 %v4166
      %v4168 = vpop.xlane.xlu0 %4167
      %v4169 = vmax.f32 %v4079, %v4080
      %4170 = vmax.xlane.f32.xlu0 %v4169
      %v4171 = vpop.xlane.xlu0 %4170
      %v4172 = vmax.f32 %v4081, %v4082
      %4173 = vmax.xlane.f32.xlu0 %v4172
      %v4174 = vpop.xlane.xlu0 %4173
      %v4175 = vmax.f32 %v4083, %v4084
      %4176 = vmax.xlane.f32.xlu0 %v4175
      %v4177 = vpop.xlane.xlu0 %4176
      %v4178 = vmax.f32 %v4085, %v4086
      %4179 = vmax.xlane.f32.xlu0 %v4178
      %v4180 = vpop.xlane.xlu0 %4179
      %v4181 = vmax.f32 %v4087, %v4088
      %4182 = vmax.xlane.f32.xlu0 %v4181
      %v4183 = vpop.xlane.xlu0 %4182
      %v4184 = vmax.f32 %v4089, %v4090
      %4185 = vmax.xlane.f32.xlu0 %v4184
      %v4186 = vpop.xlane.xlu0 %4185
      %v4187 = vsub.f32 %v4027, %v4093
      %v4188 = vsub.f32 %v4028, %v4093
      %v4189 = vsub.f32 %v4029, %v4096
      %v4190 = vsub.f32 %v4030, %v4096
      %v4191 = vsub.f32 %v4031, %v4099
      %v4192 = vsub.f32 %v4032, %v4099
      %v4193 = vsub.f32 %v4033, %v4102
      %v4194 = vsub.f32 %v4034, %v4102
      %v4195 = vsub.f32 %v4035, %v4105
      %v4196 = vsub.f32 %v4036, %v4105
      %v4197 = vsub.f32 %v4037, %v4108
      %v4198 = vsub.f32 %v4038, %v4108
      %v4199 = vsub.f32 %v4039, %v4111
      %v4200 = vsub.f32 %v4040, %v4111
      %v4201 = vsub.f32 %v4041, %v4114
      %v4202 = vsub.f32 %v4042, %v4114
      %v4203 = vsub.f32 %v4043, %v4117
      %v4204 = vsub.f32 %v4044, %v4117
      %v4205 = vsub.f32 %v4045, %v4120
      %v4206 = vsub.f32 %v4046, %v4120
      %v4207 = vsub.f32 %v4047, %v4123
      %v4208 = vsub.f32 %v4048, %v4123
      %v4209 = vsub.f32 %v4049, %v4126
      %v4210 = vsub.f32 %v4050, %v4126
      %v4211 = vsub.f32 %v4051, %v4129
      %v4212 = vsub.f32 %v4052, %v4129
      %v4213 = vsub.f32 %v4053, %v4132
      %v4214 = vsub.f32 %v4054, %v4132
      %v4215 = vsub.f32 %v4055, %v4135
      %v4216 = vsub.f32 %v4056, %v4135
      %v4217 = vsub.f32 %v4057, %v4138
      %v4218 = vsub.f32 %v4058, %v4138
      %v4219 = vsub.f32 %v4059, %v4141
      %v4220 = vsub.f32 %v4060, %v4141
      %v4221 = vsub.f32 %v4061, %v4144
      %v4222 = vsub.f32 %v4062, %v4144
      %v4223 = vsub.f32 %v4063, %v4147
      %v4224 = vsub.f32 %v4064, %v4147
      %v4225 = vsub.f32 %v4065, %v4150
      %v4226 = vsub.f32 %v4066, %v4150
      %v4227 = vsub.f32 %v4067, %v4153
      %v4228 = vsub.f32 %v4068, %v4153
      %v4229 = vsub.f32 %v4069, %v4156
      %v4230 = vsub.f32 %v4070, %v4156
      %v4231 = vsub.f32 %v4071, %v4159
      %v4232 = vsub.f32 %v4072, %v4159
      %v4233 = vsub.f32 %v4073, %v4162
      %v4234 = vsub.f32 %v4074, %v4162
      %v4235 = vsub.f32 %v4075, %v4165
      %v4236 = vsub.f32 %v4076, %v4165
      %v4237 = vsub.f32 %v4077, %v4168
      %v4238 = vsub.f32 %v4078, %v4168
      %v4239 = vsub.f32 %v4079, %v4171
      %v4240 = vsub.f32 %v4080, %v4171
      %v4241 = vsub.f32 %v4081, %v4174
      %v4242 = vsub.f32 %v4082, %v4174
      %v4243 = vsub.f32 %v4083, %v4177
      %v4244 = vsub.f32 %v4084, %v4177
      %v4245 = vsub.f32 %v4085, %v4180
      %v4246 = vsub.f32 %v4086, %v4180
      %v4247 = vsub.f32 %v4087, %v4183
      %v4248 = vsub.f32 %v4088, %v4183
      %v4249 = vsub.f32 %v4089, %v4186
      %v4250 = vsub.f32 %v4090, %v4186
      %v4251 = vmul.f32 %v4187, 1.442695
      %v4252 = vpow.pop %v4251
      %v4253 = vmul.f32 %v4188, 1.442695
      %v4254 = vpow.pop %v4253
      %v4255 = vmul.f32 %v4189, 1.442695
      %v4256 = vpow.pop %v4255
      %v4257 = vmul.f32 %v4190, 1.442695
      %v4258 = vpow.pop %v4257
      %v4259 = vmul.f32 %v4191, 1.442695
      %v4260 = vpow.pop %v4259
      %v4261 = vmul.f32 %v4192, 1.442695
      %v4262 = vpow.pop %v4261
      %v4263 = vmul.f32 %v4193, 1.442695
      %v4264 = vpow.pop %v4263
      %v4265 = vmul.f32 %v4194, 1.442695
      %v4266 = vpow.pop %v4265
      %v4267 = vmul.f32 %v4195, 1.442695
      %v4268 = vpow.pop %v4267
      %v4269 = vmul.f32 %v4196, 1.442695
      %v4270 = vpow.pop %v4269
      %v4271 = vmul.f32 %v4197, 1.442695
      %v4272 = vpow.pop %v4271
      %v4273 = vmul.f32 %v4198, 1.442695
      %v4274 = vpow.pop %v4273
      %v4275 = vmul.f32 %v4199, 1.442695
      %v4276 = vpow.pop %v4275
      %v4277 = vmul.f32 %v4200, 1.442695
      %v4278 = vpow.pop %v4277
      %v4279 = vmul.f32 %v4201, 1.442695
      %v4280 = vpow.pop %v4279
      %v4281 = vmul.f32 %v4202, 1.442695
      %v4282 = vpow.pop %v4281
      %v4283 = vmul.f32 %v4203, 1.442695
      %v4284 = vpow.pop %v4283
      %v4285 = vmul.f32 %v4204, 1.442695
      %v4286 = vpow.pop %v4285
      %v4287 = vmul.f32 %v4205, 1.442695
      %v4288 = vpow.pop %v4287
      %v4289 = vmul.f32 %v4206, 1.442695
      %v4290 = vpow.pop %v4289
      %v4291 = vmul.f32 %v4207, 1.442695
      %v4292 = vpow.pop %v4291
      %v4293 = vmul.f32 %v4208, 1.442695
      %v4294 = vpow.pop %v4293
      %v4295 = vmul.f32 %v4209, 1.442695
      %v4296 = vpow.pop %v4295
      %v4297 = vmul.f32 %v4210, 1.442695
      %v4298 = vpow.pop %v4297
      %v4299 = vmul.f32 %v4211, 1.442695
      %v4300 = vpow.pop %v4299
      %v4301 = vmul.f32 %v4212, 1.442695
      %v4302 = vpow.pop %v4301
      %v4303 = vmul.f32 %v4213, 1.442695
      %v4304 = vpow.pop %v4303
      %v4305 = vmul.f32 %v4214, 1.442695
      %v4306 = vpow.pop %v4305
      %v4307 = vmul.f32 %v4215, 1.442695
      %v4308 = vpow.pop %v4307
      %v4309 = vmul.f32 %v4216, 1.442695
      %v4310 = vpow.pop %v4309
      %v4311 = vmul.f32 %v4217, 1.442695
      %v4312 = vpow.pop %v4311
      %v4313 = vmul.f32 %v4218, 1.442695
      %v4314 = vpow.pop %v4313
      %v4315 = vmul.f32 %v4219, 1.442695
      %v4316 = vpow.pop %v4315
      %v4317 = vmul.f32 %v4220, 1.442695
      %v4318 = vpow.pop %v4317
      %v4319 = vmul.f32 %v4221, 1.442695
      %v4320 = vpow.pop %v4319
      %v4321 = vmul.f32 %v4222, 1.442695
      %v4322 = vpow.pop %v4321
      %v4323 = vmul.f32 %v4223, 1.442695
      %v4324 = vpow.pop %v4323
      %v4325 = vmul.f32 %v4224, 1.442695
      %v4326 = vpow.pop %v4325
      %v4327 = vmul.f32 %v4225, 1.442695
      %v4328 = vpow.pop %v4327
      %v4329 = vmul.f32 %v4226, 1.442695
      %v4330 = vpow.pop %v4329
      %v4331 = vmul.f32 %v4227, 1.442695
      %v4332 = vpow.pop %v4331
      %v4333 = vmul.f32 %v4228, 1.442695
      %v4334 = vpow.pop %v4333
      %v4335 = vmul.f32 %v4229, 1.442695
      %v4336 = vpow.pop %v4335
      %v4337 = vmul.f32 %v4230, 1.442695
      %v4338 = vpow.pop %v4337
      %v4339 = vmul.f32 %v4231, 1.442695
      %v4340 = vpow.pop %v4339
      %v4341 = vmul.f32 %v4232, 1.442695
      %v4342 = vpow.pop %v4341
      %v4343 = vmul.f32 %v4233, 1.442695
      %v4344 = vpow.pop %v4343
      %v4345 = vmul.f32 %v4234, 1.442695
      %v4346 = vpow.pop %v4345
      %v4347 = vmul.f32 %v4235, 1.442695
      %v4348 = vpow.pop %v4347
      %v4349 = vmul.f32 %v4236, 1.442695
      %v4350 = vpow.pop %v4349
      %v4351 = vmul.f32 %v4237, 1.442695
      %v4352 = vpow.pop %v4351
      %v4353 = vmul.f32 %v4238, 1.442695
      %v4354 = vpow.pop %v4353
      %v4355 = vmul.f32 %v4239, 1.442695
      %v4356 = vpow.pop %v4355
      %v4357 = vmul.f32 %v4240, 1.442695
      %v4358 = vpow.pop %v4357
      %v4359 = vmul.f32 %v4241, 1.442695
      %v4360 = vpow.pop %v4359
      %v4361 = vmul.f32 %v4242, 1.442695
      %v4362 = vpow.pop %v4361
      %v4363 = vmul.f32 %v4243, 1.442695
      %v4364 = vpow.pop %v4363
      %v4365 = vmul.f32 %v4244, 1.442695
      %v4366 = vpow.pop %v4365
      %v4367 = vmul.f32 %v4245, 1.442695
      %v4368 = vpow.pop %v4367
      %v4369 = vmul.f32 %v4246, 1.442695
      %v4370 = vpow.pop %v4369
      %v4371 = vmul.f32 %v4247, 1.442695
      %v4372 = vpow.pop %v4371
      %v4373 = vmul.f32 %v4248, 1.442695
      %v4374 = vpow.pop %v4373
      %v4375 = vmul.f32 %v4249, 1.442695
      %v4376 = vpow.pop %v4375
      %v4377 = vmul.f32 %v4250, 1.442695
      %v4378 = vpow.pop %v4377
      %v4379 = vadd.f32 %v4252, %v4254
      %4380 = vadd.xlane.f32.xlu0 %v4379
      %v4381 = vpop.xlane.xlu0 %4380
      %v4382 = vadd.f32 %v4256, %v4258
      %4383 = vadd.xlane.f32.xlu0 %v4382
      %v4384 = vpop.xlane.xlu0 %4383
      %v4385 = vadd.f32 %v4260, %v4262
      %4386 = vadd.xlane.f32.xlu0 %v4385
      %v4387 = vpop.xlane.xlu0 %4386
      %v4388 = vadd.f32 %v4264, %v4266
      %4389 = vadd.xlane.f32.xlu0 %v4388
      %v4390 = vpop.xlane.xlu0 %4389
      %v4391 = vadd.f32 %v4268, %v4270
      %4392 = vadd.xlane.f32.xlu0 %v4391
      %v4393 = vpop.xlane.xlu0 %4392
      %v4394 = vadd.f32 %v4272, %v4274
      %4395 = vadd.xlane.f32.xlu0 %v4394
      %v4396 = vpop.xlane.xlu0 %4395
      %v4397 = vadd.f32 %v4276, %v4278
      %4398 = vadd.xlane.f32.xlu0 %v4397
      %v4399 = vpop.xlane.xlu0 %4398
      %v4400 = vadd.f32 %v4280, %v4282
      %4401 = vadd.xlane.f32.xlu0 %v4400
      %v4402 = vpop.xlane.xlu0 %4401
      %v4403 = vadd.f32 %v4284, %v4286
      %4404 = vadd.xlane.f32.xlu0 %v4403
      %v4405 = vpop.xlane.xlu0 %4404
      %v4406 = vadd.f32 %v4288, %v4290
      %4407 = vadd.xlane.f32.xlu0 %v4406
      %v4408 = vpop.xlane.xlu0 %4407
      %v4409 = vadd.f32 %v4292, %v4294
      %4410 = vadd.xlane.f32.xlu0 %v4409
      %v4411 = vpop.xlane.xlu0 %4410
      %v4412 = vadd.f32 %v4296, %v4298
      %4413 = vadd.xlane.f32.xlu0 %v4412
      %v4414 = vpop.xlane.xlu0 %4413
      %v4415 = vadd.f32 %v4300, %v4302
      %4416 = vadd.xlane.f32.xlu0 %v4415
      %v4417 = vpop.xlane.xlu0 %4416
      %v4418 = vadd.f32 %v4304, %v4306
      %4419 = vadd.xlane.f32.xlu0 %v4418
      %v4420 = vpop.xlane.xlu0 %4419
      %v4421 = vadd.f32 %v4308, %v4310
      %4422 = vadd.xlane.f32.xlu0 %v4421
      %v4423 = vpop.xlane.xlu0 %4422
      %v4424 = vadd.f32 %v4312, %v4314
      %4425 = vadd.xlane.f32.xlu0 %v4424
      %v4426 = vpop.xlane.xlu0 %4425
      %v4427 = vadd.f32 %v4316, %v4318
      %4428 = vadd.xlane.f32.xlu0 %v4427
      %v4429 = vpop.xlane.xlu0 %4428
      %v4430 = vadd.f32 %v4320, %v4322
      %4431 = vadd.xlane.f32.xlu0 %v4430
      %v4432 = vpop.xlane.xlu0 %4431
      %v4433 = vadd.f32 %v4324, %v4326
      %4434 = vadd.xlane.f32.xlu0 %v4433
      %v4435 = vpop.xlane.xlu0 %4434
      %v4436 = vadd.f32 %v4328, %v4330
      %4437 = vadd.xlane.f32.xlu0 %v4436
      %v4438 = vpop.xlane.xlu0 %4437
      %v4439 = vadd.f32 %v4332, %v4334
      %4440 = vadd.xlane.f32.xlu0 %v4439
      %v4441 = vpop.xlane.xlu0 %4440
      %v4442 = vadd.f32 %v4336, %v4338
      %4443 = vadd.xlane.f32.xlu0 %v4442
      %v4444 = vpop.xlane.xlu0 %4443
      %v4445 = vadd.f32 %v4340, %v4342
      %4446 = vadd.xlane.f32.xlu0 %v4445
      %v4447 = vpop.xlane.xlu0 %4446
      %v4448 = vadd.f32 %v4344, %v4346
      %4449 = vadd.xlane.f32.xlu0 %v4448
      %v4450 = vpop.xlane.xlu0 %4449
      %v4451 = vadd.f32 %v4348, %v4350
      %4452 = vadd.xlane.f32.xlu0 %v4451
      %v4453 = vpop.xlane.xlu0 %4452
      %v4454 = vadd.f32 %v4352, %v4354
      %4455 = vadd.xlane.f32.xlu0 %v4454
      %v4456 = vpop.xlane.xlu0 %4455
      %v4457 = vadd.f32 %v4356, %v4358
      %4458 = vadd.xlane.f32.xlu0 %v4457
      %v4459 = vpop.xlane.xlu0 %4458
      %v4460 = vadd.f32 %v4360, %v4362
      %4461 = vadd.xlane.f32.xlu0 %v4460
      %v4462 = vpop.xlane.xlu0 %4461
      %v4463 = vadd.f32 %v4364, %v4366
      %4464 = vadd.xlane.f32.xlu0 %v4463
      %v4465 = vpop.xlane.xlu0 %4464
      %v4466 = vadd.f32 %v4368, %v4370
      %4467 = vadd.xlane.f32.xlu0 %v4466
      %v4468 = vpop.xlane.xlu0 %4467
      %v4469 = vadd.f32 %v4372, %v4374
      %4470 = vadd.xlane.f32.xlu0 %v4469
      %v4471 = vpop.xlane.xlu0 %4470
      %v4472 = vadd.f32 %v4376, %v4378
      %4473 = vadd.xlane.f32.xlu0 %v4472
      %v4474 = vpop.xlane.xlu0 %4473
      %v4475 = vrcp.pop %v4381
      %v4476 = vrcp.pop %v4384
      %v4477 = vrcp.pop %v4387
      %v4478 = vrcp.pop %v4390
      %v4479 = vrcp.pop %v4393
      %v4480 = vrcp.pop %v4396
      %v4481 = vrcp.pop %v4399
      %v4482 = vrcp.pop %v4402
      %v4483 = vrcp.pop %v4405
      %v4484 = vrcp.pop %v4408
      %v4485 = vrcp.pop %v4411
      %v4486 = vrcp.pop %v4414
      %v4487 = vrcp.pop %v4417
      %v4488 = vrcp.pop %v4420
      %v4489 = vrcp.pop %v4423
      %v4490 = vrcp.pop %v4426
      %v4491 = vrcp.pop %v4429
      %v4492 = vrcp.pop %v4432
      %v4493 = vrcp.pop %v4435
      %v4494 = vrcp.pop %v4438
      %v4495 = vrcp.pop %v4441
      %v4496 = vrcp.pop %v4444
      %v4497 = vrcp.pop %v4447
      %v4498 = vrcp.pop %v4450
      %v4499 = vrcp.pop %v4453
      %v4500 = vrcp.pop %v4456
      %v4501 = vrcp.pop %v4459
      %v4502 = vrcp.pop %v4462
      %v4503 = vrcp.pop %v4465
      %v4504 = vrcp.pop %v4468
      %v4505 = vrcp.pop %v4471
      %v4506 = vrcp.pop %v4474
      %v4507 = vmul.f32 %v4252, %v4475
      %v4508 = vmul.f32 %v4254, %v4475
      %v4509 = vmul.f32 %v4256, %v4476
      %v4510 = vmul.f32 %v4258, %v4476
      %v4511 = vmul.f32 %v4260, %v4477
      %v4512 = vmul.f32 %v4262, %v4477
      %v4513 = vmul.f32 %v4264, %v4478
      %v4514 = vmul.f32 %v4266, %v4478
      %v4515 = vmul.f32 %v4268, %v4479
      %v4516 = vmul.f32 %v4270, %v4479
      %v4517 = vmul.f32 %v4272, %v4480
      %v4518 = vmul.f32 %v4274, %v4480
      %v4519 = vmul.f32 %v4276, %v4481
      %v4520 = vmul.f32 %v4278, %v4481
      %v4521 = vmul.f32 %v4280, %v4482
      %v4522 = vmul.f32 %v4282, %v4482
      %v4523 = vmul.f32 %v4284, %v4483
      %v4524 = vmul.f32 %v4286, %v4483
      %v4525 = vmul.f32 %v4288, %v4484
      %v4526 = vmul.f32 %v4290, %v4484
      %v4527 = vmul.f32 %v4292, %v4485
      %v4528 = vmul.f32 %v4294, %v4485
      %v4529 = vmul.f32 %v4296, %v4486
      %v4530 = vmul.f32 %v4298, %v4486
      %v4531 = vmul.f32 %v4300, %v4487
      %v4532 = vmul.f32 %v4302, %v4487
      %v4533 = vmul.f32 %v4304, %v4488
      %v4534 = vmul.f32 %v4306, %v4488
      %v4535 = vmul.f32 %v4308, %v4489
      %v4536 = vmul.f32 %v4310, %v4489
      %v4537 = vmul.f32 %v4312, %v4490
      %v4538 = vmul.f32 %v4314, %v4490
      %v4539 = vmul.f32 %v4316, %v4491
      %v4540 = vmul.f32 %v4318, %v4491
      %v4541 = vmul.f32 %v4320, %v4492
      %v4542 = vmul.f32 %v4322, %v4492
      %v4543 = vmul.f32 %v4324, %v4493
      %v4544 = vmul.f32 %v4326, %v4493
      %v4545 = vmul.f32 %v4328, %v4494
      %v4546 = vmul.f32 %v4330, %v4494
      %v4547 = vmul.f32 %v4332, %v4495
      %v4548 = vmul.f32 %v4334, %v4495
      %v4549 = vmul.f32 %v4336, %v4496
      %v4550 = vmul.f32 %v4338, %v4496
      %v4551 = vmul.f32 %v4340, %v4497
      %v4552 = vmul.f32 %v4342, %v4497
      %v4553 = vmul.f32 %v4344, %v4498
      %v4554 = vmul.f32 %v4346, %v4498
      %v4555 = vmul.f32 %v4348, %v4499
      %v4556 = vmul.f32 %v4350, %v4499
      %v4557 = vmul.f32 %v4352, %v4500
      %v4558 = vmul.f32 %v4354, %v4500
      %v4559 = vmul.f32 %v4356, %v4501
      %v4560 = vmul.f32 %v4358, %v4501
      %v4561 = vmul.f32 %v4360, %v4502
      %v4562 = vmul.f32 %v4362, %v4502
      %v4563 = vmul.f32 %v4364, %v4503
      %v4564 = vmul.f32 %v4366, %v4503
      %v4565 = vmul.f32 %v4368, %v4504
      %v4566 = vmul.f32 %v4370, %v4504
      %v4567 = vmul.f32 %v4372, %v4505
      %v4568 = vmul.f32 %v4374, %v4505
      %v4569 = vmul.f32 %v4376, %v4506
      %v4570 = vmul.f32 %v4378, %v4506
      %v4571 = vpack.c.bf16 %v4509, %v4507
      %v4572 = vpack.c.bf16 %v4510, %v4508
      %v4573 = vpack.c.bf16 %v4513, %v4511
      %v4574 = vpack.c.bf16 %v4514, %v4512
      %v4575 = vpack.c.bf16 %v4517, %v4515
      %v4576 = vpack.c.bf16 %v4518, %v4516
      %v4577 = vpack.c.bf16 %v4521, %v4519
      %v4578 = vpack.c.bf16 %v4522, %v4520
      %v4579 = vpack.c.bf16 %v4525, %v4523
      %v4580 = vpack.c.bf16 %v4526, %v4524
      %v4581 = vpack.c.bf16 %v4529, %v4527
      %v4582 = vpack.c.bf16 %v4530, %v4528
      %v4583 = vpack.c.bf16 %v4533, %v4531
      %v4584 = vpack.c.bf16 %v4534, %v4532
      %v4585 = vpack.c.bf16 %v4537, %v4535
      %v4586 = vpack.c.bf16 %v4538, %v4536
      %v4587 = vpack.c.bf16 %v4541, %v4539
      %v4588 = vpack.c.bf16 %v4542, %v4540
      %v4589 = vpack.c.bf16 %v4545, %v4543
      %v4590 = vpack.c.bf16 %v4546, %v4544
      %v4591 = vpack.c.bf16 %v4549, %v4547
      %v4592 = vpack.c.bf16 %v4550, %v4548
      %v4593 = vpack.c.bf16 %v4553, %v4551
      %v4594 = vpack.c.bf16 %v4554, %v4552
      %v4595 = vpack.c.bf16 %v4557, %v4555
      %v4596 = vpack.c.bf16 %v4558, %v4556
      %v4597 = vpack.c.bf16 %v4561, %v4559
      %v4598 = vpack.c.bf16 %v4562, %v4560
      %v4599 = vpack.c.bf16 %v4565, %v4563
      %v4600 = vpack.c.bf16 %v4566, %v4564
      %v4601 = vpack.c.bf16 %v4569, %v4567
      %v4602 = vpack.c.bf16 %v4570, %v4568
      %4603 = vrot.lane.b32.xlu0 %v3690, 96
      %v4604 = vpop.permute.xlu0 %4603
      %4605 = vrot.lane.b32.xlu0 %v3691, 96
      %v4606 = vpop.permute.xlu0 %4605
      %4607 = vrot.lane.b32.xlu0 %v3692, 96
      %v4608 = vpop.permute.xlu0 %4607
      %4609 = vrot.lane.b32.xlu0 %v3693, 96
      %v4610 = vpop.permute.xlu0 %4609
      %4611 = vrot.lane.b32.xlu0 %v3694, 96
      %v4612 = vpop.permute.xlu0 %4611
      %4613 = vrot.lane.b32.xlu0 %v3695, 96
      %v4614 = vpop.permute.xlu0 %4613
      %4615 = vrot.lane.b32.xlu0 %v3696, 96
      %v4616 = vpop.permute.xlu0 %4615
      %4617 = vrot.lane.b32.xlu0 %v3697, 96
      %v4618 = vpop.permute.xlu0 %4617
      %4619 = vrot.lane.b32.xlu0 %v3698, 96
      %v4620 = vpop.permute.xlu0 %4619
      %4621 = vrot.lane.b32.xlu0 %v3699, 96
      %v4622 = vpop.permute.xlu0 %4621
      %4623 = vrot.lane.b32.xlu0 %v3700, 96
      %v4624 = vpop.permute.xlu0 %4623
      %4625 = vrot.lane.b32.xlu0 %v3701, 96
      %v4626 = vpop.permute.xlu0 %4625
      %4627 = vrot.lane.b32.xlu0 %v3702, 96
      %v4628 = vpop.permute.xlu0 %4627
      %4629 = vrot.lane.b32.xlu0 %v3703, 96
      %v4630 = vpop.permute.xlu0 %4629
      %4631 = vrot.lane.b32.xlu0 %v3704, 96
      %v4632 = vpop.permute.xlu0 %4631
      %4633 = vrot.lane.b32.xlu0 %v3705, 96
      %v4634 = vpop.permute.xlu0 %4633
      %4651 = vmatprep.subr.bf16.mxu0 0
      %4652 = vmatpush1.bf16.msra.mxu0 %v4618
      %4653 = vmatprep.subr.bf16.mxu0 0
      %4654 = vmatpush1.bf16.msra.mxu0 %v4616
      %4655 = vmatprep.subr.bf16.mxu0 0
      %4656 = vmatpush1.bf16.msra.mxu0 %v4614
      %4657 = vmatprep.subr.bf16.mxu0 0
      %4658 = vmatpush1.bf16.msra.mxu0 %v4612
      %4659 = vmatprep.subr.bf16.mxu0 0
      %4660 = vmatpush1.bf16.msra.mxu0 %v4610
      %4661 = vmatprep.subr.bf16.mxu0 0
      %4662 = vmatpush1.bf16.msra.mxu0 %v4608
      %4663 = vmatprep.subr.bf16.mxu0 0
      %4664 = vmatpush1.bf16.msra.mxu0 %v4606
      %4665 = vmatprep.subr.bf16.mxu0 0
      %4666 = vmatpush1.bf16.msra.mxu0 %v4604
      %4667 = vmatprep.subr.bf16.mxu0 0
      %4668 = vmatpush2.bf16.msra.mxu0 %v4634
      %4669 = vmatprep.subr.bf16.mxu0 0
      %4670 = vmatpush2.bf16.msra.mxu0 %v4632
      %4671 = vmatprep.subr.bf16.mxu0 0
      %4672 = vmatpush2.bf16.msra.mxu0 %v4630
      %4673 = vmatprep.subr.bf16.mxu0 0
      %4674 = vmatpush2.bf16.msra.mxu0 %v4628
      %4675 = vmatprep.subr.bf16.mxu0 0
      %4676 = vmatpush2.bf16.msra.mxu0 %v4626
      %4677 = vmatprep.subr.bf16.mxu0 0
      %4678 = vmatpush2.bf16.msra.mxu0 %v4624
      %4679 = vmatprep.subr.bf16.mxu0 0
      %4680 = vmatpush2.bf16.msra.mxu0 %v4622
      %4681 = vmatprep.subr.bf16.mxu0 0
      %4682 = vmatpush2.bf16.msra.mxu0 %v4620
      %4683 = vmatprep.mubr.bf16.mxu0 %v4572
      %4684 = vmatmul.mubr.bf16.gmra.mxu0 %v4571
      %v4685 = vpop.f32.mrf.mxu0
      %v4686 = vadd.f32 0.0, %v4685
      %v4687 = vpop.f32.mrf.mxu0
      %v4688 = vpop.f32.mrf.mxu0
      %v4689 = vadd.f32 0.0, %v4688
      %v4690 = vpop.f32.mrf.mxu0
      %4691 = vmatprep.mubr.bf16.mxu0 %v4574
      %4692 = vmatmul.mubr.bf16.gmra.mxu0 %v4573
      %v4693 = vpop.f32.mrf.mxu0
      %v4694 = vadd.f32 0.0, %v4693
      %v4695 = vpop.f32.mrf.mxu0
      %v4696 = vpop.f32.mrf.mxu0
      %v4697 = vadd.f32 0.0, %v4696
      %v4698 = vpop.f32.mrf.mxu0
      %4699 = vmatprep.mubr.bf16.mxu0 %v4576
      %4700 = vmatmul.mubr.bf16.gmra.mxu0 %v4575
      %v4701 = vpop.f32.mrf.mxu0
      %v4702 = vadd.f32 0.0, %v4701
      %v4703 = vpop.f32.mrf.mxu0
      %v4704 = vpop.f32.mrf.mxu0
      %v4705 = vadd.f32 0.0, %v4704
      %v4706 = vpop.f32.mrf.mxu0
      %4707 = vmatprep.mubr.bf16.mxu0 %v4578
      %4708 = vmatmul.mubr.bf16.gmra.mxu0 %v4577
      %v4709 = vpop.f32.mrf.mxu0
      %v4710 = vadd.f32 0.0, %v4709
      %v4711 = vpop.f32.mrf.mxu0
      %v4712 = vpop.f32.mrf.mxu0
      %v4713 = vadd.f32 0.0, %v4712
      %v4714 = vpop.f32.mrf.mxu0
      %4715 = vmatprep.mubr.bf16.mxu0 %v4580
      %4716 = vmatmul.mubr.bf16.gmra.mxu0 %v4579
      %v4717 = vpop.f32.mrf.mxu0
      %v4718 = vadd.f32 0.0, %v4717
      %v4719 = vpop.f32.mrf.mxu0
      %v4720 = vpop.f32.mrf.mxu0
      %v4721 = vadd.f32 0.0, %v4720
      %v4722 = vpop.f32.mrf.mxu0
      %4723 = vmatprep.mubr.bf16.mxu0 %v4582
      %4724 = vmatmul.mubr.bf16.gmra.mxu0 %v4581
      %v4725 = vpop.f32.mrf.mxu0
      %v4726 = vadd.f32 0.0, %v4725
      %v4727 = vpop.f32.mrf.mxu0
      %v4728 = vpop.f32.mrf.mxu0
      %v4729 = vadd.f32 0.0, %v4728
      %v4730 = vpop.f32.mrf.mxu0
      %4731 = vmatprep.mubr.bf16.mxu0 %v4584
      %4732 = vmatmul.mubr.bf16.gmra.mxu0 %v4583
      %v4733 = vpop.f32.mrf.mxu0
      %v4734 = vadd.f32 0.0, %v4733
      %v4735 = vpop.f32.mrf.mxu0
      %v4736 = vpop.f32.mrf.mxu0
      %v4737 = vadd.f32 0.0, %v4736
      %v4738 = vpop.f32.mrf.mxu0
      %4739 = vmatprep.mubr.bf16.mxu0 %v4586
      %4740 = vmatmul.mubr.bf16.gmra.mxu0 %v4585
      %v4741 = vpop.f32.mrf.mxu0
      %v4742 = vadd.f32 0.0, %v4741
      %v4743 = vpop.f32.mrf.mxu0
      %v4744 = vpop.f32.mrf.mxu0
      %v4745 = vadd.f32 0.0, %v4744
      %v4746 = vpop.f32.mrf.mxu0
      %4747 = vmatprep.mubr.bf16.mxu0 %v4588
      %4748 = vmatmul.mubr.bf16.gmra.mxu0 %v4587
      %v4749 = vpop.f32.mrf.mxu0
      %v4750 = vadd.f32 0.0, %v4749
      %v4751 = vpop.f32.mrf.mxu0
      %v4752 = vpop.f32.mrf.mxu0
      %v4753 = vadd.f32 0.0, %v4752
      %v4754 = vpop.f32.mrf.mxu0
      %4755 = vmatprep.mubr.bf16.mxu0 %v4590
      %4756 = vmatmul.mubr.bf16.gmra.mxu0 %v4589
      %v4757 = vpop.f32.mrf.mxu0
      %v4758 = vadd.f32 0.0, %v4757
      %v4759 = vpop.f32.mrf.mxu0
      %v4760 = vpop.f32.mrf.mxu0
      %v4761 = vadd.f32 0.0, %v4760
      %v4762 = vpop.f32.mrf.mxu0
      %4763 = vmatprep.mubr.bf16.mxu0 %v4592
      %4764 = vmatmul.mubr.bf16.gmra.mxu0 %v4591
      %v4765 = vpop.f32.mrf.mxu0
      %v4766 = vadd.f32 0.0, %v4765
      %v4767 = vpop.f32.mrf.mxu0
      %v4768 = vpop.f32.mrf.mxu0
      %v4769 = vadd.f32 0.0, %v4768
      %v4770 = vpop.f32.mrf.mxu0
      %4771 = vmatprep.mubr.bf16.mxu0 %v4594
      %4772 = vmatmul.mubr.bf16.gmra.mxu0 %v4593
      %v4773 = vpop.f32.mrf.mxu0
      %v4774 = vadd.f32 0.0, %v4773
      %v4775 = vpop.f32.mrf.mxu0
      %v4776 = vpop.f32.mrf.mxu0
      %v4777 = vadd.f32 0.0, %v4776
      %v4778 = vpop.f32.mrf.mxu0
      %4779 = vmatprep.mubr.bf16.mxu0 %v4596
      %4780 = vmatmul.mubr.bf16.gmra.mxu0 %v4595
      %v4781 = vpop.f32.mrf.mxu0
      %v4782 = vadd.f32 0.0, %v4781
      %v4783 = vpop.f32.mrf.mxu0
      %v4784 = vpop.f32.mrf.mxu0
      %v4785 = vadd.f32 0.0, %v4784
      %v4786 = vpop.f32.mrf.mxu0
      %4787 = vmatprep.mubr.bf16.mxu0 %v4598
      %4788 = vmatmul.mubr.bf16.gmra.mxu0 %v4597
      %v4789 = vpop.f32.mrf.mxu0
      %v4790 = vadd.f32 0.0, %v4789
      %v4791 = vpop.f32.mrf.mxu0
      %v4792 = vpop.f32.mrf.mxu0
      %v4793 = vadd.f32 0.0, %v4792
      %v4794 = vpop.f32.mrf.mxu0
      %4795 = vmatprep.mubr.bf16.mxu0 %v4600
      %4796 = vmatmul.mubr.bf16.gmra.mxu0 %v4599
      %v4797 = vpop.f32.mrf.mxu0
      %v4798 = vadd.f32 0.0, %v4797
      %v4799 = vpop.f32.mrf.mxu0
      %v4800 = vpop.f32.mrf.mxu0
      %v4801 = vadd.f32 0.0, %v4800
      %v4802 = vpop.f32.mrf.mxu0
      %4803 = vmatprep.mubr.bf16.mxu0 %v4602
      %4804 = vmatmul.mubr.bf16.gmra.mxu0 %v4601
      %v4805 = vpop.f32.mrf.mxu0
      %v4806 = vadd.f32 0.0, %v4805
      %v4807 = vpop.f32.mrf.mxu0
      %v4808 = vpop.f32.mrf.mxu0
      %v4809 = vadd.f32 0.0, %v4808
      %v4810 = vpop.f32.mrf.mxu0
      %4811 = vdwg.mxu0
      %v4812 = vpack.c.bf16 %v4689, %v4686
      %v4813 = vpack.c.bf16 %v4697, %v4694
      %v4814 = vpack.c.bf16 %v4705, %v4702
      %v4815 = vpack.c.bf16 %v4713, %v4710
      %v4816 = vpack.c.bf16 %v4721, %v4718
      %v4817 = vpack.c.bf16 %v4729, %v4726
      %v4818 = vpack.c.bf16 %v4737, %v4734
      %v4819 = vpack.c.bf16 %v4745, %v4742
      %v4820 = vpack.c.bf16 %v4753, %v4750
      %v4821 = vpack.c.bf16 %v4761, %v4758
      %v4822 = vpack.c.bf16 %v4769, %v4766
      %v4823 = vpack.c.bf16 %v4777, %v4774
      %v4824 = vpack.c.bf16 %v4785, %v4782
      %v4825 = vpack.c.bf16 %v4793, %v4790
      %v4826 = vpack.c.bf16 %v4801, %v4798
      %v4827 = vpack.c.bf16 %v4809, %v4806
      %v4828 = vld [vmem:[%s3 + $0x20] sm:$0xf]
      %v4829 = vld [vmem:[%s3 + $0x24] sm:$0xf]
      %v4830 = vld [vmem:[%s3 + $0x28] sm:$0xf]
      %v4831 = vld [vmem:[%s3 + $0x2c] sm:$0xf]
      %v4836 = vunpack.c.l.b16 %v4828
      %v4837 = vunpack.c.l.b16 %v4829
      %v4838 = vunpack.c.l.b16 %v4830
      %v4839 = vunpack.c.l.b16 %v4831
      %v4840 = vpack.c.b16 %v4837, %v4836
      %v4841 = vpack.c.b16 %v4839, %v4838
      %v4845 = vsel %vm1941, %v4812, 0
      %v4848 = vsel %vm1941, %v4813, 0
      %v4851 = vsel %vm1941, %v4814, 0
      %v4854 = vsel %vm1941, %v4815, 0
      %v4857 = vsel %vm1941, %v4816, 0
      %v4860 = vsel %vm1941, %v4817, 0
      %v4863 = vsel %vm1941, %v4818, 0
      %v4866 = vsel %vm1941, %v4819, 0
      %v4869 = vsel %vm1941, %v4820, 0
      %v4872 = vsel %vm1941, %v4821, 0
      %v4875 = vsel %vm1941, %v4822, 0
      %v4878 = vsel %vm1941, %v4823, 0
      %v4881 = vsel %vm1941, %v4824, 0
      %v4884 = vsel %vm1941, %v4825, 0
      %v4887 = vsel %vm1941, %v4826, 0
      %v4890 = vsel %vm1941, %v4827, 0
      %4892 = vmatprep.subr.bf16.mxu0 0
      %4893 = vmatpush1.bf16.msra.mxu0 0
      %4894 = vmatprep.subr.bf16.mxu0 0
      %4895 = vmatpush1.bf16.msra.mxu0 0
      %4896 = vmatprep.subr.bf16.mxu0 0
      %4897 = vmatpush1.bf16.msra.mxu0 0
      %4898 = vmatprep.subr.bf16.mxu0 0
      %4899 = vmatpush1.bf16.msra.mxu0 0
      %4900 = vmatprep.subr.bf16.mxu0 0
      %4901 = vmatpush1.bf16.msra.mxu0 0
      %4902 = vmatprep.subr.bf16.mxu0 0
      %4903 = vmatpush1.bf16.msra.mxu0 0
      %4904 = vmatprep.subr.bf16.mxu0 0
      %4905 = vmatpush1.bf16.msra.mxu0 %v4841
      %4906 = vmatprep.subr.bf16.mxu0 0
      %4907 = vmatpush1.bf16.msra.mxu0 %v4840
      %4908 = vmatprep.subr.bf16.mxu0 0
      %4909 = vmatpush2.bf16.msra.mxu0 0
      %4910 = vmatprep.subr.bf16.mxu0 0
      %4911 = vmatpush2.bf16.msra.mxu0 0
      %4912 = vmatprep.subr.bf16.mxu0 0
      %4913 = vmatpush2.bf16.msra.mxu0 0
      %4914 = vmatprep.subr.bf16.mxu0 0
      %4915 = vmatpush2.bf16.msra.mxu0 0
      %4916 = vmatprep.subr.bf16.mxu0 0
      %4917 = vmatpush2.bf16.msra.mxu0 0
      %4918 = vmatprep.subr.bf16.mxu0 0
      %4919 = vmatpush2.bf16.msra.mxu0 0
      %4920 = vmatprep.subr.bf16.mxu0 0
      %4921 = vmatpush2.bf16.msra.mxu0 0
      %4922 = vmatprep.subr.bf16.mxu0 0
      %4923 = vmatpush2.bf16.msra.mxu0 0
      %4924 = vmatprep.mubr.bf16.mxu0 0
      %4925 = vmatmul.mubr.bf16.gmra.mxu0 %v4845
      %v4926 = vpop.f32.mrf.mxu0
      %v4927 = vadd.f32 0.0, %v4926
      %v4928 = vpop.f32.mrf.mxu0
      %v4929 = vpop.f32.mrf.mxu0
      %v4930 = vadd.f32 0.0, %v4929
      %v4931 = vpop.f32.mrf.mxu0
      %4932 = vmatprep.mubr.bf16.mxu0 0
      %4933 = vmatmul.mubr.bf16.gmra.mxu0 %v4848
      %v4934 = vpop.f32.mrf.mxu0
      %v4935 = vadd.f32 0.0, %v4934
      %v4936 = vpop.f32.mrf.mxu0
      %v4937 = vpop.f32.mrf.mxu0
      %v4938 = vadd.f32 0.0, %v4937
      %v4939 = vpop.f32.mrf.mxu0
      %4940 = vmatprep.mubr.bf16.mxu0 0
      %4941 = vmatmul.mubr.bf16.gmra.mxu0 %v4851
      %v4942 = vpop.f32.mrf.mxu0
      %v4943 = vadd.f32 0.0, %v4942
      %v4944 = vpop.f32.mrf.mxu0
      %v4945 = vpop.f32.mrf.mxu0
      %v4946 = vadd.f32 0.0, %v4945
      %v4947 = vpop.f32.mrf.mxu0
      %4948 = vmatprep.mubr.bf16.mxu0 0
      %4949 = vmatmul.mubr.bf16.gmra.mxu0 %v4854
      %v4950 = vpop.f32.mrf.mxu0
      %v4951 = vadd.f32 0.0, %v4950
      %v4952 = vpop.f32.mrf.mxu0
      %v4953 = vpop.f32.mrf.mxu0
      %v4954 = vadd.f32 0.0, %v4953
      %v4955 = vpop.f32.mrf.mxu0
      %4956 = vmatprep.mubr.bf16.mxu0 0
      %4957 = vmatmul.mubr.bf16.gmra.mxu0 %v4857
      %v4958 = vpop.f32.mrf.mxu0
      %v4959 = vadd.f32 0.0, %v4958
      %v4960 = vpop.f32.mrf.mxu0
      %v4961 = vpop.f32.mrf.mxu0
      %v4962 = vadd.f32 0.0, %v4961
      %v4963 = vpop.f32.mrf.mxu0
      %4964 = vmatprep.mubr.bf16.mxu0 0
      %4965 = vmatmul.mubr.bf16.gmra.mxu0 %v4860
      %v4966 = vpop.f32.mrf.mxu0
      %v4967 = vadd.f32 0.0, %v4966
      %v4968 = vpop.f32.mrf.mxu0
      %v4969 = vpop.f32.mrf.mxu0
      %v4970 = vadd.f32 0.0, %v4969
      %v4971 = vpop.f32.mrf.mxu0
      %4972 = vmatprep.mubr.bf16.mxu0 0
      %4973 = vmatmul.mubr.bf16.gmra.mxu0 %v4863
      %v4974 = vpop.f32.mrf.mxu0
      %v4975 = vadd.f32 0.0, %v4974
      %v4976 = vpop.f32.mrf.mxu0
      %v4977 = vpop.f32.mrf.mxu0
      %v4978 = vadd.f32 0.0, %v4977
      %v4979 = vpop.f32.mrf.mxu0
      %4980 = vmatprep.mubr.bf16.mxu0 0
      %4981 = vmatmul.mubr.bf16.gmra.mxu0 %v4866
      %v4982 = vpop.f32.mrf.mxu0
      %v4983 = vadd.f32 0.0, %v4982
      %v4984 = vpop.f32.mrf.mxu0
      %v4985 = vpop.f32.mrf.mxu0
      %v4986 = vadd.f32 0.0, %v4985
      %v4987 = vpop.f32.mrf.mxu0
      %4988 = vmatprep.mubr.bf16.mxu0 0
      %4989 = vmatmul.mubr.bf16.gmra.mxu0 %v4869
      %v4990 = vpop.f32.mrf.mxu0
      %v4991 = vadd.f32 0.0, %v4990
      %v4992 = vpop.f32.mrf.mxu0
      %v4993 = vpop.f32.mrf.mxu0
      %v4994 = vadd.f32 0.0, %v4993
      %v4995 = vpop.f32.mrf.mxu0
      %4996 = vmatprep.mubr.bf16.mxu0 0
      %4997 = vmatmul.mubr.bf16.gmra.mxu0 %v4872
      %v4998 = vpop.f32.mrf.mxu0
      %v4999 = vadd.f32 0.0, %v4998
      %v5000 = vpop.f32.mrf.mxu0
      %v5001 = vpop.f32.mrf.mxu0
      %v5002 = vadd.f32 0.0, %v5001
      %v5003 = vpop.f32.mrf.mxu0
      %5004 = vmatprep.mubr.bf16.mxu0 0
      %5005 = vmatmul.mubr.bf16.gmra.mxu0 %v4875
      %v5006 = vpop.f32.mrf.mxu0
      %v5007 = vadd.f32 0.0, %v5006
      %v5008 = vpop.f32.mrf.mxu0
      %v5009 = vpop.f32.mrf.mxu0
      %v5010 = vadd.f32 0.0, %v5009
      %v5011 = vpop.f32.mrf.mxu0
      %5012 = vmatprep.mubr.bf16.mxu0 0
      %5013 = vmatmul.mubr.bf16.gmra.mxu0 %v4878
      %v5014 = vpop.f32.mrf.mxu0
      %v5015 = vadd.f32 0.0, %v5014
      %v5016 = vpop.f32.mrf.mxu0
      %v5017 = vpop.f32.mrf.mxu0
      %v5018 = vadd.f32 0.0, %v5017
      %v5019 = vpop.f32.mrf.mxu0
      %5020 = vmatprep.mubr.bf16.mxu0 0
      %5021 = vmatmul.mubr.bf16.gmra.mxu0 %v4881
      %v5022 = vpop.f32.mrf.mxu0
      %v5023 = vadd.f32 0.0, %v5022
      %v5024 = vpop.f32.mrf.mxu0
      %v5025 = vpop.f32.mrf.mxu0
      %v5026 = vadd.f32 0.0, %v5025
      %v5027 = vpop.f32.mrf.mxu0
      %5028 = vmatprep.mubr.bf16.mxu0 0
      %5029 = vmatmul.mubr.bf16.gmra.mxu0 %v4884
      %v5030 = vpop.f32.mrf.mxu0
      %v5031 = vadd.f32 0.0, %v5030
      %v5032 = vpop.f32.mrf.mxu0
      %v5033 = vpop.f32.mrf.mxu0
      %v5034 = vadd.f32 0.0, %v5033
      %v5035 = vpop.f32.mrf.mxu0
      %5036 = vmatprep.mubr.bf16.mxu0 0
      %5037 = vmatmul.mubr.bf16.gmra.mxu0 %v4887
      %v5038 = vpop.f32.mrf.mxu0
      %v5039 = vadd.f32 0.0, %v5038
      %v5040 = vpop.f32.mrf.mxu0
      %v5041 = vpop.f32.mrf.mxu0
      %v5042 = vadd.f32 0.0, %v5041
      %v5043 = vpop.f32.mrf.mxu0
      %5044 = vmatprep.mubr.bf16.mxu0 0
      %5045 = vmatmul.mubr.bf16.gmra.mxu0 %v4890
      %v5046 = vpop.f32.mrf.mxu0
      %v5047 = vadd.f32 0.0, %v5046
      %v5048 = vpop.f32.mrf.mxu0
      %v5049 = vpop.f32.mrf.mxu0
      %v5050 = vadd.f32 0.0, %v5049
      %v5051 = vpop.f32.mrf.mxu0
      %5052 = vdwg.mxu0
      %v5053 = vadd.f32 %v3562, %v4927
      %v5054 = vadd.f32 %v3563, %v4930
      %v5055 = vadd.f32 %v3564, %v4935
      %v5056 = vadd.f32 %v3565, %v4938
      %v5057 = vadd.f32 %v3566, %v4943
      %v5058 = vadd.f32 %v3567, %v4946
      %v5059 = vadd.f32 %v3568, %v4951
      %v5060 = vadd.f32 %v3569, %v4954
      %v5061 = vadd.f32 %v3570, %v4959
      %v5062 = vadd.f32 %v3571, %v4962
      %v5063 = vadd.f32 %v3572, %v4967
      %v5064 = vadd.f32 %v3573, %v4970
      %v5065 = vadd.f32 %v3574, %v4975
      %v5066 = vadd.f32 %v3575, %v4978
      %v5067 = vadd.f32 %v3576, %v4983
      %v5068 = vadd.f32 %v3577, %v4986
      %v5069 = vadd.f32 %v3578, %v4991
      %v5070 = vadd.f32 %v3579, %v4994
      %v5071 = vadd.f32 %v3580, %v4999
      %v5072 = vadd.f32 %v3581, %v5002
      %v5073 = vadd.f32 %v3582, %v5007
      %v5074 = vadd.f32 %v3583, %v5010
      %v5075 = vadd.f32 %v3584, %v5015
      %v5076 = vadd.f32 %v3585, %v5018
      %v5077 = vadd.f32 %v3586, %v5023
      %v5078 = vadd.f32 %v3587, %v5026
      %v5079 = vadd.f32 %v3588, %v5031
      %v5080 = vadd.f32 %v3589, %v5034
      %v5081 = vadd.f32 %v3590, %v5039
      %v5082 = vadd.f32 %v3591, %v5042
      %v5083 = vadd.f32 %v3592, %v5047
      %v5084 = vadd.f32 %v3593, %v5050
      %5085 = vrot.lane.b32.xlu0 %v3690, 64
      %v5086 = vpop.permute.xlu0 %5085
      %5087 = vrot.lane.b32.xlu0 %v3691, 64
      %v5088 = vpop.permute.xlu0 %5087
      %5089 = vrot.lane.b32.xlu0 %v3692, 64
      %v5090 = vpop.permute.xlu0 %5089
      %5091 = vrot.lane.b32.xlu0 %v3693, 64
      %v5092 = vpop.permute.xlu0 %5091
      %5093 = vrot.lane.b32.xlu0 %v3694, 64
      %v5094 = vpop.permute.xlu0 %5093
      %5095 = vrot.lane.b32.xlu0 %v3695, 64
      %v5096 = vpop.permute.xlu0 %5095
      %5097 = vrot.lane.b32.xlu0 %v3696, 64
      %v5098 = vpop.permute.xlu0 %5097
      %5099 = vrot.lane.b32.xlu0 %v3697, 64
      %v5100 = vpop.permute.xlu0 %5099
      %5101 = vrot.lane.b32.xlu0 %v3698, 64
      %v5102 = vpop.permute.xlu0 %5101
      %5103 = vrot.lane.b32.xlu0 %v3699, 64
      %v5104 = vpop.permute.xlu0 %5103
      %5105 = vrot.lane.b32.xlu0 %v3700, 64
      %v5106 = vpop.permute.xlu0 %5105
      %5107 = vrot.lane.b32.xlu0 %v3701, 64
      %v5108 = vpop.permute.xlu0 %5107
      %5109 = vrot.lane.b32.xlu0 %v3702, 64
      %v5110 = vpop.permute.xlu0 %5109
      %5111 = vrot.lane.b32.xlu0 %v3703, 64
      %v5112 = vpop.permute.xlu0 %5111
      %5113 = vrot.lane.b32.xlu0 %v3704, 64
      %v5114 = vpop.permute.xlu0 %5113
      %5115 = vrot.lane.b32.xlu0 %v3705, 64
      %v5116 = vpop.permute.xlu0 %5115
      %5117 = vrot.lane.b32.xlu0 %v3690, 48
      %v5118 = vpop.permute.xlu0 %5117
      %5119 = vrot.lane.b32.xlu0 %v3691, 48
      %v5120 = vpop.permute.xlu0 %5119
      %5121 = vrot.lane.b32.xlu0 %v3692, 48
      %v5122 = vpop.permute.xlu0 %5121
      %5123 = vrot.lane.b32.xlu0 %v3693, 48
      %v5124 = vpop.permute.xlu0 %5123
      %5125 = vrot.lane.b32.xlu0 %v3694, 48
      %v5126 = vpop.permute.xlu0 %5125
      %5127 = vrot.lane.b32.xlu0 %v3695, 48
      %v5128 = vpop.permute.xlu0 %5127
      %5129 = vrot.lane.b32.xlu0 %v3696, 48
      %v5130 = vpop.permute.xlu0 %5129
      %5131 = vrot.lane.b32.xlu0 %v3697, 48
      %v5132 = vpop.permute.xlu0 %5131
      %5133 = vrot.lane.b32.xlu0 %v3698, 48
      %v5134 = vpop.permute.xlu0 %5133
      %5135 = vrot.lane.b32.xlu0 %v3699, 48
      %v5136 = vpop.permute.xlu0 %5135
      %5137 = vrot.lane.b32.xlu0 %v3700, 48
      %v5138 = vpop.permute.xlu0 %5137
      %5139 = vrot.lane.b32.xlu0 %v3701, 48
      %v5140 = vpop.permute.xlu0 %5139
      %5141 = vrot.lane.b32.xlu0 %v3702, 48
      %v5142 = vpop.permute.xlu0 %5141
      %5143 = vrot.lane.b32.xlu0 %v3703, 48
      %v5144 = vpop.permute.xlu0 %5143
      %5145 = vrot.lane.b32.xlu0 %v3704, 48
      %v5146 = vpop.permute.xlu0 %5145
      %5147 = vrot.lane.b32.xlu0 %v3705, 48
      %v5148 = vpop.permute.xlu0 %5147
      %v5150 = vsel %vm834, %v5086, 0
      %v5153 = vsel %vm834, %v5088, 0
      %v5156 = vsel %vm834, %v5090, 0
      %v5159 = vsel %vm834, %v5092, 0
      %v5162 = vsel %vm834, %v5094, 0
      %v5165 = vsel %vm834, %v5096, 0
      %v5168 = vsel %vm834, %v5098, 0
      %v5171 = vsel %vm834, %v5100, 0
      %v5174 = vsel %vm834, %v5102, 0
      %v5177 = vsel %vm834, %v5104, 0
      %v5180 = vsel %vm834, %v5106, 0
      %v5183 = vsel %vm834, %v5108, 0
      %v5186 = vsel %vm834, %v5110, 0
      %v5189 = vsel %vm834, %v5112, 0
      %v5192 = vsel %vm834, %v5114, 0
      %v5195 = vsel %vm834, %v5116, 0
      %v5198 = vsel %vm834, %v5118, 0
      %v5201 = vsel %vm834, %v5120, 0
      %v5204 = vsel %vm834, %v5122, 0
      %v5207 = vsel %vm834, %v5124, 0
      %v5210 = vsel %vm834, %v5126, 0
      %v5213 = vsel %vm834, %v5128, 0
      %v5216 = vsel %vm834, %v5130, 0
      %v5219 = vsel %vm834, %v5132, 0
      %v5222 = vsel %vm834, %v5134, 0
      %v5225 = vsel %vm834, %v5136, 0
      %v5228 = vsel %vm834, %v5138, 0
      %v5231 = vsel %vm834, %v5140, 0
      %v5234 = vsel %vm834, %v5142, 0
      %v5237 = vsel %vm834, %v5144, 0
      %v5240 = vsel %vm834, %v5146, 0
      %v5243 = vsel %vm834, %v5148, 0
      %5245 = vmatprep.subr.bf16.mxu0 0
      %5246 = vmatpush1.bf16.xpose.msra.mxu0 %v5219
      %5247 = vmatprep.subr.bf16.mxu0 0
      %5248 = vmatpush1.bf16.xpose.msra.mxu0 %v5216
      %5249 = vmatprep.subr.bf16.mxu0 0
      %5250 = vmatpush1.bf16.xpose.msra.mxu0 %v5213
      %5251 = vmatprep.subr.bf16.mxu0 0
      %5252 = vmatpush1.bf16.xpose.msra.mxu0 %v5210
      %5253 = vmatprep.subr.bf16.mxu0 0
      %5254 = vmatpush1.bf16.xpose.msra.mxu0 %v5207
      %5255 = vmatprep.subr.bf16.mxu0 0
      %5256 = vmatpush1.bf16.xpose.msra.mxu0 %v5204
      %5257 = vmatprep.subr.bf16.mxu0 0
      %5258 = vmatpush1.bf16.xpose.msra.mxu0 %v5201
      %5259 = vmatprep.subr.bf16.mxu0 0
      %5260 = vmatpush1.bf16.xpose.msra.mxu0 %v5198
      %5261 = vmatprep.subr.bf16.mxu0 0
      %5262 = vmatpush2.bf16.xpose.msra.mxu0 %v5243
      %5263 = vmatprep.subr.bf16.mxu0 0
      %5264 = vmatpush2.bf16.xpose.msra.mxu0 %v5240
      %5265 = vmatprep.subr.bf16.mxu0 0
      %5266 = vmatpush2.bf16.xpose.msra.mxu0 %v5237
      %5267 = vmatprep.subr.bf16.mxu0 0
      %5268 = vmatpush2.bf16.xpose.msra.mxu0 %v5234
      %5269 = vmatprep.subr.bf16.mxu0 0
      %5270 = vmatpush2.bf16.xpose.msra.mxu0 %v5231
      %5271 = vmatprep.subr.bf16.mxu0 0
      %5272 = vmatpush2.bf16.xpose.msra.mxu0 %v5228
      %5273 = vmatprep.subr.bf16.mxu0 0
      %5274 = vmatpush2.bf16.xpose.msra.mxu0 %v5225
      %5275 = vmatprep.subr.bf16.mxu0 0
      %5276 = vmatpush2.bf16.xpose.msra.mxu0 %v5222
      %5277 = vmatprep.mubr.bf16.mxu0 0
      %5278 = vmatmul.mubr.bf16.gmra.mxu0 %v5150
      %v5279 = vpop.f32.mrf.mxu0
      %v5280 = vadd.f32 0.0, %v5279
      %v5281 = vpop.f32.mrf.mxu0
      %v5282 = vadd.f32 0.0, %v5281
      %v5283 = vpop.f32.mrf.mxu0
      %v5284 = vadd.f32 0.0, %v5283
      %v5285 = vpop.f32.mrf.mxu0
      %v5286 = vadd.f32 0.0, %v5285
      %5287 = vmatprep.mubr.bf16.mxu0 0
      %5288 = vmatmul.mubr.bf16.gmra.mxu0 %v5153
      %v5289 = vpop.f32.mrf.mxu0
      %v5290 = vadd.f32 0.0, %v5289
      %v5291 = vpop.f32.mrf.mxu0
      %v5292 = vadd.f32 0.0, %v5291
      %v5293 = vpop.f32.mrf.mxu0
      %v5294 = vadd.f32 0.0, %v5293
      %v5295 = vpop.f32.mrf.mxu0
      %v5296 = vadd.f32 0.0, %v5295
      %5297 = vmatprep.mubr.bf16.mxu0 0
      %5298 = vmatmul.mubr.bf16.gmra.mxu0 %v5156
      %v5299 = vpop.f32.mrf.mxu0
      %v5300 = vadd.f32 0.0, %v5299
      %v5301 = vpop.f32.mrf.mxu0
      %v5302 = vadd.f32 0.0, %v5301
      %v5303 = vpop.f32.mrf.mxu0
      %v5304 = vadd.f32 0.0, %v5303
      %v5305 = vpop.f32.mrf.mxu0
      %v5306 = vadd.f32 0.0, %v5305
      %5307 = vmatprep.mubr.bf16.mxu0 0
      %5308 = vmatmul.mubr.bf16.gmra.mxu0 %v5159
      %v5309 = vpop.f32.mrf.mxu0
      %v5310 = vadd.f32 0.0, %v5309
      %v5311 = vpop.f32.mrf.mxu0
      %v5312 = vadd.f32 0.0, %v5311
      %v5313 = vpop.f32.mrf.mxu0
      %v5314 = vadd.f32 0.0, %v5313
      %v5315 = vpop.f32.mrf.mxu0
      %v5316 = vadd.f32 0.0, %v5315
      %5317 = vmatprep.mubr.bf16.mxu0 0
      %5318 = vmatmul.mubr.bf16.gmra.mxu0 %v5162
      %v5319 = vpop.f32.mrf.mxu0
      %v5320 = vadd.f32 0.0, %v5319
      %v5321 = vpop.f32.mrf.mxu0
      %v5322 = vadd.f32 0.0, %v5321
      %v5323 = vpop.f32.mrf.mxu0
      %v5324 = vadd.f32 0.0, %v5323
      %v5325 = vpop.f32.mrf.mxu0
      %v5326 = vadd.f32 0.0, %v5325
      %5327 = vmatprep.mubr.bf16.mxu0 0
      %5328 = vmatmul.mubr.bf16.gmra.mxu0 %v5165
      %v5329 = vpop.f32.mrf.mxu0
      %v5330 = vadd.f32 0.0, %v5329
      %v5331 = vpop.f32.mrf.mxu0
      %v5332 = vadd.f32 0.0, %v5331
      %v5333 = vpop.f32.mrf.mxu0
      %v5334 = vadd.f32 0.0, %v5333
      %v5335 = vpop.f32.mrf.mxu0
      %v5336 = vadd.f32 0.0, %v5335
      %5337 = vmatprep.mubr.bf16.mxu0 0
      %5338 = vmatmul.mubr.bf16.gmra.mxu0 %v5168
      %v5339 = vpop.f32.mrf.mxu0
      %v5340 = vadd.f32 0.0, %v5339
      %v5341 = vpop.f32.mrf.mxu0
      %v5342 = vadd.f32 0.0, %v5341
      %v5343 = vpop.f32.mrf.mxu0
      %v5344 = vadd.f32 0.0, %v5343
      %v5345 = vpop.f32.mrf.mxu0
      %v5346 = vadd.f32 0.0, %v5345
      %5347 = vmatprep.mubr.bf16.mxu0 0
      %5348 = vmatmul.mubr.bf16.gmra.mxu0 %v5171
      %v5349 = vpop.f32.mrf.mxu0
      %v5350 = vadd.f32 0.0, %v5349
      %v5351 = vpop.f32.mrf.mxu0
      %v5352 = vadd.f32 0.0, %v5351
      %v5353 = vpop.f32.mrf.mxu0
      %v5354 = vadd.f32 0.0, %v5353
      %v5355 = vpop.f32.mrf.mxu0
      %v5356 = vadd.f32 0.0, %v5355
      %5357 = vmatprep.mubr.bf16.mxu0 0
      %5358 = vmatmul.mubr.bf16.gmra.mxu0 %v5174
      %v5359 = vpop.f32.mrf.mxu0
      %v5360 = vadd.f32 0.0, %v5359
      %v5361 = vpop.f32.mrf.mxu0
      %v5362 = vadd.f32 0.0, %v5361
      %v5363 = vpop.f32.mrf.mxu0
      %v5364 = vadd.f32 0.0, %v5363
      %v5365 = vpop.f32.mrf.mxu0
      %v5366 = vadd.f32 0.0, %v5365
      %5367 = vmatprep.mubr.bf16.mxu0 0
      %5368 = vmatmul.mubr.bf16.gmra.mxu0 %v5177
      %v5369 = vpop.f32.mrf.mxu0
      %v5370 = vadd.f32 0.0, %v5369
      %v5371 = vpop.f32.mrf.mxu0
      %v5372 = vadd.f32 0.0, %v5371
      %v5373 = vpop.f32.mrf.mxu0
      %v5374 = vadd.f32 0.0, %v5373
      %v5375 = vpop.f32.mrf.mxu0
      %v5376 = vadd.f32 0.0, %v5375
      %5377 = vmatprep.mubr.bf16.mxu0 0
      %5378 = vmatmul.mubr.bf16.gmra.mxu0 %v5180
      %v5379 = vpop.f32.mrf.mxu0
      %v5380 = vadd.f32 0.0, %v5379
      %v5381 = vpop.f32.mrf.mxu0
      %v5382 = vadd.f32 0.0, %v5381
      %v5383 = vpop.f32.mrf.mxu0
      %v5384 = vadd.f32 0.0, %v5383
      %v5385 = vpop.f32.mrf.mxu0
      %v5386 = vadd.f32 0.0, %v5385
      %5387 = vmatprep.mubr.bf16.mxu0 0
      %5388 = vmatmul.mubr.bf16.gmra.mxu0 %v5183
      %v5389 = vpop.f32.mrf.mxu0
      %v5390 = vadd.f32 0.0, %v5389
      %v5391 = vpop.f32.mrf.mxu0
      %v5392 = vadd.f32 0.0, %v5391
      %v5393 = vpop.f32.mrf.mxu0
      %v5394 = vadd.f32 0.0, %v5393
      %v5395 = vpop.f32.mrf.mxu0
      %v5396 = vadd.f32 0.0, %v5395
      %5397 = vmatprep.mubr.bf16.mxu0 0
      %5398 = vmatmul.mubr.bf16.gmra.mxu0 %v5186
      %v5399 = vpop.f32.mrf.mxu0
      %v5400 = vadd.f32 0.0, %v5399
      %v5401 = vpop.f32.mrf.mxu0
      %v5402 = vadd.f32 0.0, %v5401
      %v5403 = vpop.f32.mrf.mxu0
      %v5404 = vadd.f32 0.0, %v5403
      %v5405 = vpop.f32.mrf.mxu0
      %v5406 = vadd.f32 0.0, %v5405
      %5407 = vmatprep.mubr.bf16.mxu0 0
      %5408 = vmatmul.mubr.bf16.gmra.mxu0 %v5189
      %v5409 = vpop.f32.mrf.mxu0
      %v5410 = vadd.f32 0.0, %v5409
      %v5411 = vpop.f32.mrf.mxu0
      %v5412 = vadd.f32 0.0, %v5411
      %v5413 = vpop.f32.mrf.mxu0
      %v5414 = vadd.f32 0.0, %v5413
      %v5415 = vpop.f32.mrf.mxu0
      %v5416 = vadd.f32 0.0, %v5415
      %5417 = vmatprep.mubr.bf16.mxu0 0
      %5418 = vmatmul.mubr.bf16.gmra.mxu0 %v5192
      %v5419 = vpop.f32.mrf.mxu0
      %v5420 = vadd.f32 0.0, %v5419
      %v5421 = vpop.f32.mrf.mxu0
      %v5422 = vadd.f32 0.0, %v5421
      %v5423 = vpop.f32.mrf.mxu0
      %v5424 = vadd.f32 0.0, %v5423
      %v5425 = vpop.f32.mrf.mxu0
      %v5426 = vadd.f32 0.0, %v5425
      %5427 = vmatprep.mubr.bf16.mxu0 0
      %5428 = vmatmul.mubr.bf16.gmra.mxu0 %v5195
      %v5429 = vpop.f32.mrf.mxu0
      %v5430 = vadd.f32 0.0, %v5429
      %v5431 = vpop.f32.mrf.mxu0
      %v5432 = vadd.f32 0.0, %v5431
      %v5433 = vpop.f32.mrf.mxu0
      %v5434 = vadd.f32 0.0, %v5433
      %v5435 = vpop.f32.mrf.mxu0
      %v5436 = vadd.f32 0.0, %v5435
      %5437 = vdwg.mxu0
      %v5438 = vmul.f32 %v5280, 0.25
      %v5439 = vmul.f32 %v5282, 0.25
      %v5440 = vmul.f32 %v5284, 0.25
      %v5441 = vmul.f32 %v5286, 0.25
      %v5442 = vmul.f32 %v5290, 0.25
      %v5443 = vmul.f32 %v5292, 0.25
      %v5444 = vmul.f32 %v5294, 0.25
      %v5445 = vmul.f32 %v5296, 0.25
      %v5446 = vmul.f32 %v5300, 0.25
      %v5447 = vmul.f32 %v5302, 0.25
      %v5448 = vmul.f32 %v5304, 0.25
      %v5449 = vmul.f32 %v5306, 0.25
      %v5450 = vmul.f32 %v5310, 0.25
      %v5451 = vmul.f32 %v5312, 0.25
      %v5452 = vmul.f32 %v5314, 0.25
      %v5453 = vmul.f32 %v5316, 0.25
      %v5454 = vmul.f32 %v5320, 0.25
      %v5455 = vmul.f32 %v5322, 0.25
      %v5456 = vmul.f32 %v5324, 0.25
      %v5457 = vmul.f32 %v5326, 0.25
      %v5458 = vmul.f32 %v5330, 0.25
      %v5459 = vmul.f32 %v5332, 0.25
      %v5460 = vmul.f32 %v5334, 0.25
      %v5461 = vmul.f32 %v5336, 0.25
      %v5462 = vmul.f32 %v5340, 0.25
      %v5463 = vmul.f32 %v5342, 0.25
      %v5464 = vmul.f32 %v5344, 0.25
      %v5465 = vmul.f32 %v5346, 0.25
      %v5466 = vmul.f32 %v5350, 0.25
      %v5467 = vmul.f32 %v5352, 0.25
      %v5468 = vmul.f32 %v5354, 0.25
      %v5469 = vmul.f32 %v5356, 0.25
      %v5470 = vmul.f32 %v5360, 0.25
      %v5471 = vmul.f32 %v5362, 0.25
      %v5472 = vmul.f32 %v5364, 0.25
      %v5473 = vmul.f32 %v5366, 0.25
      %v5474 = vmul.f32 %v5370, 0.25
      %v5475 = vmul.f32 %v5372, 0.25
      %v5476 = vmul.f32 %v5374, 0.25
      %v5477 = vmul.f32 %v5376, 0.25
      %v5478 = vmul.f32 %v5380, 0.25
      %v5479 = vmul.f32 %v5382, 0.25
      %v5480 = vmul.f32 %v5384, 0.25
      %v5481 = vmul.f32 %v5386, 0.25
      %v5482 = vmul.f32 %v5390, 0.25
      %v5483 = vmul.f32 %v5392, 0.25
      %v5484 = vmul.f32 %v5394, 0.25
      %v5485 = vmul.f32 %v5396, 0.25
      %v5486 = vmul.f32 %v5400, 0.25
      %v5487 = vmul.f32 %v5402, 0.25
      %v5488 = vmul.f32 %v5404, 0.25
      %v5489 = vmul.f32 %v5406, 0.25
      %v5490 = vmul.f32 %v5410, 0.25
      %v5491 = vmul.f32 %v5412, 0.25
      %v5492 = vmul.f32 %v5414, 0.25
      %v5493 = vmul.f32 %v5416, 0.25
      %v5494 = vmul.f32 %v5420, 0.25
      %v5495 = vmul.f32 %v5422, 0.25
      %v5496 = vmul.f32 %v5424, 0.25
      %v5497 = vmul.f32 %v5426, 0.25
      %v5498 = vmul.f32 %v5430, 0.25
      %v5499 = vmul.f32 %v5432, 0.25
      %v5500 = vmul.f32 %v5434, 0.25
      %v5501 = vmul.f32 %v5436, 0.25
      %v5502 = vmax.f32 %v5438, %v5439
      %5503 = vmax.xlane.f32.xlu0 %v5502
      %v5504 = vpop.xlane.xlu0 %5503
      %v5505 = vmax.f32 %v5440, %v5441
      %5506 = vmax.xlane.f32.xlu0 %v5505
      %v5507 = vpop.xlane.xlu0 %5506
      %v5508 = vmax.f32 %v5442, %v5443
      %5509 = vmax.xlane.f32.xlu0 %v5508
      %v5510 = vpop.xlane.xlu0 %5509
      %v5511 = vmax.f32 %v5444, %v5445
      %5512 = vmax.xlane.f32.xlu0 %v5511
      %v5513 = vpop.xlane.xlu0 %5512
      %v5514 = vmax.f32 %v5446, %v5447
      %5515 = vmax.xlane.f32.xlu0 %v5514
      %v5516 = vpop.xlane.xlu0 %5515
      %v5517 = vmax.f32 %v5448, %v5449
      %5518 = vmax.xlane.f32.xlu0 %v5517
      %v5519 = vpop.xlane.xlu0 %5518
      %v5520 = vmax.f32 %v5450, %v5451
      %5521 = vmax.xlane.f32.xlu0 %v5520
      %v5522 = vpop.xlane.xlu0 %5521
      %v5523 = vmax.f32 %v5452, %v5453
      %5524 = vmax.xlane.f32.xlu0 %v5523
      %v5525 = vpop.xlane.xlu0 %5524
      %v5526 = vmax.f32 %v5454, %v5455
      %5527 = vmax.xlane.f32.xlu0 %v5526
      %v5528 = vpop.xlane.xlu0 %5527
      %v5529 = vmax.f32 %v5456, %v5457
      %5530 = vmax.xlane.f32.xlu0 %v5529
      %v5531 = vpop.xlane.xlu0 %5530
      %v5532 = vmax.f32 %v5458, %v5459
      %5533 = vmax.xlane.f32.xlu0 %v5532
      %v5534 = vpop.xlane.xlu0 %5533
      %v5535 = vmax.f32 %v5460, %v5461
      %5536 = vmax.xlane.f32.xlu0 %v5535
      %v5537 = vpop.xlane.xlu0 %5536
      %v5538 = vmax.f32 %v5462, %v5463
      %5539 = vmax.xlane.f32.xlu0 %v5538
      %v5540 = vpop.xlane.xlu0 %5539
      %v5541 = vmax.f32 %v5464, %v5465
      %5542 = vmax.xlane.f32.xlu0 %v5541
      %v5543 = vpop.xlane.xlu0 %5542
      %v5544 = vmax.f32 %v5466, %v5467
      %5545 = vmax.xlane.f32.xlu0 %v5544
      %v5546 = vpop.xlane.xlu0 %5545
      %v5547 = vmax.f32 %v5468, %v5469
      %5548 = vmax.xlane.f32.xlu0 %v5547
      %v5549 = vpop.xlane.xlu0 %5548
      %v5550 = vmax.f32 %v5470, %v5471
      %5551 = vmax.xlane.f32.xlu0 %v5550
      %v5552 = vpop.xlane.xlu0 %5551
      %v5553 = vmax.f32 %v5472, %v5473
      %5554 = vmax.xlane.f32.xlu0 %v5553
      %v5555 = vpop.xlane.xlu0 %5554
      %v5556 = vmax.f32 %v5474, %v5475
      %5557 = vmax.xlane.f32.xlu0 %v5556
      %v5558 = vpop.xlane.xlu0 %5557
      %v5559 = vmax.f32 %v5476, %v5477
      %5560 = vmax.xlane.f32.xlu0 %v5559
      %v5561 = vpop.xlane.xlu0 %5560
      %v5562 = vmax.f32 %v5478, %v5479
      %5563 = vmax.xlane.f32.xlu0 %v5562
      %v5564 = vpop.xlane.xlu0 %5563
      %v5565 = vmax.f32 %v5480, %v5481
      %5566 = vmax.xlane.f32.xlu0 %v5565
      %v5567 = vpop.xlane.xlu0 %5566
      %v5568 = vmax.f32 %v5482, %v5483
      %5569 = vmax.xlane.f32.xlu0 %v5568
      %v5570 = vpop.xlane.xlu0 %5569
      %v5571 = vmax.f32 %v5484, %v5485
      %5572 = vmax.xlane.f32.xlu0 %v5571
      %v5573 = vpop.xlane.xlu0 %5572
      %v5574 = vmax.f32 %v5486, %v5487
      %5575 = vmax.xlane.f32.xlu0 %v5574
      %v5576 = vpop.xlane.xlu0 %5575
      %v5577 = vmax.f32 %v5488, %v5489
      %5578 = vmax.xlane.f32.xlu0 %v5577
      %v5579 = vpop.xlane.xlu0 %5578
      %v5580 = vmax.f32 %v5490, %v5491
      %5581 = vmax.xlane.f32.xlu0 %v5580
      %v5582 = vpop.xlane.xlu0 %5581
      %v5583 = vmax.f32 %v5492, %v5493
      %5584 = vmax.xlane.f32.xlu0 %v5583
      %v5585 = vpop.xlane.xlu0 %5584
      %v5586 = vmax.f32 %v5494, %v5495
      %5587 = vmax.xlane.f32.xlu0 %v5586
      %v5588 = vpop.xlane.xlu0 %5587
      %v5589 = vmax.f32 %v5496, %v5497
      %5590 = vmax.xlane.f32.xlu0 %v5589
      %v5591 = vpop.xlane.xlu0 %5590
      %v5592 = vmax.f32 %v5498, %v5499
      %5593 = vmax.xlane.f32.xlu0 %v5592
      %v5594 = vpop.xlane.xlu0 %5593
      %v5595 = vmax.f32 %v5500, %v5501
      %5596 = vmax.xlane.f32.xlu0 %v5595
      %v5597 = vpop.xlane.xlu0 %5596
      %v5598 = vsub.f32 %v5438, %v5504
      %v5599 = vsub.f32 %v5439, %v5504
      %v5600 = vsub.f32 %v5440, %v5507
      %v5601 = vsub.f32 %v5441, %v5507
      %v5602 = vsub.f32 %v5442, %v5510
      %v5603 = vsub.f32 %v5443, %v5510
      %v5604 = vsub.f32 %v5444, %v5513
      %v5605 = vsub.f32 %v5445, %v5513
      %v5606 = vsub.f32 %v5446, %v5516
      %v5607 = vsub.f32 %v5447, %v5516
      %v5608 = vsub.f32 %v5448, %v5519
      %v5609 = vsub.f32 %v5449, %v5519
      %v5610 = vsub.f32 %v5450, %v5522
      %v5611 = vsub.f32 %v5451, %v5522
      %v5612 = vsub.f32 %v5452, %v5525
      %v5613 = vsub.f32 %v5453, %v5525
      %v5614 = vsub.f32 %v5454, %v5528
      %v5615 = vsub.f32 %v5455, %v5528
      %v5616 = vsub.f32 %v5456, %v5531
      %v5617 = vsub.f32 %v5457, %v5531
      %v5618 = vsub.f32 %v5458, %v5534
      %v5619 = vsub.f32 %v5459, %v5534
      %v5620 = vsub.f32 %v5460, %v5537
      %v5621 = vsub.f32 %v5461, %v5537
      %v5622 = vsub.f32 %v5462, %v5540
      %v5623 = vsub.f32 %v5463, %v5540
      %v5624 = vsub.f32 %v5464, %v5543
      %v5625 = vsub.f32 %v5465, %v5543
      %v5626 = vsub.f32 %v5466, %v5546
      %v5627 = vsub.f32 %v5467, %v5546
      %v5628 = vsub.f32 %v5468, %v5549
      %v5629 = vsub.f32 %v5469, %v5549
      %v5630 = vsub.f32 %v5470, %v5552
      %v5631 = vsub.f32 %v5471, %v5552
      %v5632 = vsub.f32 %v5472, %v5555
      %v5633 = vsub.f32 %v5473, %v5555
      %v5634 = vsub.f32 %v5474, %v5558
      %v5635 = vsub.f32 %v5475, %v5558
      %v5636 = vsub.f32 %v5476, %v5561
      %v5637 = vsub.f32 %v5477, %v5561
      %v5638 = vsub.f32 %v5478, %v5564
      %v5639 = vsub.f32 %v5479, %v5564
      %v5640 = vsub.f32 %v5480, %v5567
      %v5641 = vsub.f32 %v5481, %v5567
      %v5642 = vsub.f32 %v5482, %v5570
      %v5643 = vsub.f32 %v5483, %v5570
      %v5644 = vsub.f32 %v5484, %v5573
      %v5645 = vsub.f32 %v5485, %v5573
      %v5646 = vsub.f32 %v5486, %v5576
      %v5647 = vsub.f32 %v5487, %v5576
      %v5648 = vsub.f32 %v5488, %v5579
      %v5649 = vsub.f32 %v5489, %v5579
      %v5650 = vsub.f32 %v5490, %v5582
      %v5651 = vsub.f32 %v5491, %v5582
      %v5652 = vsub.f32 %v5492, %v5585
      %v5653 = vsub.f32 %v5493, %v5585
      %v5654 = vsub.f32 %v5494, %v5588
      %v5655 = vsub.f32 %v5495, %v5588
      %v5656 = vsub.f32 %v5496, %v5591
      %v5657 = vsub.f32 %v5497, %v5591
      %v5658 = vsub.f32 %v5498, %v5594
      %v5659 = vsub.f32 %v5499, %v5594
      %v5660 = vsub.f32 %v5500, %v5597
      %v5661 = vsub.f32 %v5501, %v5597
      %v5662 = vmul.f32 %v5598, 1.442695
      %v5663 = vpow.pop %v5662
      %v5664 = vmul.f32 %v5599, 1.442695
      %v5665 = vpow.pop %v5664
      %v5666 = vmul.f32 %v5600, 1.442695
      %v5667 = vpow.pop %v5666
      %v5668 = vmul.f32 %v5601, 1.442695
      %v5669 = vpow.pop %v5668
      %v5670 = vmul.f32 %v5602, 1.442695
      %v5671 = vpow.pop %v5670
      %v5672 = vmul.f32 %v5603, 1.442695
      %v5673 = vpow.pop %v5672
      %v5674 = vmul.f32 %v5604, 1.442695
      %v5675 = vpow.pop %v5674
      %v5676 = vmul.f32 %v5605, 1.442695
      %v5677 = vpow.pop %v5676
      %v5678 = vmul.f32 %v5606, 1.442695
      %v5679 = vpow.pop %v5678
      %v5680 = vmul.f32 %v5607, 1.442695
      %v5681 = vpow.pop %v5680
      %v5682 = vmul.f32 %v5608, 1.442695
      %v5683 = vpow.pop %v5682
      %v5684 = vmul.f32 %v5609, 1.442695
      %v5685 = vpow.pop %v5684
      %v5686 = vmul.f32 %v5610, 1.442695
      %v5687 = vpow.pop %v5686
      %v5688 = vmul.f32 %v5611, 1.442695
      %v5689 = vpow.pop %v5688
      %v5690 = vmul.f32 %v5612, 1.442695
      %v5691 = vpow.pop %v5690
      %v5692 = vmul.f32 %v5613, 1.442695
      %v5693 = vpow.pop %v5692
      %v5694 = vmul.f32 %v5614, 1.442695
      %v5695 = vpow.pop %v5694
      %v5696 = vmul.f32 %v5615, 1.442695
      %v5697 = vpow.pop %v5696
      %v5698 = vmul.f32 %v5616, 1.442695
      %v5699 = vpow.pop %v5698
      %v5700 = vmul.f32 %v5617, 1.442695
      %v5701 = vpow.pop %v5700
      %v5702 = vmul.f32 %v5618, 1.442695
      %v5703 = vpow.pop %v5702
      %v5704 = vmul.f32 %v5619, 1.442695
      %v5705 = vpow.pop %v5704
      %v5706 = vmul.f32 %v5620, 1.442695
      %v5707 = vpow.pop %v5706
      %v5708 = vmul.f32 %v5621, 1.442695
      %v5709 = vpow.pop %v5708
      %v5710 = vmul.f32 %v5622, 1.442695
      %v5711 = vpow.pop %v5710
      %v5712 = vmul.f32 %v5623, 1.442695
      %v5713 = vpow.pop %v5712
      %v5714 = vmul.f32 %v5624, 1.442695
      %v5715 = vpow.pop %v5714
      %v5716 = vmul.f32 %v5625, 1.442695
      %v5717 = vpow.pop %v5716
      %v5718 = vmul.f32 %v5626, 1.442695
      %v5719 = vpow.pop %v5718
      %v5720 = vmul.f32 %v5627, 1.442695
      %v5721 = vpow.pop %v5720
      %v5722 = vmul.f32 %v5628, 1.442695
      %v5723 = vpow.pop %v5722
      %v5724 = vmul.f32 %v5629, 1.442695
      %v5725 = vpow.pop %v5724
      %v5726 = vmul.f32 %v5630, 1.442695
      %v5727 = vpow.pop %v5726
      %v5728 = vmul.f32 %v5631, 1.442695
      %v5729 = vpow.pop %v5728
      %v5730 = vmul.f32 %v5632, 1.442695
      %v5731 = vpow.pop %v5730
      %v5732 = vmul.f32 %v5633, 1.442695
      %v5733 = vpow.pop %v5732
      %v5734 = vmul.f32 %v5634, 1.442695
      %v5735 = vpow.pop %v5734
      %v5736 = vmul.f32 %v5635, 1.442695
      %v5737 = vpow.pop %v5736
      %v5738 = vmul.f32 %v5636, 1.442695
      %v5739 = vpow.pop %v5738
      %v5740 = vmul.f32 %v5637, 1.442695
      %v5741 = vpow.pop %v5740
      %v5742 = vmul.f32 %v5638, 1.442695
      %v5743 = vpow.pop %v5742
      %v5744 = vmul.f32 %v5639, 1.442695
      %v5745 = vpow.pop %v5744
      %v5746 = vmul.f32 %v5640, 1.442695
      %v5747 = vpow.pop %v5746
      %v5748 = vmul.f32 %v5641, 1.442695
      %v5749 = vpow.pop %v5748
      %v5750 = vmul.f32 %v5642, 1.442695
      %v5751 = vpow.pop %v5750
      %v5752 = vmul.f32 %v5643, 1.442695
      %v5753 = vpow.pop %v5752
      %v5754 = vmul.f32 %v5644, 1.442695
      %v5755 = vpow.pop %v5754
      %v5756 = vmul.f32 %v5645, 1.442695
      %v5757 = vpow.pop %v5756
      %v5758 = vmul.f32 %v5646, 1.442695
      %v5759 = vpow.pop %v5758
      %v5760 = vmul.f32 %v5647, 1.442695
      %v5761 = vpow.pop %v5760
      %v5762 = vmul.f32 %v5648, 1.442695
      %v5763 = vpow.pop %v5762
      %v5764 = vmul.f32 %v5649, 1.442695
      %v5765 = vpow.pop %v5764
      %v5766 = vmul.f32 %v5650, 1.442695
      %v5767 = vpow.pop %v5766
      %v5768 = vmul.f32 %v5651, 1.442695
      %v5769 = vpow.pop %v5768
      %v5770 = vmul.f32 %v5652, 1.442695
      %v5771 = vpow.pop %v5770
      %v5772 = vmul.f32 %v5653, 1.442695
      %v5773 = vpow.pop %v5772
      %v5774 = vmul.f32 %v5654, 1.442695
      %v5775 = vpow.pop %v5774
      %v5776 = vmul.f32 %v5655, 1.442695
      %v5777 = vpow.pop %v5776
      %v5778 = vmul.f32 %v5656, 1.442695
      %v5779 = vpow.pop %v5778
      %v5780 = vmul.f32 %v5657, 1.442695
      %v5781 = vpow.pop %v5780
      %v5782 = vmul.f32 %v5658, 1.442695
      %v5783 = vpow.pop %v5782
      %v5784 = vmul.f32 %v5659, 1.442695
      %v5785 = vpow.pop %v5784
      %v5786 = vmul.f32 %v5660, 1.442695
      %v5787 = vpow.pop %v5786
      %v5788 = vmul.f32 %v5661, 1.442695
      %v5789 = vpow.pop %v5788
      %v5790 = vadd.f32 %v5663, %v5665
      %5791 = vadd.xlane.f32.xlu0 %v5790
      %v5792 = vpop.xlane.xlu0 %5791
      %v5793 = vadd.f32 %v5667, %v5669
      %5794 = vadd.xlane.f32.xlu0 %v5793
      %v5795 = vpop.xlane.xlu0 %5794
      %v5796 = vadd.f32 %v5671, %v5673
      %5797 = vadd.xlane.f32.xlu0 %v5796
      %v5798 = vpop.xlane.xlu0 %5797
      %v5799 = vadd.f32 %v5675, %v5677
      %5800 = vadd.xlane.f32.xlu0 %v5799
      %v5801 = vpop.xlane.xlu0 %5800
      %v5802 = vadd.f32 %v5679, %v5681
      %5803 = vadd.xlane.f32.xlu0 %v5802
      %v5804 = vpop.xlane.xlu0 %5803
      %v5805 = vadd.f32 %v5683, %v5685
      %5806 = vadd.xlane.f32.xlu0 %v5805
      %v5807 = vpop.xlane.xlu0 %5806
      %v5808 = vadd.f32 %v5687, %v5689
      %5809 = vadd.xlane.f32.xlu0 %v5808
      %v5810 = vpop.xlane.xlu0 %5809
      %v5811 = vadd.f32 %v5691, %v5693
      %5812 = vadd.xlane.f32.xlu0 %v5811
      %v5813 = vpop.xlane.xlu0 %5812
      %v5814 = vadd.f32 %v5695, %v5697
      %5815 = vadd.xlane.f32.xlu0 %v5814
      %v5816 = vpop.xlane.xlu0 %5815
      %v5817 = vadd.f32 %v5699, %v5701
      %5818 = vadd.xlane.f32.xlu0 %v5817
      %v5819 = vpop.xlane.xlu0 %5818
      %v5820 = vadd.f32 %v5703, %v5705
      %5821 = vadd.xlane.f32.xlu0 %v5820
      %v5822 = vpop.xlane.xlu0 %5821
      %v5823 = vadd.f32 %v5707, %v5709
      %5824 = vadd.xlane.f32.xlu0 %v5823
      %v5825 = vpop.xlane.xlu0 %5824
      %v5826 = vadd.f32 %v5711, %v5713
      %5827 = vadd.xlane.f32.xlu0 %v5826
      %v5828 = vpop.xlane.xlu0 %5827
      %v5829 = vadd.f32 %v5715, %v5717
      %5830 = vadd.xlane.f32.xlu0 %v5829
      %v5831 = vpop.xlane.xlu0 %5830
      %v5832 = vadd.f32 %v5719, %v5721
      %5833 = vadd.xlane.f32.xlu0 %v5832
      %v5834 = vpop.xlane.xlu0 %5833
      %v5835 = vadd.f32 %v5723, %v5725
      %5836 = vadd.xlane.f32.xlu0 %v5835
      %v5837 = vpop.xlane.xlu0 %5836
      %v5838 = vadd.f32 %v5727, %v5729
      %5839 = vadd.xlane.f32.xlu0 %v5838
      %v5840 = vpop.xlane.xlu0 %5839
      %v5841 = vadd.f32 %v5731, %v5733
      %5842 = vadd.xlane.f32.xlu0 %v5841
      %v5843 = vpop.xlane.xlu0 %5842
      %v5844 = vadd.f32 %v5735, %v5737
      %5845 = vadd.xlane.f32.xlu0 %v5844
      %v5846 = vpop.xlane.xlu0 %5845
      %v5847 = vadd.f32 %v5739, %v5741
      %5848 = vadd.xlane.f32.xlu0 %v5847
      %v5849 = vpop.xlane.xlu0 %5848
      %v5850 = vadd.f32 %v5743, %v5745
      %5851 = vadd.xlane.f32.xlu0 %v5850
      %v5852 = vpop.xlane.xlu0 %5851
      %v5853 = vadd.f32 %v5747, %v5749
      %5854 = vadd.xlane.f32.xlu0 %v5853
      %v5855 = vpop.xlane.xlu0 %5854
      %v5856 = vadd.f32 %v5751, %v5753
      %5857 = vadd.xlane.f32.xlu0 %v5856
      %v5858 = vpop.xlane.xlu0 %5857
      %v5859 = vadd.f32 %v5755, %v5757
      %5860 = vadd.xlane.f32.xlu0 %v5859
      %v5861 = vpop.xlane.xlu0 %5860
      %v5862 = vadd.f32 %v5759, %v5761
      %5863 = vadd.xlane.f32.xlu0 %v5862
      %v5864 = vpop.xlane.xlu0 %5863
      %v5865 = vadd.f32 %v5763, %v5765
      %5866 = vadd.xlane.f32.xlu0 %v5865
      %v5867 = vpop.xlane.xlu0 %5866
      %v5868 = vadd.f32 %v5767, %v5769
      %5869 = vadd.xlane.f32.xlu0 %v5868
      %v5870 = vpop.xlane.xlu0 %5869
      %v5871 = vadd.f32 %v5771, %v5773
      %5872 = vadd.xlane.f32.xlu0 %v5871
      %v5873 = vpop.xlane.xlu0 %5872
      %v5874 = vadd.f32 %v5775, %v5777
      %5875 = vadd.xlane.f32.xlu0 %v5874
      %v5876 = vpop.xlane.xlu0 %5875
      %v5877 = vadd.f32 %v5779, %v5781
      %5878 = vadd.xlane.f32.xlu0 %v5877
      %v5879 = vpop.xlane.xlu0 %5878
      %v5880 = vadd.f32 %v5783, %v5785
      %5881 = vadd.xlane.f32.xlu0 %v5880
      %v5882 = vpop.xlane.xlu0 %5881
      %v5883 = vadd.f32 %v5787, %v5789
      %5884 = vadd.xlane.f32.xlu0 %v5883
      %v5885 = vpop.xlane.xlu0 %5884
      %v5886 = vrcp.pop %v5792
      %v5887 = vrcp.pop %v5795
      %v5888 = vrcp.pop %v5798
      %v5889 = vrcp.pop %v5801
      %v5890 = vrcp.pop %v5804
      %v5891 = vrcp.pop %v5807
      %v5892 = vrcp.pop %v5810
      %v5893 = vrcp.pop %v5813
      %v5894 = vrcp.pop %v5816
      %v5895 = vrcp.pop %v5819
      %v5896 = vrcp.pop %v5822
      %v5897 = vrcp.pop %v5825
      %v5898 = vrcp.pop %v5828
      %v5899 = vrcp.pop %v5831
      %v5900 = vrcp.pop %v5834
      %v5901 = vrcp.pop %v5837
      %v5902 = vrcp.pop %v5840
      %v5903 = vrcp.pop %v5843
      %v5904 = vrcp.pop %v5846
      %v5905 = vrcp.pop %v5849
      %v5906 = vrcp.pop %v5852
      %v5907 = vrcp.pop %v5855
      %v5908 = vrcp.pop %v5858
      %v5909 = vrcp.pop %v5861
      %v5910 = vrcp.pop %v5864
      %v5911 = vrcp.pop %v5867
      %v5912 = vrcp.pop %v5870
      %v5913 = vrcp.pop %v5873
      %v5914 = vrcp.pop %v5876
      %v5915 = vrcp.pop %v5879
      %v5916 = vrcp.pop %v5882
      %v5917 = vrcp.pop %v5885
      %v5918 = vmul.f32 %v5663, %v5886
      %v5919 = vmul.f32 %v5665, %v5886
      %v5920 = vmul.f32 %v5667, %v5887
      %v5921 = vmul.f32 %v5669, %v5887
      %v5922 = vmul.f32 %v5671, %v5888
      %v5923 = vmul.f32 %v5673, %v5888
      %v5924 = vmul.f32 %v5675, %v5889
      %v5925 = vmul.f32 %v5677, %v5889
      %v5926 = vmul.f32 %v5679, %v5890
      %v5927 = vmul.f32 %v5681, %v5890
      %v5928 = vmul.f32 %v5683, %v5891
      %v5929 = vmul.f32 %v5685, %v5891
      %v5930 = vmul.f32 %v5687, %v5892
      %v5931 = vmul.f32 %v5689, %v5892
      %v5932 = vmul.f32 %v5691, %v5893
      %v5933 = vmul.f32 %v5693, %v5893
      %v5934 = vmul.f32 %v5695, %v5894
      %v5935 = vmul.f32 %v5697, %v5894
      %v5936 = vmul.f32 %v5699, %v5895
      %v5937 = vmul.f32 %v5701, %v5895
      %v5938 = vmul.f32 %v5703, %v5896
      %v5939 = vmul.f32 %v5705, %v5896
      %v5940 = vmul.f32 %v5707, %v5897
      %v5941 = vmul.f32 %v5709, %v5897
      %v5942 = vmul.f32 %v5711, %v5898
      %v5943 = vmul.f32 %v5713, %v5898
      %v5944 = vmul.f32 %v5715, %v5899
      %v5945 = vmul.f32 %v5717, %v5899
      %v5946 = vmul.f32 %v5719, %v5900
      %v5947 = vmul.f32 %v5721, %v5900
      %v5948 = vmul.f32 %v5723, %v5901
      %v5949 = vmul.f32 %v5725, %v5901
      %v5950 = vmul.f32 %v5727, %v5902
      %v5951 = vmul.f32 %v5729, %v5902
      %v5952 = vmul.f32 %v5731, %v5903
      %v5953 = vmul.f32 %v5733, %v5903
      %v5954 = vmul.f32 %v5735, %v5904
      %v5955 = vmul.f32 %v5737, %v5904
      %v5956 = vmul.f32 %v5739, %v5905
      %v5957 = vmul.f32 %v5741, %v5905
      %v5958 = vmul.f32 %v5743, %v5906
      %v5959 = vmul.f32 %v5745, %v5906
      %v5960 = vmul.f32 %v5747, %v5907
      %v5961 = vmul.f32 %v5749, %v5907
      %v5962 = vmul.f32 %v5751, %v5908
      %v5963 = vmul.f32 %v5753, %v5908
      %v5964 = vmul.f32 %v5755, %v5909
      %v5965 = vmul.f32 %v5757, %v5909
      %v5966 = vmul.f32 %v5759, %v5910
      %v5967 = vmul.f32 %v5761, %v5910
      %v5968 = vmul.f32 %v5763, %v5911
      %v5969 = vmul.f32 %v5765, %v5911
      %v5970 = vmul.f32 %v5767, %v5912
      %v5971 = vmul.f32 %v5769, %v5912
      %v5972 = vmul.f32 %v5771, %v5913
      %v5973 = vmul.f32 %v5773, %v5913
      %v5974 = vmul.f32 %v5775, %v5914
      %v5975 = vmul.f32 %v5777, %v5914
      %v5976 = vmul.f32 %v5779, %v5915
      %v5977 = vmul.f32 %v5781, %v5915
      %v5978 = vmul.f32 %v5783, %v5916
      %v5979 = vmul.f32 %v5785, %v5916
      %v5980 = vmul.f32 %v5787, %v5917
      %v5981 = vmul.f32 %v5789, %v5917
      %v5982 = vpack.c.bf16 %v5920, %v5918
      %v5983 = vpack.c.bf16 %v5921, %v5919
      %v5984 = vpack.c.bf16 %v5924, %v5922
      %v5985 = vpack.c.bf16 %v5925, %v5923
      %v5986 = vpack.c.bf16 %v5928, %v5926
      %v5987 = vpack.c.bf16 %v5929, %v5927
      %v5988 = vpack.c.bf16 %v5932, %v5930
      %v5989 = vpack.c.bf16 %v5933, %v5931
      %v5990 = vpack.c.bf16 %v5936, %v5934
      %v5991 = vpack.c.bf16 %v5937, %v5935
      %v5992 = vpack.c.bf16 %v5940, %v5938
      %v5993 = vpack.c.bf16 %v5941, %v5939
      %v5994 = vpack.c.bf16 %v5944, %v5942
      %v5995 = vpack.c.bf16 %v5945, %v5943
      %v5996 = vpack.c.bf16 %v5948, %v5946
      %v5997 = vpack.c.bf16 %v5949, %v5947
      %v5998 = vpack.c.bf16 %v5952, %v5950
      %v5999 = vpack.c.bf16 %v5953, %v5951
      %v6000 = vpack.c.bf16 %v5956, %v5954
      %v6001 = vpack.c.bf16 %v5957, %v5955
      %v6002 = vpack.c.bf16 %v5960, %v5958
      %v6003 = vpack.c.bf16 %v5961, %v5959
      %v6004 = vpack.c.bf16 %v5964, %v5962
      %v6005 = vpack.c.bf16 %v5965, %v5963
      %v6006 = vpack.c.bf16 %v5968, %v5966
      %v6007 = vpack.c.bf16 %v5969, %v5967
      %v6008 = vpack.c.bf16 %v5972, %v5970
      %v6009 = vpack.c.bf16 %v5973, %v5971
      %v6010 = vpack.c.bf16 %v5976, %v5974
      %v6011 = vpack.c.bf16 %v5977, %v5975
      %v6012 = vpack.c.bf16 %v5980, %v5978
      %v6013 = vpack.c.bf16 %v5981, %v5979
      %6014 = vrot.lane.b32.xlu0 %v3690, 32
      %v6015 = vpop.permute.xlu0 %6014
      %6016 = vrot.lane.b32.xlu0 %v3691, 32
      %v6017 = vpop.permute.xlu0 %6016
      %6018 = vrot.lane.b32.xlu0 %v3692, 32
      %v6019 = vpop.permute.xlu0 %6018
      %6020 = vrot.lane.b32.xlu0 %v3693, 32
      %v6021 = vpop.permute.xlu0 %6020
      %6022 = vrot.lane.b32.xlu0 %v3694, 32
      %v6023 = vpop.permute.xlu0 %6022
      %6024 = vrot.lane.b32.xlu0 %v3695, 32
      %v6025 = vpop.permute.xlu0 %6024
      %6026 = vrot.lane.b32.xlu0 %v3696, 32
      %v6027 = vpop.permute.xlu0 %6026
      %6028 = vrot.lane.b32.xlu0 %v3697, 32
      %v6029 = vpop.permute.xlu0 %6028
      %6030 = vrot.lane.b32.xlu0 %v3698, 32
      %v6031 = vpop.permute.xlu0 %6030
      %6032 = vrot.lane.b32.xlu0 %v3699, 32
      %v6033 = vpop.permute.xlu0 %6032
      %6034 = vrot.lane.b32.xlu0 %v3700, 32
      %v6035 = vpop.permute.xlu0 %6034
      %6036 = vrot.lane.b32.xlu0 %v3701, 32
      %v6037 = vpop.permute.xlu0 %6036
      %6038 = vrot.lane.b32.xlu0 %v3702, 32
      %v6039 = vpop.permute.xlu0 %6038
      %6040 = vrot.lane.b32.xlu0 %v3703, 32
      %v6041 = vpop.permute.xlu0 %6040
      %6042 = vrot.lane.b32.xlu0 %v3704, 32
      %v6043 = vpop.permute.xlu0 %6042
      %6044 = vrot.lane.b32.xlu0 %v3705, 32
      %v6045 = vpop.permute.xlu0 %6044
      %6062 = vmatprep.subr.bf16.mxu0 0
      %6063 = vmatpush1.bf16.msra.mxu0 %v6029
      %6064 = vmatprep.subr.bf16.mxu0 0
      %6065 = vmatpush1.bf16.msra.mxu0 %v6027
      %6066 = vmatprep.subr.bf16.mxu0 0
      %6067 = vmatpush1.bf16.msra.mxu0 %v6025
      %6068 = vmatprep.subr.bf16.mxu0 0
      %6069 = vmatpush1.bf16.msra.mxu0 %v6023
      %6070 = vmatprep.subr.bf16.mxu0 0
      %6071 = vmatpush1.bf16.msra.mxu0 %v6021
      %6072 = vmatprep.subr.bf16.mxu0 0
      %6073 = vmatpush1.bf16.msra.mxu0 %v6019
      %6074 = vmatprep.subr.bf16.mxu0 0
      %6075 = vmatpush1.bf16.msra.mxu0 %v6017
      %6076 = vmatprep.subr.bf16.mxu0 0
      %6077 = vmatpush1.bf16.msra.mxu0 %v6015
      %6078 = vmatprep.subr.bf16.mxu0 0
      %6079 = vmatpush2.bf16.msra.mxu0 %v6045
      %6080 = vmatprep.subr.bf16.mxu0 0
      %6081 = vmatpush2.bf16.msra.mxu0 %v6043
      %6082 = vmatprep.subr.bf16.mxu0 0
      %6083 = vmatpush2.bf16.msra.mxu0 %v6041
      %6084 = vmatprep.subr.bf16.mxu0 0
      %6085 = vmatpush2.bf16.msra.mxu0 %v6039
      %6086 = vmatprep.subr.bf16.mxu0 0
      %6087 = vmatpush2.bf16.msra.mxu0 %v6037
      %6088 = vmatprep.subr.bf16.mxu0 0
      %6089 = vmatpush2.bf16.msra.mxu0 %v6035
      %6090 = vmatprep.subr.bf16.mxu0 0
      %6091 = vmatpush2.bf16.msra.mxu0 %v6033
      %6092 = vmatprep.subr.bf16.mxu0 0
      %6093 = vmatpush2.bf16.msra.mxu0 %v6031
      %6094 = vmatprep.mubr.bf16.mxu0 %v5983
      %6095 = vmatmul.mubr.bf16.gmra.mxu0 %v5982
      %v6096 = vpop.f32.mrf.mxu0
      %v6097 = vadd.f32 0.0, %v6096
      %v6098 = vpop.f32.mrf.mxu0
      %v6099 = vpop.f32.mrf.mxu0
      %v6100 = vadd.f32 0.0, %v6099
      %v6101 = vpop.f32.mrf.mxu0
      %6102 = vmatprep.mubr.bf16.mxu0 %v5985
      %6103 = vmatmul.mubr.bf16.gmra.mxu0 %v5984
      %v6104 = vpop.f32.mrf.mxu0
      %v6105 = vadd.f32 0.0, %v6104
      %v6106 = vpop.f32.mrf.mxu0
      %v6107 = vpop.f32.mrf.mxu0
      %v6108 = vadd.f32 0.0, %v6107
      %v6109 = vpop.f32.mrf.mxu0
      %6110 = vmatprep.mubr.bf16.mxu0 %v5987
      %6111 = vmatmul.mubr.bf16.gmra.mxu0 %v5986
      %v6112 = vpop.f32.mrf.mxu0
      %v6113 = vadd.f32 0.0, %v6112
      %v6114 = vpop.f32.mrf.mxu0
      %v6115 = vpop.f32.mrf.mxu0
      %v6116 = vadd.f32 0.0, %v6115
      %v6117 = vpop.f32.mrf.mxu0
      %6118 = vmatprep.mubr.bf16.mxu0 %v5989
      %6119 = vmatmul.mubr.bf16.gmra.mxu0 %v5988
      %v6120 = vpop.f32.mrf.mxu0
      %v6121 = vadd.f32 0.0, %v6120
      %v6122 = vpop.f32.mrf.mxu0
      %v6123 = vpop.f32.mrf.mxu0
      %v6124 = vadd.f32 0.0, %v6123
      %v6125 = vpop.f32.mrf.mxu0
      %6126 = vmatprep.mubr.bf16.mxu0 %v5991
      %6127 = vmatmul.mubr.bf16.gmra.mxu0 %v5990
      %v6128 = vpop.f32.mrf.mxu0
      %v6129 = vadd.f32 0.0, %v6128
      %v6130 = vpop.f32.mrf.mxu0
      %v6131 = vpop.f32.mrf.mxu0
      %v6132 = vadd.f32 0.0, %v6131
      %v6133 = vpop.f32.mrf.mxu0
      %6134 = vmatprep.mubr.bf16.mxu0 %v5993
      %6135 = vmatmul.mubr.bf16.gmra.mxu0 %v5992
      %v6136 = vpop.f32.mrf.mxu0
      %v6137 = vadd.f32 0.0, %v6136
      %v6138 = vpop.f32.mrf.mxu0
      %v6139 = vpop.f32.mrf.mxu0
      %v6140 = vadd.f32 0.0, %v6139
      %v6141 = vpop.f32.mrf.mxu0
      %6142 = vmatprep.mubr.bf16.mxu0 %v5995
      %6143 = vmatmul.mubr.bf16.gmra.mxu0 %v5994
      %v6144 = vpop.f32.mrf.mxu0
      %v6145 = vadd.f32 0.0, %v6144
      %v6146 = vpop.f32.mrf.mxu0
      %v6147 = vpop.f32.mrf.mxu0
      %v6148 = vadd.f32 0.0, %v6147
      %v6149 = vpop.f32.mrf.mxu0
      %6150 = vmatprep.mubr.bf16.mxu0 %v5997
      %6151 = vmatmul.mubr.bf16.gmra.mxu0 %v5996
      %v6152 = vpop.f32.mrf.mxu0
      %v6153 = vadd.f32 0.0, %v6152
      %v6154 = vpop.f32.mrf.mxu0
      %v6155 = vpop.f32.mrf.mxu0
      %v6156 = vadd.f32 0.0, %v6155
      %v6157 = vpop.f32.mrf.mxu0
      %6158 = vmatprep.mubr.bf16.mxu0 %v5999
      %6159 = vmatmul.mubr.bf16.gmra.mxu0 %v5998
      %v6160 = vpop.f32.mrf.mxu0
      %v6161 = vadd.f32 0.0, %v6160
      %v6162 = vpop.f32.mrf.mxu0
      %v6163 = vpop.f32.mrf.mxu0
      %v6164 = vadd.f32 0.0, %v6163
      %v6165 = vpop.f32.mrf.mxu0
      %6166 = vmatprep.mubr.bf16.mxu0 %v6001
      %6167 = vmatmul.mubr.bf16.gmra.mxu0 %v6000
      %v6168 = vpop.f32.mrf.mxu0
      %v6169 = vadd.f32 0.0, %v6168
      %v6170 = vpop.f32.mrf.mxu0
      %v6171 = vpop.f32.mrf.mxu0
      %v6172 = vadd.f32 0.0, %v6171
      %v6173 = vpop.f32.mrf.mxu0
      %6174 = vmatprep.mubr.bf16.mxu0 %v6003
      %6175 = vmatmul.mubr.bf16.gmra.mxu0 %v6002
      %v6176 = vpop.f32.mrf.mxu0
      %v6177 = vadd.f32 0.0, %v6176
      %v6178 = vpop.f32.mrf.mxu0
      %v6179 = vpop.f32.mrf.mxu0
      %v6180 = vadd.f32 0.0, %v6179
      %v6181 = vpop.f32.mrf.mxu0
      %6182 = vmatprep.mubr.bf16.mxu0 %v6005
      %6183 = vmatmul.mubr.bf16.gmra.mxu0 %v6004
      %v6184 = vpop.f32.mrf.mxu0
      %v6185 = vadd.f32 0.0, %v6184
      %v6186 = vpop.f32.mrf.mxu0
      %v6187 = vpop.f32.mrf.mxu0
      %v6188 = vadd.f32 0.0, %v6187
      %v6189 = vpop.f32.mrf.mxu0
      %6190 = vmatprep.mubr.bf16.mxu0 %v6007
      %6191 = vmatmul.mubr.bf16.gmra.mxu0 %v6006
      %v6192 = vpop.f32.mrf.mxu0
      %v6193 = vadd.f32 0.0, %v6192
      %v6194 = vpop.f32.mrf.mxu0
      %v6195 = vpop.f32.mrf.mxu0
      %v6196 = vadd.f32 0.0, %v6195
      %v6197 = vpop.f32.mrf.mxu0
      %6198 = vmatprep.mubr.bf16.mxu0 %v6009
      %6199 = vmatmul.mubr.bf16.gmra.mxu0 %v6008
      %v6200 = vpop.f32.mrf.mxu0
      %v6201 = vadd.f32 0.0, %v6200
      %v6202 = vpop.f32.mrf.mxu0
      %v6203 = vpop.f32.mrf.mxu0
      %v6204 = vadd.f32 0.0, %v6203
      %v6205 = vpop.f32.mrf.mxu0
      %6206 = vmatprep.mubr.bf16.mxu0 %v6011
      %6207 = vmatmul.mubr.bf16.gmra.mxu0 %v6010
      %v6208 = vpop.f32.mrf.mxu0
      %v6209 = vadd.f32 0.0, %v6208
      %v6210 = vpop.f32.mrf.mxu0
      %v6211 = vpop.f32.mrf.mxu0
      %v6212 = vadd.f32 0.0, %v6211
      %v6213 = vpop.f32.mrf.mxu0
      %6214 = vmatprep.mubr.bf16.mxu0 %v6013
      %6215 = vmatmul.mubr.bf16.gmra.mxu0 %v6012
      %v6216 = vpop.f32.mrf.mxu0
      %v6217 = vadd.f32 0.0, %v6216
      %v6218 = vpop.f32.mrf.mxu0
      %v6219 = vpop.f32.mrf.mxu0
      %v6220 = vadd.f32 0.0, %v6219
      %v6221 = vpop.f32.mrf.mxu0
      %6222 = vdwg.mxu0
      %v6223 = vpack.c.bf16 %v6100, %v6097
      %v6224 = vpack.c.bf16 %v6108, %v6105
      %v6225 = vpack.c.bf16 %v6116, %v6113
      %v6226 = vpack.c.bf16 %v6124, %v6121
      %v6227 = vpack.c.bf16 %v6132, %v6129
      %v6228 = vpack.c.bf16 %v6140, %v6137
      %v6229 = vpack.c.bf16 %v6148, %v6145
      %v6230 = vpack.c.bf16 %v6156, %v6153
      %v6231 = vpack.c.bf16 %v6164, %v6161
      %v6232 = vpack.c.bf16 %v6172, %v6169
      %v6233 = vpack.c.bf16 %v6180, %v6177
      %v6234 = vpack.c.bf16 %v6188, %v6185
      %v6235 = vpack.c.bf16 %v6196, %v6193
      %v6236 = vpack.c.bf16 %v6204, %v6201
      %v6237 = vpack.c.bf16 %v6212, %v6209
      %v6238 = vpack.c.bf16 %v6220, %v6217
      %v6240 = vsel %vm1941, %v6223, 0
      %v6243 = vsel %vm1941, %v6224, 0
      %v6246 = vsel %vm1941, %v6225, 0
      %v6249 = vsel %vm1941, %v6226, 0
      %v6252 = vsel %vm1941, %v6227, 0
      %v6255 = vsel %vm1941, %v6228, 0
      %v6258 = vsel %vm1941, %v6229, 0
      %v6261 = vsel %vm1941, %v6230, 0
      %v6264 = vsel %vm1941, %v6231, 0
      %v6267 = vsel %vm1941, %v6232, 0
      %v6270 = vsel %vm1941, %v6233, 0
      %v6273 = vsel %vm1941, %v6234, 0
      %v6276 = vsel %vm1941, %v6235, 0
      %v6279 = vsel %vm1941, %v6236, 0
      %v6282 = vsel %vm1941, %v6237, 0
      %v6285 = vsel %vm1941, %v6238, 0
      %6287 = vmatprep.subr.bf16.mxu0 0
      %6288 = vmatpush1.bf16.msra.mxu0 0
      %6289 = vmatprep.subr.bf16.mxu0 0
      %6290 = vmatpush1.bf16.msra.mxu0 0
      %6291 = vmatprep.subr.bf16.mxu0 0
      %6292 = vmatpush1.bf16.msra.mxu0 0
      %6293 = vmatprep.subr.bf16.mxu0 0
      %6294 = vmatpush1.bf16.msra.mxu0 0
      %6295 = vmatprep.subr.bf16.mxu0 0
      %6296 = vmatpush1.bf16.msra.mxu0 0
      %6297 = vmatprep.subr.bf16.mxu0 0
      %6298 = vmatpush1.bf16.msra.mxu0 0
      %6299 = vmatprep.subr.bf16.mxu0 0
      %6300 = vmatpush1.bf16.msra.mxu0 %v456
      %6301 = vmatprep.subr.bf16.mxu0 0
      %6302 = vmatpush1.bf16.msra.mxu0 %v455
      %6303 = vmatprep.subr.bf16.mxu0 0
      %6304 = vmatpush2.bf16.msra.mxu0 0
      %6305 = vmatprep.subr.bf16.mxu0 0
      %6306 = vmatpush2.bf16.msra.mxu0 0
      %6307 = vmatprep.subr.bf16.mxu0 0
      %6308 = vmatpush2.bf16.msra.mxu0 0
      %6309 = vmatprep.subr.bf16.mxu0 0
      %6310 = vmatpush2.bf16.msra.mxu0 0
      %6311 = vmatprep.subr.bf16.mxu0 0
      %6312 = vmatpush2.bf16.msra.mxu0 0
      %6313 = vmatprep.subr.bf16.mxu0 0
      %6314 = vmatpush2.bf16.msra.mxu0 0
      %6315 = vmatprep.subr.bf16.mxu0 0
      %6316 = vmatpush2.bf16.msra.mxu0 0
      %6317 = vmatprep.subr.bf16.mxu0 0
      %6318 = vmatpush2.bf16.msra.mxu0 0
      %6319 = vmatprep.mubr.bf16.mxu0 0
      %6320 = vmatmul.mubr.bf16.gmra.mxu0 %v6240
      %v6321 = vpop.f32.mrf.mxu0
      %v6322 = vadd.f32 0.0, %v6321
      %v6323 = vpop.f32.mrf.mxu0
      %v6324 = vpop.f32.mrf.mxu0
      %v6325 = vadd.f32 0.0, %v6324
      %v6326 = vpop.f32.mrf.mxu0
      %6327 = vmatprep.mubr.bf16.mxu0 0
      %6328 = vmatmul.mubr.bf16.gmra.mxu0 %v6243
      %v6329 = vpop.f32.mrf.mxu0
      %v6330 = vadd.f32 0.0, %v6329
      %v6331 = vpop.f32.mrf.mxu0
      %v6332 = vpop.f32.mrf.mxu0
      %v6333 = vadd.f32 0.0, %v6332
      %v6334 = vpop.f32.mrf.mxu0
      %6335 = vmatprep.mubr.bf16.mxu0 0
      %6336 = vmatmul.mubr.bf16.gmra.mxu0 %v6246
      %v6337 = vpop.f32.mrf.mxu0
      %v6338 = vadd.f32 0.0, %v6337
      %v6339 = vpop.f32.mrf.mxu0
      %v6340 = vpop.f32.mrf.mxu0
      %v6341 = vadd.f32 0.0, %v6340
      %v6342 = vpop.f32.mrf.mxu0
      %6343 = vmatprep.mubr.bf16.mxu0 0
      %6344 = vmatmul.mubr.bf16.gmra.mxu0 %v6249
      %v6345 = vpop.f32.mrf.mxu0
      %v6346 = vadd.f32 0.0, %v6345
      %v6347 = vpop.f32.mrf.mxu0
      %v6348 = vpop.f32.mrf.mxu0
      %v6349 = vadd.f32 0.0, %v6348
      %v6350 = vpop.f32.mrf.mxu0
      %6351 = vmatprep.mubr.bf16.mxu0 0
      %6352 = vmatmul.mubr.bf16.gmra.mxu0 %v6252
      %v6353 = vpop.f32.mrf.mxu0
      %v6354 = vadd.f32 0.0, %v6353
      %v6355 = vpop.f32.mrf.mxu0
      %v6356 = vpop.f32.mrf.mxu0
      %v6357 = vadd.f32 0.0, %v6356
      %v6358 = vpop.f32.mrf.mxu0
      %6359 = vmatprep.mubr.bf16.mxu0 0
      %6360 = vmatmul.mubr.bf16.gmra.mxu0 %v6255
      %v6361 = vpop.f32.mrf.mxu0
      %v6362 = vadd.f32 0.0, %v6361
      %v6363 = vpop.f32.mrf.mxu0
      %v6364 = vpop.f32.mrf.mxu0
      %v6365 = vadd.f32 0.0, %v6364
      %v6366 = vpop.f32.mrf.mxu0
      %6367 = vmatprep.mubr.bf16.mxu0 0
      %6368 = vmatmul.mubr.bf16.gmra.mxu0 %v6258
      %v6369 = vpop.f32.mrf.mxu0
      %v6370 = vadd.f32 0.0, %v6369
      %v6371 = vpop.f32.mrf.mxu0
      %v6372 = vpop.f32.mrf.mxu0
      %v6373 = vadd.f32 0.0, %v6372
      %v6374 = vpop.f32.mrf.mxu0
      %6375 = vmatprep.mubr.bf16.mxu0 0
      %6376 = vmatmul.mubr.bf16.gmra.mxu0 %v6261
      %v6377 = vpop.f32.mrf.mxu0
      %v6378 = vadd.f32 0.0, %v6377
      %v6379 = vpop.f32.mrf.mxu0
      %v6380 = vpop.f32.mrf.mxu0
      %v6381 = vadd.f32 0.0, %v6380
      %v6382 = vpop.f32.mrf.mxu0
      %6383 = vmatprep.mubr.bf16.mxu0 0
      %6384 = vmatmul.mubr.bf16.gmra.mxu0 %v6264
      %v6385 = vpop.f32.mrf.mxu0
      %v6386 = vadd.f32 0.0, %v6385
      %v6387 = vpop.f32.mrf.mxu0
      %v6388 = vpop.f32.mrf.mxu0
      %v6389 = vadd.f32 0.0, %v6388
      %v6390 = vpop.f32.mrf.mxu0
      %6391 = vmatprep.mubr.bf16.mxu0 0
      %6392 = vmatmul.mubr.bf16.gmra.mxu0 %v6267
      %v6393 = vpop.f32.mrf.mxu0
      %v6394 = vadd.f32 0.0, %v6393
      %v6395 = vpop.f32.mrf.mxu0
      %v6396 = vpop.f32.mrf.mxu0
      %v6397 = vadd.f32 0.0, %v6396
      %v6398 = vpop.f32.mrf.mxu0
      %6399 = vmatprep.mubr.bf16.mxu0 0
      %6400 = vmatmul.mubr.bf16.gmra.mxu0 %v6270
      %v6401 = vpop.f32.mrf.mxu0
      %v6402 = vadd.f32 0.0, %v6401
      %v6403 = vpop.f32.mrf.mxu0
      %v6404 = vpop.f32.mrf.mxu0
      %v6405 = vadd.f32 0.0, %v6404
      %v6406 = vpop.f32.mrf.mxu0
      %6407 = vmatprep.mubr.bf16.mxu0 0
      %6408 = vmatmul.mubr.bf16.gmra.mxu0 %v6273
      %v6409 = vpop.f32.mrf.mxu0
      %v6410 = vadd.f32 0.0, %v6409
      %v6411 = vpop.f32.mrf.mxu0
      %v6412 = vpop.f32.mrf.mxu0
      %v6413 = vadd.f32 0.0, %v6412
      %v6414 = vpop.f32.mrf.mxu0
      %6415 = vmatprep.mubr.bf16.mxu0 0
      %6416 = vmatmul.mubr.bf16.gmra.mxu0 %v6276
      %v6417 = vpop.f32.mrf.mxu0
      %v6418 = vadd.f32 0.0, %v6417
      %v6419 = vpop.f32.mrf.mxu0
      %v6420 = vpop.f32.mrf.mxu0
      %v6421 = vadd.f32 0.0, %v6420
      %v6422 = vpop.f32.mrf.mxu0
      %6423 = vmatprep.mubr.bf16.mxu0 0
      %6424 = vmatmul.mubr.bf16.gmra.mxu0 %v6279
      %v6425 = vpop.f32.mrf.mxu0
      %v6426 = vadd.f32 0.0, %v6425
      %v6427 = vpop.f32.mrf.mxu0
      %v6428 = vpop.f32.mrf.mxu0
      %v6429 = vadd.f32 0.0, %v6428
      %v6430 = vpop.f32.mrf.mxu0
      %6431 = vmatprep.mubr.bf16.mxu0 0
      %6432 = vmatmul.mubr.bf16.gmra.mxu0 %v6282
      %v6433 = vpop.f32.mrf.mxu0
      %v6434 = vadd.f32 0.0, %v6433
      %v6435 = vpop.f32.mrf.mxu0
      %v6436 = vpop.f32.mrf.mxu0
      %v6437 = vadd.f32 0.0, %v6436
      %v6438 = vpop.f32.mrf.mxu0
      %6439 = vmatprep.mubr.bf16.mxu0 0
      %6440 = vmatmul.mubr.bf16.gmra.mxu0 %v6285
      %v6441 = vpop.f32.mrf.mxu0
      %v6442 = vadd.f32 0.0, %v6441
      %v6443 = vpop.f32.mrf.mxu0
      %v6444 = vpop.f32.mrf.mxu0
      %v6445 = vadd.f32 0.0, %v6444
      %v6446 = vpop.f32.mrf.mxu0
      %6447 = vdwg.mxu0
      %v6448 = vadd.f32 %v5053, %v6322
      %v6449 = vadd.f32 %v5054, %v6325
      %v6450 = vadd.f32 %v5055, %v6330
      %v6451 = vadd.f32 %v5056, %v6333
      %v6452 = vadd.f32 %v5057, %v6338
      %v6453 = vadd.f32 %v5058, %v6341
      %v6454 = vadd.f32 %v5059, %v6346
      %v6455 = vadd.f32 %v5060, %v6349
      %v6456 = vadd.f32 %v5061, %v6354
      %v6457 = vadd.f32 %v5062, %v6357
      %v6458 = vadd.f32 %v5063, %v6362
      %v6459 = vadd.f32 %v5064, %v6365
      %v6460 = vadd.f32 %v5065, %v6370
      %v6461 = vadd.f32 %v5066, %v6373
      %v6462 = vadd.f32 %v5067, %v6378
      %v6463 = vadd.f32 %v5068, %v6381
      %v6464 = vadd.f32 %v5069, %v6386
      %v6465 = vadd.f32 %v5070, %v6389
      %v6466 = vadd.f32 %v5071, %v6394
      %v6467 = vadd.f32 %v5072, %v6397
      %v6468 = vadd.f32 %v5073, %v6402
      %v6469 = vadd.f32 %v5074, %v6405
      %v6470 = vadd.f32 %v5075, %v6410
      %v6471 = vadd.f32 %v5076, %v6413
      %v6472 = vadd.f32 %v5077, %v6418
      %v6473 = vadd.f32 %v5078, %v6421
      %v6474 = vadd.f32 %v5079, %v6426
      %v6475 = vadd.f32 %v5080, %v6429
      %v6476 = vadd.f32 %v5081, %v6434
      %v6477 = vadd.f32 %v5082, %v6437
      %v6478 = vadd.f32 %v5083, %v6442
      %v6479 = vadd.f32 %v5084, %v6445
      %6480 = vst [vmem:[%s264] sm:$0xff] %v6448
      %6481 = vst [vmem:[%s264 + $0x8] sm:$0xff] %v6449
      %6482 = vst [vmem:[%s264 + $0x10] sm:$0xff] %v6450
      %6483 = vst [vmem:[%s264 + $0x18] sm:$0xff] %v6451
      %6484 = vst [vmem:[%s264 + $0x20] sm:$0xff] %v6452
      %6485 = vst [vmem:[%s264 + $0x28] sm:$0xff] %v6453
      %6486 = vst [vmem:[%s264 + $0x30] sm:$0xff] %v6454
      %6487 = vst [vmem:[%s264 + $0x38] sm:$0xff] %v6455
      %6488 = vst [vmem:[%s264 + $0x40] sm:$0xff] %v6456
      %6489 = vst [vmem:[%s264 + $0x48] sm:$0xff] %v6457
      %6490 = vst [vmem:[%s264 + $0x50] sm:$0xff] %v6458
      %6491 = vst [vmem:[%s264 + $0x58] sm:$0xff] %v6459
      %6492 = vst [vmem:[%s264 + $0x60] sm:$0xff] %v6460
      %6493 = vst [vmem:[%s264 + $0x68] sm:$0xff] %v6461
      %6494 = vst [vmem:[%s264 + $0x70] sm:$0xff] %v6462
      %6495 = vst [vmem:[%s264 + $0x78] sm:$0xff] %v6463
      %6496 = vst [vmem:[%s264 + $0x80] sm:$0xff] %v6464
      %6497 = vst [vmem:[%s264 + $0x88] sm:$0xff] %v6465
      %6498 = vst [vmem:[%s264 + $0x90] sm:$0xff] %v6466
      %6499 = vst [vmem:[%s264 + $0x98] sm:$0xff] %v6467
      %6500 = vst [vmem:[%s264 + $0xa0] sm:$0xff] %v6468
      %6501 = vst [vmem:[%s264 + $0xa8] sm:$0xff] %v6469
      %6502 = vst [vmem:[%s264 + $0xb0] sm:$0xff] %v6470
      %6503 = vst [vmem:[%s264 + $0xb8] sm:$0xff] %v6471
      %6504 = vst [vmem:[%s264 + $0xc0] sm:$0xff] %v6472
      %6505 = vst [vmem:[%s264 + $0xc8] sm:$0xff] %v6473
      %6506 = vst [vmem:[%s264 + $0xd0] sm:$0xff] %v6474
      %6507 = vst [vmem:[%s264 + $0xd8] sm:$0xff] %v6475
      %6508 = vst [vmem:[%s264 + $0xe0] sm:$0xff] %v6476
      %6509 = vst [vmem:[%s264 + $0xe8] sm:$0xff] %v6477
      %6510 = vst [vmem:[%s264 + $0xf0] sm:$0xff] %v6478
      %6511 = vst [vmem:[%s264 + $0xf8] sm:$0xff] %v6479
      %p6512 = scmp.lt.s32.totalorder %s16, 1
      %s6513 = scalar_select %p6512, %s16, 1
      %s6514 = smul.addr %s6513, 32
      %s6515 = smul.addr %s6514, 8
      %s6516 = scalar_lea.vmem %s5, %s6515
      // Predicated region
      $region41: #{psablock_forward.6} parent=39 // pred_check
        %p6517 = pneg %p154
      $region42: #{psablock_forward.6} parent=39 // pred_check_branch
        %6519 = sbr.rel (%p6517) target = $region44
      $region43: #{psablock_forward.6} parent=39 // pred_region
        _
      $region44: #{psablock_forward.6} parent=39 // pred_fallthru
        _
    $region40: #{psablock_forward.6} parent=5 // pred_fallthru
      _
    %p6520 = scmp.le.s32.totalorder 2, %s11
    // Predicated region
    $region45: #{psablock_forward.6} parent=5 // pred_check
      %p6521 = pneg %p6520
    $region46: #{psablock_forward.6} parent=5 // pred_check_branch
      %6523 = sbr.rel (%p6521) target = $region48
    $region47: #{psablock_forward.6} parent=5 // pred_region
      %s6524 = ssub.s32 %s11, 2
      // Predicated region
      $region49: #{psablock_forward.6} parent=47 // pred_check
        %p6525 = pneg %p160
      $region50: #{psablock_forward.6} parent=47 // pred_check_branch
        %6527 = sbr.rel (%p6525) target = $region52
      $region51: #{psablock_forward.6} parent=47 // pred_region
        %p6528 = scmp.lt.s32.totalorder %s17, 1
        %s6529 = scalar_select %p6528, %s17, 1
        %s6530 = smul.addr %s6529, 32
        %s6531 = smul.addr %s6530, 8
        %s6532 = scalar_lea.vmem %s5, %s6531
      $region52: #{psablock_forward.6} parent=47 // pred_fallthru
        _
    $region48: #{psablock_forward.6} parent=5 // pred_fallthru
      _
  $region6: #{psablock_forward.6} parent=0 // loop_footer
    %s15 = sadd.s32 1, %s11
  $region7: #{psablock_forward.6} parent=0 // loop_footer_branch
    %10 = sbr.rel target = $region3
  $region8: #{psablock_forward.6} parent=0 // loop_exit
    _

</llo_original>
